<compile_context>
chip_gen: v5e
topology: v5e:2x2
jax: 0.10.0
libtpu: 0.0.40
codegen_flags: <defaults>
</compile_context>

<pallas_src>
import jax
import jax.numpy as jnp
from jax.experimental import pallas as pl
from jax.experimental.pallas import tpu as pltpu

EPS = 1e-5                 # nn.BatchNorm2d default eps
LANES = 128                # lane width / channel padding target


def _pick_vmem_limit():
    # ~half of physical VMEM: 64 MiB on v5e/v6e (128 MiB), 32 MiB on v7x (64 MiB).
    try:
        cap = int(pltpu.get_tpu_info().vmem_capacity_bytes)
        return max(16 * 1024 * 1024, min(cap // 2, 64 * 1024 * 1024))
    except Exception:
        return 32 * 1024 * 1024


VMEM_LIMIT = _pick_vmem_limit()


# ---------------------------------------------------------------------------
# Kernel A: conv3x3 + bias, emit unpadded activation (bf16) + BN partial stats
# ---------------------------------------------------------------------------
def _conv_bias_stats_kernel(x_ref, w_ref, b_ref, y1_ref, stats_ref):
    hp2, wp2, cp = x_ref.shape[1], x_ref.shape[2], x_ref.shape[3]
    h, w = hp2 - 2, wp2 - 2

    # accumulator seeded with the broadcast bias; 9 uninterrupted MXU dots
    acc = jnp.broadcast_to(b_ref[...], (h * w, cp))          # f32
    for t in range(9):                                        # static unroll
        dy, dx = divmod(t, 3)
        slab = x_ref[0, dy:dy + h, dx:dx + w, :].reshape(h * w, cp)   # bf16
        acc = acc + jnp.dot(slab, w_ref[t], preferred_element_type=jnp.float32)

    # single-pass BN partial statistics for this image, one store
    s0 = jnp.sum(acc, axis=0, keepdims=True)
    s1 = jnp.sum(acc * acc, axis=0, keepdims=True)
    stats_ref[0] = jnp.concatenate([s0, s1], axis=0)

    y1_ref[0] = acc.astype(y1_ref.dtype).reshape(h, w, cp)   # lane-dense bf16


# ---------------------------------------------------------------------------
# Kernel B: bn1 + relu fused with conv3x3 + bias, + BN partial stats
# ---------------------------------------------------------------------------
def _bn_relu_conv_bias_stats_kernel(y1_ref, w_ref, b_ref, sc_ref, sh_ref,
                                    y2_ref, stats_ref, apad_ref):
    h, w, cp = y1_ref.shape[1], y1_ref.shape[2], y1_ref.shape[3]

    # zero only the 1-pixel halo of the padded-activation scratch (thin stores;
    # conv "same" zero-padding semantics). Interior is overwritten below.
    zrow = jnp.zeros((1, w + 2, cp), apad_ref.dtype)
    zcol = jnp.zeros((h + 2, 1, cp), apad_ref.dtype)
    apad_ref[0:1, :, :] = zrow
    apad_ref[h + 1:h + 2, :, :] = zrow
    apad_ref[:, 0:1, :] = zcol
    apad_ref[:, w + 1:w + 2, :] = zcol

    # bn1 + relu in f32 (bf16 * f32 promotes), single bf16 cast into scratch
    sc = sc_ref[...].reshape(1, 1, cp)
    sh = sh_ref[...].reshape(1, 1, cp)
    a = jnp.maximum(y1_ref[0] * sc + sh, 0.0)                 # (h, w, cp) f32
    apad_ref[1:h + 1, 1:w + 1, :] = a.astype(apad_ref.dtype)

    acc = jnp.broadcast_to(b_ref[...], (h * w, cp))           # f32
    for t in range(9):
        dy, dx = divmod(t, 3)
        slab = apad_ref[dy:dy + h, dx:dx + w, :].reshape(h * w, cp)   # bf16
        acc = acc + jnp.dot(slab, w_ref[t], preferred_element_type=jnp.float32)

    s0 = jnp.sum(acc, axis=0, keepdims=True)
    s1 = jnp.sum(acc * acc, axis=0, keepdims=True)
    stats_ref[0] = jnp.concatenate([s0, s1], axis=0)
    y2_ref[0] = acc.astype(y2_ref.dtype)                      # (h*w, cp) bf16


# ---------------------------------------------------------------------------
# Kernel C: bn2 scale/shift + residual add + relu (pure HBM-bound, all bf16 io)
# ---------------------------------------------------------------------------
def _bn_add_relu_kernel(y2_ref, res_ref, sc_ref, sh_ref, out_ref):
    v = jnp.maximum(y2_ref[0] * sc_ref[...] + sh_ref[...] + res_ref[0], 0.0)
    out_ref[0] = v.astype(out_ref.dtype)


# ---------------------------------------------------------------------------
# Parameter prep / BN fold helpers (tiny, wrapper-side)
# ---------------------------------------------------------------------------
def _weight_to_taps(w_oihw, cp):
    """(Cout, Cin, 3, 3) -> (9, Cp, Cp) bf16, tap-major, zero padded channels."""
    cout, cin, kh, kw = w_oihw.shape
    w = jnp.transpose(w_oihw, (2, 3, 1, 0)).reshape(kh * kw, cin, cout)
    w = jnp.pad(w, ((0, 0), (0, cp - cin), (0, cp - cout)))
    return w.astype(jnp.bfloat16)


def _pad_vec(v, cp):
    return jnp.pad(v.astype(jnp.float32), (0, cp - v.shape[0])).reshape(1, cp)


def _bn_scale_shift(stats, gamma, beta, m):
    """Fold per-image batch-stat partials into per-channel scale/shift (f32)."""
    s = jnp.sum(stats, axis=0)                                # (2, Cp)
    mean = s[0] / m
    # NOTE: single-pass E[x^2]-E[x]^2 (clamped); fine for unit-scale inputs.
    var = jnp.maximum(s[1] / m - mean * mean, 0.0)
    scale = gamma[0] * jax.lax.rsqrt(var + EPS)               # padded ch: gamma=0
    shift = beta[0] - mean * scale
    return scale.reshape(1, -1), shift.reshape(1, -1)


# ---------------------------------------------------------------------------
# ResidualBlock forward (stride=1, downsample=None => Cin == Cout)
# ---------------------------------------------------------------------------
@jax.jit
def residual_block(x_nchw, w1, b1, g1, be1, w2, b2, g2, be2):
    n, c, h, w = x_nchw.shape
    cp = max(((c + LANES - 1) // LANES) * LANES, LANES)
    hw = h * w
    m = n * hw

    # layout prep (tiny): NCHW -> NHWC, channel pad to 128 lanes (bf16),
    # 1-pixel spatial zero halo for the first conv.
    x_nhwc = jnp.transpose(x_nchw, (0, 2, 3, 1))
    xb = jnp.pad(x_nhwc, ((0, 0), (0, 0), (0, 0), (0, cp - c))).astype(jnp.bfloat16)
    x_sp = jnp.pad(xb, ((0, 0), (1, 1), (1, 1), (0, 0)))      # (n, h+2, w+2, cp)
    x_res = xb.reshape(n, hw, cp)                             # bf16 residual

    w1m, w2m = _weight_to_taps(w1, cp), _weight_to_taps(w2, cp)
    b1p, b2p = _pad_vec(b1, cp), _pad_vec(b2, cp)
    g1p, g2p = _pad_vec(g1, cp), _pad_vec(g2, cp)
    be1p, be2p = _pad_vec(be1, cp), _pad_vec(be2, cp)

    cparams = pltpu.CompilerParams(dimension_semantics=("parallel",),
                                   vmem_limit_bytes=VMEM_LIMIT)
    vec_spec = pl.BlockSpec((1, cp), lambda i: (0, 0))
    tap_spec = pl.BlockSpec((9, cp, cp), lambda i: (0, 0, 0))
    xpad_spec = pl.BlockSpec((1, h + 2, w + 2, cp), lambda i: (i, 0, 0, 0))
    img_spec = pl.BlockSpec((1, h, w, cp), lambda i: (i, 0, 0, 0))
    flat_spec = pl.BlockSpec((1, hw, cp), lambda i: (i, 0, 0))
    stats_spec = pl.BlockSpec((1, 2, cp), lambda i: (i, 0, 0))

    # ---- kernel A: conv1 + bias, partial BN1 stats -------------------------
    y1, stats1 = pl.pallas_call(
        _conv_bias_stats_kernel,
        out_shape=(jax.ShapeDtypeStruct((n, h, w, cp), jnp.bfloat16),
                   jax.ShapeDtypeStruct((n, 2, cp), jnp.float32)),
        grid=(n,),
        in_specs=[xpad_spec, tap_spec, vec_spec],
        out_specs=(img_spec, stats_spec),
        compiler_params=cparams,
    )(x_sp, w1m, b1p)
    scale1, shift1 = _bn_scale_shift(stats1, g1p, be1p, m)

    # ---- kernel B: bn1 + relu fused with conv2 + bias, partial BN2 stats ---
    y2, stats2 = pl.pallas_call(
        _bn_relu_conv_bias_stats_kernel,
        out_shape=(jax.ShapeDtypeStruct((n, hw, cp), jnp.bfloat16),
                   jax.ShapeDtypeStruct((n, 2, cp), jnp.float32)),
        grid=(n,),
        in_specs=[img_spec, tap_spec, vec_spec, vec_spec, vec_spec],
        out_specs=(flat_spec, stats_spec),
        scratch_shapes=[pltpu.VMEM((h + 2, w + 2, cp), jnp.bfloat16)],
        compiler_params=cparams,
    )(y1, w2m, b2p, scale1, shift1)
    scale2, shift2 = _bn_scale_shift(stats2, g2p, be2p, m)

    # ---- kernel C: bn2 + residual add + relu -------------------------------
    out = pl.pallas_call(
        _bn_add_relu_kernel,
        out_shape=jax.ShapeDtypeStruct((n, hw, cp), jnp.bfloat16),
        grid=(n,),
        in_specs=[flat_spec, flat_spec, vec_spec, vec_spec],
        out_specs=flat_spec,
        compiler_params=cparams,
    )(y2, x_res, scale2, shift2)

    # cheap epilogue: slice real channels from bf16, cast, NCHW
    out = out.reshape(n, h, w, cp)[..., :c].astype(jnp.float32)
    return jnp.transpose(out, (0, 3, 1, 2))


# ---------------------------------------------------------------------------
# Pure-JAX f32 reference (training-mode BatchNorm, matching the PyTorch module)
# ---------------------------------------------------------------------------
def _ref_forward(x, w1, b1, g1, be1, w2, b2, g2, be2):
    def conv(xx, ww, bb):
        y = jax.lax.conv_general_dilated(
            xx, ww, (1, 1), ((1, 1), (1, 1)),
            dimension_numbers=("NCHW", "OIHW", "NCHW"))
        return y + bb[None, :, None, None]

    def bn(xx, gg, bb):
        mean = xx.mean(axis=(0, 2, 3), keepdims=True)
        var = xx.var(axis=(0, 2, 3), keepdims=True)
        return (xx - mean) / jnp.sqrt(var + EPS) * gg[None, :, None, None] \
            + bb[None, :, None, None]

    out = jax.nn.relu(bn(conv(x, w1, b1), g1, be1))
    out = bn(conv(out, w2, b2), g2, be2)
    return jax.nn.relu(out + x)


# ---------------------------------------------------------------------------
if __name__ == "__main__":
    key = jax.random.PRNGKey(0)
    ks = jax.random.split(key, 5)

    N, C, H, W = 2, 4, 16, 16                    # inp_channels == out_channels
    x = jax.random.normal(ks[0], (N, C, H, W), jnp.float32)

    fan_in = C * 3 * 3
    bound = 1.0 / (fan_in ** 0.5)
    w1 = jax.random.uniform(ks[1], (C, C, 3, 3), jnp.float32, -bound, bound)
    b1 = jax.random.uniform(ks[2], (C,), jnp.float32, -bound, bound)
    w2 = jax.random.uniform(ks[3], (C, C, 3, 3), jnp.float32, -bound, bound)
    b2 = jax.random.uniform(ks[4], (C,), jnp.float32, -bound, bound)
    g1 = jnp.ones((C,), jnp.float32)
    be1 = jnp.zeros((C,), jnp.float32)
    g2 = jnp.ones((C,), jnp.float32)
    be2 = jnp.zeros((C,), jnp.float32)

    out = residual_block(x, w1, b1, g1, be1, w2, b2, g2, be2)
    out = jax.block_until_ready(out)

    ref = _ref_forward(x, w1, b1, g1, be1, w2, b2, g2, be2)
    assert out.shape == (N, C, H, W)
    # bf16 matmul inputs / bf16 intermediates & residual => loose tolerance
    assert jnp.allclose(out, ref, atol=5e-2, rtol=5e-2), "mismatch vs reference"

    print("KERNEL_OK")
</pallas_src>

<mosaic_0001>
module attributes {stable_mosaic.version = 11 : i64} {
  func.func @_conv_bias_stats_kernel(%arg0: i32, %arg1: memref<1x18x18x128xbf16, #tpu.memory_space<vmem>>, %arg2: memref<9x128x128xbf16, #tpu.memory_space<vmem>>, %arg3: memref<1x128xf32, #tpu.memory_space<vmem>>, %arg4: memref<1x16x16x128xbf16, #tpu.memory_space<vmem>>, %arg5: memref<1x2x128xf32, #tpu.memory_space<vmem>>) attributes {dimension_semantics = [#tpu.dimension_semantics<parallel>], iteration_bounds = array<i64: 2>, scalar_prefetch = 0 : i64, scratch_operands = 0 : i64, tpu.core_type = #tpu.core_type<tc>, window_params = [{transform_indices = @transform_0, window_bounds = array<i64: 1, 18, 18, 128>}, {pipeline_mode = #tpu.pipeline_mode<synchronous>, transform_indices = @transform_1, window_bounds = array<i64: 9, 128, 128>}, {pipeline_mode = #tpu.pipeline_mode<synchronous>, transform_indices = @transform_2, window_bounds = array<i64: 1, 128>}, {transform_indices = @transform_3, window_bounds = array<i64: 1, 16, 16, 128>}, {transform_indices = @transform_4, window_bounds = array<i64: 1, 2, 128>}]} {
    %c0 = arith.constant 0 : index
    %c0_0 = arith.constant 0 : index
    %0 = vector.load %arg3[%c0, %c0_0] : memref<1x128xf32, #tpu.memory_space<vmem>>, vector<1x128xf32>
    %1 = vector.shape_cast %0 : vector<1x128xf32> to vector<1x128xf32>
    %2 = vector.broadcast %1 : vector<1x128xf32> to vector<256x128xf32>
    %c0_1 = arith.constant 0 : index
    %c0_2 = arith.constant 0 : index
    %c0_3 = arith.constant 0 : index
    %c0_4 = arith.constant 0 : index
    %3 = vector.load %arg1[%c0_1, %c0_2, %c0_3, %c0_4] : memref<1x18x18x128xbf16, #tpu.memory_space<vmem>>, vector<1x16x16x128xbf16>
    %4 = vector.shape_cast %3 : vector<1x16x16x128xbf16> to vector<16x16x128xbf16>
    %5 = vector.shape_cast %4 : vector<16x16x128xbf16> to vector<256x128xbf16>
    %c0_5 = arith.constant 0 : index
    %c0_6 = arith.constant 0 : index
    %c0_7 = arith.constant 0 : index
    %6 = vector.load %arg2[%c0_5, %c0_6, %c0_7] : memref<9x128x128xbf16, #tpu.memory_space<vmem>>, vector<1x128x128xbf16>
    %7 = vector.shape_cast %6 : vector<1x128x128xbf16> to vector<128x128xbf16>
    %cst = arith.constant dense<0.000000e+00> : vector<256x128xf32>
    %8 = tpu.matmul %5, %7, %cst {dimension_numbers = #tpu.dot_dimension_numbers<[1], [0], [0], [1], [0, 0, 1, 1], [], []>} : vector<256x128xbf16>, vector<128x128xbf16>, vector<256x128xf32> -> vector<256x128xf32>
    %9 = arith.addf %2, %8 : vector<256x128xf32>
    %c0_8 = arith.constant 0 : index
    %c0_9 = arith.constant 0 : index
    %c1 = arith.constant 1 : index
    %c0_10 = arith.constant 0 : index
    %10 = vector.load %arg1[%c0_8, %c0_9, %c1, %c0_10] : memref<1x18x18x128xbf16, #tpu.memory_space<vmem>>, vector<1x16x16x128xbf16>
    %11 = vector.shape_cast %10 : vector<1x16x16x128xbf16> to vector<16x16x128xbf16>
    %12 = vector.shape_cast %11 : vector<16x16x128xbf16> to vector<256x128xbf16>
    %c1_11 = arith.constant 1 : index
    %c0_12 = arith.constant 0 : index
    %c0_13 = arith.constant 0 : index
    %13 = vector.load %arg2[%c1_11, %c0_12, %c0_13] : memref<9x128x128xbf16, #tpu.memory_space<vmem>>, vector<1x128x128xbf16>
    %14 = vector.shape_cast %13 : vector<1x128x128xbf16> to vector<128x128xbf16>
    %cst_14 = arith.constant dense<0.000000e+00> : vector<256x128xf32>
    %15 = tpu.matmul %12, %14, %cst_14 {dimension_numbers = #tpu.dot_dimension_numbers<[1], [0], [0], [1], [0, 0, 1, 1], [], []>} : vector<256x128xbf16>, vector<128x128xbf16>, vector<256x128xf32> -> vector<256x128xf32>
    %16 = arith.addf %9, %15 : vector<256x128xf32>
    %c0_15 = arith.constant 0 : index
    %c0_16 = arith.constant 0 : index
    %c2 = arith.constant 2 : index
    %c0_17 = arith.constant 0 : index
    %17 = vector.load %arg1[%c0_15, %c0_16, %c2, %c0_17] : memref<1x18x18x128xbf16, #tpu.memory_space<vmem>>, vector<1x16x16x128xbf16>
    %18 = vector.shape_cast %17 : vector<1x16x16x128xbf16> to vector<16x16x128xbf16>
    %19 = vector.shape_cast %18 : vector<16x16x128xbf16> to vector<256x128xbf16>
    %c2_18 = arith.constant 2 : index
    %c0_19 = arith.constant 0 : index
    %c0_20 = arith.constant 0 : index
    %20 = vector.load %arg2[%c2_18, %c0_19, %c0_20] : memref<9x128x128xbf16, #tpu.memory_space<vmem>>, vector<1x128x128xbf16>
    %21 = vector.shape_cast %20 : vector<1x128x128xbf16> to vector<128x128xbf16>
    %cst_21 = arith.constant dense<0.000000e+00> : vector<256x128xf32>
    %22 = tpu.matmul %19, %21, %cst_21 {dimension_numbers = #tpu.dot_dimension_numbers<[1], [0], [0], [1], [0, 0, 1, 1], [], []>} : vector<256x128xbf16>, vector<128x128xbf16>, vector<256x128xf32> -> vector<256x128xf32>
    %23 = arith.addf %16, %22 : vector<256x128xf32>
    %c0_22 = arith.constant 0 : index
    %c1_23 = arith.constant 1 : index
    %c0_24 = arith.constant 0 : index
    %c0_25 = arith.constant 0 : index
    %24 = vector.load %arg1[%c0_22, %c1_23, %c0_24, %c0_25] : memref<1x18x18x128xbf16, #tpu.memory_space<vmem>>, vector<1x16x16x128xbf16>
    %25 = vector.shape_cast %24 : vector<1x16x16x128xbf16> to vector<16x16x128xbf16>
    %26 = vector.shape_cast %25 : vector<16x16x128xbf16> to vector<256x128xbf16>
    %c3 = arith.constant 3 : index
    %c0_26 = arith.constant 0 : index
    %c0_27 = arith.constant 0 : index
    %27 = vector.load %arg2[%c3, %c0_26, %c0_27] : memref<9x128x128xbf16, #tpu.memory_space<vmem>>, vector<1x128x128xbf16>
    %28 = vector.shape_cast %27 : vector<1x128x128xbf16> to vector<128x128xbf16>
    %cst_28 = arith.constant dense<0.000000e+00> : vector<256x128xf32>
    %29 = tpu.matmul %26, %28, %cst_28 {dimension_numbers = #tpu.dot_dimension_numbers<[1], [0], [0], [1], [0, 0, 1, 1], [], []>} : vector<256x128xbf16>, vector<128x128xbf16>, vector<256x128xf32> -> vector<256x128xf32>
    %30 = arith.addf %23, %29 : vector<256x128xf32>
    %c0_29 = arith.constant 0 : index
    %c1_30 = arith.constant 1 : index
    %c1_31 = arith.constant 1 : index
    %c0_32 = arith.constant 0 : index
    %31 = vector.load %arg1[%c0_29, %c1_30, %c1_31, %c0_32] : memref<1x18x18x128xbf16, #tpu.memory_space<vmem>>, vector<1x16x16x128xbf16>
    %32 = vector.shape_cast %31 : vector<1x16x16x128xbf16> to vector<16x16x128xbf16>
    %33 = vector.shape_cast %32 : vector<16x16x128xbf16> to vector<256x128xbf16>
    %c4 = arith.constant 4 : index
    %c0_33 = arith.constant 0 : index
    %c0_34 = arith.constant 0 : index
    %34 = vector.load %arg2[%c4, %c0_33, %c0_34] : memref<9x128x128xbf16, #tpu.memory_space<vmem>>, vector<1x128x128xbf16>
    %35 = vector.shape_cast %34 : vector<1x128x128xbf16> to vector<128x128xbf16>
    %cst_35 = arith.constant dense<0.000000e+00> : vector<256x128xf32>
    %36 = tpu.matmul %33, %35, %cst_35 {dimension_numbers = #tpu.dot_dimension_numbers<[1], [0], [0], [1], [0, 0, 1, 1], [], []>} : vector<256x128xbf16>, vector<128x128xbf16>, vector<256x128xf32> -> vector<256x128xf32>
    %37 = arith.addf %30, %36 : vector<256x128xf32>
    %c0_36 = arith.constant 0 : index
    %c1_37 = arith.constant 1 : index
    %c2_38 = arith.constant 2 : index
    %c0_39 = arith.constant 0 : index
    %38 = vector.load %arg1[%c0_36, %c1_37, %c2_38, %c0_39] : memref<1x18x18x128xbf16, #tpu.memory_space<vmem>>, vector<1x16x16x128xbf16>
    %39 = vector.shape_cast %38 : vector<1x16x16x128xbf16> to vector<16x16x128xbf16>
    %40 = vector.shape_cast %39 : vector<16x16x128xbf16> to vector<256x128xbf16>
    %c5 = arith.constant 5 : index
    %c0_40 = arith.constant 0 : index
    %c0_41 = arith.constant 0 : index
    %41 = vector.load %arg2[%c5, %c0_40, %c0_41] : memref<9x128x128xbf16, #tpu.memory_space<vmem>>, vector<1x128x128xbf16>
    %42 = vector.shape_cast %41 : vector<1x128x128xbf16> to vector<128x128xbf16>
    %cst_42 = arith.constant dense<0.000000e+00> : vector<256x128xf32>
    %43 = tpu.matmul %40, %42, %cst_42 {dimension_numbers = #tpu.dot_dimension_numbers<[1], [0], [0], [1], [0, 0, 1, 1], [], []>} : vector<256x128xbf16>, vector<128x128xbf16>, vector<256x128xf32> -> vector<256x128xf32>
    %44 = arith.addf %37, %43 : vector<256x128xf32>
    %c0_43 = arith.constant 0 : index
    %c2_44 = arith.constant 2 : index
    %c0_45 = arith.constant 0 : index
    %c0_46 = arith.constant 0 : index
    %45 = vector.load %arg1[%c0_43, %c2_44, %c0_45, %c0_46] : memref<1x18x18x128xbf16, #tpu.memory_space<vmem>>, vector<1x16x16x128xbf16>
    %46 = vector.shape_cast %45 : vector<1x16x16x128xbf16> to vector<16x16x128xbf16>
    %47 = vector.shape_cast %46 : vector<16x16x128xbf16> to vector<256x128xbf16>
    %c6 = arith.constant 6 : index
    %c0_47 = arith.constant 0 : index
    %c0_48 = arith.constant 0 : index
    %48 = vector.load %arg2[%c6, %c0_47, %c0_48] : memref<9x128x128xbf16, #tpu.memory_space<vmem>>, vector<1x128x128xbf16>
    %49 = vector.shape_cast %48 : vector<1x128x128xbf16> to vector<128x128xbf16>
    %cst_49 = arith.constant dense<0.000000e+00> : vector<256x128xf32>
    %50 = tpu.matmul %47, %49, %cst_49 {dimension_numbers = #tpu.dot_dimension_numbers<[1], [0], [0], [1], [0, 0, 1, 1], [], []>} : vector<256x128xbf16>, vector<128x128xbf16>, vector<256x128xf32> -> vector<256x128xf32>
    %51 = arith.addf %44, %50 : vector<256x128xf32>
    %c0_50 = arith.constant 0 : index
    %c2_51 = arith.constant 2 : index
    %c1_52 = arith.constant 1 : index
    %c0_53 = arith.constant 0 : index
    %52 = vector.load %arg1[%c0_50, %c2_51, %c1_52, %c0_53] : memref<1x18x18x128xbf16, #tpu.memory_space<vmem>>, vector<1x16x16x128xbf16>
    %53 = vector.shape_cast %52 : vector<1x16x16x128xbf16> to vector<16x16x128xbf16>
    %54 = vector.shape_cast %53 : vector<16x16x128xbf16> to vector<256x128xbf16>
    %c7 = arith.constant 7 : index
    %c0_54 = arith.constant 0 : index
    %c0_55 = arith.constant 0 : index
    %55 = vector.load %arg2[%c7, %c0_54, %c0_55] : memref<9x128x128xbf16, #tpu.memory_space<vmem>>, vector<1x128x128xbf16>
    %56 = vector.shape_cast %55 : vector<1x128x128xbf16> to vector<128x128xbf16>
    %cst_56 = arith.constant dense<0.000000e+00> : vector<256x128xf32>
    %57 = tpu.matmul %54, %56, %cst_56 {dimension_numbers = #tpu.dot_dimension_numbers<[1], [0], [0], [1], [0, 0, 1, 1], [], []>} : vector<256x128xbf16>, vector<128x128xbf16>, vector<256x128xf32> -> vector<256x128xf32>
    %58 = arith.addf %51, %57 : vector<256x128xf32>
    %c0_57 = arith.constant 0 : index
    %c2_58 = arith.constant 2 : index
    %c2_59 = arith.constant 2 : index
    %c0_60 = arith.constant 0 : index
    %59 = vector.load %arg1[%c0_57, %c2_58, %c2_59, %c0_60] : memref<1x18x18x128xbf16, #tpu.memory_space<vmem>>, vector<1x16x16x128xbf16>
    %60 = vector.shape_cast %59 : vector<1x16x16x128xbf16> to vector<16x16x128xbf16>
    %61 = vector.shape_cast %60 : vector<16x16x128xbf16> to vector<256x128xbf16>
    %c8 = arith.constant 8 : index
    %c0_61 = arith.constant 0 : index
    %c0_62 = arith.constant 0 : index
    %62 = vector.load %arg2[%c8, %c0_61, %c0_62] : memref<9x128x128xbf16, #tpu.memory_space<vmem>>, vector<1x128x128xbf16>
    %63 = vector.shape_cast %62 : vector<1x128x128xbf16> to vector<128x128xbf16>
    %cst_63 = arith.constant dense<0.000000e+00> : vector<256x128xf32>
    %64 = tpu.matmul %61, %63, %cst_63 {dimension_numbers = #tpu.dot_dimension_numbers<[1], [0], [0], [1], [0, 0, 1, 1], [], []>} : vector<256x128xbf16>, vector<128x128xbf16>, vector<256x128xf32> -> vector<256x128xf32>
    %65 = arith.addf %58, %64 : vector<256x128xf32>
    %cst_64 = arith.constant dense<0.000000e+00> : vector<128xf32>
    %66 = vector.multi_reduction <add>, %65, %cst_64 [0] : vector<256x128xf32> to vector<128xf32>
    %67 = vector.shape_cast %66 : vector<128xf32> to vector<1x128xf32>
    %68 = arith.mulf %65, %65 : vector<256x128xf32>
    %cst_65 = arith.constant dense<0.000000e+00> : vector<128xf32>
    %69 = vector.multi_reduction <add>, %68, %cst_65 [0] : vector<256x128xf32> to vector<128xf32>
    %70 = vector.shape_cast %69 : vector<128xf32> to vector<1x128xf32>
    %71 = tpu.concatenate %67, %70 in 0 : vector<1x128xf32>, vector<1x128xf32> -> vector<2x128xf32>
    %c0_66 = arith.constant 0 : index
    %c0_67 = arith.constant 0 : index
    %c0_68 = arith.constant 0 : index
    %72 = vector.load %arg5[%c0_66, %c0_67, %c0_68] : memref<1x2x128xf32, #tpu.memory_space<vmem>>, vector<1x2x128xf32>
    %73 = vector.shape_cast %72 : vector<1x2x128xf32> to vector<2x128xf32>
    %74 = vector.shape_cast %71 : vector<2x128xf32> to vector<1x2x128xf32>
    tpu.vector_store %arg5[%c0_66, %c0_67, %c0_68], %74 {strides = array<i32>} : memref<1x2x128xf32, #tpu.memory_space<vmem>>, vector<1x2x128xf32>,
    %75 = arith.truncf %65 : vector<256x128xf32> to vector<256x128xbf16>
    %76 = vector.shape_cast %75 : vector<256x128xbf16> to vector<16x16x128xbf16>
    %c0_69 = arith.constant 0 : index
    %c0_70 = arith.constant 0 : index
    %c0_71 = arith.constant 0 : index
    %c0_72 = arith.constant 0 : index
    %77 = vector.load %arg4[%c0_69, %c0_70, %c0_71, %c0_72] : memref<1x16x16x128xbf16, #tpu.memory_space<vmem>>, vector<1x16x16x128xbf16>
    %78 = vector.shape_cast %77 : vector<1x16x16x128xbf16> to vector<16x16x128xbf16>
    %79 = vector.shape_cast %76 : vector<16x16x128xbf16> to vector<1x16x16x128xbf16>
    tpu.vector_store %arg4[%c0_69, %c0_70, %c0_71, %c0_72], %79 {strides = array<i32>} : memref<1x16x16x128xbf16, #tpu.memory_space<vmem>>, vector<1x16x16x128xbf16>,
    return
  }
  func.func @transform_0(%arg0: i32) -> (i32, i32, i32, i32) {
    %c0_i32 = arith.constant 0 : i32
    %c0_i32_0 = arith.constant 0 : i32
    %c0_i32_1 = arith.constant 0 : i32
    %c0_i32_2 = arith.constant 0 : i32
    return %arg0, %c0_i32, %c0_i32_0, %c0_i32_1 : i32, i32, i32, i32
  }
  func.func @transform_1(%arg0: i32) -> (i32, i32, i32) {
    %c0_i32 = arith.constant 0 : i32
    %c0_i32_0 = arith.constant 0 : i32
    %c0_i32_1 = arith.constant 0 : i32
    %c0_i32_2 = arith.constant 0 : i32
    return %c0_i32, %c0_i32_0, %c0_i32_1 : i32, i32, i32
  }
  func.func @transform_2(%arg0: i32) -> (i32, i32) {
    %c0_i32 = arith.constant 0 : i32
    %c0_i32_0 = arith.constant 0 : i32
    %c0_i32_1 = arith.constant 0 : i32
    return %c0_i32, %c0_i32_0 : i32, i32
  }
  func.func @transform_3(%arg0: i32) -> (i32, i32, i32, i32) {
    %c0_i32 = arith.constant 0 : i32
    %c0_i32_0 = arith.constant 0 : i32
    %c0_i32_1 = arith.constant 0 : i32
    %c0_i32_2 = arith.constant 0 : i32
    return %arg0, %c0_i32, %c0_i32_0, %c0_i32_1 : i32, i32, i32, i32
  }
  func.func @transform_4(%arg0: i32) -> (i32, i32, i32) {
    %c0_i32 = arith.constant 0 : i32
    %c0_i32_0 = arith.constant 0 : i32
    %c0_i32_1 = arith.constant 0 : i32
    return %arg0, %c0_i32, %c0_i32_0 : i32, i32, i32
  }
}

module attributes {stable_mosaic.version = 11 : i64} {
  func.func @_bn_add_relu_kernel(%arg0: i32, %arg1: memref<1x256x128xbf16, #tpu.memory_space<vmem>>, %arg2: memref<1x256x128xbf16, #tpu.memory_space<vmem>>, %arg3: memref<1x128xf32, #tpu.memory_space<vmem>>, %arg4: memref<1x128xf32, #tpu.memory_space<vmem>>, %arg5: memref<1x256x128xbf16, #tpu.memory_space<vmem>>) attributes {dimension_semantics = [#tpu.dimension_semantics<parallel>], iteration_bounds = array<i64: 2>, scalar_prefetch = 0 : i64, scratch_operands = 0 : i64, tpu.core_type = #tpu.core_type<tc>, window_params = [{transform_indices = @transform_0, window_bounds = array<i64: 1, 256, 128>}, {transform_indices = @transform_1, window_bounds = array<i64: 1, 256, 128>}, {pipeline_mode = #tpu.pipeline_mode<synchronous>, transform_indices = @transform_2, window_bounds = array<i64: 1, 128>}, {pipeline_mode = #tpu.pipeline_mode<synchronous>, transform_indices = @transform_3, window_bounds = array<i64: 1, 128>}, {transform_indices = @transform_4, window_bounds = array<i64: 1, 256, 128>}]} {
    %c0 = arith.constant 0 : index
    %c0_0 = arith.constant 0 : index
    %c0_1 = arith.constant 0 : index
    %0 = vector.load %arg1[%c0, %c0_0, %c0_1] : memref<1x256x128xbf16, #tpu.memory_space<vmem>>, vector<1x256x128xbf16>
    %1 = vector.shape_cast %0 : vector<1x256x128xbf16> to vector<256x128xbf16>
    %c0_2 = arith.constant 0 : index
    %c0_3 = arith.constant 0 : index
    %2 = vector.load %arg3[%c0_2, %c0_3] : memref<1x128xf32, #tpu.memory_space<vmem>>, vector<1x128xf32>
    %3 = arith.extf %1 : vector<256x128xbf16> to vector<256x128xf32>
    %4 = vector.broadcast %2 : vector<1x128xf32> to vector<256x128xf32>
    %5 = arith.mulf %3, %4 : vector<256x128xf32>
    %c0_4 = arith.constant 0 : index
    %c0_5 = arith.constant 0 : index
    %6 = vector.load %arg4[%c0_4, %c0_5] : memref<1x128xf32, #tpu.memory_space<vmem>>, vector<1x128xf32>
    %7 = vector.broadcast %6 : vector<1x128xf32> to vector<256x128xf32>
    %8 = arith.addf %5, %7 : vector<256x128xf32>
    %c0_6 = arith.constant 0 : index
    %c0_7 = arith.constant 0 : index
    %c0_8 = arith.constant 0 : index
    %9 = vector.load %arg2[%c0_6, %c0_7, %c0_8] : memref<1x256x128xbf16, #tpu.memory_space<vmem>>, vector<1x256x128xbf16>
    %10 = vector.shape_cast %9 : vector<1x256x128xbf16> to vector<256x128xbf16>
    %11 = arith.extf %10 : vector<256x128xbf16> to vector<256x128xf32>
    %12 = arith.addf %8, %11 : vector<256x128xf32>
    %cst = arith.constant 0.000000e+00 : f32
    %13 = vector.broadcast %cst : f32 to vector<256x128xf32>
    %14 = arith.maximumf %12, %13 : vector<256x128xf32>
    %15 = arith.truncf %14 : vector<256x128xf32> to vector<256x128xbf16>
    %c0_9 = arith.constant 0 : index
    %c0_10 = arith.constant 0 : index
    %c0_11 = arith.constant 0 : index
    %16 = vector.load %arg5[%c0_9, %c0_10, %c0_11] : memref<1x256x128xbf16, #tpu.memory_space<vmem>>, vector<1x256x128xbf16>
    %17 = vector.shape_cast %16 : vector<1x256x128xbf16> to vector<256x128xbf16>
    %18 = vector.shape_cast %15 : vector<256x128xbf16> to vector<1x256x128xbf16>
    tpu.vector_store %arg5[%c0_9, %c0_10, %c0_11], %18 {strides = array<i32>} : memref<1x256x128xbf16, #tpu.memory_space<vmem>>, vector<1x256x128xbf16>,
    return
  }
  func.func @transform_0(%arg0: i32) -> (i32, i32, i32) {
    %c0_i32 = arith.constant 0 : i32
    %c0_i32_0 = arith.constant 0 : i32
    %c0_i32_1 = arith.constant 0 : i32
    return %arg0, %c0_i32, %c0_i32_0 : i32, i32, i32
  }
  func.func @transform_1(%arg0: i32) -> (i32, i32, i32) {
    %c0_i32 = arith.constant 0 : i32
    %c0_i32_0 = arith.constant 0 : i32
    %c0_i32_1 = arith.constant 0 : i32
    return %arg0, %c0_i32, %c0_i32_0 : i32, i32, i32
  }
  func.func @transform_2(%arg0: i32) -> (i32, i32) {
    %c0_i32 = arith.constant 0 : i32
    %c0_i32_0 = arith.constant 0 : i32
    %c0_i32_1 = arith.constant 0 : i32
    return %c0_i32, %c0_i32_0 : i32, i32
  }
  func.func @transform_3(%arg0: i32) -> (i32, i32) {
    %c0_i32 = arith.constant 0 : i32
    %c0_i32_0 = arith.constant 0 : i32
    %c0_i32_1 = arith.constant 0 : i32
    return %c0_i32, %c0_i32_0 : i32, i32
  }
  func.func @transform_4(%arg0: i32) -> (i32, i32, i32) {
    %c0_i32 = arith.constant 0 : i32
    %c0_i32_0 = arith.constant 0 : i32
    %c0_i32_1 = arith.constant 0 : i32
    return %arg0, %c0_i32, %c0_i32_0 : i32, i32, i32
  }
}

module attributes {stable_mosaic.version = 11 : i64} {
  func.func @_bn_relu_conv_bias_stats_kernel(%arg0: i32, %arg1: memref<1x16x16x128xbf16, #tpu.memory_space<vmem>>, %arg2: memref<9x128x128xbf16, #tpu.memory_space<vmem>>, %arg3: memref<1x128xf32, #tpu.memory_space<vmem>>, %arg4: memref<1x128xf32, #tpu.memory_space<vmem>>, %arg5: memref<1x128xf32, #tpu.memory_space<vmem>>, %arg6: memref<1x256x128xbf16, #tpu.memory_space<vmem>>, %arg7: memref<1x2x128xf32, #tpu.memory_space<vmem>>, %arg8: memref<18x18x128xbf16, #tpu.memory_space<vmem>>) attributes {dimension_semantics = [#tpu.dimension_semantics<parallel>], iteration_bounds = array<i64: 2>, scalar_prefetch = 0 : i64, scratch_operands = 1 : i64, tpu.core_type = #tpu.core_type<tc>, window_params = [{transform_indices = @transform_0, window_bounds = array<i64: 1, 16, 16, 128>}, {pipeline_mode = #tpu.pipeline_mode<synchronous>, transform_indices = @transform_1, window_bounds = array<i64: 9, 128, 128>}, {pipeline_mode = #tpu.pipeline_mode<synchronous>, transform_indices = @transform_2, window_bounds = array<i64: 1, 128>}, {pipeline_mode = #tpu.pipeline_mode<synchronous>, transform_indices = @transform_3, window_bounds = array<i64: 1, 128>}, {pipeline_mode = #tpu.pipeline_mode<synchronous>, transform_indices = @transform_4, window_bounds = array<i64: 1, 128>}, {transform_indices = @transform_5, window_bounds = array<i64: 1, 256, 128>}, {transform_indices = @transform_6, window_bounds = array<i64: 1, 2, 128>}]} {
    %cst = arith.constant 0.000000e+00 : bf16
    %0 = vector.broadcast %cst : bf16 to vector<1x18x128xbf16>
    %cst_0 = arith.constant 0.000000e+00 : bf16
    %1 = vector.broadcast %cst_0 : bf16 to vector<18x1x128xbf16>
    %c0 = arith.constant 0 : index
    %c0_1 = arith.constant 0 : index
    %c0_2 = arith.constant 0 : index
    %2 = vector.load %arg8[%c0, %c0_1, %c0_2] : memref<18x18x128xbf16, #tpu.memory_space<vmem>>, vector<1x18x128xbf16>
    tpu.vector_store %arg8[%c0, %c0_1, %c0_2], %0 {strides = array<i32>} : memref<18x18x128xbf16, #tpu.memory_space<vmem>>, vector<1x18x128xbf16>,
    %c17 = arith.constant 17 : index
    %c0_3 = arith.constant 0 : index
    %c0_4 = arith.constant 0 : index
    %3 = vector.load %arg8[%c17, %c0_3, %c0_4] : memref<18x18x128xbf16, #tpu.memory_space<vmem>>, vector<1x18x128xbf16>
    tpu.vector_store %arg8[%c17, %c0_3, %c0_4], %0 {strides = array<i32>} : memref<18x18x128xbf16, #tpu.memory_space<vmem>>, vector<1x18x128xbf16>,
    %c0_5 = arith.constant 0 : index
    %c0_6 = arith.constant 0 : index
    %c0_7 = arith.constant 0 : index
    %4 = vector.load %arg8[%c0_5, %c0_6, %c0_7] : memref<18x18x128xbf16, #tpu.memory_space<vmem>>, vector<18x1x128xbf16>
    tpu.vector_store %arg8[%c0_5, %c0_6, %c0_7], %1 {strides = array<i32>} : memref<18x18x128xbf16, #tpu.memory_space<vmem>>, vector<18x1x128xbf16>,
    %c0_8 = arith.constant 0 : index
    %c17_9 = arith.constant 17 : index
    %c0_10 = arith.constant 0 : index
    %5 = vector.load %arg8[%c0_8, %c17_9, %c0_10] : memref<18x18x128xbf16, #tpu.memory_space<vmem>>, vector<18x1x128xbf16>
    tpu.vector_store %arg8[%c0_8, %c17_9, %c0_10], %1 {strides = array<i32>} : memref<18x18x128xbf16, #tpu.memory_space<vmem>>, vector<18x1x128xbf16>,
    %c0_11 = arith.constant 0 : index
    %c0_12 = arith.constant 0 : index
    %6 = vector.load %arg4[%c0_11, %c0_12] : memref<1x128xf32, #tpu.memory_space<vmem>>, vector<1x128xf32>
    %7 = vector.shape_cast %6 : vector<1x128xf32> to vector<1x1x128xf32>
    %c0_13 = arith.constant 0 : index
    %c0_14 = arith.constant 0 : index
    %8 = vector.load %arg5[%c0_13, %c0_14] : memref<1x128xf32, #tpu.memory_space<vmem>>, vector<1x128xf32>
    %9 = vector.shape_cast %8 : vector<1x128xf32> to vector<1x1x128xf32>
    %c0_15 = arith.constant 0 : index
    %c0_16 = arith.constant 0 : index
    %c0_17 = arith.constant 0 : index
    %c0_18 = arith.constant 0 : index
    %10 = vector.load %arg1[%c0_15, %c0_16, %c0_17, %c0_18] : memref<1x16x16x128xbf16, #tpu.memory_space<vmem>>, vector<1x16x16x128xbf16>
    %11 = vector.shape_cast %10 : vector<1x16x16x128xbf16> to vector<16x16x128xbf16>
    %12 = arith.extf %11 : vector<16x16x128xbf16> to vector<16x16x128xf32>
    %13 = vector.broadcast %7 : vector<1x1x128xf32> to vector<16x16x128xf32>
    %14 = arith.mulf %12, %13 : vector<16x16x128xf32>
    %15 = vector.broadcast %9 : vector<1x1x128xf32> to vector<16x16x128xf32>
    %16 = arith.addf %14, %15 : vector<16x16x128xf32>
    %cst_19 = arith.constant 0.000000e+00 : f32
    %17 = vector.broadcast %cst_19 : f32 to vector<16x16x128xf32>
    %18 = arith.maximumf %16, %17 : vector<16x16x128xf32>
    %19 = arith.truncf %18 : vector<16x16x128xf32> to vector<16x16x128xbf16>
    %c1 = arith.constant 1 : index
    %c1_20 = arith.constant 1 : index
    %c0_21 = arith.constant 0 : index
    %20 = vector.load %arg8[%c1, %c1_20, %c0_21] : memref<18x18x128xbf16, #tpu.memory_space<vmem>>, vector<16x16x128xbf16>
    tpu.vector_store %arg8[%c1, %c1_20, %c0_21], %19 {strides = array<i32>} : memref<18x18x128xbf16, #tpu.memory_space<vmem>>, vector<16x16x128xbf16>,
    %c0_22 = arith.constant 0 : index
    %c0_23 = arith.constant 0 : index
    %21 = vector.load %arg3[%c0_22, %c0_23] : memref<1x128xf32, #tpu.memory_space<vmem>>, vector<1x128xf32>
    %22 = vector.shape_cast %21 : vector<1x128xf32> to vector<1x128xf32>
    %23 = vector.broadcast %22 : vector<1x128xf32> to vector<256x128xf32>
    %c0_24 = arith.constant 0 : index
    %c0_25 = arith.constant 0 : index
    %c0_26 = arith.constant 0 : index
    %24 = vector.load %arg8[%c0_24, %c0_25, %c0_26] : memref<18x18x128xbf16, #tpu.memory_space<vmem>>, vector<16x16x128xbf16>
    %25 = vector.shape_cast %24 : vector<16x16x128xbf16> to vector<256x128xbf16>
    %c0_27 = arith.constant 0 : index
    %c0_28 = arith.constant 0 : index
    %c0_29 = arith.constant 0 : index
    %26 = vector.load %arg2[%c0_27, %c0_28, %c0_29] : memref<9x128x128xbf16, #tpu.memory_space<vmem>>, vector<1x128x128xbf16>
    %27 = vector.shape_cast %26 : vector<1x128x128xbf16> to vector<128x128xbf16>
    %cst_30 = arith.constant dense<0.000000e+00> : vector<256x128xf32>
    %28 = tpu.matmul %25, %27, %cst_30 {dimension_numbers = #tpu.dot_dimension_numbers<[1], [0], [0], [1], [0, 0, 1, 1], [], []>} : vector<256x128xbf16>, vector<128x128xbf16>, vector<256x128xf32> -> vector<256x128xf32>
    %29 = arith.addf %23, %28 : vector<256x128xf32>
    %c0_31 = arith.constant 0 : index
    %c1_32 = arith.constant 1 : index
    %c0_33 = arith.constant 0 : index
    %30 = vector.load %arg8[%c0_31, %c1_32, %c0_33] : memref<18x18x128xbf16, #tpu.memory_space<vmem>>, vector<16x16x128xbf16>
    %31 = vector.shape_cast %30 : vector<16x16x128xbf16> to vector<256x128xbf16>
    %c1_34 = arith.constant 1 : index
    %c0_35 = arith.constant 0 : index
    %c0_36 = arith.constant 0 : index
    %32 = vector.load %arg2[%c1_34, %c0_35, %c0_36] : memref<9x128x128xbf16, #tpu.memory_space<vmem>>, vector<1x128x128xbf16>
    %33 = vector.shape_cast %32 : vector<1x128x128xbf16> to vector<128x128xbf16>
    %cst_37 = arith.constant dense<0.000000e+00> : vector<256x128xf32>
    %34 = tpu.matmul %31, %33, %cst_37 {dimension_numbers = #tpu.dot_dimension_numbers<[1], [0], [0], [1], [0, 0, 1, 1], [], []>} : vector<256x128xbf16>, vector<128x128xbf16>, vector<256x128xf32> -> vector<256x128xf32>
    %35 = arith.addf %29, %34 : vector<256x128xf32>
    %c0_38 = arith.constant 0 : index
    %c2 = arith.constant 2 : index
    %c0_39 = arith.constant 0 : index
    %36 = vector.load %arg8[%c0_38, %c2, %c0_39] : memref<18x18x128xbf16, #tpu.memory_space<vmem>>, vector<16x16x128xbf16>
    %37 = vector.shape_cast %36 : vector<16x16x128xbf16> to vector<256x128xbf16>
    %c2_40 = arith.constant 2 : index
    %c0_41 = arith.constant 0 : index
    %c0_42 = arith.constant 0 : index
    %38 = vector.load %arg2[%c2_40, %c0_41, %c0_42] : memref<9x128x128xbf16, #tpu.memory_space<vmem>>, vector<1x128x128xbf16>
    %39 = vector.shape_cast %38 : vector<1x128x128xbf16> to vector<128x128xbf16>
    %cst_43 = arith.constant dense<0.000000e+00> : vector<256x128xf32>
    %40 = tpu.matmul %37, %39, %cst_43 {dimension_numbers = #tpu.dot_dimension_numbers<[1], [0], [0], [1], [0, 0, 1, 1], [], []>} : vector<256x128xbf16>, vector<128x128xbf16>, vector<256x128xf32> -> vector<256x128xf32>
    %41 = arith.addf %35, %40 : vector<256x128xf32>
    %c1_44 = arith.constant 1 : index
    %c0_45 = arith.constant 0 : index
    %c0_46 = arith.constant 0 : index
    %42 = vector.load %arg8[%c1_44, %c0_45, %c0_46] : memref<18x18x128xbf16, #tpu.memory_space<vmem>>, vector<16x16x128xbf16>
    %43 = vector.shape_cast %42 : vector<16x16x128xbf16> to vector<256x128xbf16>
    %c3 = arith.constant 3 : index
    %c0_47 = arith.constant 0 : index
    %c0_48 = arith.constant 0 : index
    %44 = vector.load %arg2[%c3, %c0_47, %c0_48] : memref<9x128x128xbf16, #tpu.memory_space<vmem>>, vector<1x128x128xbf16>
    %45 = vector.shape_cast %44 : vector<1x128x128xbf16> to vector<128x128xbf16>
    %cst_49 = arith.constant dense<0.000000e+00> : vector<256x128xf32>
    %46 = tpu.matmul %43, %45, %cst_49 {dimension_numbers = #tpu.dot_dimension_numbers<[1], [0], [0], [1], [0, 0, 1, 1], [], []>} : vector<256x128xbf16>, vector<128x128xbf16>, vector<256x128xf32> -> vector<256x128xf32>
    %47 = arith.addf %41, %46 : vector<256x128xf32>
    %c1_50 = arith.constant 1 : index
    %c1_51 = arith.constant 1 : index
    %c0_52 = arith.constant 0 : index
    %48 = vector.load %arg8[%c1_50, %c1_51, %c0_52] : memref<18x18x128xbf16, #tpu.memory_space<vmem>>, vector<16x16x128xbf16>
    %49 = vector.shape_cast %48 : vector<16x16x128xbf16> to vector<256x128xbf16>
    %c4 = arith.constant 4 : index
    %c0_53 = arith.constant 0 : index
    %c0_54 = arith.constant 0 : index
    %50 = vector.load %arg2[%c4, %c0_53, %c0_54] : memref<9x128x128xbf16, #tpu.memory_space<vmem>>, vector<1x128x128xbf16>
    %51 = vector.shape_cast %50 : vector<1x128x128xbf16> to vector<128x128xbf16>
    %cst_55 = arith.constant dense<0.000000e+00> : vector<256x128xf32>
    %52 = tpu.matmul %49, %51, %cst_55 {dimension_numbers = #tpu.dot_dimension_numbers<[1], [0], [0], [1], [0, 0, 1, 1], [], []>} : vector<256x128xbf16>, vector<128x128xbf16>, vector<256x128xf32> -> vector<256x128xf32>
    %53 = arith.addf %47, %52 : vector<256x128xf32>
    %c1_56 = arith.constant 1 : index
    %c2_57 = arith.constant 2 : index
    %c0_58 = arith.constant 0 : index
    %54 = vector.load %arg8[%c1_56, %c2_57, %c0_58] : memref<18x18x128xbf16, #tpu.memory_space<vmem>>, vector<16x16x128xbf16>
    %55 = vector.shape_cast %54 : vector<16x16x128xbf16> to vector<256x128xbf16>
    %c5 = arith.constant 5 : index
    %c0_59 = arith.constant 0 : index
    %c0_60 = arith.constant 0 : index
    %56 = vector.load %arg2[%c5, %c0_59, %c0_60] : memref<9x128x128xbf16, #tpu.memory_space<vmem>>, vector<1x128x128xbf16>
    %57 = vector.shape_cast %56 : vector<1x128x128xbf16> to vector<128x128xbf16>
    %cst_61 = arith.constant dense<0.000000e+00> : vector<256x128xf32>
    %58 = tpu.matmul %55, %57, %cst_61 {dimension_numbers = #tpu.dot_dimension_numbers<[1], [0], [0], [1], [0, 0, 1, 1], [], []>} : vector<256x128xbf16>, vector<128x128xbf16>, vector<256x128xf32> -> vector<256x128xf32>
    %59 = arith.addf %53, %58 : vector<256x128xf32>
    %c2_62 = arith.constant 2 : index
    %c0_63 = arith.constant 0 : index
    %c0_64 = arith.constant 0 : index
    %60 = vector.load %arg8[%c2_62, %c0_63, %c0_64] : memref<18x18x128xbf16, #tpu.memory_space<vmem>>, vector<16x16x128xbf16>
    %61 = vector.shape_cast %60 : vector<16x16x128xbf16> to vector<256x128xbf16>
    %c6 = arith.constant 6 : index
    %c0_65 = arith.constant 0 : index
    %c0_66 = arith.constant 0 : index
    %62 = vector.load %arg2[%c6, %c0_65, %c0_66] : memref<9x128x128xbf16, #tpu.memory_space<vmem>>, vector<1x128x128xbf16>
    %63 = vector.shape_cast %62 : vector<1x128x128xbf16> to vector<128x128xbf16>
    %cst_67 = arith.constant dense<0.000000e+00> : vector<256x128xf32>
    %64 = tpu.matmul %61, %63, %cst_67 {dimension_numbers = #tpu.dot_dimension_numbers<[1], [0], [0], [1], [0, 0, 1, 1], [], []>} : vector<256x128xbf16>, vector<128x128xbf16>, vector<256x128xf32> -> vector<256x128xf32>
    %65 = arith.addf %59, %64 : vector<256x128xf32>
    %c2_68 = arith.constant 2 : index
    %c1_69 = arith.constant 1 : index
    %c0_70 = arith.constant 0 : index
    %66 = vector.load %arg8[%c2_68, %c1_69, %c0_70] : memref<18x18x128xbf16, #tpu.memory_space<vmem>>, vector<16x16x128xbf16>
    %67 = vector.shape_cast %66 : vector<16x16x128xbf16> to vector<256x128xbf16>
    %c7 = arith.constant 7 : index
    %c0_71 = arith.constant 0 : index
    %c0_72 = arith.constant 0 : index
    %68 = vector.load %arg2[%c7, %c0_71, %c0_72] : memref<9x128x128xbf16, #tpu.memory_space<vmem>>, vector<1x128x128xbf16>
    %69 = vector.shape_cast %68 : vector<1x128x128xbf16> to vector<128x128xbf16>
    %cst_73 = arith.constant dense<0.000000e+00> : vector<256x128xf32>
    %70 = tpu.matmul %67, %69, %cst_73 {dimension_numbers = #tpu.dot_dimension_numbers<[1], [0], [0], [1], [0, 0, 1, 1], [], []>} : vector<256x128xbf16>, vector<128x128xbf16>, vector<256x128xf32> -> vector<256x128xf32>
    %71 = arith.addf %65, %70 : vector<256x128xf32>
    %c2_74 = arith.constant 2 : index
    %c2_75 = arith.constant 2 : index
    %c0_76 = arith.constant 0 : index
    %72 = vector.load %arg8[%c2_74, %c2_75, %c0_76] : memref<18x18x128xbf16, #tpu.memory_space<vmem>>, vector<16x16x128xbf16>
    %73 = vector.shape_cast %72 : vector<16x16x128xbf16> to vector<256x128xbf16>
    %c8 = arith.constant 8 : index
    %c0_77 = arith.constant 0 : index
    %c0_78 = arith.constant 0 : index
    %74 = vector.load %arg2[%c8, %c0_77, %c0_78] : memref<9x128x128xbf16, #tpu.memory_space<vmem>>, vector<1x128x128xbf16>
    %75 = vector.shape_cast %74 : vector<1x128x128xbf16> to vector<128x128xbf16>
    %cst_79 = arith.constant dense<0.000000e+00> : vector<256x128xf32>
    %76 = tpu.matmul %73, %75, %cst_79 {dimension_numbers = #tpu.dot_dimension_numbers<[1], [0], [0], [1], [0, 0, 1, 1], [], []>} : vector<256x128xbf16>, vector<128x128xbf16>, vector<256x128xf32> -> vector<256x128xf32>
    %77 = arith.addf %71, %76 : vector<256x128xf32>
    %cst_80 = arith.constant dense<0.000000e+00> : vector<128xf32>
    %78 = vector.multi_reduction <add>, %77, %cst_80 [0] : vector<256x128xf32> to vector<128xf32>
    %79 = vector.shape_cast %78 : vector<128xf32> to vector<1x128xf32>
    %80 = arith.mulf %77, %77 : vector<256x128xf32>
    %cst_81 = arith.constant dense<0.000000e+00> : vector<128xf32>
    %81 = vector.multi_reduction <add>, %80, %cst_81 [0] : vector<256x128xf32> to vector<128xf32>
    %82 = vector.shape_cast %81 : vector<128xf32> to vector<1x128xf32>
    %83 = tpu.concatenate %79, %82 in 0 : vector<1x128xf32>, vector<1x128xf32> -> vector<2x128xf32>
    %c0_82 = arith.constant 0 : index
    %c0_83 = arith.constant 0 : index
    %c0_84 = arith.constant 0 : index
    %84 = vector.load %arg7[%c0_82, %c0_83, %c0_84] : memref<1x2x128xf32, #tpu.memory_space<vmem>>, vector<1x2x128xf32>
    %85 = vector.shape_cast %84 : vector<1x2x128xf32> to vector<2x128xf32>
    %86 = vector.shape_cast %83 : vector<2x128xf32> to vector<1x2x128xf32>
    tpu.vector_store %arg7[%c0_82, %c0_83, %c0_84], %86 {strides = array<i32>} : memref<1x2x128xf32, #tpu.memory_space<vmem>>, vector<1x2x128xf32>,
    %87 = arith.truncf %77 : vector<256x128xf32> to vector<256x128xbf16>
    %c0_85 = arith.constant 0 : index
    %c0_86 = arith.constant 0 : index
    %c0_87 = arith.constant 0 : index
    %88 = vector.load %arg6[%c0_85, %c0_86, %c0_87] : memref<1x256x128xbf16, #tpu.memory_space<vmem>>, vector<1x256x128xbf16>
    %89 = vector.shape_cast %88 : vector<1x256x128xbf16> to vector<256x128xbf16>
    %90 = vector.shape_cast %87 : vector<256x128xbf16> to vector<1x256x128xbf16>
    tpu.vector_store %arg6[%c0_85, %c0_86, %c0_87], %90 {strides = array<i32>} : memref<1x256x128xbf16, #tpu.memory_space<vmem>>, vector<1x256x128xbf16>,
    return
  }
  func.func @transform_0(%arg0: i32) -> (i32, i32, i32, i32) {
    %c0_i32 = arith.constant 0 : i32
    %c0_i32_0 = arith.constant 0 : i32
    %c0_i32_1 = arith.constant 0 : i32
    %c0_i32_2 = arith.constant 0 : i32
    return %arg0, %c0_i32, %c0_i32_0, %c0_i32_1 : i32, i32, i32, i32
  }
  func.func @transform_1(%arg0: i32) -> (i32, i32, i32) {
    %c0_i32 = arith.constant 0 : i32
    %c0_i32_0 = arith.constant 0 : i32
    %c0_i32_1 = arith.constant 0 : i32
    %c0_i32_2 = arith.constant 0 : i32
    return %c0_i32, %c0_i32_0, %c0_i32_1 : i32, i32, i32
  }
  func.func @transform_2(%arg0: i32) -> (i32, i32) {
    %c0_i32 = arith.constant 0 : i32
    %c0_i32_0 = arith.constant 0 : i32
    %c0_i32_1 = arith.constant 0 : i32
    return %c0_i32, %c0_i32_0 : i32, i32
  }
  func.func @transform_3(%arg0: i32) -> (i32, i32) {
    %c0_i32 = arith.constant 0 : i32
    %c0_i32_0 = arith.constant 0 : i32
    %c0_i32_1 = arith.constant 0 : i32
    return %c0_i32, %c0_i32_0 : i32, i32
  }
  func.func @transform_4(%arg0: i32) -> (i32, i32) {
    %c0_i32 = arith.constant 0 : i32
    %c0_i32_0 = arith.constant 0 : i32
    %c0_i32_1 = arith.constant 0 : i32
    return %c0_i32, %c0_i32_0 : i32, i32
  }
  func.func @transform_5(%arg0: i32) -> (i32, i32, i32) {
    %c0_i32 = arith.constant 0 : i32
    %c0_i32_0 = arith.constant 0 : i32
    %c0_i32_1 = arith.constant 0 : i32
    return %arg0, %c0_i32, %c0_i32_0 : i32, i32, i32
  }
  func.func @transform_6(%arg0: i32) -> (i32, i32, i32) {
    %c0_i32 = arith.constant 0 : i32
    %c0_i32_0 = arith.constant 0 : i32
    %c0_i32_1 = arith.constant 0 : i32
    return %arg0, %c0_i32, %c0_i32_0 : i32, i32, i32
  }
}

</mosaic_0001>

<llo_original>
// kernel: residual_block.5
$region0: #{residual_block.5}
  #allocation0 [shape = 'u32[]', space=smem, size = 0x4, offset = 0x4, fixed_abs, tag = 'smem constant byte address 0x4 - core index']
  #allocation1 [shape = 'u32[72,128]{1,0:T(1,128)}', space=vmem, size = 0x9000, scoped, tag = 'internal scratch']
  %s0 = inlined_call_operand.vmem [shape: bf16[2,256,128], index: 0, kind: input, shape index: {}]
  %s1 = inlined_call_operand.vmem [shape: bf16[2,256,128], index: 1, kind: input, shape index: {}]
  %s2 = inlined_call_operand.vmem [shape: f32[1,128], index: 2, kind: input, shape index: {}]
  %s3 = inlined_call_operand.vmem [shape: f32[1,128], index: 3, kind: input, shape index: {}]
  %s4 = inlined_call_operand.vmem [shape: bf16[2,256,128], index: 4, kind: output, shape index: {}]
  %s5 = sld [smem:[#allocation0]]
  $region49: #{residual_block.5} parent=0
    _
  %s7 = ssub.s32 1, %s5
  %s8 = scalar_select 0, %s7, %s5
  loop: start=0, step=1, limit=4
  $region2: #{residual_block.5} parent=0 // loop_pre_header
    _
  $region3: #{residual_block.5} parent=0 // loop_header
    %s10 = sphi 0, %s14
    %p11 = scmp.ge.s32.totalorder %s10, 4
    %s20 = sphi 0, %s22
    %s23 = sphi 0, %s20
    %s24 = sphi 0, %s23
    %s40 = sphi 0, %s24
    %s46 = sphi 0, %s48
    %s49 = sphi 0, %s46
    %s50 = sphi 0, %s49
    %s66 = sphi 0, %s50
    %s70 = sphi 0, %s70
    %s72 = sphi 0, %s70
    %s73 = sphi 0, %s72
    %s87 = sphi 0, %s73
    %s91 = sphi 0, %s91
    %s93 = sphi 0, %s91
    %s94 = sphi 0, %s93
    %s108 = sphi 0, %s94
    %s114 = sphi 0, %s116
    %s117 = sphi 0, %s114
    %s118 = sphi 0, %s117
    %s134 = sphi 0, %s118
  $region4: #{residual_block.5} parent=0 // loop_header_branch
    %13 = sbr.rel (%p11) target = $region8
  $region5: #{residual_block.5} parent=0 // loop_body
    %s15 = ssub.s32 %s10, 1
    %s16 = ssub.s32 %s10, 2
    %s17 = sadd.s32 %s10, 1
    %s18 = ssub.s32 %s10, %s17
    %p19 = scmp.eq.s32.totalorder %s18, 0
    %s21 = sadd.s32 %s20, 1
    %s22 = scalar_select %p19, %s20, %s21
    %p25 = pneg %p19
    %p26 = scmp.eq.s32.totalorder %s10, 1
    %p27 = por %p25, %p26
    %p28 = scmp.ne.s32.totalorder %s20, %s23
    %p29 = scmp.eq.s32.totalorder %s10, 0
    %p30 = por %p28, %p29
    %p31 = scmp.ne.s32.totalorder %s20, %s23
    %p32 = scmp.eq.s32.totalorder %s15, 1
    %p33 = por %p31, %p32
    %p34 = scmp.ne.s32.totalorder %s23, %s24
    %p35 = scmp.eq.s32.totalorder %s15, 0
    %p36 = por %p34, %p35
    %p37 = scmp.ne.s32.totalorder %s23, %s24
    %p38 = scmp.eq.s32.totalorder %s16, 1
    %p39 = por %p37, %p38
    %p41 = scmp.ne.s32.totalorder %s24, %s40
    %p42 = scmp.eq.s32.totalorder %s16, 0
    %p43 = por %p41, %p42
    %s44 = ssub.s32 %s10, %s17
    %p45 = scmp.eq.s32.totalorder %s44, 0
    %s47 = sadd.s32 %s46, 1
    %s48 = scalar_select %p45, %s46, %s47
    %p51 = pneg %p45
    %p52 = scmp.eq.s32.totalorder %s10, 1
    %p53 = por %p51, %p52
    %p54 = scmp.ne.s32.totalorder %s46, %s49
    %p55 = scmp.eq.s32.totalorder %s10, 0
    %p56 = por %p54, %p55
    %p57 = scmp.ne.s32.totalorder %s46, %s49
    %p58 = scmp.eq.s32.totalorder %s15, 1
    %p59 = por %p57, %p58
    %p60 = scmp.ne.s32.totalorder %s49, %s50
    %p61 = scmp.eq.s32.totalorder %s15, 0
    %p62 = por %p60, %p61
    %p63 = scmp.ne.s32.totalorder %s49, %s50
    %p64 = scmp.eq.s32.totalorder %s16, 1
    %p65 = por %p63, %p64
    %p67 = scmp.ne.s32.totalorder %s50, %s66
    %p68 = scmp.eq.s32.totalorder %s16, 0
    %p69 = por %p67, %p68
    %s71 = sadd.s32 %s70, 1
    %p74 = scmp.eq.s32.totalorder %s10, 1
    %p75 = scmp.ne.s32.totalorder %s70, %s72
    %p76 = scmp.eq.s32.totalorder %s10, 0
    %p77 = por %p75, %p76
    %p78 = scmp.ne.s32.totalorder %s70, %s72
    %p79 = scmp.eq.s32.totalorder %s15, 1
    %p80 = por %p78, %p79
    %p81 = scmp.ne.s32.totalorder %s72, %s73
    %p82 = scmp.eq.s32.totalorder %s15, 0
    %p83 = por %p81, %p82
    %p84 = scmp.ne.s32.totalorder %s72, %s73
    %p85 = scmp.eq.s32.totalorder %s16, 1
    %p86 = por %p84, %p85
    %p88 = scmp.ne.s32.totalorder %s73, %s87
    %p89 = scmp.eq.s32.totalorder %s16, 0
    %p90 = por %p88, %p89
    %s92 = sadd.s32 %s91, 1
    %p95 = scmp.eq.s32.totalorder %s10, 1
    %p96 = scmp.ne.s32.totalorder %s91, %s93
    %p97 = scmp.eq.s32.totalorder %s10, 0
    %p98 = por %p96, %p97
    %p99 = scmp.ne.s32.totalorder %s91, %s93
    %p100 = scmp.eq.s32.totalorder %s15, 1
    %p101 = por %p99, %p100
    %p102 = scmp.ne.s32.totalorder %s93, %s94
    %p103 = scmp.eq.s32.totalorder %s15, 0
    %p104 = por %p102, %p103
    %p105 = scmp.ne.s32.totalorder %s93, %s94
    %p106 = scmp.eq.s32.totalorder %s16, 1
    %p107 = por %p105, %p106
    %p109 = scmp.ne.s32.totalorder %s94, %s108
    %p110 = scmp.eq.s32.totalorder %s16, 0
    %p111 = por %p109, %p110
    %s112 = ssub.s32 %s10, %s17
    %p113 = scmp.eq.s32.totalorder %s112, 0
    %s115 = sadd.s32 %s114, 1
    %s116 = scalar_select %p113, %s114, %s115
    %p119 = pneg %p113
    %p120 = scmp.eq.s32.totalorder %s10, 1
    %p121 = por %p119, %p120
    %p122 = scmp.ne.s32.totalorder %s114, %s117
    %p123 = scmp.eq.s32.totalorder %s10, 0
    %p124 = por %p122, %p123
    %p125 = scmp.ne.s32.totalorder %s114, %s117
    %p126 = scmp.eq.s32.totalorder %s15, 1
    %p127 = por %p125, %p126
    %p128 = scmp.ne.s32.totalorder %s117, %s118
    %p129 = scmp.eq.s32.totalorder %s15, 0
    %p130 = por %p128, %p129
    %p131 = scmp.ne.s32.totalorder %s117, %s118
    %p132 = scmp.eq.s32.totalorder %s16, 1
    %p133 = por %p131, %p132
    %p135 = scmp.ne.s32.totalorder %s118, %s134
    %p136 = scmp.eq.s32.totalorder %s16, 0
    %p137 = por %p135, %p136
    %p138 = scmp.le.s32.totalorder 1, %s10
    %p139 = scmp.lt.s32.totalorder %s10, 3
    %p140 = pnand %p138, %p139
    %p141 = pneg %p140
    // Predicated region
    $region9: #{residual_block.5} parent=5 // pred_check
      _
    $region10: #{residual_block.5} parent=5 // pred_check_branch
      %143 = sbr.rel (%p140) target = $region12
    $region11: #{residual_block.5} parent=5 // pred_region
      %s144 = ssub.s32 %s10, 1
      // Predicated region
      $region13: #{residual_block.5} parent=11 // pred_check
        %p145 = pneg %p83
      $region14: #{residual_block.5} parent=11 // pred_check_branch
        %147 = sbr.rel (%p145) target = $region16
      $region15: #{residual_block.5} parent=11 // pred_region
        _
      $region16: #{residual_block.5} parent=11 // pred_fallthru
        _
      // Predicated region
      $region17: #{residual_block.5} parent=11 // pred_check
        %p148 = pneg %p104
      $region18: #{residual_block.5} parent=11 // pred_check_branch
        %150 = sbr.rel (%p148) target = $region20
      $region19: #{residual_block.5} parent=11 // pred_region
        _
      $region20: #{residual_block.5} parent=11 // pred_fallthru
        _
    $region12: #{residual_block.5} parent=5 // pred_fallthru
      _
    %p151 = scmp.lt.s32.totalorder %s10, 2
    // Predicated region
    $region21: #{residual_block.5} parent=5 // pred_check
      %p152 = pneg %p151
    $region22: #{residual_block.5} parent=5 // pred_check_branch
      %154 = sbr.rel (%p152) target = $region24
    $region23: #{residual_block.5} parent=5 // pred_region
      // Predicated region
      $region25: #{residual_block.5} parent=23 // pred_check
        %p155 = pneg %p30
      $region26: #{residual_block.5} parent=23 // pred_check_branch
        %157 = sbr.rel (%p155) target = $region28
      $region27: #{residual_block.5} parent=23 // pred_region
        %p158 = scmp.lt.s32.totalorder %s10, 1
        %s159 = scalar_select %p158, %s10, 1
        %s160 = smul.addr %s159, 32
        %s161 = smul.addr %s160, 4
        %s162 = scalar_lea.vmem %s0, %s161
      $region28: #{residual_block.5} parent=23 // pred_fallthru
        _
      // Predicated region
      $region29: #{residual_block.5} parent=23 // pred_check
        %p163 = pneg %p56
      $region30: #{residual_block.5} parent=23 // pred_check_branch
        %165 = sbr.rel (%p163) target = $region32
      $region31: #{residual_block.5} parent=23 // pred_region
        %p166 = scmp.lt.s32.totalorder %s10, 1
        %s167 = scalar_select %p166, %s10, 1
        %s168 = smul.addr %s167, 32
        %s169 = smul.addr %s168, 4
        %s170 = scalar_lea.vmem %s1, %s169
      $region32: #{residual_block.5} parent=23 // pred_fallthru
        _
    $region24: #{residual_block.5} parent=5 // pred_fallthru
      _
    %p171 = scmp.le.s32.totalorder 1, %s10
    %p172 = scmp.lt.s32.totalorder %s10, 3
    %p173 = pnand %p171, %p172
    %p174 = pneg %p173
    // Predicated region
    $region33: #{residual_block.5} parent=5 // pred_check
      _
    $region34: #{residual_block.5} parent=5 // pred_check_branch
      %176 = sbr.rel (%p173) target = $region36
    $region35: #{residual_block.5} parent=5 // pred_region
      %s177 = ssub.s32 %s10, 1
      %p178 = scmp.lt.s32.totalorder %s15, 1
      %s179 = scalar_select %p178, %s15, 1
      %s180 = smul.addr %s179, 32
      %s181 = smul.addr %s180, 4
      %s182 = scalar_lea.vmem %s0, %s181
      %p183 = pneg %p36
      %p184 = pneg %p33
      %p185 = scmp.lt.s32.totalorder %s15, 1
      %s186 = scalar_select %p185, %s15, 1
      %s187 = smul.addr %s186, 32
      %s188 = smul.addr %s187, 4
      %s189 = scalar_lea.vmem %s1, %s188
      %p190 = pneg %p62
      %p191 = pneg %p59
      %p192 = pneg %p83
      %p193 = pneg %p80
      %p194 = pneg %p104
      %p195 = pneg %p101
      %p196 = pneg %p130
      %p197 = pneg %p127
      %p198 = scmp.lt.s32.totalorder %s15, 1
      %s199 = scalar_select %p198, %s15, 1
      %s200 = smul.addr %s199, 32
      %s201 = smul.addr %s200, 4
      %s202 = scalar_lea.vmem %s4, %s201
      %p203 = scmp.lt.s32.totalorder %s15, 1
      %s204 = scalar_select %p203, %s15, 1
      %s205 = smul.addr %s204, 32
      %s206 = smul.addr %s205, 4
      %s207 = scalar_lea.vmem %s0, %s206
      %p208 = scmp.lt.s32.totalorder %s15, 1
      %s209 = scalar_select %p208, %s15, 1
      %s210 = smul.addr %s209, 32
      %s211 = smul.addr %s210, 4
      %s212 = scalar_lea.vmem %s1, %s211
      %p213 = scmp.lt.s32.totalorder %s15, 1
      %s214 = scalar_select %p213, %s15, 1
      %s215 = smul.addr %s214, 32
      %s216 = smul.addr %s215, 4
      %s217 = scalar_lea.vmem %s4, %s216
      %v218 = vld [vmem:[%s207] sm:$0xf]
      %v219 = vld [vmem:[%s207 + $0x4] sm:$0xf]
      %v220 = vld [vmem:[%s207 + $0x8] sm:$0xf]
      %v221 = vld [vmem:[%s207 + $0xc] sm:$0xf]
      %v222 = vld [vmem:[%s207 + $0x10] sm:$0xf]
      %v223 = vld [vmem:[%s207 + $0x14] sm:$0xf]
      %v224 = vld [vmem:[%s207 + $0x18] sm:$0xf]
      %v225 = vld [vmem:[%s207 + $0x1c] sm:$0xf]
      %v226 = vld [vmem:[%s207 + $0x20] sm:$0xf]
      %v227 = vld [vmem:[%s207 + $0x24] sm:$0xf]
      %v228 = vld [vmem:[%s207 + $0x28] sm:$0xf]
      %v229 = vld [vmem:[%s207 + $0x2c] sm:$0xf]
      %v230 = vld [vmem:[%s207 + $0x30] sm:$0xf]
      %v231 = vld [vmem:[%s207 + $0x34] sm:$0xf]
      %v232 = vld [vmem:[%s207 + $0x38] sm:$0xf]
      %v233 = vld [vmem:[%s207 + $0x3c] sm:$0xf]
      %v234 = vld [vmem:[%s207 + $0x40] sm:$0xf]
      %v235 = vld [vmem:[%s207 + $0x44] sm:$0xf]
      %v236 = vld [vmem:[%s207 + $0x48] sm:$0xf]
      %v237 = vld [vmem:[%s207 + $0x4c] sm:$0xf]
      %v238 = vld [vmem:[%s207 + $0x50] sm:$0xf]
      %v239 = vld [vmem:[%s207 + $0x54] sm:$0xf]
      %v240 = vld [vmem:[%s207 + $0x58] sm:$0xf]
      %v241 = vld [vmem:[%s207 + $0x5c] sm:$0xf]
      %v242 = vld [vmem:[%s207 + $0x60] sm:$0xf]
      %v243 = vld [vmem:[%s207 + $0x64] sm:$0xf]
      %v244 = vld [vmem:[%s207 + $0x68] sm:$0xf]
      %v245 = vld [vmem:[%s207 + $0x6c] sm:$0xf]
      %v246 = vld [vmem:[%s207 + $0x70] sm:$0xf]
      %v247 = vld [vmem:[%s207 + $0x74] sm:$0xf]
      %v248 = vld [vmem:[%s207 + $0x78] sm:$0xf]
      %v249 = vld [vmem:[%s207 + $0x7c] sm:$0xf]
      %v250 = vld [vmem:[%s2] sm:$0x1]
      %v251 = vunpack.c.l.bf16 %v218
      %v252 = vunpack.c.l.bf16 %v219
      %v253 = vunpack.c.l.bf16 %v220
      %v254 = vunpack.c.l.bf16 %v221
      %v255 = vunpack.c.l.bf16 %v222
      %v256 = vunpack.c.l.bf16 %v223
      %v257 = vunpack.c.l.bf16 %v224
      %v258 = vunpack.c.l.bf16 %v225
      %v259 = vunpack.c.l.bf16 %v226
      %v260 = vunpack.c.l.bf16 %v227
      %v261 = vunpack.c.l.bf16 %v228
      %v262 = vunpack.c.l.bf16 %v229
      %v263 = vunpack.c.l.bf16 %v230
      %v264 = vunpack.c.l.bf16 %v231
      %v265 = vunpack.c.l.bf16 %v232
      %v266 = vunpack.c.l.bf16 %v233
      %v267 = vunpack.c.l.bf16 %v234
      %v268 = vunpack.c.l.bf16 %v235
      %v269 = vunpack.c.l.bf16 %v236
      %v270 = vunpack.c.l.bf16 %v237
      %v271 = vunpack.c.l.bf16 %v238
      %v272 = vunpack.c.l.bf16 %v239
      %v273 = vunpack.c.l.bf16 %v240
      %v274 = vunpack.c.l.bf16 %v241
      %v275 = vunpack.c.l.bf16 %v242
      %v276 = vunpack.c.l.bf16 %v243
      %v277 = vunpack.c.l.bf16 %v244
      %v278 = vunpack.c.l.bf16 %v245
      %v279 = vunpack.c.l.bf16 %v246
      %v280 = vunpack.c.l.bf16 %v247
      %v281 = vunpack.c.l.bf16 %v248
      %v282 = vunpack.c.l.bf16 %v249
      %v284 = vperm.slane %v250, 0
      %v286 = vmul.f32 %v251, %v284
      %v287 = vmul.f32 %v252, %v284
      %v288 = vmul.f32 %v253, %v284
      %v289 = vmul.f32 %v254, %v284
      %v290 = vmul.f32 %v255, %v284
      %v291 = vmul.f32 %v256, %v284
      %v292 = vmul.f32 %v257, %v284
      %v293 = vmul.f32 %v258, %v284
      %v294 = vmul.f32 %v259, %v284
      %v295 = vmul.f32 %v260, %v284
      %v296 = vmul.f32 %v261, %v284
      %v297 = vmul.f32 %v262, %v284
      %v298 = vmul.f32 %v263, %v284
      %v299 = vmul.f32 %v264, %v284
      %v300 = vmul.f32 %v265, %v284
      %v301 = vmul.f32 %v266, %v284
      %v302 = vmul.f32 %v267, %v284
      %v303 = vmul.f32 %v268, %v284
      %v304 = vmul.f32 %v269, %v284
      %v305 = vmul.f32 %v270, %v284
      %v306 = vmul.f32 %v271, %v284
      %v307 = vmul.f32 %v272, %v284
      %v308 = vmul.f32 %v273, %v284
      %v309 = vmul.f32 %v274, %v284
      %v310 = vmul.f32 %v275, %v284
      %v311 = vmul.f32 %v276, %v284
      %v312 = vmul.f32 %v277, %v284
      %v313 = vmul.f32 %v278, %v284
      %v314 = vmul.f32 %v279, %v284
      %v315 = vmul.f32 %v280, %v284
      %v316 = vmul.f32 %v281, %v284
      %v317 = vmul.f32 %v282, %v284
      %v318 = vld [vmem:[%s3] sm:$0x1]
      %v320 = vperm.slane %v318, 0
      %v322 = vadd.f32 %v286, %v320
      %v323 = vadd.f32 %v287, %v320
      %v324 = vadd.f32 %v288, %v320
      %v325 = vadd.f32 %v289, %v320
      %v326 = vadd.f32 %v290, %v320
      %v327 = vadd.f32 %v291, %v320
      %v328 = vadd.f32 %v292, %v320
      %v329 = vadd.f32 %v293, %v320
      %v330 = vadd.f32 %v294, %v320
      %v331 = vadd.f32 %v295, %v320
      %v332 = vadd.f32 %v296, %v320
      %v333 = vadd.f32 %v297, %v320
      %v334 = vadd.f32 %v298, %v320
      %v335 = vadd.f32 %v299, %v320
      %v336 = vadd.f32 %v300, %v320
      %v337 = vadd.f32 %v301, %v320
      %v338 = vadd.f32 %v302, %v320
      %v339 = vadd.f32 %v303, %v320
      %v340 = vadd.f32 %v304, %v320
      %v341 = vadd.f32 %v305, %v320
      %v342 = vadd.f32 %v306, %v320
      %v343 = vadd.f32 %v307, %v320
      %v344 = vadd.f32 %v308, %v320
      %v345 = vadd.f32 %v309, %v320
      %v346 = vadd.f32 %v310, %v320
      %v347 = vadd.f32 %v311, %v320
      %v348 = vadd.f32 %v312, %v320
      %v349 = vadd.f32 %v313, %v320
      %v350 = vadd.f32 %v314, %v320
      %v351 = vadd.f32 %v315, %v320
      %v352 = vadd.f32 %v316, %v320
      %v353 = vadd.f32 %v317, %v320
      %v354 = vld [vmem:[%s212] sm:$0xf]
      %v355 = vld [vmem:[%s212 + $0x4] sm:$0xf]
      %v356 = vld [vmem:[%s212 + $0x8] sm:$0xf]
      %v357 = vld [vmem:[%s212 + $0xc] sm:$0xf]
      %v358 = vld [vmem:[%s212 + $0x10] sm:$0xf]
      %v359 = vld [vmem:[%s212 + $0x14] sm:$0xf]
      %v360 = vld [vmem:[%s212 + $0x18] sm:$0xf]
      %v361 = vld [vmem:[%s212 + $0x1c] sm:$0xf]
      %v362 = vld [vmem:[%s212 + $0x20] sm:$0xf]
      %v363 = vld [vmem:[%s212 + $0x24] sm:$0xf]
      %v364 = vld [vmem:[%s212 + $0x28] sm:$0xf]
      %v365 = vld [vmem:[%s212 + $0x2c] sm:$0xf]
      %v366 = vld [vmem:[%s212 + $0x30] sm:$0xf]
      %v367 = vld [vmem:[%s212 + $0x34] sm:$0xf]
      %v368 = vld [vmem:[%s212 + $0x38] sm:$0xf]
      %v369 = vld [vmem:[%s212 + $0x3c] sm:$0xf]
      %v370 = vld [vmem:[%s212 + $0x40] sm:$0xf]
      %v371 = vld [vmem:[%s212 + $0x44] sm:$0xf]
      %v372 = vld [vmem:[%s212 + $0x48] sm:$0xf]
      %v373 = vld [vmem:[%s212 + $0x4c] sm:$0xf]
      %v374 = vld [vmem:[%s212 + $0x50] sm:$0xf]
      %v375 = vld [vmem:[%s212 + $0x54] sm:$0xf]
      %v376 = vld [vmem:[%s212 + $0x58] sm:$0xf]
      %v377 = vld [vmem:[%s212 + $0x5c] sm:$0xf]
      %v378 = vld [vmem:[%s212 + $0x60] sm:$0xf]
      %v379 = vld [vmem:[%s212 + $0x64] sm:$0xf]
      %v380 = vld [vmem:[%s212 + $0x68] sm:$0xf]
      %v381 = vld [vmem:[%s212 + $0x6c] sm:$0xf]
      %v382 = vld [vmem:[%s212 + $0x70] sm:$0xf]
      %v383 = vld [vmem:[%s212 + $0x74] sm:$0xf]
      %v384 = vld [vmem:[%s212 + $0x78] sm:$0xf]
      %v385 = vld [vmem:[%s212 + $0x7c] sm:$0xf]
      %v386 = vunpack.c.l.bf16 %v354
      %v387 = vunpack.c.l.bf16 %v355
      %v388 = vunpack.c.l.bf16 %v356
      %v389 = vunpack.c.l.bf16 %v357
      %v390 = vunpack.c.l.bf16 %v358
      %v391 = vunpack.c.l.bf16 %v359
      %v392 = vunpack.c.l.bf16 %v360
      %v393 = vunpack.c.l.bf16 %v361
      %v394 = vunpack.c.l.bf16 %v362
      %v395 = vunpack.c.l.bf16 %v363
      %v396 = vunpack.c.l.bf16 %v364
      %v397 = vunpack.c.l.bf16 %v365
      %v398 = vunpack.c.l.bf16 %v366
      %v399 = vunpack.c.l.bf16 %v367
      %v400 = vunpack.c.l.bf16 %v368
      %v401 = vunpack.c.l.bf16 %v369
      %v402 = vunpack.c.l.bf16 %v370
      %v403 = vunpack.c.l.bf16 %v371
      %v404 = vunpack.c.l.bf16 %v372
      %v405 = vunpack.c.l.bf16 %v373
      %v406 = vunpack.c.l.bf16 %v374
      %v407 = vunpack.c.l.bf16 %v375
      %v408 = vunpack.c.l.bf16 %v376
      %v409 = vunpack.c.l.bf16 %v377
      %v410 = vunpack.c.l.bf16 %v378
      %v411 = vunpack.c.l.bf16 %v379
      %v412 = vunpack.c.l.bf16 %v380
      %v413 = vunpack.c.l.bf16 %v381
      %v414 = vunpack.c.l.bf16 %v382
      %v415 = vunpack.c.l.bf16 %v383
      %v416 = vunpack.c.l.bf16 %v384
      %v417 = vunpack.c.l.bf16 %v385
      %v418 = vadd.f32 %v322, %v386
      %v419 = vadd.f32 %v323, %v387
      %v420 = vadd.f32 %v324, %v388
      %v421 = vadd.f32 %v325, %v389
      %v422 = vadd.f32 %v326, %v390
      %v423 = vadd.f32 %v327, %v391
      %v424 = vadd.f32 %v328, %v392
      %v425 = vadd.f32 %v329, %v393
      %v426 = vadd.f32 %v330, %v394
      %v427 = vadd.f32 %v331, %v395
      %v428 = vadd.f32 %v332, %v396
      %v429 = vadd.f32 %v333, %v397
      %v430 = vadd.f32 %v334, %v398
      %v431 = vadd.f32 %v335, %v399
      %v432 = vadd.f32 %v336, %v400
      %v433 = vadd.f32 %v337, %v401
      %v434 = vadd.f32 %v338, %v402
      %v435 = vadd.f32 %v339, %v403
      %v436 = vadd.f32 %v340, %v404
      %v437 = vadd.f32 %v341, %v405
      %v438 = vadd.f32 %v342, %v406
      %v439 = vadd.f32 %v343, %v407
      %v440 = vadd.f32 %v344, %v408
      %v441 = vadd.f32 %v345, %v409
      %v442 = vadd.f32 %v346, %v410
      %v443 = vadd.f32 %v347, %v411
      %v444 = vadd.f32 %v348, %v412
      %v445 = vadd.f32 %v349, %v413
      %v446 = vadd.f32 %v350, %v414
      %v447 = vadd.f32 %v351, %v415
      %v448 = vadd.f32 %v352, %v416
      %v449 = vadd.f32 %v353, %v417
      %v450 = vmax.f32 %v418, 0.0
      %v451 = vmax.f32 %v419, 0.0
      %v452 = vmax.f32 %v420, 0.0
      %v453 = vmax.f32 %v421, 0.0
      %v454 = vmax.f32 %v422, 0.0
      %v455 = vmax.f32 %v423, 0.0
      %v456 = vmax.f32 %v424, 0.0
      %v457 = vmax.f32 %v425, 0.0
      %v458 = vmax.f32 %v426, 0.0
      %v459 = vmax.f32 %v427, 0.0
      %v460 = vmax.f32 %v428, 0.0
      %v461 = vmax.f32 %v429, 0.0
      %v462 = vmax.f32 %v430, 0.0
      %v463 = vmax.f32 %v431, 0.0
      %v464 = vmax.f32 %v432, 0.0
      %v465 = vmax.f32 %v433, 0.0
      %v466 = vmax.f32 %v434, 0.0
      %v467 = vmax.f32 %v435, 0.0
      %v468 = vmax.f32 %v436, 0.0
      %v469 = vmax.f32 %v437, 0.0
      %v470 = vmax.f32 %v438, 0.0
      %v471 = vmax.f32 %v439, 0.0
      %v472 = vmax.f32 %v440, 0.0
      %v473 = vmax.f32 %v441, 0.0
      %v474 = vmax.f32 %v442, 0.0
      %v475 = vmax.f32 %v443, 0.0
      %v476 = vmax.f32 %v444, 0.0
      %v477 = vmax.f32 %v445, 0.0
      %v478 = vmax.f32 %v446, 0.0
      %v479 = vmax.f32 %v447, 0.0
      %v480 = vmax.f32 %v448, 0.0
      %v481 = vmax.f32 %v449, 0.0
      %v482 = vpack.c.bf16 %v450, %v450
      %v483 = vpack.c.bf16 %v451, %v451
      %v484 = vpack.c.bf16 %v452, %v452
      %v485 = vpack.c.bf16 %v453, %v453
      %v486 = vpack.c.bf16 %v454, %v454
      %v487 = vpack.c.bf16 %v455, %v455
      %v488 = vpack.c.bf16 %v456, %v456
      %v489 = vpack.c.bf16 %v457, %v457
      %v490 = vpack.c.bf16 %v458, %v458
      %v491 = vpack.c.bf16 %v459, %v459
      %v492 = vpack.c.bf16 %v460, %v460
      %v493 = vpack.c.bf16 %v461, %v461
      %v494 = vpack.c.bf16 %v462, %v462
      %v495 = vpack.c.bf16 %v463, %v463
      %v496 = vpack.c.bf16 %v464, %v464
      %v497 = vpack.c.bf16 %v465, %v465
      %v498 = vpack.c.bf16 %v466, %v466
      %v499 = vpack.c.bf16 %v467, %v467
      %v500 = vpack.c.bf16 %v468, %v468
      %v501 = vpack.c.bf16 %v469, %v469
      %v502 = vpack.c.bf16 %v470, %v470
      %v503 = vpack.c.bf16 %v471, %v471
      %v504 = vpack.c.bf16 %v472, %v472
      %v505 = vpack.c.bf16 %v473, %v473
      %v506 = vpack.c.bf16 %v474, %v474
      %v507 = vpack.c.bf16 %v475, %v475
      %v508 = vpack.c.bf16 %v476, %v476
      %v509 = vpack.c.bf16 %v477, %v477
      %v510 = vpack.c.bf16 %v478, %v478
      %v511 = vpack.c.bf16 %v479, %v479
      %v512 = vpack.c.bf16 %v480, %v480
      %v513 = vpack.c.bf16 %v481, %v481
      %514 = vst [vmem:[%s217] sm:$0xf] %v482
      %515 = vst [vmem:[%s217 + $0x4] sm:$0xf] %v483
      %516 = vst [vmem:[%s217 + $0x8] sm:$0xf] %v484
      %517 = vst [vmem:[%s217 + $0xc] sm:$0xf] %v485
      %518 = vst [vmem:[%s217 + $0x10] sm:$0xf] %v486
      %519 = vst [vmem:[%s217 + $0x14] sm:$0xf] %v487
      %520 = vst [vmem:[%s217 + $0x18] sm:$0xf] %v488
      %521 = vst [vmem:[%s217 + $0x1c] sm:$0xf] %v489
      %522 = vst [vmem:[%s217 + $0x20] sm:$0xf] %v490
      %523 = vst [vmem:[%s217 + $0x24] sm:$0xf] %v491
      %524 = vst [vmem:[%s217 + $0x28] sm:$0xf] %v492
      %525 = vst [vmem:[%s217 + $0x2c] sm:$0xf] %v493
      %526 = vst [vmem:[%s217 + $0x30] sm:$0xf] %v494
      %527 = vst [vmem:[%s217 + $0x34] sm:$0xf] %v495
      %528 = vst [vmem:[%s217 + $0x38] sm:$0xf] %v496
      %529 = vst [vmem:[%s217 + $0x3c] sm:$0xf] %v497
      %530 = vst [vmem:[%s217 + $0x40] sm:$0xf] %v498
      %531 = vst [vmem:[%s217 + $0x44] sm:$0xf] %v499
      %532 = vst [vmem:[%s217 + $0x48] sm:$0xf] %v500
      %533 = vst [vmem:[%s217 + $0x4c] sm:$0xf] %v501
      %534 = vst [vmem:[%s217 + $0x50] sm:$0xf] %v502
      %535 = vst [vmem:[%s217 + $0x54] sm:$0xf] %v503
      %536 = vst [vmem:[%s217 + $0x58] sm:$0xf] %v504
      %537 = vst [vmem:[%s217 + $0x5c] sm:$0xf] %v505
      %538 = vst [vmem:[%s217 + $0x60] sm:$0xf] %v506
      %539 = vst [vmem:[%s217 + $0x64] sm:$0xf] %v507
      %540 = vst [vmem:[%s217 + $0x68] sm:$0xf] %v508
      %541 = vst [vmem:[%s217 + $0x6c] sm:$0xf] %v509
      %542 = vst [vmem:[%s217 + $0x70] sm:$0xf] %v510
      %543 = vst [vmem:[%s217 + $0x74] sm:$0xf] %v511
      %544 = vst [vmem:[%s217 + $0x78] sm:$0xf] %v512
      %545 = vst [vmem:[%s217 + $0x7c] sm:$0xf] %v513
      %p546 = scmp.lt.s32.totalorder %s15, 1
      %s547 = scalar_select %p546, %s15, 1
      %s548 = smul.addr %s547, 32
      %s549 = smul.addr %s548, 4
      %s550 = scalar_lea.vmem %s4, %s549
      // Predicated region
      $region37: #{residual_block.5} parent=35 // pred_check
        %p551 = pneg %p127
      $region38: #{residual_block.5} parent=35 // pred_check_branch
        %553 = sbr.rel (%p551) target = $region40
      $region39: #{residual_block.5} parent=35 // pred_region
        _
      $region40: #{residual_block.5} parent=35 // pred_fallthru
        _
    $region36: #{residual_block.5} parent=5 // pred_fallthru
      _
    %p554 = scmp.le.s32.totalorder 2, %s10
    // Predicated region
    $region41: #{residual_block.5} parent=5 // pred_check
      %p555 = pneg %p554
    $region42: #{residual_block.5} parent=5 // pred_check_branch
      %557 = sbr.rel (%p555) target = $region44
    $region43: #{residual_block.5} parent=5 // pred_region
      %s558 = ssub.s32 %s10, 2
      // Predicated region
      $region45: #{residual_block.5} parent=43 // pred_check
        %p559 = pneg %p133
      $region46: #{residual_block.5} parent=43 // pred_check_branch
        %561 = sbr.rel (%p559) target = $region48
      $region47: #{residual_block.5} parent=43 // pred_region
        %p562 = scmp.lt.s32.totalorder %s16, 1
        %s563 = scalar_select %p562, %s16, 1
        %s564 = smul.addr %s563, 32
        %s565 = smul.addr %s564, 4
        %s566 = scalar_lea.vmem %s4, %s565
      $region48: #{residual_block.5} parent=43 // pred_fallthru
        _
    $region44: #{residual_block.5} parent=5 // pred_fallthru
      _
  $region6: #{residual_block.5} parent=0 // loop_footer
    %s14 = sadd.s32 1, %s10
  $region7: #{residual_block.5} parent=0 // loop_footer_branch
    %9 = sbr.rel target = $region3
  $region8: #{residual_block.5} parent=0 // loop_exit
    _

// kernel: residual_block.3
$region0: #{residual_block.3}
  #allocation0 [shape = 'u32[]', space=smem, size = 0x4, offset = 0x4, fixed_abs, tag = 'smem constant byte address 0x4 - core index']
  #allocation1 [shape = 'u32[72,128]{1,0:T(1,128)}', space=vmem, size = 0x9000, scoped, tag = 'internal scratch']
  %s0 = inlined_call_operand.vmem [shape: bf16[2,18,18,128], index: 0, kind: input, shape index: {}]
  %s1 = inlined_call_operand.vmem [shape: bf16[9,128,128], index: 1, kind: input, shape index: {}]
  %s2 = inlined_call_operand.vmem [shape: f32[1,128], index: 2, kind: input, shape index: {}]
  %s3 = inlined_call_operand.vmem [shape: bf16[2,16,16,128], index: 3, kind: output, shape index: {0}]
  %s4 = inlined_call_operand.vmem [shape: f32[2,2,128], index: 4, kind: output, shape index: {1}]
  %5 = xla_tuple %s3, %s4
  %s6 = sld [smem:[#allocation0]]
  $region53: #{residual_block.3} parent=0
    _
  %s8 = ssub.s32 1, %s6
  %s9 = scalar_select 0, %s8, %s6
  loop: start=0, step=1, limit=4
  $region2: #{residual_block.3} parent=0 // loop_pre_header
    _
  $region3: #{residual_block.3} parent=0 // loop_header
    %s11 = sphi 0, %s15
    %p12 = scmp.ge.s32.totalorder %s11, 4
    %s21 = sphi 0, %s23
    %s24 = sphi 0, %s21
    %s25 = sphi 0, %s24
    %s41 = sphi 0, %s25
    %s45 = sphi 0, %s45
    %s47 = sphi 0, %s45
    %s48 = sphi 0, %s47
    %s62 = sphi 0, %s48
    %s66 = sphi 0, %s66
    %s68 = sphi 0, %s66
    %s69 = sphi 0, %s68
    %s83 = sphi 0, %s69
    %s89 = sphi 0, %s91
    %s92 = sphi 0, %s89
    %s93 = sphi 0, %s92
    %s109 = sphi 0, %s93
    %s115 = sphi 0, %s117
    %s118 = sphi 0, %s115
    %s119 = sphi 0, %s118
    %s135 = sphi 0, %s119
  $region4: #{residual_block.3} parent=0 // loop_header_branch
    %14 = sbr.rel (%p12) target = $region8
  $region5: #{residual_block.3} parent=0 // loop_body
    %s16 = ssub.s32 %s11, 1
    %s17 = ssub.s32 %s11, 2
    %s18 = sadd.s32 %s11, 1
    %s19 = ssub.s32 %s11, %s18
    %p20 = scmp.eq.s32.totalorder %s19, 0
    %s22 = sadd.s32 %s21, 1
    %s23 = scalar_select %p20, %s21, %s22
    %p26 = pneg %p20
    %p27 = scmp.eq.s32.totalorder %s11, 1
    %p28 = por %p26, %p27
    %p29 = scmp.ne.s32.totalorder %s21, %s24
    %p30 = scmp.eq.s32.totalorder %s11, 0
    %p31 = por %p29, %p30
    %p32 = scmp.ne.s32.totalorder %s21, %s24
    %p33 = scmp.eq.s32.totalorder %s16, 1
    %p34 = por %p32, %p33
    %p35 = scmp.ne.s32.totalorder %s24, %s25
    %p36 = scmp.eq.s32.totalorder %s16, 0
    %p37 = por %p35, %p36
    %p38 = scmp.ne.s32.totalorder %s24, %s25
    %p39 = scmp.eq.s32.totalorder %s17, 1
    %p40 = por %p38, %p39
    %p42 = scmp.ne.s32.totalorder %s25, %s41
    %p43 = scmp.eq.s32.totalorder %s17, 0
    %p44 = por %p42, %p43
    %s46 = sadd.s32 %s45, 1
    %p49 = scmp.eq.s32.totalorder %s11, 1
    %p50 = scmp.ne.s32.totalorder %s45, %s47
    %p51 = scmp.eq.s32.totalorder %s11, 0
    %p52 = por %p50, %p51
    %p53 = scmp.ne.s32.totalorder %s45, %s47
    %p54 = scmp.eq.s32.totalorder %s16, 1
    %p55 = por %p53, %p54
    %p56 = scmp.ne.s32.totalorder %s47, %s48
    %p57 = scmp.eq.s32.totalorder %s16, 0
    %p58 = por %p56, %p57
    %p59 = scmp.ne.s32.totalorder %s47, %s48
    %p60 = scmp.eq.s32.totalorder %s17, 1
    %p61 = por %p59, %p60
    %p63 = scmp.ne.s32.totalorder %s48, %s62
    %p64 = scmp.eq.s32.totalorder %s17, 0
    %p65 = por %p63, %p64
    %s67 = sadd.s32 %s66, 1
    %p70 = scmp.eq.s32.totalorder %s11, 1
    %p71 = scmp.ne.s32.totalorder %s66, %s68
    %p72 = scmp.eq.s32.totalorder %s11, 0
    %p73 = por %p71, %p72
    %p74 = scmp.ne.s32.totalorder %s66, %s68
    %p75 = scmp.eq.s32.totalorder %s16, 1
    %p76 = por %p74, %p75
    %p77 = scmp.ne.s32.totalorder %s68, %s69
    %p78 = scmp.eq.s32.totalorder %s16, 0
    %p79 = por %p77, %p78
    %p80 = scmp.ne.s32.totalorder %s68, %s69
    %p81 = scmp.eq.s32.totalorder %s17, 1
    %p82 = por %p80, %p81
    %p84 = scmp.ne.s32.totalorder %s69, %s83
    %p85 = scmp.eq.s32.totalorder %s17, 0
    %p86 = por %p84, %p85
    %s87 = ssub.s32 %s11, %s18
    %p88 = scmp.eq.s32.totalorder %s87, 0
    %s90 = sadd.s32 %s89, 1
    %s91 = scalar_select %p88, %s89, %s90
    %p94 = pneg %p88
    %p95 = scmp.eq.s32.totalorder %s11, 1
    %p96 = por %p94, %p95
    %p97 = scmp.ne.s32.totalorder %s89, %s92
    %p98 = scmp.eq.s32.totalorder %s11, 0
    %p99 = por %p97, %p98
    %p100 = scmp.ne.s32.totalorder %s89, %s92
    %p101 = scmp.eq.s32.totalorder %s16, 1
    %p102 = por %p100, %p101
    %p103 = scmp.ne.s32.totalorder %s92, %s93
    %p104 = scmp.eq.s32.totalorder %s16, 0
    %p105 = por %p103, %p104
    %p106 = scmp.ne.s32.totalorder %s92, %s93
    %p107 = scmp.eq.s32.totalorder %s17, 1
    %p108 = por %p106, %p107
    %p110 = scmp.ne.s32.totalorder %s93, %s109
    %p111 = scmp.eq.s32.totalorder %s17, 0
    %p112 = por %p110, %p111
    %s113 = ssub.s32 %s11, %s18
    %p114 = scmp.eq.s32.totalorder %s113, 0
    %s116 = sadd.s32 %s115, 1
    %s117 = scalar_select %p114, %s115, %s116
    %p120 = pneg %p114
    %p121 = scmp.eq.s32.totalorder %s11, 1
    %p122 = por %p120, %p121
    %p123 = scmp.ne.s32.totalorder %s115, %s118
    %p124 = scmp.eq.s32.totalorder %s11, 0
    %p125 = por %p123, %p124
    %p126 = scmp.ne.s32.totalorder %s115, %s118
    %p127 = scmp.eq.s32.totalorder %s16, 1
    %p128 = por %p126, %p127
    %p129 = scmp.ne.s32.totalorder %s118, %s119
    %p130 = scmp.eq.s32.totalorder %s16, 0
    %p131 = por %p129, %p130
    %p132 = scmp.ne.s32.totalorder %s118, %s119
    %p133 = scmp.eq.s32.totalorder %s17, 1
    %p134 = por %p132, %p133
    %p136 = scmp.ne.s32.totalorder %s119, %s135
    %p137 = scmp.eq.s32.totalorder %s17, 0
    %p138 = por %p136, %p137
    %p139 = scmp.le.s32.totalorder 1, %s11
    %p140 = scmp.lt.s32.totalorder %s11, 3
    %p141 = pnand %p139, %p140
    %p142 = pneg %p141
    // Predicated region
    $region9: #{residual_block.3} parent=5 // pred_check
      _
    $region10: #{residual_block.3} parent=5 // pred_check_branch
      %144 = sbr.rel (%p141) target = $region12
    $region11: #{residual_block.3} parent=5 // pred_region
      %s145 = ssub.s32 %s11, 1
      // Predicated region
      $region13: #{residual_block.3} parent=11 // pred_check
        %p146 = pneg %p58
      $region14: #{residual_block.3} parent=11 // pred_check_branch
        %148 = sbr.rel (%p146) target = $region16
      $region15: #{residual_block.3} parent=11 // pred_region
        _
      $region16: #{residual_block.3} parent=11 // pred_fallthru
        _
      // Predicated region
      $region17: #{residual_block.3} parent=11 // pred_check
        %p149 = pneg %p79
      $region18: #{residual_block.3} parent=11 // pred_check_branch
        %151 = sbr.rel (%p149) target = $region20
      $region19: #{residual_block.3} parent=11 // pred_region
        _
      $region20: #{residual_block.3} parent=11 // pred_fallthru
        _
    $region12: #{residual_block.3} parent=5 // pred_fallthru
      _
    %p152 = scmp.lt.s32.totalorder %s11, 2
    // Predicated region
    $region21: #{residual_block.3} parent=5 // pred_check
      %p153 = pneg %p152
    $region22: #{residual_block.3} parent=5 // pred_check_branch
      %155 = sbr.rel (%p153) target = $region24
    $region23: #{residual_block.3} parent=5 // pred_region
      // Predicated region
      $region25: #{residual_block.3} parent=23 // pred_check
        %p156 = pneg %p31
      $region26: #{residual_block.3} parent=23 // pred_check_branch
        %158 = sbr.rel (%p156) target = $region28
      $region27: #{residual_block.3} parent=23 // pred_region
        %p159 = scmp.lt.s32.totalorder %s11, 1
        %s160 = scalar_select %p159, %s11, 1
        %s161 = smul.addr %s160, 54
        %s162 = smul.addr %s161, 4
        %s163 = scalar_lea.vmem %s0, %s162
      $region28: #{residual_block.3} parent=23 // pred_fallthru
        _
    $region24: #{residual_block.3} parent=5 // pred_fallthru
      _
    %p164 = scmp.le.s32.totalorder 1, %s11
    %p165 = scmp.lt.s32.totalorder %s11, 3
    %p166 = pnand %p164, %p165
    %p167 = pneg %p166
    // Predicated region
    $region29: #{residual_block.3} parent=5 // pred_check
      _
    $region30: #{residual_block.3} parent=5 // pred_check_branch
      %169 = sbr.rel (%p166) target = $region32
    $region31: #{residual_block.3} parent=5 // pred_region
      %s170 = ssub.s32 %s11, 1
      %p171 = scmp.lt.s32.totalorder %s16, 1
      %s172 = scalar_select %p171, %s16, 1
      %s173 = smul.addr %s172, 54
      %s174 = smul.addr %s173, 4
      %s175 = scalar_lea.vmem %s0, %s174
      %p176 = pneg %p37
      %p177 = pneg %p34
      %p178 = pneg %p58
      %p179 = pneg %p55
      %p180 = pneg %p79
      %p181 = pneg %p76
      %p182 = pneg %p105
      %p183 = pneg %p102
      %p184 = scmp.lt.s32.totalorder %s16, 1
      %s185 = scalar_select %p184, %s16, 1
      %s186 = smul.addr %s185, 32
      %s187 = smul.addr %s186, 4
      %s188 = scalar_lea.vmem %s3, %s187
      %p189 = pneg %p131
      %p190 = pneg %p128
      %p191 = scmp.lt.s32.totalorder %s16, 1
      %s192 = scalar_select %p191, %s16, 1
      %s193 = smul.addr %s192, 2
      %s194 = scalar_lea.vmem %s4, %s193
      %p195 = scmp.lt.s32.totalorder %s16, 1
      %s196 = scalar_select %p195, %s16, 1
      %s197 = smul.addr %s196, 54
      %s198 = smul.addr %s197, 4
      %s199 = scalar_lea.vmem %s0, %s198
      %p200 = scmp.lt.s32.totalorder %s16, 1
      %s201 = scalar_select %p200, %s16, 1
      %s202 = smul.addr %s201, 32
      %s203 = smul.addr %s202, 4
      %s204 = scalar_lea.vmem %s3, %s203
      %p205 = scmp.lt.s32.totalorder %s16, 1
      %s206 = scalar_select %p205, %s16, 1
      %s207 = smul.addr %s206, 2
      %s208 = scalar_lea.vmem %s4, %s207
      %v209 = vld [vmem:[%s2] sm:$0x1]
      %v211 = vperm.slane %v209, 0
      %v213 = vld [vmem:[%s199] sm:$0xf]
      %v214 = vld [vmem:[%s199 + $0x4] sm:$0xf]
      %v215 = vld [vmem:[%s199 + $0xc] sm:$0xf]
      %v216 = vld [vmem:[%s199 + $0x10] sm:$0xf]
      %v217 = vld [vmem:[%s199 + $0x18] sm:$0xf]
      %v218 = vld [vmem:[%s199 + $0x1c] sm:$0xf]
      %v219 = vld [vmem:[%s199 + $0x24] sm:$0xf]
      %v220 = vld [vmem:[%s199 + $0x28] sm:$0xf]
      %v221 = vld [vmem:[%s199 + $0x30] sm:$0xf]
      %v222 = vld [vmem:[%s199 + $0x34] sm:$0xf]
      %v223 = vld [vmem:[%s199 + $0x3c] sm:$0xf]
      %v224 = vld [vmem:[%s199 + $0x40] sm:$0xf]
      %v225 = vld [vmem:[%s199 + $0x48] sm:$0xf]
      %v226 = vld [vmem:[%s199 + $0x4c] sm:$0xf]
      %v227 = vld [vmem:[%s199 + $0x54] sm:$0xf]
      %v228 = vld [vmem:[%s199 + $0x58] sm:$0xf]
      %v229 = vld [vmem:[%s199 + $0x60] sm:$0xf]
      %v230 = vld [vmem:[%s199 + $0x64] sm:$0xf]
      %v231 = vld [vmem:[%s199 + $0x6c] sm:$0xf]
      %v232 = vld [vmem:[%s199 + $0x70] sm:$0xf]
      %v233 = vld [vmem:[%s199 + $0x78] sm:$0xf]
      %v234 = vld [vmem:[%s199 + $0x7c] sm:$0xf]
      %v235 = vld [vmem:[%s199 + $0x84] sm:$0xf]
      %v236 = vld [vmem:[%s199 + $0x88] sm:$0xf]
      %v237 = vld [vmem:[%s199 + $0x90] sm:$0xf]
      %v238 = vld [vmem:[%s199 + $0x94] sm:$0xf]
      %v239 = vld [vmem:[%s199 + $0x9c] sm:$0xf]
      %v240 = vld [vmem:[%s199 + $0xa0] sm:$0xf]
      %v241 = vld [vmem:[%s199 + $0xa8] sm:$0xf]
      %v242 = vld [vmem:[%s199 + $0xac] sm:$0xf]
      %v243 = vld [vmem:[%s199 + $0xb4] sm:$0xf]
      %v244 = vld [vmem:[%s199 + $0xb8] sm:$0xf]
      %v245 = vld [vmem:[%s1] sm:$0xf]
      %v246 = vld [vmem:[%s1 + $0x4] sm:$0xf]
      %v247 = vld [vmem:[%s1 + $0x8] sm:$0xf]
      %v248 = vld [vmem:[%s1 + $0xc] sm:$0xf]
      %v249 = vld [vmem:[%s1 + $0x10] sm:$0xf]
      %v250 = vld [vmem:[%s1 + $0x14] sm:$0xf]
      %v251 = vld [vmem:[%s1 + $0x18] sm:$0xf]
      %v252 = vld [vmem:[%s1 + $0x1c] sm:$0xf]
      %v253 = vld [vmem:[%s1 + $0x20] sm:$0xf]
      %v254 = vld [vmem:[%s1 + $0x24] sm:$0xf]
      %v255 = vld [vmem:[%s1 + $0x28] sm:$0xf]
      %v256 = vld [vmem:[%s1 + $0x2c] sm:$0xf]
      %v257 = vld [vmem:[%s1 + $0x30] sm:$0xf]
      %v258 = vld [vmem:[%s1 + $0x34] sm:$0xf]
      %v259 = vld [vmem:[%s1 + $0x38] sm:$0xf]
      %v260 = vld [vmem:[%s1 + $0x3c] sm:$0xf]
      %v293 = vunpack.c.l.b16 %v213
      %v294 = vunpack.c.l.b16 %v214
      %v295 = vunpack.c.l.b16 %v215
      %v296 = vunpack.c.l.b16 %v216
      %v297 = vunpack.c.l.b16 %v217
      %v298 = vunpack.c.l.b16 %v218
      %v299 = vunpack.c.l.b16 %v219
      %v300 = vunpack.c.l.b16 %v220
      %v301 = vunpack.c.l.b16 %v221
      %v302 = vunpack.c.l.b16 %v222
      %v303 = vunpack.c.l.b16 %v223
      %v304 = vunpack.c.l.b16 %v224
      %v305 = vunpack.c.l.b16 %v225
      %v306 = vunpack.c.l.b16 %v226
      %v307 = vunpack.c.l.b16 %v227
      %v308 = vunpack.c.l.b16 %v228
      %v309 = vunpack.c.l.b16 %v229
      %v310 = vunpack.c.l.b16 %v230
      %v311 = vunpack.c.l.b16 %v231
      %v312 = vunpack.c.l.b16 %v232
      %v313 = vunpack.c.l.b16 %v233
      %v314 = vunpack.c.l.b16 %v234
      %v315 = vunpack.c.l.b16 %v235
      %v316 = vunpack.c.l.b16 %v236
      %v317 = vunpack.c.l.b16 %v237
      %v318 = vunpack.c.l.b16 %v238
      %v319 = vunpack.c.l.b16 %v239
      %v320 = vunpack.c.l.b16 %v240
      %v321 = vunpack.c.l.b16 %v241
      %v322 = vunpack.c.l.b16 %v242
      %v323 = vunpack.c.l.b16 %v243
      %v324 = vunpack.c.l.b16 %v244
      %v325 = vpack.c.b16 %v294, %v293
      %v326 = vpack.c.b16 %v296, %v295
      %v327 = vpack.c.b16 %v298, %v297
      %v328 = vpack.c.b16 %v300, %v299
      %v329 = vpack.c.b16 %v302, %v301
      %v330 = vpack.c.b16 %v304, %v303
      %v331 = vpack.c.b16 %v306, %v305
      %v332 = vpack.c.b16 %v308, %v307
      %v333 = vpack.c.b16 %v310, %v309
      %v334 = vpack.c.b16 %v312, %v311
      %v335 = vpack.c.b16 %v314, %v313
      %v336 = vpack.c.b16 %v316, %v315
      %v337 = vpack.c.b16 %v318, %v317
      %v338 = vpack.c.b16 %v320, %v319
      %v339 = vpack.c.b16 %v322, %v321
      %v340 = vpack.c.b16 %v324, %v323
      %v373 = vunpack.c.l.b16 %v245
      %v374 = vunpack.c.l.b16 %v246
      %v375 = vunpack.c.l.b16 %v247
      %v376 = vunpack.c.l.b16 %v248
      %v377 = vunpack.c.l.b16 %v249
      %v378 = vunpack.c.l.b16 %v250
      %v379 = vunpack.c.l.b16 %v251
      %v380 = vunpack.c.l.b16 %v252
      %v381 = vunpack.c.l.b16 %v253
      %v382 = vunpack.c.l.b16 %v254
      %v383 = vunpack.c.l.b16 %v255
      %v384 = vunpack.c.l.b16 %v256
      %v385 = vunpack.c.l.b16 %v257
      %v386 = vunpack.c.l.b16 %v258
      %v387 = vunpack.c.l.b16 %v259
      %v388 = vunpack.c.l.b16 %v260
      %v389 = vpack.c.b16 %v374, %v373
      %v390 = vpack.c.b16 %v376, %v375
      %v391 = vpack.c.b16 %v378, %v377
      %v392 = vpack.c.b16 %v380, %v379
      %v393 = vpack.c.b16 %v382, %v381
      %v394 = vpack.c.b16 %v384, %v383
      %v395 = vpack.c.b16 %v386, %v385
      %v396 = vpack.c.b16 %v388, %v387
      %405 = vmatpush.bf16.msra.mxu0 %v396
      %406 = vmatpush.bf16.msra.mxu0 %v395
      %407 = vmatpush.bf16.msra.mxu0 %v394
      %408 = vmatpush.bf16.msra.mxu0 %v393
      %409 = vmatpush.bf16.msra.mxu0 %v392
      %410 = vmatpush.bf16.msra.mxu0 %v391
      %411 = vmatpush.bf16.msra.mxu0 %v390
      %412 = vmatpush.bf16.msra.mxu0 %v389
      %413 = vmatmul.bf16.gmra.mxu0 %v325
      %v414 = vpop.f32.mrf.mxu0
      %v415 = vadd.f32 0.0, %v414
      %v416 = vpop.f32.mrf.mxu0
      %v417 = vadd.f32 0.0, %v416
      %418 = vmatmul.bf16.gmra.mxu0 %v326
      %v419 = vpop.f32.mrf.mxu0
      %v420 = vadd.f32 0.0, %v419
      %v421 = vpop.f32.mrf.mxu0
      %v422 = vadd.f32 0.0, %v421
      %423 = vmatmul.bf16.gmra.mxu0 %v327
      %v424 = vpop.f32.mrf.mxu0
      %v425 = vadd.f32 0.0, %v424
      %v426 = vpop.f32.mrf.mxu0
      %v427 = vadd.f32 0.0, %v426
      %428 = vmatmul.bf16.gmra.mxu0 %v328
      %v429 = vpop.f32.mrf.mxu0
      %v430 = vadd.f32 0.0, %v429
      %v431 = vpop.f32.mrf.mxu0
      %v432 = vadd.f32 0.0, %v431
      %433 = vmatmul.bf16.gmra.mxu0 %v329
      %v434 = vpop.f32.mrf.mxu0
      %v435 = vadd.f32 0.0, %v434
      %v436 = vpop.f32.mrf.mxu0
      %v437 = vadd.f32 0.0, %v436
      %438 = vmatmul.bf16.gmra.mxu0 %v330
      %v439 = vpop.f32.mrf.mxu0
      %v440 = vadd.f32 0.0, %v439
      %v441 = vpop.f32.mrf.mxu0
      %v442 = vadd.f32 0.0, %v441
      %443 = vmatmul.bf16.gmra.mxu0 %v331
      %v444 = vpop.f32.mrf.mxu0
      %v445 = vadd.f32 0.0, %v444
      %v446 = vpop.f32.mrf.mxu0
      %v447 = vadd.f32 0.0, %v446
      %448 = vmatmul.bf16.gmra.mxu0 %v332
      %v449 = vpop.f32.mrf.mxu0
      %v450 = vadd.f32 0.0, %v449
      %v451 = vpop.f32.mrf.mxu0
      %v452 = vadd.f32 0.0, %v451
      %453 = vmatmul.bf16.gmra.mxu0 %v333
      %v454 = vpop.f32.mrf.mxu0
      %v455 = vadd.f32 0.0, %v454
      %v456 = vpop.f32.mrf.mxu0
      %v457 = vadd.f32 0.0, %v456
      %458 = vmatmul.bf16.gmra.mxu0 %v334
      %v459 = vpop.f32.mrf.mxu0
      %v460 = vadd.f32 0.0, %v459
      %v461 = vpop.f32.mrf.mxu0
      %v462 = vadd.f32 0.0, %v461
      %463 = vmatmul.bf16.gmra.mxu0 %v335
      %v464 = vpop.f32.mrf.mxu0
      %v465 = vadd.f32 0.0, %v464
      %v466 = vpop.f32.mrf.mxu0
      %v467 = vadd.f32 0.0, %v466
      %468 = vmatmul.bf16.gmra.mxu0 %v336
      %v469 = vpop.f32.mrf.mxu0
      %v470 = vadd.f32 0.0, %v469
      %v471 = vpop.f32.mrf.mxu0
      %v472 = vadd.f32 0.0, %v471
      %473 = vmatmul.bf16.gmra.mxu0 %v337
      %v474 = vpop.f32.mrf.mxu0
      %v475 = vadd.f32 0.0, %v474
      %v476 = vpop.f32.mrf.mxu0
      %v477 = vadd.f32 0.0, %v476
      %478 = vmatmul.bf16.gmra.mxu0 %v338
      %v479 = vpop.f32.mrf.mxu0
      %v480 = vadd.f32 0.0, %v479
      %v481 = vpop.f32.mrf.mxu0
      %v482 = vadd.f32 0.0, %v481
      %483 = vmatmul.bf16.gmra.mxu0 %v339
      %v484 = vpop.f32.mrf.mxu0
      %v485 = vadd.f32 0.0, %v484
      %v486 = vpop.f32.mrf.mxu0
      %v487 = vadd.f32 0.0, %v486
      %488 = vmatmul.bf16.gmra.mxu0 %v340
      %v489 = vpop.f32.mrf.mxu0
      %v490 = vadd.f32 0.0, %v489
      %v491 = vpop.f32.mrf.mxu0
      %v492 = vadd.f32 0.0, %v491
      %493 = vdwg.mxu0
      %v494 = vadd.f32 %v211, %v415
      %v495 = vadd.f32 %v211, %v417
      %v496 = vadd.f32 %v211, %v420
      %v497 = vadd.f32 %v211, %v422
      %v498 = vadd.f32 %v211, %v425
      %v499 = vadd.f32 %v211, %v427
      %v500 = vadd.f32 %v211, %v430
      %v501 = vadd.f32 %v211, %v432
      %v502 = vadd.f32 %v211, %v435
      %v503 = vadd.f32 %v211, %v437
      %v504 = vadd.f32 %v211, %v440
      %v505 = vadd.f32 %v211, %v442
      %v506 = vadd.f32 %v211, %v445
      %v507 = vadd.f32 %v211, %v447
      %v508 = vadd.f32 %v211, %v450
      %v509 = vadd.f32 %v211, %v452
      %v510 = vadd.f32 %v211, %v455
      %v511 = vadd.f32 %v211, %v457
      %v512 = vadd.f32 %v211, %v460
      %v513 = vadd.f32 %v211, %v462
      %v514 = vadd.f32 %v211, %v465
      %v515 = vadd.f32 %v211, %v467
      %v516 = vadd.f32 %v211, %v470
      %v517 = vadd.f32 %v211, %v472
      %v518 = vadd.f32 %v211, %v475
      %v519 = vadd.f32 %v211, %v477
      %v520 = vadd.f32 %v211, %v480
      %v521 = vadd.f32 %v211, %v482
      %v522 = vadd.f32 %v211, %v485
      %v523 = vadd.f32 %v211, %v487
      %v524 = vadd.f32 %v211, %v490
      %v525 = vadd.f32 %v211, %v492
      %v526 = vld [vmem:[%s199] sm:$0xf]
      %v527 = vld [vmem:[%s199 + $0x4] sm:$0xf]
      %v528 = vld [vmem:[%s199 + $0x8] sm:$0x1]
      %v529 = vld [vmem:[%s199 + $0xc] sm:$0xf]
      %v530 = vld [vmem:[%s199 + $0x10] sm:$0xf]
      %v531 = vld [vmem:[%s199 + $0x14] sm:$0x1]
      %v532 = vld [vmem:[%s199 + $0x18] sm:$0xf]
      %v533 = vld [vmem:[%s199 + $0x1c] sm:$0xf]
      %v534 = vld [vmem:[%s199 + $0x20] sm:$0x1]
      %v535 = vld [vmem:[%s199 + $0x24] sm:$0xf]
      %v536 = vld [vmem:[%s199 + $0x28] sm:$0xf]
      %v537 = vld [vmem:[%s199 + $0x2c] sm:$0x1]
      %v538 = vld [vmem:[%s199 + $0x30] sm:$0xf]
      %v539 = vld [vmem:[%s199 + $0x34] sm:$0xf]
      %v540 = vld [vmem:[%s199 + $0x38] sm:$0x1]
      %v541 = vld [vmem:[%s199 + $0x3c] sm:$0xf]
      %v542 = vld [vmem:[%s199 + $0x40] sm:$0xf]
      %v543 = vld [vmem:[%s199 + $0x44] sm:$0x1]
      %v544 = vld [vmem:[%s199 + $0x48] sm:$0xf]
      %v545 = vld [vmem:[%s199 + $0x4c] sm:$0xf]
      %v546 = vld [vmem:[%s199 + $0x50] sm:$0x1]
      %v547 = vld [vmem:[%s199 + $0x54] sm:$0xf]
      %v548 = vld [vmem:[%s199 + $0x58] sm:$0xf]
      %v549 = vld [vmem:[%s199 + $0x5c] sm:$0x1]
      %v550 = vld [vmem:[%s199 + $0x60] sm:$0xf]
      %v551 = vld [vmem:[%s199 + $0x64] sm:$0xf]
      %v552 = vld [vmem:[%s199 + $0x68] sm:$0x1]
      %v553 = vld [vmem:[%s199 + $0x6c] sm:$0xf]
      %v554 = vld [vmem:[%s199 + $0x70] sm:$0xf]
      %v555 = vld [vmem:[%s199 + $0x74] sm:$0x1]
      %v556 = vld [vmem:[%s199 + $0x78] sm:$0xf]
      %v557 = vld [vmem:[%s199 + $0x7c] sm:$0xf]
      %v558 = vld [vmem:[%s199 + $0x80] sm:$0x1]
      %v559 = vld [vmem:[%s199 + $0x84] sm:$0xf]
      %v560 = vld [vmem:[%s199 + $0x88] sm:$0xf]
      %v561 = vld [vmem:[%s199 + $0x8c] sm:$0x1]
      %v562 = vld [vmem:[%s199 + $0x90] sm:$0xf]
      %v563 = vld [vmem:[%s199 + $0x94] sm:$0xf]
      %v564 = vld [vmem:[%s199 + $0x98] sm:$0x1]
      %v565 = vld [vmem:[%s199 + $0x9c] sm:$0xf]
      %v566 = vld [vmem:[%s199 + $0xa0] sm:$0xf]
      %v567 = vld [vmem:[%s199 + $0xa4] sm:$0x1]
      %v568 = vld [vmem:[%s199 + $0xa8] sm:$0xf]
      %v569 = vld [vmem:[%s199 + $0xac] sm:$0xf]
      %v570 = vld [vmem:[%s199 + $0xb0] sm:$0x1]
      %v571 = vld [vmem:[%s199 + $0xb4] sm:$0xf]
      %v572 = vld [vmem:[%s199 + $0xb8] sm:$0xf]
      %v573 = vld [vmem:[%s199 + $0xbc] sm:$0x1]
      %vm574 = vsmask.f32 3328
      %vm575 = vsmask.f32 7440
      %vm576 = vmor %vm574, %vm575
      %v578 = vshrl.u32 %v526, 16
      %v580 = vrot.slane %v578, 4
      %v581 = vshll.u32 %v526, 16
      %v583 = vrot.slane %v581, 5
      %v584 = vor.u32 %v580, %v583
      %v585 = vrot.slane %v584, 4
      %v587 = vshll.u32 %v527, 16
      %v589 = vrot.slane %v587, 5
      %v590 = vsel %vm576, %v585, %v589
      %v591 = vshrl.u32 %v527, 16
      %v593 = vrot.slane %v591, 4
      %v594 = vor.u32 %v593, %v589
      %v595 = vrot.slane %v594, 4
      %v597 = vshll.u32 %v528, 16
      %v599 = vrot.slane %v597, 5
      %v600 = vsel %vm576, %v595, %v599
      %v602 = vshrl.u32 %v529, 16
      %v604 = vrot.slane %v602, 4
      %v605 = vshll.u32 %v529, 16
      %v607 = vrot.slane %v605, 5
      %v608 = vor.u32 %v604, %v607
      %v609 = vrot.slane %v608, 4
      %v611 = vshll.u32 %v530, 16
      %v613 = vrot.slane %v611, 5
      %v614 = vsel %vm576, %v609, %v613
      %v615 = vshrl.u32 %v530, 16
      %v617 = vrot.slane %v615, 4
      %v618 = vor.u32 %v617, %v613
      %v619 = vrot.slane %v618, 4
      %v621 = vshll.u32 %v531, 16
      %v623 = vrot.slane %v621, 5
      %v624 = vsel %vm576, %v619, %v623
      %v626 = vshrl.u32 %v532, 16
      %v628 = vrot.slane %v626, 4
      %v629 = vshll.u32 %v532, 16
      %v631 = vrot.slane %v629, 5
      %v632 = vor.u32 %v628, %v631
      %v633 = vrot.slane %v632, 4
      %v635 = vshll.u32 %v533, 16
      %v637 = vrot.slane %v635, 5
      %v638 = vsel %vm576, %v633, %v637
      %v639 = vshrl.u32 %v533, 16
      %v641 = vrot.slane %v639, 4
      %v642 = vor.u32 %v641, %v637
      %v643 = vrot.slane %v642, 4
      %v645 = vshll.u32 %v534, 16
      %v647 = vrot.slane %v645, 5
      %v648 = vsel %vm576, %v643, %v647
      %v650 = vshrl.u32 %v535, 16
      %v652 = vrot.slane %v650, 4
      %v653 = vshll.u32 %v535, 16
      %v655 = vrot.slane %v653, 5
      %v656 = vor.u32 %v652, %v655
      %v657 = vrot.slane %v656, 4
      %v659 = vshll.u32 %v536, 16
      %v661 = vrot.slane %v659, 5
      %v662 = vsel %vm576, %v657, %v661
      %v663 = vshrl.u32 %v536, 16
      %v665 = vrot.slane %v663, 4
      %v666 = vor.u32 %v665, %v661
      %v667 = vrot.slane %v666, 4
      %v669 = vshll.u32 %v537, 16
      %v671 = vrot.slane %v669, 5
      %v672 = vsel %vm576, %v667, %v671
      %v674 = vshrl.u32 %v538, 16
      %v676 = vrot.slane %v674, 4
      %v677 = vshll.u32 %v538, 16
      %v679 = vrot.slane %v677, 5
      %v680 = vor.u32 %v676, %v679
      %v681 = vrot.slane %v680, 4
      %v683 = vshll.u32 %v539, 16
      %v685 = vrot.slane %v683, 5
      %v686 = vsel %vm576, %v681, %v685
      %v687 = vshrl.u32 %v539, 16
      %v689 = vrot.slane %v687, 4
      %v690 = vor.u32 %v689, %v685
      %v691 = vrot.slane %v690, 4
      %v693 = vshll.u32 %v540, 16
      %v695 = vrot.slane %v693, 5
      %v696 = vsel %vm576, %v691, %v695
      %v698 = vshrl.u32 %v541, 16
      %v700 = vrot.slane %v698, 4
      %v701 = vshll.u32 %v541, 16
      %v703 = vrot.slane %v701, 5
      %v704 = vor.u32 %v700, %v703
      %v705 = vrot.slane %v704, 4
      %v707 = vshll.u32 %v542, 16
      %v709 = vrot.slane %v707, 5
      %v710 = vsel %vm576, %v705, %v709
      %v711 = vshrl.u32 %v542, 16
      %v713 = vrot.slane %v711, 4
      %v714 = vor.u32 %v713, %v709
      %v715 = vrot.slane %v714, 4
      %v717 = vshll.u32 %v543, 16
      %v719 = vrot.slane %v717, 5
      %v720 = vsel %vm576, %v715, %v719
      %v722 = vshrl.u32 %v544, 16
      %v724 = vrot.slane %v722, 4
      %v725 = vshll.u32 %v544, 16
      %v727 = vrot.slane %v725, 5
      %v728 = vor.u32 %v724, %v727
      %v729 = vrot.slane %v728, 4
      %v731 = vshll.u32 %v545, 16
      %v733 = vrot.slane %v731, 5
      %v734 = vsel %vm576, %v729, %v733
      %v735 = vshrl.u32 %v545, 16
      %v737 = vrot.slane %v735, 4
      %v738 = vor.u32 %v737, %v733
      %v739 = vrot.slane %v738, 4
      %v741 = vshll.u32 %v546, 16
      %v743 = vrot.slane %v741, 5
      %v744 = vsel %vm576, %v739, %v743
      %v746 = vshrl.u32 %v547, 16
      %v748 = vrot.slane %v746, 4
      %v749 = vshll.u32 %v547, 16
      %v751 = vrot.slane %v749, 5
      %v752 = vor.u32 %v748, %v751
      %v753 = vrot.slane %v752, 4
      %v755 = vshll.u32 %v548, 16
      %v757 = vrot.slane %v755, 5
      %v758 = vsel %vm576, %v753, %v757
      %v759 = vshrl.u32 %v548, 16
      %v761 = vrot.slane %v759, 4
      %v762 = vor.u32 %v761, %v757
      %v763 = vrot.slane %v762, 4
      %v765 = vshll.u32 %v549, 16
      %v767 = vrot.slane %v765, 5
      %v768 = vsel %vm576, %v763, %v767
      %v770 = vshrl.u32 %v550, 16
      %v772 = vrot.slane %v770, 4
      %v773 = vshll.u32 %v550, 16
      %v775 = vrot.slane %v773, 5
      %v776 = vor.u32 %v772, %v775
      %v777 = vrot.slane %v776, 4
      %v779 = vshll.u32 %v551, 16
      %v781 = vrot.slane %v779, 5
      %v782 = vsel %vm576, %v777, %v781
      %v783 = vshrl.u32 %v551, 16
      %v785 = vrot.slane %v783, 4
      %v786 = vor.u32 %v785, %v781
      %v787 = vrot.slane %v786, 4
      %v789 = vshll.u32 %v552, 16
      %v791 = vrot.slane %v789, 5
      %v792 = vsel %vm576, %v787, %v791
      %v794 = vshrl.u32 %v553, 16
      %v796 = vrot.slane %v794, 4
      %v797 = vshll.u32 %v553, 16
      %v799 = vrot.slane %v797, 5
      %v800 = vor.u32 %v796, %v799
      %v801 = vrot.slane %v800, 4
      %v803 = vshll.u32 %v554, 16
      %v805 = vrot.slane %v803, 5
      %v806 = vsel %vm576, %v801, %v805
      %v807 = vshrl.u32 %v554, 16
      %v809 = vrot.slane %v807, 4
      %v810 = vor.u32 %v809, %v805
      %v811 = vrot.slane %v810, 4
      %v813 = vshll.u32 %v555, 16
      %v815 = vrot.slane %v813, 5
      %v816 = vsel %vm576, %v811, %v815
      %v818 = vshrl.u32 %v556, 16
      %v820 = vrot.slane %v818, 4
      %v821 = vshll.u32 %v556, 16
      %v823 = vrot.slane %v821, 5
      %v824 = vor.u32 %v820, %v823
      %v825 = vrot.slane %v824, 4
      %v827 = vshll.u32 %v557, 16
      %v829 = vrot.slane %v827, 5
      %v830 = vsel %vm576, %v825, %v829
      %v831 = vshrl.u32 %v557, 16
      %v833 = vrot.slane %v831, 4
      %v834 = vor.u32 %v833, %v829
      %v835 = vrot.slane %v834, 4
      %v837 = vshll.u32 %v558, 16
      %v839 = vrot.slane %v837, 5
      %v840 = vsel %vm576, %v835, %v839
      %v842 = vshrl.u32 %v559, 16
      %v844 = vrot.slane %v842, 4
      %v845 = vshll.u32 %v559, 16
      %v847 = vrot.slane %v845, 5
      %v848 = vor.u32 %v844, %v847
      %v849 = vrot.slane %v848, 4
      %v851 = vshll.u32 %v560, 16
      %v853 = vrot.slane %v851, 5
      %v854 = vsel %vm576, %v849, %v853
      %v855 = vshrl.u32 %v560, 16
      %v857 = vrot.slane %v855, 4
      %v858 = vor.u32 %v857, %v853
      %v859 = vrot.slane %v858, 4
      %v861 = vshll.u32 %v561, 16
      %v863 = vrot.slane %v861, 5
      %v864 = vsel %vm576, %v859, %v863
      %v866 = vshrl.u32 %v562, 16
      %v868 = vrot.slane %v866, 4
      %v869 = vshll.u32 %v562, 16
      %v871 = vrot.slane %v869, 5
      %v872 = vor.u32 %v868, %v871
      %v873 = vrot.slane %v872, 4
      %v875 = vshll.u32 %v563, 16
      %v877 = vrot.slane %v875, 5
      %v878 = vsel %vm576, %v873, %v877
      %v879 = vshrl.u32 %v563, 16
      %v881 = vrot.slane %v879, 4
      %v882 = vor.u32 %v881, %v877
      %v883 = vrot.slane %v882, 4
      %v885 = vshll.u32 %v564, 16
      %v887 = vrot.slane %v885, 5
      %v888 = vsel %vm576, %v883, %v887
      %v890 = vshrl.u32 %v565, 16
      %v892 = vrot.slane %v890, 4
      %v893 = vshll.u32 %v565, 16
      %v895 = vrot.slane %v893, 5
      %v896 = vor.u32 %v892, %v895
      %v897 = vrot.slane %v896, 4
      %v899 = vshll.u32 %v566, 16
      %v901 = vrot.slane %v899, 5
      %v902 = vsel %vm576, %v897, %v901
      %v903 = vshrl.u32 %v566, 16
      %v905 = vrot.slane %v903, 4
      %v906 = vor.u32 %v905, %v901
      %v907 = vrot.slane %v906, 4
      %v909 = vshll.u32 %v567, 16
      %v911 = vrot.slane %v909, 5
      %v912 = vsel %vm576, %v907, %v911
      %v914 = vshrl.u32 %v568, 16
      %v916 = vrot.slane %v914, 4
      %v917 = vshll.u32 %v568, 16
      %v919 = vrot.slane %v917, 5
      %v920 = vor.u32 %v916, %v919
      %v921 = vrot.slane %v920, 4
      %v923 = vshll.u32 %v569, 16
      %v925 = vrot.slane %v923, 5
      %v926 = vsel %vm576, %v921, %v925
      %v927 = vshrl.u32 %v569, 16
      %v929 = vrot.slane %v927, 4
      %v930 = vor.u32 %v929, %v925
      %v931 = vrot.slane %v930, 4
      %v933 = vshll.u32 %v570, 16
      %v935 = vrot.slane %v933, 5
      %v936 = vsel %vm576, %v931, %v935
      %v938 = vshrl.u32 %v571, 16
      %v940 = vrot.slane %v938, 4
      %v941 = vshll.u32 %v571, 16
      %v943 = vrot.slane %v941, 5
      %v944 = vor.u32 %v940, %v943
      %v945 = vrot.slane %v944, 4
      %v947 = vshll.u32 %v572, 16
      %v949 = vrot.slane %v947, 5
      %v950 = vsel %vm576, %v945, %v949
      %v951 = vshrl.u32 %v572, 16
      %v953 = vrot.slane %v951, 4
      %v954 = vor.u32 %v953, %v949
      %v955 = vrot.slane %v954, 4
      %v957 = vshll.u32 %v573, 16
      %v959 = vrot.slane %v957, 5
      %v960 = vsel %vm576, %v955, %v959
      %s961 = scalar_lea.vmem %s1, 64
      %v962 = vld [vmem:[%s961] sm:$0xf]
      %v963 = vld [vmem:[%s961 + $0x4] sm:$0xf]
      %v964 = vld [vmem:[%s961 + $0x8] sm:$0xf]
      %v965 = vld [vmem:[%s961 + $0xc] sm:$0xf]
      %v966 = vld [vmem:[%s961 + $0x10] sm:$0xf]
      %v967 = vld [vmem:[%s961 + $0x14] sm:$0xf]
      %v968 = vld [vmem:[%s961 + $0x18] sm:$0xf]
      %v969 = vld [vmem:[%s961 + $0x1c] sm:$0xf]
      %v970 = vld [vmem:[%s961 + $0x20] sm:$0xf]
      %v971 = vld [vmem:[%s961 + $0x24] sm:$0xf]
      %v972 = vld [vmem:[%s961 + $0x28] sm:$0xf]
      %v973 = vld [vmem:[%s961 + $0x2c] sm:$0xf]
      %v974 = vld [vmem:[%s961 + $0x30] sm:$0xf]
      %v975 = vld [vmem:[%s961 + $0x34] sm:$0xf]
      %v976 = vld [vmem:[%s961 + $0x38] sm:$0xf]
      %v977 = vld [vmem:[%s961 + $0x3c] sm:$0xf]
      %v978 = vunpack.c.l.b16 %v590
      %v979 = vunpack.c.l.b16 %v600
      %v980 = vunpack.c.l.b16 %v614
      %v981 = vunpack.c.l.b16 %v624
      %v982 = vunpack.c.l.b16 %v638
      %v983 = vunpack.c.l.b16 %v648
      %v984 = vunpack.c.l.b16 %v662
      %v985 = vunpack.c.l.b16 %v672
      %v986 = vunpack.c.l.b16 %v686
      %v987 = vunpack.c.l.b16 %v696
      %v988 = vunpack.c.l.b16 %v710
      %v989 = vunpack.c.l.b16 %v720
      %v990 = vunpack.c.l.b16 %v734
      %v991 = vunpack.c.l.b16 %v744
      %v992 = vunpack.c.l.b16 %v758
      %v993 = vunpack.c.l.b16 %v768
      %v994 = vunpack.c.l.b16 %v782
      %v995 = vunpack.c.l.b16 %v792
      %v996 = vunpack.c.l.b16 %v806
      %v997 = vunpack.c.l.b16 %v816
      %v998 = vunpack.c.l.b16 %v830
      %v999 = vunpack.c.l.b16 %v840
      %v1000 = vunpack.c.l.b16 %v854
      %v1001 = vunpack.c.l.b16 %v864
      %v1002 = vunpack.c.l.b16 %v878
      %v1003 = vunpack.c.l.b16 %v888
      %v1004 = vunpack.c.l.b16 %v902
      %v1005 = vunpack.c.l.b16 %v912
      %v1006 = vunpack.c.l.b16 %v926
      %v1007 = vunpack.c.l.b16 %v936
      %v1008 = vunpack.c.l.b16 %v950
      %v1009 = vunpack.c.l.b16 %v960
      %v1010 = vpack.c.b16 %v979, %v978
      %v1011 = vpack.c.b16 %v981, %v980
      %v1012 = vpack.c.b16 %v983, %v982
      %v1013 = vpack.c.b16 %v985, %v984
      %v1014 = vpack.c.b16 %v987, %v986
      %v1015 = vpack.c.b16 %v989, %v988
      %v1016 = vpack.c.b16 %v991, %v990
      %v1017 = vpack.c.b16 %v993, %v992
      %v1018 = vpack.c.b16 %v995, %v994
      %v1019 = vpack.c.b16 %v997, %v996
      %v1020 = vpack.c.b16 %v999, %v998
      %v1021 = vpack.c.b16 %v1001, %v1000
      %v1022 = vpack.c.b16 %v1003, %v1002
      %v1023 = vpack.c.b16 %v1005, %v1004
      %v1024 = vpack.c.b16 %v1007, %v1006
      %v1025 = vpack.c.b16 %v1009, %v1008
      %v1058 = vunpack.c.l.b16 %v962
      %v1059 = vunpack.c.l.b16 %v963
      %v1060 = vunpack.c.l.b16 %v964
      %v1061 = vunpack.c.l.b16 %v965
      %v1062 = vunpack.c.l.b16 %v966
      %v1063 = vunpack.c.l.b16 %v967
      %v1064 = vunpack.c.l.b16 %v968
      %v1065 = vunpack.c.l.b16 %v969
      %v1066 = vunpack.c.l.b16 %v970
      %v1067 = vunpack.c.l.b16 %v971
      %v1068 = vunpack.c.l.b16 %v972
      %v1069 = vunpack.c.l.b16 %v973
      %v1070 = vunpack.c.l.b16 %v974
      %v1071 = vunpack.c.l.b16 %v975
      %v1072 = vunpack.c.l.b16 %v976
      %v1073 = vunpack.c.l.b16 %v977
      %v1074 = vpack.c.b16 %v1059, %v1058
      %v1075 = vpack.c.b16 %v1061, %v1060
      %v1076 = vpack.c.b16 %v1063, %v1062
      %v1077 = vpack.c.b16 %v1065, %v1064
      %v1078 = vpack.c.b16 %v1067, %v1066
      %v1079 = vpack.c.b16 %v1069, %v1068
      %v1080 = vpack.c.b16 %v1071, %v1070
      %v1081 = vpack.c.b16 %v1073, %v1072
      %1090 = vmatpush.bf16.msra.mxu0 %v1081
      %1091 = vmatpush.bf16.msra.mxu0 %v1080
      %1092 = vmatpush.bf16.msra.mxu0 %v1079
      %1093 = vmatpush.bf16.msra.mxu0 %v1078
      %1094 = vmatpush.bf16.msra.mxu0 %v1077
      %1095 = vmatpush.bf16.msra.mxu0 %v1076
      %1096 = vmatpush.bf16.msra.mxu0 %v1075
      %1097 = vmatpush.bf16.msra.mxu0 %v1074
      %1098 = vmatmul.bf16.gmra.mxu0 %v1010
      %v1099 = vpop.f32.mrf.mxu0
      %v1100 = vadd.f32 0.0, %v1099
      %v1101 = vpop.f32.mrf.mxu0
      %v1102 = vadd.f32 0.0, %v1101
      %1103 = vmatmul.bf16.gmra.mxu0 %v1011
      %v1104 = vpop.f32.mrf.mxu0
      %v1105 = vadd.f32 0.0, %v1104
      %v1106 = vpop.f32.mrf.mxu0
      %v1107 = vadd.f32 0.0, %v1106
      %1108 = vmatmul.bf16.gmra.mxu0 %v1012
      %v1109 = vpop.f32.mrf.mxu0
      %v1110 = vadd.f32 0.0, %v1109
      %v1111 = vpop.f32.mrf.mxu0
      %v1112 = vadd.f32 0.0, %v1111
      %1113 = vmatmul.bf16.gmra.mxu0 %v1013
      %v1114 = vpop.f32.mrf.mxu0
      %v1115 = vadd.f32 0.0, %v1114
      %v1116 = vpop.f32.mrf.mxu0
      %v1117 = vadd.f32 0.0, %v1116
      %1118 = vmatmul.bf16.gmra.mxu0 %v1014
      %v1119 = vpop.f32.mrf.mxu0
      %v1120 = vadd.f32 0.0, %v1119
      %v1121 = vpop.f32.mrf.mxu0
      %v1122 = vadd.f32 0.0, %v1121
      %1123 = vmatmul.bf16.gmra.mxu0 %v1015
      %v1124 = vpop.f32.mrf.mxu0
      %v1125 = vadd.f32 0.0, %v1124
      %v1126 = vpop.f32.mrf.mxu0
      %v1127 = vadd.f32 0.0, %v1126
      %1128 = vmatmul.bf16.gmra.mxu0 %v1016
      %v1129 = vpop.f32.mrf.mxu0
      %v1130 = vadd.f32 0.0, %v1129
      %v1131 = vpop.f32.mrf.mxu0
      %v1132 = vadd.f32 0.0, %v1131
      %1133 = vmatmul.bf16.gmra.mxu0 %v1017
      %v1134 = vpop.f32.mrf.mxu0
      %v1135 = vadd.f32 0.0, %v1134
      %v1136 = vpop.f32.mrf.mxu0
      %v1137 = vadd.f32 0.0, %v1136
      %1138 = vmatmul.bf16.gmra.mxu0 %v1018
      %v1139 = vpop.f32.mrf.mxu0
      %v1140 = vadd.f32 0.0, %v1139
      %v1141 = vpop.f32.mrf.mxu0
      %v1142 = vadd.f32 0.0, %v1141
      %1143 = vmatmul.bf16.gmra.mxu0 %v1019
      %v1144 = vpop.f32.mrf.mxu0
      %v1145 = vadd.f32 0.0, %v1144
      %v1146 = vpop.f32.mrf.mxu0
      %v1147 = vadd.f32 0.0, %v1146
      %1148 = vmatmul.bf16.gmra.mxu0 %v1020
      %v1149 = vpop.f32.mrf.mxu0
      %v1150 = vadd.f32 0.0, %v1149
      %v1151 = vpop.f32.mrf.mxu0
      %v1152 = vadd.f32 0.0, %v1151
      %1153 = vmatmul.bf16.gmra.mxu0 %v1021
      %v1154 = vpop.f32.mrf.mxu0
      %v1155 = vadd.f32 0.0, %v1154
      %v1156 = vpop.f32.mrf.mxu0
      %v1157 = vadd.f32 0.0, %v1156
      %1158 = vmatmul.bf16.gmra.mxu0 %v1022
      %v1159 = vpop.f32.mrf.mxu0
      %v1160 = vadd.f32 0.0, %v1159
      %v1161 = vpop.f32.mrf.mxu0
      %v1162 = vadd.f32 0.0, %v1161
      %1163 = vmatmul.bf16.gmra.mxu0 %v1023
      %v1164 = vpop.f32.mrf.mxu0
      %v1165 = vadd.f32 0.0, %v1164
      %v1166 = vpop.f32.mrf.mxu0
      %v1167 = vadd.f32 0.0, %v1166
      %1168 = vmatmul.bf16.gmra.mxu0 %v1024
      %v1169 = vpop.f32.mrf.mxu0
      %v1170 = vadd.f32 0.0, %v1169
      %v1171 = vpop.f32.mrf.mxu0
      %v1172 = vadd.f32 0.0, %v1171
      %1173 = vmatmul.bf16.gmra.mxu0 %v1025
      %v1174 = vpop.f32.mrf.mxu0
      %v1175 = vadd.f32 0.0, %v1174
      %v1176 = vpop.f32.mrf.mxu0
      %v1177 = vadd.f32 0.0, %v1176
      %1178 = vdwg.mxu0
      %v1179 = vadd.f32 %v494, %v1100
      %v1180 = vadd.f32 %v495, %v1102
      %v1181 = vadd.f32 %v496, %v1105
      %v1182 = vadd.f32 %v497, %v1107
      %v1183 = vadd.f32 %v498, %v1110
      %v1184 = vadd.f32 %v499, %v1112
      %v1185 = vadd.f32 %v500, %v1115
      %v1186 = vadd.f32 %v501, %v1117
      %v1187 = vadd.f32 %v502, %v1120
      %v1188 = vadd.f32 %v503, %v1122
      %v1189 = vadd.f32 %v504, %v1125
      %v1190 = vadd.f32 %v505, %v1127
      %v1191 = vadd.f32 %v506, %v1130
      %v1192 = vadd.f32 %v507, %v1132
      %v1193 = vadd.f32 %v508, %v1135
      %v1194 = vadd.f32 %v509, %v1137
      %v1195 = vadd.f32 %v510, %v1140
      %v1196 = vadd.f32 %v511, %v1142
      %v1197 = vadd.f32 %v512, %v1145
      %v1198 = vadd.f32 %v513, %v1147
      %v1199 = vadd.f32 %v514, %v1150
      %v1200 = vadd.f32 %v515, %v1152
      %v1201 = vadd.f32 %v516, %v1155
      %v1202 = vadd.f32 %v517, %v1157
      %v1203 = vadd.f32 %v518, %v1160
      %v1204 = vadd.f32 %v519, %v1162
      %v1205 = vadd.f32 %v520, %v1165
      %v1206 = vadd.f32 %v521, %v1167
      %v1207 = vadd.f32 %v522, %v1170
      %v1208 = vadd.f32 %v523, %v1172
      %v1209 = vadd.f32 %v524, %v1175
      %v1210 = vadd.f32 %v525, %v1177
      %v1211 = vld [vmem:[%s199] sm:$0xe]
      %v1212 = vld [vmem:[%s199 + $0xc] sm:$0xe]
      %v1213 = vld [vmem:[%s199 + $0x18] sm:$0xe]
      %v1214 = vld [vmem:[%s199 + $0x24] sm:$0xe]
      %v1215 = vld [vmem:[%s199 + $0x30] sm:$0xe]
      %v1216 = vld [vmem:[%s199 + $0x3c] sm:$0xe]
      %v1217 = vld [vmem:[%s199 + $0x48] sm:$0xe]
      %v1218 = vld [vmem:[%s199 + $0x54] sm:$0xe]
      %v1219 = vld [vmem:[%s199 + $0x60] sm:$0xe]
      %v1220 = vld [vmem:[%s199 + $0x6c] sm:$0xe]
      %v1221 = vld [vmem:[%s199 + $0x78] sm:$0xe]
      %v1222 = vld [vmem:[%s199 + $0x84] sm:$0xe]
      %v1223 = vld [vmem:[%s199 + $0x90] sm:$0xe]
      %v1224 = vld [vmem:[%s199 + $0x9c] sm:$0xe]
      %v1225 = vld [vmem:[%s199 + $0xa8] sm:$0xe]
      %v1226 = vld [vmem:[%s199 + $0xb4] sm:$0xe]
      %vm1275 = vcmask 1042432
      %vm1276 = vcmask 1046532
      %vm1277 = vmor %vm1275, %vm1276
      %v1278 = vrot.slane %v1211, 5
      %v1279 = vrot.slane %v1278, 4
      %v1280 = vrot.slane %v527, 5
      %v1281 = vsel %vm1277, %v1279, %v1280
      %v1282 = vrot.slane %v1280, 4
      %v1283 = vrot.slane %v528, 5
      %v1284 = vsel %vm1277, %v1282, %v1283
      %v1285 = vrot.slane %v1212, 5
      %v1286 = vrot.slane %v1285, 4
      %v1287 = vrot.slane %v530, 5
      %v1288 = vsel %vm1277, %v1286, %v1287
      %v1289 = vrot.slane %v1287, 4
      %v1290 = vrot.slane %v531, 5
      %v1291 = vsel %vm1277, %v1289, %v1290
      %v1292 = vrot.slane %v1213, 5
      %v1293 = vrot.slane %v1292, 4
      %v1294 = vrot.slane %v533, 5
      %v1295 = vsel %vm1277, %v1293, %v1294
      %v1296 = vrot.slane %v1294, 4
      %v1297 = vrot.slane %v534, 5
      %v1298 = vsel %vm1277, %v1296, %v1297
      %v1299 = vrot.slane %v1214, 5
      %v1300 = vrot.slane %v1299, 4
      %v1301 = vrot.slane %v536, 5
      %v1302 = vsel %vm1277, %v1300, %v1301
      %v1303 = vrot.slane %v1301, 4
      %v1304 = vrot.slane %v537, 5
      %v1305 = vsel %vm1277, %v1303, %v1304
      %v1306 = vrot.slane %v1215, 5
      %v1307 = vrot.slane %v1306, 4
      %v1308 = vrot.slane %v539, 5
      %v1309 = vsel %vm1277, %v1307, %v1308
      %v1310 = vrot.slane %v1308, 4
      %v1311 = vrot.slane %v540, 5
      %v1312 = vsel %vm1277, %v1310, %v1311
      %v1313 = vrot.slane %v1216, 5
      %v1314 = vrot.slane %v1313, 4
      %v1315 = vrot.slane %v542, 5
      %v1316 = vsel %vm1277, %v1314, %v1315
      %v1317 = vrot.slane %v1315, 4
      %v1318 = vrot.slane %v543, 5
      %v1319 = vsel %vm1277, %v1317, %v1318
      %v1320 = vrot.slane %v1217, 5
      %v1321 = vrot.slane %v1320, 4
      %v1322 = vrot.slane %v545, 5
      %v1323 = vsel %vm1277, %v1321, %v1322
      %v1324 = vrot.slane %v1322, 4
      %v1325 = vrot.slane %v546, 5
      %v1326 = vsel %vm1277, %v1324, %v1325
      %v1327 = vrot.slane %v1218, 5
      %v1328 = vrot.slane %v1327, 4
      %v1329 = vrot.slane %v548, 5
      %v1330 = vsel %vm1277, %v1328, %v1329
      %v1331 = vrot.slane %v1329, 4
      %v1332 = vrot.slane %v549, 5
      %v1333 = vsel %vm1277, %v1331, %v1332
      %v1334 = vrot.slane %v1219, 5
      %v1335 = vrot.slane %v1334, 4
      %v1336 = vrot.slane %v551, 5
      %v1337 = vsel %vm1277, %v1335, %v1336
      %v1338 = vrot.slane %v1336, 4
      %v1339 = vrot.slane %v552, 5
      %v1340 = vsel %vm1277, %v1338, %v1339
      %v1341 = vrot.slane %v1220, 5
      %v1342 = vrot.slane %v1341, 4
      %v1343 = vrot.slane %v554, 5
      %v1344 = vsel %vm1277, %v1342, %v1343
      %v1345 = vrot.slane %v1343, 4
      %v1346 = vrot.slane %v555, 5
      %v1347 = vsel %vm1277, %v1345, %v1346
      %v1348 = vrot.slane %v1221, 5
      %v1349 = vrot.slane %v1348, 4
      %v1350 = vrot.slane %v557, 5
      %v1351 = vsel %vm1277, %v1349, %v1350
      %v1352 = vrot.slane %v1350, 4
      %v1353 = vrot.slane %v558, 5
      %v1354 = vsel %vm1277, %v1352, %v1353
      %v1355 = vrot.slane %v1222, 5
      %v1356 = vrot.slane %v1355, 4
      %v1357 = vrot.slane %v560, 5
      %v1358 = vsel %vm1277, %v1356, %v1357
      %v1359 = vrot.slane %v1357, 4
      %v1360 = vrot.slane %v561, 5
      %v1361 = vsel %vm1277, %v1359, %v1360
      %v1362 = vrot.slane %v1223, 5
      %v1363 = vrot.slane %v1362, 4
      %v1364 = vrot.slane %v563, 5
      %v1365 = vsel %vm1277, %v1363, %v1364
      %v1366 = vrot.slane %v1364, 4
      %v1367 = vrot.slane %v564, 5
      %v1368 = vsel %vm1277, %v1366, %v1367
      %v1369 = vrot.slane %v1224, 5
      %v1370 = vrot.slane %v1369, 4
      %v1371 = vrot.slane %v566, 5
      %v1372 = vsel %vm1277, %v1370, %v1371
      %v1373 = vrot.slane %v1371, 4
      %v1374 = vrot.slane %v567, 5
      %v1375 = vsel %vm1277, %v1373, %v1374
      %v1376 = vrot.slane %v1225, 5
      %v1377 = vrot.slane %v1376, 4
      %v1378 = vrot.slane %v569, 5
      %v1379 = vsel %vm1277, %v1377, %v1378
      %v1380 = vrot.slane %v1378, 4
      %v1381 = vrot.slane %v570, 5
      %v1382 = vsel %vm1277, %v1380, %v1381
      %v1383 = vrot.slane %v1226, 5
      %v1384 = vrot.slane %v1383, 4
      %v1385 = vrot.slane %v572, 5
      %v1386 = vsel %vm1277, %v1384, %v1385
      %v1387 = vrot.slane %v1385, 4
      %v1388 = vrot.slane %v573, 5
      %v1389 = vsel %vm1277, %v1387, %v1388
      %s1390 = scalar_lea.vmem %s1, 128
      %v1391 = vld [vmem:[%s1390] sm:$0xf]
      %v1392 = vld [vmem:[%s1390 + $0x4] sm:$0xf]
      %v1393 = vld [vmem:[%s1390 + $0x8] sm:$0xf]
      %v1394 = vld [vmem:[%s1390 + $0xc] sm:$0xf]
      %v1395 = vld [vmem:[%s1390 + $0x10] sm:$0xf]
      %v1396 = vld [vmem:[%s1390 + $0x14] sm:$0xf]
      %v1397 = vld [vmem:[%s1390 + $0x18] sm:$0xf]
      %v1398 = vld [vmem:[%s1390 + $0x1c] sm:$0xf]
      %v1399 = vld [vmem:[%s1390 + $0x20] sm:$0xf]
      %v1400 = vld [vmem:[%s1390 + $0x24] sm:$0xf]
      %v1401 = vld [vmem:[%s1390 + $0x28] sm:$0xf]
      %v1402 = vld [vmem:[%s1390 + $0x2c] sm:$0xf]
      %v1403 = vld [vmem:[%s1390 + $0x30] sm:$0xf]
      %v1404 = vld [vmem:[%s1390 + $0x34] sm:$0xf]
      %v1405 = vld [vmem:[%s1390 + $0x38] sm:$0xf]
      %v1406 = vld [vmem:[%s1390 + $0x3c] sm:$0xf]
      %v1407 = vunpack.c.l.b16 %v1281
      %v1408 = vunpack.c.l.b16 %v1284
      %v1409 = vunpack.c.l.b16 %v1288
      %v1410 = vunpack.c.l.b16 %v1291
      %v1411 = vunpack.c.l.b16 %v1295
      %v1412 = vunpack.c.l.b16 %v1298
      %v1413 = vunpack.c.l.b16 %v1302
      %v1414 = vunpack.c.l.b16 %v1305
      %v1415 = vunpack.c.l.b16 %v1309
      %v1416 = vunpack.c.l.b16 %v1312
      %v1417 = vunpack.c.l.b16 %v1316
      %v1418 = vunpack.c.l.b16 %v1319
      %v1419 = vunpack.c.l.b16 %v1323
      %v1420 = vunpack.c.l.b16 %v1326
      %v1421 = vunpack.c.l.b16 %v1330
      %v1422 = vunpack.c.l.b16 %v1333
      %v1423 = vunpack.c.l.b16 %v1337
      %v1424 = vunpack.c.l.b16 %v1340
      %v1425 = vunpack.c.l.b16 %v1344
      %v1426 = vunpack.c.l.b16 %v1347
      %v1427 = vunpack.c.l.b16 %v1351
      %v1428 = vunpack.c.l.b16 %v1354
      %v1429 = vunpack.c.l.b16 %v1358
      %v1430 = vunpack.c.l.b16 %v1361
      %v1431 = vunpack.c.l.b16 %v1365
      %v1432 = vunpack.c.l.b16 %v1368
      %v1433 = vunpack.c.l.b16 %v1372
      %v1434 = vunpack.c.l.b16 %v1375
      %v1435 = vunpack.c.l.b16 %v1379
      %v1436 = vunpack.c.l.b16 %v1382
      %v1437 = vunpack.c.l.b16 %v1386
      %v1438 = vunpack.c.l.b16 %v1389
      %v1439 = vpack.c.b16 %v1408, %v1407
      %v1440 = vpack.c.b16 %v1410, %v1409
      %v1441 = vpack.c.b16 %v1412, %v1411
      %v1442 = vpack.c.b16 %v1414, %v1413
      %v1443 = vpack.c.b16 %v1416, %v1415
      %v1444 = vpack.c.b16 %v1418, %v1417
      %v1445 = vpack.c.b16 %v1420, %v1419
      %v1446 = vpack.c.b16 %v1422, %v1421
      %v1447 = vpack.c.b16 %v1424, %v1423
      %v1448 = vpack.c.b16 %v1426, %v1425
      %v1449 = vpack.c.b16 %v1428, %v1427
      %v1450 = vpack.c.b16 %v1430, %v1429
      %v1451 = vpack.c.b16 %v1432, %v1431
      %v1452 = vpack.c.b16 %v1434, %v1433
      %v1453 = vpack.c.b16 %v1436, %v1435
      %v1454 = vpack.c.b16 %v1438, %v1437
      %v1487 = vunpack.c.l.b16 %v1391
      %v1488 = vunpack.c.l.b16 %v1392
      %v1489 = vunpack.c.l.b16 %v1393
      %v1490 = vunpack.c.l.b16 %v1394
      %v1491 = vunpack.c.l.b16 %v1395
      %v1492 = vunpack.c.l.b16 %v1396
      %v1493 = vunpack.c.l.b16 %v1397
      %v1494 = vunpack.c.l.b16 %v1398
      %v1495 = vunpack.c.l.b16 %v1399
      %v1496 = vunpack.c.l.b16 %v1400
      %v1497 = vunpack.c.l.b16 %v1401
      %v1498 = vunpack.c.l.b16 %v1402
      %v1499 = vunpack.c.l.b16 %v1403
      %v1500 = vunpack.c.l.b16 %v1404
      %v1501 = vunpack.c.l.b16 %v1405
      %v1502 = vunpack.c.l.b16 %v1406
      %v1503 = vpack.c.b16 %v1488, %v1487
      %v1504 = vpack.c.b16 %v1490, %v1489
      %v1505 = vpack.c.b16 %v1492, %v1491
      %v1506 = vpack.c.b16 %v1494, %v1493
      %v1507 = vpack.c.b16 %v1496, %v1495
      %v1508 = vpack.c.b16 %v1498, %v1497
      %v1509 = vpack.c.b16 %v1500, %v1499
      %v1510 = vpack.c.b16 %v1502, %v1501
      %1519 = vmatpush.bf16.msra.mxu0 %v1510
      %1520 = vmatpush.bf16.msra.mxu0 %v1509
      %1521 = vmatpush.bf16.msra.mxu0 %v1508
      %1522 = vmatpush.bf16.msra.mxu0 %v1507
      %1523 = vmatpush.bf16.msra.mxu0 %v1506
      %1524 = vmatpush.bf16.msra.mxu0 %v1505
      %1525 = vmatpush.bf16.msra.mxu0 %v1504
      %1526 = vmatpush.bf16.msra.mxu0 %v1503
      %1527 = vmatmul.bf16.gmra.mxu0 %v1439
      %v1528 = vpop.f32.mrf.mxu0
      %v1529 = vadd.f32 0.0, %v1528
      %v1530 = vpop.f32.mrf.mxu0
      %v1531 = vadd.f32 0.0, %v1530
      %1532 = vmatmul.bf16.gmra.mxu0 %v1440
      %v1533 = vpop.f32.mrf.mxu0
      %v1534 = vadd.f32 0.0, %v1533
      %v1535 = vpop.f32.mrf.mxu0
      %v1536 = vadd.f32 0.0, %v1535
      %1537 = vmatmul.bf16.gmra.mxu0 %v1441
      %v1538 = vpop.f32.mrf.mxu0
      %v1539 = vadd.f32 0.0, %v1538
      %v1540 = vpop.f32.mrf.mxu0
      %v1541 = vadd.f32 0.0, %v1540
      %1542 = vmatmul.bf16.gmra.mxu0 %v1442
      %v1543 = vpop.f32.mrf.mxu0
      %v1544 = vadd.f32 0.0, %v1543
      %v1545 = vpop.f32.mrf.mxu0
      %v1546 = vadd.f32 0.0, %v1545
      %1547 = vmatmul.bf16.gmra.mxu0 %v1443
      %v1548 = vpop.f32.mrf.mxu0
      %v1549 = vadd.f32 0.0, %v1548
      %v1550 = vpop.f32.mrf.mxu0
      %v1551 = vadd.f32 0.0, %v1550
      %1552 = vmatmul.bf16.gmra.mxu0 %v1444
      %v1553 = vpop.f32.mrf.mxu0
      %v1554 = vadd.f32 0.0, %v1553
      %v1555 = vpop.f32.mrf.mxu0
      %v1556 = vadd.f32 0.0, %v1555
      %1557 = vmatmul.bf16.gmra.mxu0 %v1445
      %v1558 = vpop.f32.mrf.mxu0
      %v1559 = vadd.f32 0.0, %v1558
      %v1560 = vpop.f32.mrf.mxu0
      %v1561 = vadd.f32 0.0, %v1560
      %1562 = vmatmul.bf16.gmra.mxu0 %v1446
      %v1563 = vpop.f32.mrf.mxu0
      %v1564 = vadd.f32 0.0, %v1563
      %v1565 = vpop.f32.mrf.mxu0
      %v1566 = vadd.f32 0.0, %v1565
      %1567 = vmatmul.bf16.gmra.mxu0 %v1447
      %v1568 = vpop.f32.mrf.mxu0
      %v1569 = vadd.f32 0.0, %v1568
      %v1570 = vpop.f32.mrf.mxu0
      %v1571 = vadd.f32 0.0, %v1570
      %1572 = vmatmul.bf16.gmra.mxu0 %v1448
      %v1573 = vpop.f32.mrf.mxu0
      %v1574 = vadd.f32 0.0, %v1573
      %v1575 = vpop.f32.mrf.mxu0
      %v1576 = vadd.f32 0.0, %v1575
      %1577 = vmatmul.bf16.gmra.mxu0 %v1449
      %v1578 = vpop.f32.mrf.mxu0
      %v1579 = vadd.f32 0.0, %v1578
      %v1580 = vpop.f32.mrf.mxu0
      %v1581 = vadd.f32 0.0, %v1580
      %1582 = vmatmul.bf16.gmra.mxu0 %v1450
      %v1583 = vpop.f32.mrf.mxu0
      %v1584 = vadd.f32 0.0, %v1583
      %v1585 = vpop.f32.mrf.mxu0
      %v1586 = vadd.f32 0.0, %v1585
      %1587 = vmatmul.bf16.gmra.mxu0 %v1451
      %v1588 = vpop.f32.mrf.mxu0
      %v1589 = vadd.f32 0.0, %v1588
      %v1590 = vpop.f32.mrf.mxu0
      %v1591 = vadd.f32 0.0, %v1590
      %1592 = vmatmul.bf16.gmra.mxu0 %v1452
      %v1593 = vpop.f32.mrf.mxu0
      %v1594 = vadd.f32 0.0, %v1593
      %v1595 = vpop.f32.mrf.mxu0
      %v1596 = vadd.f32 0.0, %v1595
      %1597 = vmatmul.bf16.gmra.mxu0 %v1453
      %v1598 = vpop.f32.mrf.mxu0
      %v1599 = vadd.f32 0.0, %v1598
      %v1600 = vpop.f32.mrf.mxu0
      %v1601 = vadd.f32 0.0, %v1600
      %1602 = vmatmul.bf16.gmra.mxu0 %v1454
      %v1603 = vpop.f32.mrf.mxu0
      %v1604 = vadd.f32 0.0, %v1603
      %v1605 = vpop.f32.mrf.mxu0
      %v1606 = vadd.f32 0.0, %v1605
      %1607 = vdwg.mxu0
      %v1608 = vadd.f32 %v1179, %v1529
      %v1609 = vadd.f32 %v1180, %v1531
      %v1610 = vadd.f32 %v1181, %v1534
      %v1611 = vadd.f32 %v1182, %v1536
      %v1612 = vadd.f32 %v1183, %v1539
      %v1613 = vadd.f32 %v1184, %v1541
      %v1614 = vadd.f32 %v1185, %v1544
      %v1615 = vadd.f32 %v1186, %v1546
      %v1616 = vadd.f32 %v1187, %v1549
      %v1617 = vadd.f32 %v1188, %v1551
      %v1618 = vadd.f32 %v1189, %v1554
      %v1619 = vadd.f32 %v1190, %v1556
      %v1620 = vadd.f32 %v1191, %v1559
      %v1621 = vadd.f32 %v1192, %v1561
      %v1622 = vadd.f32 %v1193, %v1564
      %v1623 = vadd.f32 %v1194, %v1566
      %v1624 = vadd.f32 %v1195, %v1569
      %v1625 = vadd.f32 %v1196, %v1571
      %v1626 = vadd.f32 %v1197, %v1574
      %v1627 = vadd.f32 %v1198, %v1576
      %v1628 = vadd.f32 %v1199, %v1579
      %v1629 = vadd.f32 %v1200, %v1581
      %v1630 = vadd.f32 %v1201, %v1584
      %v1631 = vadd.f32 %v1202, %v1586
      %v1632 = vadd.f32 %v1203, %v1589
      %v1633 = vadd.f32 %v1204, %v1591
      %v1634 = vadd.f32 %v1205, %v1594
      %v1635 = vadd.f32 %v1206, %v1596
      %v1636 = vadd.f32 %v1207, %v1599
      %v1637 = vadd.f32 %v1208, %v1601
      %v1638 = vadd.f32 %v1209, %v1604
      %v1639 = vadd.f32 %v1210, %v1606
      %s1640 = scalar_lea.vmem %s199, 12
      %v1641 = vld [vmem:[%s1640] sm:$0xf]
      %v1642 = vld [vmem:[%s1640 + $0x4] sm:$0xf]
      %v1643 = vld [vmem:[%s1640 + $0xc] sm:$0xf]
      %v1644 = vld [vmem:[%s1640 + $0x10] sm:$0xf]
      %v1645 = vld [vmem:[%s1640 + $0x18] sm:$0xf]
      %v1646 = vld [vmem:[%s1640 + $0x1c] sm:$0xf]
      %v1647 = vld [vmem:[%s1640 + $0x24] sm:$0xf]
      %v1648 = vld [vmem:[%s1640 + $0x28] sm:$0xf]
      %v1649 = vld [vmem:[%s1640 + $0x30] sm:$0xf]
      %v1650 = vld [vmem:[%s1640 + $0x34] sm:$0xf]
      %v1651 = vld [vmem:[%s1640 + $0x3c] sm:$0xf]
      %v1652 = vld [vmem:[%s1640 + $0x40] sm:$0xf]
      %v1653 = vld [vmem:[%s1640 + $0x48] sm:$0xf]
      %v1654 = vld [vmem:[%s1640 + $0x4c] sm:$0xf]
      %v1655 = vld [vmem:[%s1640 + $0x54] sm:$0xf]
      %v1656 = vld [vmem:[%s1640 + $0x58] sm:$0xf]
      %v1657 = vld [vmem:[%s1640 + $0x60] sm:$0xf]
      %v1658 = vld [vmem:[%s1640 + $0x64] sm:$0xf]
      %v1659 = vld [vmem:[%s1640 + $0x6c] sm:$0xf]
      %v1660 = vld [vmem:[%s1640 + $0x70] sm:$0xf]
      %v1661 = vld [vmem:[%s1640 + $0x78] sm:$0xf]
      %v1662 = vld [vmem:[%s1640 + $0x7c] sm:$0xf]
      %v1663 = vld [vmem:[%s1640 + $0x84] sm:$0xf]
      %v1664 = vld [vmem:[%s1640 + $0x88] sm:$0xf]
      %v1665 = vld [vmem:[%s1640 + $0x90] sm:$0xf]
      %v1666 = vld [vmem:[%s1640 + $0x94] sm:$0xf]
      %v1667 = vld [vmem:[%s1640 + $0x9c] sm:$0xf]
      %v1668 = vld [vmem:[%s1640 + $0xa0] sm:$0xf]
      %v1669 = vld [vmem:[%s1640 + $0xa8] sm:$0xf]
      %v1670 = vld [vmem:[%s1640 + $0xac] sm:$0xf]
      %v1671 = vld [vmem:[%s1640 + $0xb4] sm:$0xf]
      %v1672 = vld [vmem:[%s1640 + $0xb8] sm:$0xf]
      %s1673 = scalar_lea.vmem %s1, 192
      %v1674 = vld [vmem:[%s1673] sm:$0xf]
      %v1675 = vld [vmem:[%s1673 + $0x4] sm:$0xf]
      %v1676 = vld [vmem:[%s1673 + $0x8] sm:$0xf]
      %v1677 = vld [vmem:[%s1673 + $0xc] sm:$0xf]
      %v1678 = vld [vmem:[%s1673 + $0x10] sm:$0xf]
      %v1679 = vld [vmem:[%s1673 + $0x14] sm:$0xf]
      %v1680 = vld [vmem:[%s1673 + $0x18] sm:$0xf]
      %v1681 = vld [vmem:[%s1673 + $0x1c] sm:$0xf]
      %v1682 = vld [vmem:[%s1673 + $0x20] sm:$0xf]
      %v1683 = vld [vmem:[%s1673 + $0x24] sm:$0xf]
      %v1684 = vld [vmem:[%s1673 + $0x28] sm:$0xf]
      %v1685 = vld [vmem:[%s1673 + $0x2c] sm:$0xf]
      %v1686 = vld [vmem:[%s1673 + $0x30] sm:$0xf]
      %v1687 = vld [vmem:[%s1673 + $0x34] sm:$0xf]
      %v1688 = vld [vmem:[%s1673 + $0x38] sm:$0xf]
      %v1689 = vld [vmem:[%s1673 + $0x3c] sm:$0xf]
      %v1722 = vunpack.c.l.b16 %v1641
      %v1723 = vunpack.c.l.b16 %v1642
      %v1724 = vunpack.c.l.b16 %v1643
      %v1725 = vunpack.c.l.b16 %v1644
      %v1726 = vunpack.c.l.b16 %v1645
      %v1727 = vunpack.c.l.b16 %v1646
      %v1728 = vunpack.c.l.b16 %v1647
      %v1729 = vunpack.c.l.b16 %v1648
      %v1730 = vunpack.c.l.b16 %v1649
      %v1731 = vunpack.c.l.b16 %v1650
      %v1732 = vunpack.c.l.b16 %v1651
      %v1733 = vunpack.c.l.b16 %v1652
      %v1734 = vunpack.c.l.b16 %v1653
      %v1735 = vunpack.c.l.b16 %v1654
      %v1736 = vunpack.c.l.b16 %v1655
      %v1737 = vunpack.c.l.b16 %v1656
      %v1738 = vunpack.c.l.b16 %v1657
      %v1739 = vunpack.c.l.b16 %v1658
      %v1740 = vunpack.c.l.b16 %v1659
      %v1741 = vunpack.c.l.b16 %v1660
      %v1742 = vunpack.c.l.b16 %v1661
      %v1743 = vunpack.c.l.b16 %v1662
      %v1744 = vunpack.c.l.b16 %v1663
      %v1745 = vunpack.c.l.b16 %v1664
      %v1746 = vunpack.c.l.b16 %v1665
      %v1747 = vunpack.c.l.b16 %v1666
      %v1748 = vunpack.c.l.b16 %v1667
      %v1749 = vunpack.c.l.b16 %v1668
      %v1750 = vunpack.c.l.b16 %v1669
      %v1751 = vunpack.c.l.b16 %v1670
      %v1752 = vunpack.c.l.b16 %v1671
      %v1753 = vunpack.c.l.b16 %v1672
      %v1754 = vpack.c.b16 %v1723, %v1722
      %v1755 = vpack.c.b16 %v1725, %v1724
      %v1756 = vpack.c.b16 %v1727, %v1726
      %v1757 = vpack.c.b16 %v1729, %v1728
      %v1758 = vpack.c.b16 %v1731, %v1730
      %v1759 = vpack.c.b16 %v1733, %v1732
      %v1760 = vpack.c.b16 %v1735, %v1734
      %v1761 = vpack.c.b16 %v1737, %v1736
      %v1762 = vpack.c.b16 %v1739, %v1738
      %v1763 = vpack.c.b16 %v1741, %v1740
      %v1764 = vpack.c.b16 %v1743, %v1742
      %v1765 = vpack.c.b16 %v1745, %v1744
      %v1766 = vpack.c.b16 %v1747, %v1746
      %v1767 = vpack.c.b16 %v1749, %v1748
      %v1768 = vpack.c.b16 %v1751, %v1750
      %v1769 = vpack.c.b16 %v1753, %v1752
      %v1802 = vunpack.c.l.b16 %v1674
      %v1803 = vunpack.c.l.b16 %v1675
      %v1804 = vunpack.c.l.b16 %v1676
      %v1805 = vunpack.c.l.b16 %v1677
      %v1806 = vunpack.c.l.b16 %v1678
      %v1807 = vunpack.c.l.b16 %v1679
      %v1808 = vunpack.c.l.b16 %v1680
      %v1809 = vunpack.c.l.b16 %v1681
      %v1810 = vunpack.c.l.b16 %v1682
      %v1811 = vunpack.c.l.b16 %v1683
      %v1812 = vunpack.c.l.b16 %v1684
      %v1813 = vunpack.c.l.b16 %v1685
      %v1814 = vunpack.c.l.b16 %v1686
      %v1815 = vunpack.c.l.b16 %v1687
      %v1816 = vunpack.c.l.b16 %v1688
      %v1817 = vunpack.c.l.b16 %v1689
      %v1818 = vpack.c.b16 %v1803, %v1802
      %v1819 = vpack.c.b16 %v1805, %v1804
      %v1820 = vpack.c.b16 %v1807, %v1806
      %v1821 = vpack.c.b16 %v1809, %v1808
      %v1822 = vpack.c.b16 %v1811, %v1810
      %v1823 = vpack.c.b16 %v1813, %v1812
      %v1824 = vpack.c.b16 %v1815, %v1814
      %v1825 = vpack.c.b16 %v1817, %v1816
      %1834 = vmatpush.bf16.msra.mxu0 %v1825
      %1835 = vmatpush.bf16.msra.mxu0 %v1824
      %1836 = vmatpush.bf16.msra.mxu0 %v1823
      %1837 = vmatpush.bf16.msra.mxu0 %v1822
      %1838 = vmatpush.bf16.msra.mxu0 %v1821
      %1839 = vmatpush.bf16.msra.mxu0 %v1820
      %1840 = vmatpush.bf16.msra.mxu0 %v1819
      %1841 = vmatpush.bf16.msra.mxu0 %v1818
      %1842 = vmatmul.bf16.gmra.mxu0 %v1754
      %v1843 = vpop.f32.mrf.mxu0
      %v1844 = vadd.f32 0.0, %v1843
      %v1845 = vpop.f32.mrf.mxu0
      %v1846 = vadd.f32 0.0, %v1845
      %1847 = vmatmul.bf16.gmra.mxu0 %v1755
      %v1848 = vpop.f32.mrf.mxu0
      %v1849 = vadd.f32 0.0, %v1848
      %v1850 = vpop.f32.mrf.mxu0
      %v1851 = vadd.f32 0.0, %v1850
      %1852 = vmatmul.bf16.gmra.mxu0 %v1756
      %v1853 = vpop.f32.mrf.mxu0
      %v1854 = vadd.f32 0.0, %v1853
      %v1855 = vpop.f32.mrf.mxu0
      %v1856 = vadd.f32 0.0, %v1855
      %1857 = vmatmul.bf16.gmra.mxu0 %v1757
      %v1858 = vpop.f32.mrf.mxu0
      %v1859 = vadd.f32 0.0, %v1858
      %v1860 = vpop.f32.mrf.mxu0
      %v1861 = vadd.f32 0.0, %v1860
      %1862 = vmatmul.bf16.gmra.mxu0 %v1758
      %v1863 = vpop.f32.mrf.mxu0
      %v1864 = vadd.f32 0.0, %v1863
      %v1865 = vpop.f32.mrf.mxu0
      %v1866 = vadd.f32 0.0, %v1865
      %1867 = vmatmul.bf16.gmra.mxu0 %v1759
      %v1868 = vpop.f32.mrf.mxu0
      %v1869 = vadd.f32 0.0, %v1868
      %v1870 = vpop.f32.mrf.mxu0
      %v1871 = vadd.f32 0.0, %v1870
      %1872 = vmatmul.bf16.gmra.mxu0 %v1760
      %v1873 = vpop.f32.mrf.mxu0
      %v1874 = vadd.f32 0.0, %v1873
      %v1875 = vpop.f32.mrf.mxu0
      %v1876 = vadd.f32 0.0, %v1875
      %1877 = vmatmul.bf16.gmra.mxu0 %v1761
      %v1878 = vpop.f32.mrf.mxu0
      %v1879 = vadd.f32 0.0, %v1878
      %v1880 = vpop.f32.mrf.mxu0
      %v1881 = vadd.f32 0.0, %v1880
      %1882 = vmatmul.bf16.gmra.mxu0 %v1762
      %v1883 = vpop.f32.mrf.mxu0
      %v1884 = vadd.f32 0.0, %v1883
      %v1885 = vpop.f32.mrf.mxu0
      %v1886 = vadd.f32 0.0, %v1885
      %1887 = vmatmul.bf16.gmra.mxu0 %v1763
      %v1888 = vpop.f32.mrf.mxu0
      %v1889 = vadd.f32 0.0, %v1888
      %v1890 = vpop.f32.mrf.mxu0
      %v1891 = vadd.f32 0.0, %v1890
      %1892 = vmatmul.bf16.gmra.mxu0 %v1764
      %v1893 = vpop.f32.mrf.mxu0
      %v1894 = vadd.f32 0.0, %v1893
      %v1895 = vpop.f32.mrf.mxu0
      %v1896 = vadd.f32 0.0, %v1895
      %1897 = vmatmul.bf16.gmra.mxu0 %v1765
      %v1898 = vpop.f32.mrf.mxu0
      %v1899 = vadd.f32 0.0, %v1898
      %v1900 = vpop.f32.mrf.mxu0
      %v1901 = vadd.f32 0.0, %v1900
      %1902 = vmatmul.bf16.gmra.mxu0 %v1766
      %v1903 = vpop.f32.mrf.mxu0
      %v1904 = vadd.f32 0.0, %v1903
      %v1905 = vpop.f32.mrf.mxu0
      %v1906 = vadd.f32 0.0, %v1905
      %1907 = vmatmul.bf16.gmra.mxu0 %v1767
      %v1908 = vpop.f32.mrf.mxu0
      %v1909 = vadd.f32 0.0, %v1908
      %v1910 = vpop.f32.mrf.mxu0
      %v1911 = vadd.f32 0.0, %v1910
      %1912 = vmatmul.bf16.gmra.mxu0 %v1768
      %v1913 = vpop.f32.mrf.mxu0
      %v1914 = vadd.f32 0.0, %v1913
      %v1915 = vpop.f32.mrf.mxu0
      %v1916 = vadd.f32 0.0, %v1915
      %1917 = vmatmul.bf16.gmra.mxu0 %v1769
      %v1918 = vpop.f32.mrf.mxu0
      %v1919 = vadd.f32 0.0, %v1918
      %v1920 = vpop.f32.mrf.mxu0
      %v1921 = vadd.f32 0.0, %v1920
      %1922 = vdwg.mxu0
      %v1923 = vadd.f32 %v1608, %v1844
      %v1924 = vadd.f32 %v1609, %v1846
      %v1925 = vadd.f32 %v1610, %v1849
      %v1926 = vadd.f32 %v1611, %v1851
      %v1927 = vadd.f32 %v1612, %v1854
      %v1928 = vadd.f32 %v1613, %v1856
      %v1929 = vadd.f32 %v1614, %v1859
      %v1930 = vadd.f32 %v1615, %v1861
      %v1931 = vadd.f32 %v1616, %v1864
      %v1932 = vadd.f32 %v1617, %v1866
      %v1933 = vadd.f32 %v1618, %v1869
      %v1934 = vadd.f32 %v1619, %v1871
      %v1935 = vadd.f32 %v1620, %v1874
      %v1936 = vadd.f32 %v1621, %v1876
      %v1937 = vadd.f32 %v1622, %v1879
      %v1938 = vadd.f32 %v1623, %v1881
      %v1939 = vadd.f32 %v1624, %v1884
      %v1940 = vadd.f32 %v1625, %v1886
      %v1941 = vadd.f32 %v1626, %v1889
      %v1942 = vadd.f32 %v1627, %v1891
      %v1943 = vadd.f32 %v1628, %v1894
      %v1944 = vadd.f32 %v1629, %v1896
      %v1945 = vadd.f32 %v1630, %v1899
      %v1946 = vadd.f32 %v1631, %v1901
      %v1947 = vadd.f32 %v1632, %v1904
      %v1948 = vadd.f32 %v1633, %v1906
      %v1949 = vadd.f32 %v1634, %v1909
      %v1950 = vadd.f32 %v1635, %v1911
      %v1951 = vadd.f32 %v1636, %v1914
      %v1952 = vadd.f32 %v1637, %v1916
      %v1953 = vadd.f32 %v1638, %v1919
      %v1954 = vadd.f32 %v1639, %v1921
      %v1955 = vld [vmem:[%s1640] sm:$0xf]
      %v1956 = vld [vmem:[%s1640 + $0x4] sm:$0xf]
      %v1957 = vld [vmem:[%s1640 + $0x8] sm:$0x1]
      %v1958 = vld [vmem:[%s1640 + $0xc] sm:$0xf]
      %v1959 = vld [vmem:[%s1640 + $0x10] sm:$0xf]
      %v1960 = vld [vmem:[%s1640 + $0x14] sm:$0x1]
      %v1961 = vld [vmem:[%s1640 + $0x18] sm:$0xf]
      %v1962 = vld [vmem:[%s1640 + $0x1c] sm:$0xf]
      %v1963 = vld [vmem:[%s1640 + $0x20] sm:$0x1]
      %v1964 = vld [vmem:[%s1640 + $0x24] sm:$0xf]
      %v1965 = vld [vmem:[%s1640 + $0x28] sm:$0xf]
      %v1966 = vld [vmem:[%s1640 + $0x2c] sm:$0x1]
      %v1967 = vld [vmem:[%s1640 + $0x30] sm:$0xf]
      %v1968 = vld [vmem:[%s1640 + $0x34] sm:$0xf]
      %v1969 = vld [vmem:[%s1640 + $0x38] sm:$0x1]
      %v1970 = vld [vmem:[%s1640 + $0x3c] sm:$0xf]
      %v1971 = vld [vmem:[%s1640 + $0x40] sm:$0xf]
      %v1972 = vld [vmem:[%s1640 + $0x44] sm:$0x1]
      %v1973 = vld [vmem:[%s1640 + $0x48] sm:$0xf]
      %v1974 = vld [vmem:[%s1640 + $0x4c] sm:$0xf]
      %v1975 = vld [vmem:[%s1640 + $0x50] sm:$0x1]
      %v1976 = vld [vmem:[%s1640 + $0x54] sm:$0xf]
      %v1977 = vld [vmem:[%s1640 + $0x58] sm:$0xf]
      %v1978 = vld [vmem:[%s1640 + $0x5c] sm:$0x1]
      %v1979 = vld [vmem:[%s1640 + $0x60] sm:$0xf]
      %v1980 = vld [vmem:[%s1640 + $0x64] sm:$0xf]
      %v1981 = vld [vmem:[%s1640 + $0x68] sm:$0x1]
      %v1982 = vld [vmem:[%s1640 + $0x6c] sm:$0xf]
      %v1983 = vld [vmem:[%s1640 + $0x70] sm:$0xf]
      %v1984 = vld [vmem:[%s1640 + $0x74] sm:$0x1]
      %v1985 = vld [vmem:[%s1640 + $0x78] sm:$0xf]
      %v1986 = vld [vmem:[%s1640 + $0x7c] sm:$0xf]
      %v1987 = vld [vmem:[%s1640 + $0x80] sm:$0x1]
      %v1988 = vld [vmem:[%s1640 + $0x84] sm:$0xf]
      %v1989 = vld [vmem:[%s1640 + $0x88] sm:$0xf]
      %v1990 = vld [vmem:[%s1640 + $0x8c] sm:$0x1]
      %v1991 = vld [vmem:[%s1640 + $0x90] sm:$0xf]
      %v1992 = vld [vmem:[%s1640 + $0x94] sm:$0xf]
      %v1993 = vld [vmem:[%s1640 + $0x98] sm:$0x1]
      %v1994 = vld [vmem:[%s1640 + $0x9c] sm:$0xf]
      %v1995 = vld [vmem:[%s1640 + $0xa0] sm:$0xf]
      %v1996 = vld [vmem:[%s1640 + $0xa4] sm:$0x1]
      %v1997 = vld [vmem:[%s1640 + $0xa8] sm:$0xf]
      %v1998 = vld [vmem:[%s1640 + $0xac] sm:$0xf]
      %v1999 = vld [vmem:[%s1640 + $0xb0] sm:$0x1]
      %v2000 = vld [vmem:[%s1640 + $0xb4] sm:$0xf]
      %v2001 = vld [vmem:[%s1640 + $0xb8] sm:$0xf]
      %v2002 = vld [vmem:[%s1640 + $0xbc] sm:$0x1]
      %v2004 = vshrl.u32 %v1955, 16
      %v2006 = vrot.slane %v2004, 4
      %v2007 = vshll.u32 %v1955, 16
      %v2009 = vrot.slane %v2007, 5
      %v2010 = vor.u32 %v2006, %v2009
      %v2011 = vrot.slane %v2010, 4
      %v2013 = vshll.u32 %v1956, 16
      %v2015 = vrot.slane %v2013, 5
      %v2016 = vsel %vm576, %v2011, %v2015
      %v2017 = vshrl.u32 %v1956, 16
      %v2019 = vrot.slane %v2017, 4
      %v2020 = vor.u32 %v2019, %v2015
      %v2021 = vrot.slane %v2020, 4
      %v2023 = vshll.u32 %v1957, 16
      %v2025 = vrot.slane %v2023, 5
      %v2026 = vsel %vm576, %v2021, %v2025
      %v2028 = vshrl.u32 %v1958, 16
      %v2030 = vrot.slane %v2028, 4
      %v2031 = vshll.u32 %v1958, 16
      %v2033 = vrot.slane %v2031, 5
      %v2034 = vor.u32 %v2030, %v2033
      %v2035 = vrot.slane %v2034, 4
      %v2037 = vshll.u32 %v1959, 16
      %v2039 = vrot.slane %v2037, 5
      %v2040 = vsel %vm576, %v2035, %v2039
      %v2041 = vshrl.u32 %v1959, 16
      %v2043 = vrot.slane %v2041, 4
      %v2044 = vor.u32 %v2043, %v2039
      %v2045 = vrot.slane %v2044, 4
      %v2047 = vshll.u32 %v1960, 16
      %v2049 = vrot.slane %v2047, 5
      %v2050 = vsel %vm576, %v2045, %v2049
      %v2052 = vshrl.u32 %v1961, 16
      %v2054 = vrot.slane %v2052, 4
      %v2055 = vshll.u32 %v1961, 16
      %v2057 = vrot.slane %v2055, 5
      %v2058 = vor.u32 %v2054, %v2057
      %v2059 = vrot.slane %v2058, 4
      %v2061 = vshll.u32 %v1962, 16
      %v2063 = vrot.slane %v2061, 5
      %v2064 = vsel %vm576, %v2059, %v2063
      %v2065 = vshrl.u32 %v1962, 16
      %v2067 = vrot.slane %v2065, 4
      %v2068 = vor.u32 %v2067, %v2063
      %v2069 = vrot.slane %v2068, 4
      %v2071 = vshll.u32 %v1963, 16
      %v2073 = vrot.slane %v2071, 5
      %v2074 = vsel %vm576, %v2069, %v2073
      %v2076 = vshrl.u32 %v1964, 16
      %v2078 = vrot.slane %v2076, 4
      %v2079 = vshll.u32 %v1964, 16
      %v2081 = vrot.slane %v2079, 5
      %v2082 = vor.u32 %v2078, %v2081
      %v2083 = vrot.slane %v2082, 4
      %v2085 = vshll.u32 %v1965, 16
      %v2087 = vrot.slane %v2085, 5
      %v2088 = vsel %vm576, %v2083, %v2087
      %v2089 = vshrl.u32 %v1965, 16
      %v2091 = vrot.slane %v2089, 4
      %v2092 = vor.u32 %v2091, %v2087
      %v2093 = vrot.slane %v2092, 4
      %v2095 = vshll.u32 %v1966, 16
      %v2097 = vrot.slane %v2095, 5
      %v2098 = vsel %vm576, %v2093, %v2097
      %v2100 = vshrl.u32 %v1967, 16
      %v2102 = vrot.slane %v2100, 4
      %v2103 = vshll.u32 %v1967, 16
      %v2105 = vrot.slane %v2103, 5
      %v2106 = vor.u32 %v2102, %v2105
      %v2107 = vrot.slane %v2106, 4
      %v2109 = vshll.u32 %v1968, 16
      %v2111 = vrot.slane %v2109, 5
      %v2112 = vsel %vm576, %v2107, %v2111
      %v2113 = vshrl.u32 %v1968, 16
      %v2115 = vrot.slane %v2113, 4
      %v2116 = vor.u32 %v2115, %v2111
      %v2117 = vrot.slane %v2116, 4
      %v2119 = vshll.u32 %v1969, 16
      %v2121 = vrot.slane %v2119, 5
      %v2122 = vsel %vm576, %v2117, %v2121
      %v2124 = vshrl.u32 %v1970, 16
      %v2126 = vrot.slane %v2124, 4
      %v2127 = vshll.u32 %v1970, 16
      %v2129 = vrot.slane %v2127, 5
      %v2130 = vor.u32 %v2126, %v2129
      %v2131 = vrot.slane %v2130, 4
      %v2133 = vshll.u32 %v1971, 16
      %v2135 = vrot.slane %v2133, 5
      %v2136 = vsel %vm576, %v2131, %v2135
      %v2137 = vshrl.u32 %v1971, 16
      %v2139 = vrot.slane %v2137, 4
      %v2140 = vor.u32 %v2139, %v2135
      %v2141 = vrot.slane %v2140, 4
      %v2143 = vshll.u32 %v1972, 16
      %v2145 = vrot.slane %v2143, 5
      %v2146 = vsel %vm576, %v2141, %v2145
      %v2148 = vshrl.u32 %v1973, 16
      %v2150 = vrot.slane %v2148, 4
      %v2151 = vshll.u32 %v1973, 16
      %v2153 = vrot.slane %v2151, 5
      %v2154 = vor.u32 %v2150, %v2153
      %v2155 = vrot.slane %v2154, 4
      %v2157 = vshll.u32 %v1974, 16
      %v2159 = vrot.slane %v2157, 5
      %v2160 = vsel %vm576, %v2155, %v2159
      %v2161 = vshrl.u32 %v1974, 16
      %v2163 = vrot.slane %v2161, 4
      %v2164 = vor.u32 %v2163, %v2159
      %v2165 = vrot.slane %v2164, 4
      %v2167 = vshll.u32 %v1975, 16
      %v2169 = vrot.slane %v2167, 5
      %v2170 = vsel %vm576, %v2165, %v2169
      %v2172 = vshrl.u32 %v1976, 16
      %v2174 = vrot.slane %v2172, 4
      %v2175 = vshll.u32 %v1976, 16
      %v2177 = vrot.slane %v2175, 5
      %v2178 = vor.u32 %v2174, %v2177
      %v2179 = vrot.slane %v2178, 4
      %v2181 = vshll.u32 %v1977, 16
      %v2183 = vrot.slane %v2181, 5
      %v2184 = vsel %vm576, %v2179, %v2183
      %v2185 = vshrl.u32 %v1977, 16
      %v2187 = vrot.slane %v2185, 4
      %v2188 = vor.u32 %v2187, %v2183
      %v2189 = vrot.slane %v2188, 4
      %v2191 = vshll.u32 %v1978, 16
      %v2193 = vrot.slane %v2191, 5
      %v2194 = vsel %vm576, %v2189, %v2193
      %v2196 = vshrl.u32 %v1979, 16
      %v2198 = vrot.slane %v2196, 4
      %v2199 = vshll.u32 %v1979, 16
      %v2201 = vrot.slane %v2199, 5
      %v2202 = vor.u32 %v2198, %v2201
      %v2203 = vrot.slane %v2202, 4
      %v2205 = vshll.u32 %v1980, 16
      %v2207 = vrot.slane %v2205, 5
      %v2208 = vsel %vm576, %v2203, %v2207
      %v2209 = vshrl.u32 %v1980, 16
      %v2211 = vrot.slane %v2209, 4
      %v2212 = vor.u32 %v2211, %v2207
      %v2213 = vrot.slane %v2212, 4
      %v2215 = vshll.u32 %v1981, 16
      %v2217 = vrot.slane %v2215, 5
      %v2218 = vsel %vm576, %v2213, %v2217
      %v2220 = vshrl.u32 %v1982, 16
      %v2222 = vrot.slane %v2220, 4
      %v2223 = vshll.u32 %v1982, 16
      %v2225 = vrot.slane %v2223, 5
      %v2226 = vor.u32 %v2222, %v2225
      %v2227 = vrot.slane %v2226, 4
      %v2229 = vshll.u32 %v1983, 16
      %v2231 = vrot.slane %v2229, 5
      %v2232 = vsel %vm576, %v2227, %v2231
      %v2233 = vshrl.u32 %v1983, 16
      %v2235 = vrot.slane %v2233, 4
      %v2236 = vor.u32 %v2235, %v2231
      %v2237 = vrot.slane %v2236, 4
      %v2239 = vshll.u32 %v1984, 16
      %v2241 = vrot.slane %v2239, 5
      %v2242 = vsel %vm576, %v2237, %v2241
      %v2244 = vshrl.u32 %v1985, 16
      %v2246 = vrot.slane %v2244, 4
      %v2247 = vshll.u32 %v1985, 16
      %v2249 = vrot.slane %v2247, 5
      %v2250 = vor.u32 %v2246, %v2249
      %v2251 = vrot.slane %v2250, 4
      %v2253 = vshll.u32 %v1986, 16
      %v2255 = vrot.slane %v2253, 5
      %v2256 = vsel %vm576, %v2251, %v2255
      %v2257 = vshrl.u32 %v1986, 16
      %v2259 = vrot.slane %v2257, 4
      %v2260 = vor.u32 %v2259, %v2255
      %v2261 = vrot.slane %v2260, 4
      %v2263 = vshll.u32 %v1987, 16
      %v2265 = vrot.slane %v2263, 5
      %v2266 = vsel %vm576, %v2261, %v2265
      %v2268 = vshrl.u32 %v1988, 16
      %v2270 = vrot.slane %v2268, 4
      %v2271 = vshll.u32 %v1988, 16
      %v2273 = vrot.slane %v2271, 5
      %v2274 = vor.u32 %v2270, %v2273
      %v2275 = vrot.slane %v2274, 4
      %v2277 = vshll.u32 %v1989, 16
      %v2279 = vrot.slane %v2277, 5
      %v2280 = vsel %vm576, %v2275, %v2279
      %v2281 = vshrl.u32 %v1989, 16
      %v2283 = vrot.slane %v2281, 4
      %v2284 = vor.u32 %v2283, %v2279
      %v2285 = vrot.slane %v2284, 4
      %v2287 = vshll.u32 %v1990, 16
      %v2289 = vrot.slane %v2287, 5
      %v2290 = vsel %vm576, %v2285, %v2289
      %v2292 = vshrl.u32 %v1991, 16
      %v2294 = vrot.slane %v2292, 4
      %v2295 = vshll.u32 %v1991, 16
      %v2297 = vrot.slane %v2295, 5
      %v2298 = vor.u32 %v2294, %v2297
      %v2299 = vrot.slane %v2298, 4
      %v2301 = vshll.u32 %v1992, 16
      %v2303 = vrot.slane %v2301, 5
      %v2304 = vsel %vm576, %v2299, %v2303
      %v2305 = vshrl.u32 %v1992, 16
      %v2307 = vrot.slane %v2305, 4
      %v2308 = vor.u32 %v2307, %v2303
      %v2309 = vrot.slane %v2308, 4
      %v2311 = vshll.u32 %v1993, 16
      %v2313 = vrot.slane %v2311, 5
      %v2314 = vsel %vm576, %v2309, %v2313
      %v2316 = vshrl.u32 %v1994, 16
      %v2318 = vrot.slane %v2316, 4
      %v2319 = vshll.u32 %v1994, 16
      %v2321 = vrot.slane %v2319, 5
      %v2322 = vor.u32 %v2318, %v2321
      %v2323 = vrot.slane %v2322, 4
      %v2325 = vshll.u32 %v1995, 16
      %v2327 = vrot.slane %v2325, 5
      %v2328 = vsel %vm576, %v2323, %v2327
      %v2329 = vshrl.u32 %v1995, 16
      %v2331 = vrot.slane %v2329, 4
      %v2332 = vor.u32 %v2331, %v2327
      %v2333 = vrot.slane %v2332, 4
      %v2335 = vshll.u32 %v1996, 16
      %v2337 = vrot.slane %v2335, 5
      %v2338 = vsel %vm576, %v2333, %v2337
      %v2340 = vshrl.u32 %v1997, 16
      %v2342 = vrot.slane %v2340, 4
      %v2343 = vshll.u32 %v1997, 16
      %v2345 = vrot.slane %v2343, 5
      %v2346 = vor.u32 %v2342, %v2345
      %v2347 = vrot.slane %v2346, 4
      %v2349 = vshll.u32 %v1998, 16
      %v2351 = vrot.slane %v2349, 5
      %v2352 = vsel %vm576, %v2347, %v2351
      %v2353 = vshrl.u32 %v1998, 16
      %v2355 = vrot.slane %v2353, 4
      %v2356 = vor.u32 %v2355, %v2351
      %v2357 = vrot.slane %v2356, 4
      %v2359 = vshll.u32 %v1999, 16
      %v2361 = vrot.slane %v2359, 5
      %v2362 = vsel %vm576, %v2357, %v2361
      %v2364 = vshrl.u32 %v2000, 16
      %v2366 = vrot.slane %v2364, 4
      %v2367 = vshll.u32 %v2000, 16
      %v2369 = vrot.slane %v2367, 5
      %v2370 = vor.u32 %v2366, %v2369
      %v2371 = vrot.slane %v2370, 4
      %v2373 = vshll.u32 %v2001, 16
      %v2375 = vrot.slane %v2373, 5
      %v2376 = vsel %vm576, %v2371, %v2375
      %v2377 = vshrl.u32 %v2001, 16
      %v2379 = vrot.slane %v2377, 4
      %v2380 = vor.u32 %v2379, %v2375
      %v2381 = vrot.slane %v2380, 4
      %v2383 = vshll.u32 %v2002, 16
      %v2385 = vrot.slane %v2383, 5
      %v2386 = vsel %vm576, %v2381, %v2385
      %s2387 = scalar_lea.vmem %s1, 256
      %v2388 = vld [vmem:[%s2387] sm:$0xf]
      %v2389 = vld [vmem:[%s2387 + $0x4] sm:$0xf]
      %v2390 = vld [vmem:[%s2387 + $0x8] sm:$0xf]
      %v2391 = vld [vmem:[%s2387 + $0xc] sm:$0xf]
      %v2392 = vld [vmem:[%s2387 + $0x10] sm:$0xf]
      %v2393 = vld [vmem:[%s2387 + $0x14] sm:$0xf]
      %v2394 = vld [vmem:[%s2387 + $0x18] sm:$0xf]
      %v2395 = vld [vmem:[%s2387 + $0x1c] sm:$0xf]
      %v2396 = vld [vmem:[%s2387 + $0x20] sm:$0xf]
      %v2397 = vld [vmem:[%s2387 + $0x24] sm:$0xf]
      %v2398 = vld [vmem:[%s2387 + $0x28] sm:$0xf]
      %v2399 = vld [vmem:[%s2387 + $0x2c] sm:$0xf]
      %v2400 = vld [vmem:[%s2387 + $0x30] sm:$0xf]
      %v2401 = vld [vmem:[%s2387 + $0x34] sm:$0xf]
      %v2402 = vld [vmem:[%s2387 + $0x38] sm:$0xf]
      %v2403 = vld [vmem:[%s2387 + $0x3c] sm:$0xf]
      %v2404 = vunpack.c.l.b16 %v2016
      %v2405 = vunpack.c.l.b16 %v2026
      %v2406 = vunpack.c.l.b16 %v2040
      %v2407 = vunpack.c.l.b16 %v2050
      %v2408 = vunpack.c.l.b16 %v2064
      %v2409 = vunpack.c.l.b16 %v2074
      %v2410 = vunpack.c.l.b16 %v2088
      %v2411 = vunpack.c.l.b16 %v2098
      %v2412 = vunpack.c.l.b16 %v2112
      %v2413 = vunpack.c.l.b16 %v2122
      %v2414 = vunpack.c.l.b16 %v2136
      %v2415 = vunpack.c.l.b16 %v2146
      %v2416 = vunpack.c.l.b16 %v2160
      %v2417 = vunpack.c.l.b16 %v2170
      %v2418 = vunpack.c.l.b16 %v2184
      %v2419 = vunpack.c.l.b16 %v2194
      %v2420 = vunpack.c.l.b16 %v2208
      %v2421 = vunpack.c.l.b16 %v2218
      %v2422 = vunpack.c.l.b16 %v2232
      %v2423 = vunpack.c.l.b16 %v2242
      %v2424 = vunpack.c.l.b16 %v2256
      %v2425 = vunpack.c.l.b16 %v2266
      %v2426 = vunpack.c.l.b16 %v2280
      %v2427 = vunpack.c.l.b16 %v2290
      %v2428 = vunpack.c.l.b16 %v2304
      %v2429 = vunpack.c.l.b16 %v2314
      %v2430 = vunpack.c.l.b16 %v2328
      %v2431 = vunpack.c.l.b16 %v2338
      %v2432 = vunpack.c.l.b16 %v2352
      %v2433 = vunpack.c.l.b16 %v2362
      %v2434 = vunpack.c.l.b16 %v2376
      %v2435 = vunpack.c.l.b16 %v2386
      %v2436 = vpack.c.b16 %v2405, %v2404
      %v2437 = vpack.c.b16 %v2407, %v2406
      %v2438 = vpack.c.b16 %v2409, %v2408
      %v2439 = vpack.c.b16 %v2411, %v2410
      %v2440 = vpack.c.b16 %v2413, %v2412
      %v2441 = vpack.c.b16 %v2415, %v2414
      %v2442 = vpack.c.b16 %v2417, %v2416
      %v2443 = vpack.c.b16 %v2419, %v2418
      %v2444 = vpack.c.b16 %v2421, %v2420
      %v2445 = vpack.c.b16 %v2423, %v2422
      %v2446 = vpack.c.b16 %v2425, %v2424
      %v2447 = vpack.c.b16 %v2427, %v2426
      %v2448 = vpack.c.b16 %v2429, %v2428
      %v2449 = vpack.c.b16 %v2431, %v2430
      %v2450 = vpack.c.b16 %v2433, %v2432
      %v2451 = vpack.c.b16 %v2435, %v2434
      %v2484 = vunpack.c.l.b16 %v2388
      %v2485 = vunpack.c.l.b16 %v2389
      %v2486 = vunpack.c.l.b16 %v2390
      %v2487 = vunpack.c.l.b16 %v2391
      %v2488 = vunpack.c.l.b16 %v2392
      %v2489 = vunpack.c.l.b16 %v2393
      %v2490 = vunpack.c.l.b16 %v2394
      %v2491 = vunpack.c.l.b16 %v2395
      %v2492 = vunpack.c.l.b16 %v2396
      %v2493 = vunpack.c.l.b16 %v2397
      %v2494 = vunpack.c.l.b16 %v2398
      %v2495 = vunpack.c.l.b16 %v2399
      %v2496 = vunpack.c.l.b16 %v2400
      %v2497 = vunpack.c.l.b16 %v2401
      %v2498 = vunpack.c.l.b16 %v2402
      %v2499 = vunpack.c.l.b16 %v2403
      %v2500 = vpack.c.b16 %v2485, %v2484
      %v2501 = vpack.c.b16 %v2487, %v2486
      %v2502 = vpack.c.b16 %v2489, %v2488
      %v2503 = vpack.c.b16 %v2491, %v2490
      %v2504 = vpack.c.b16 %v2493, %v2492
      %v2505 = vpack.c.b16 %v2495, %v2494
      %v2506 = vpack.c.b16 %v2497, %v2496
      %v2507 = vpack.c.b16 %v2499, %v2498
      %2516 = vmatpush.bf16.msra.mxu0 %v2507
      %2517 = vmatpush.bf16.msra.mxu0 %v2506
      %2518 = vmatpush.bf16.msra.mxu0 %v2505
      %2519 = vmatpush.bf16.msra.mxu0 %v2504
      %2520 = vmatpush.bf16.msra.mxu0 %v2503
      %2521 = vmatpush.bf16.msra.mxu0 %v2502
      %2522 = vmatpush.bf16.msra.mxu0 %v2501
      %2523 = vmatpush.bf16.msra.mxu0 %v2500
      %2524 = vmatmul.bf16.gmra.mxu0 %v2436
      %v2525 = vpop.f32.mrf.mxu0
      %v2526 = vadd.f32 0.0, %v2525
      %v2527 = vpop.f32.mrf.mxu0
      %v2528 = vadd.f32 0.0, %v2527
      %2529 = vmatmul.bf16.gmra.mxu0 %v2437
      %v2530 = vpop.f32.mrf.mxu0
      %v2531 = vadd.f32 0.0, %v2530
      %v2532 = vpop.f32.mrf.mxu0
      %v2533 = vadd.f32 0.0, %v2532
      %2534 = vmatmul.bf16.gmra.mxu0 %v2438
      %v2535 = vpop.f32.mrf.mxu0
      %v2536 = vadd.f32 0.0, %v2535
      %v2537 = vpop.f32.mrf.mxu0
      %v2538 = vadd.f32 0.0, %v2537
      %2539 = vmatmul.bf16.gmra.mxu0 %v2439
      %v2540 = vpop.f32.mrf.mxu0
      %v2541 = vadd.f32 0.0, %v2540
      %v2542 = vpop.f32.mrf.mxu0
      %v2543 = vadd.f32 0.0, %v2542
      %2544 = vmatmul.bf16.gmra.mxu0 %v2440
      %v2545 = vpop.f32.mrf.mxu0
      %v2546 = vadd.f32 0.0, %v2545
      %v2547 = vpop.f32.mrf.mxu0
      %v2548 = vadd.f32 0.0, %v2547
      %2549 = vmatmul.bf16.gmra.mxu0 %v2441
      %v2550 = vpop.f32.mrf.mxu0
      %v2551 = vadd.f32 0.0, %v2550
      %v2552 = vpop.f32.mrf.mxu0
      %v2553 = vadd.f32 0.0, %v2552
      %2554 = vmatmul.bf16.gmra.mxu0 %v2442
      %v2555 = vpop.f32.mrf.mxu0
      %v2556 = vadd.f32 0.0, %v2555
      %v2557 = vpop.f32.mrf.mxu0
      %v2558 = vadd.f32 0.0, %v2557
      %2559 = vmatmul.bf16.gmra.mxu0 %v2443
      %v2560 = vpop.f32.mrf.mxu0
      %v2561 = vadd.f32 0.0, %v2560
      %v2562 = vpop.f32.mrf.mxu0
      %v2563 = vadd.f32 0.0, %v2562
      %2564 = vmatmul.bf16.gmra.mxu0 %v2444
      %v2565 = vpop.f32.mrf.mxu0
      %v2566 = vadd.f32 0.0, %v2565
      %v2567 = vpop.f32.mrf.mxu0
      %v2568 = vadd.f32 0.0, %v2567
      %2569 = vmatmul.bf16.gmra.mxu0 %v2445
      %v2570 = vpop.f32.mrf.mxu0
      %v2571 = vadd.f32 0.0, %v2570
      %v2572 = vpop.f32.mrf.mxu0
      %v2573 = vadd.f32 0.0, %v2572
      %2574 = vmatmul.bf16.gmra.mxu0 %v2446
      %v2575 = vpop.f32.mrf.mxu0
      %v2576 = vadd.f32 0.0, %v2575
      %v2577 = vpop.f32.mrf.mxu0
      %v2578 = vadd.f32 0.0, %v2577
      %2579 = vmatmul.bf16.gmra.mxu0 %v2447
      %v2580 = vpop.f32.mrf.mxu0
      %v2581 = vadd.f32 0.0, %v2580
      %v2582 = vpop.f32.mrf.mxu0
      %v2583 = vadd.f32 0.0, %v2582
      %2584 = vmatmul.bf16.gmra.mxu0 %v2448
      %v2585 = vpop.f32.mrf.mxu0
      %v2586 = vadd.f32 0.0, %v2585
      %v2587 = vpop.f32.mrf.mxu0
      %v2588 = vadd.f32 0.0, %v2587
      %2589 = vmatmul.bf16.gmra.mxu0 %v2449
      %v2590 = vpop.f32.mrf.mxu0
      %v2591 = vadd.f32 0.0, %v2590
      %v2592 = vpop.f32.mrf.mxu0
      %v2593 = vadd.f32 0.0, %v2592
      %2594 = vmatmul.bf16.gmra.mxu0 %v2450
      %v2595 = vpop.f32.mrf.mxu0
      %v2596 = vadd.f32 0.0, %v2595
      %v2597 = vpop.f32.mrf.mxu0
      %v2598 = vadd.f32 0.0, %v2597
      %2599 = vmatmul.bf16.gmra.mxu0 %v2451
      %v2600 = vpop.f32.mrf.mxu0
      %v2601 = vadd.f32 0.0, %v2600
      %v2602 = vpop.f32.mrf.mxu0
      %v2603 = vadd.f32 0.0, %v2602
      %2604 = vdwg.mxu0
      %v2605 = vadd.f32 %v1923, %v2526
      %v2606 = vadd.f32 %v1924, %v2528
      %v2607 = vadd.f32 %v1925, %v2531
      %v2608 = vadd.f32 %v1926, %v2533
      %v2609 = vadd.f32 %v1927, %v2536
      %v2610 = vadd.f32 %v1928, %v2538
      %v2611 = vadd.f32 %v1929, %v2541
      %v2612 = vadd.f32 %v1930, %v2543
      %v2613 = vadd.f32 %v1931, %v2546
      %v2614 = vadd.f32 %v1932, %v2548
      %v2615 = vadd.f32 %v1933, %v2551
      %v2616 = vadd.f32 %v1934, %v2553
      %v2617 = vadd.f32 %v1935, %v2556
      %v2618 = vadd.f32 %v1936, %v2558
      %v2619 = vadd.f32 %v1937, %v2561
      %v2620 = vadd.f32 %v1938, %v2563
      %v2621 = vadd.f32 %v1939, %v2566
      %v2622 = vadd.f32 %v1940, %v2568
      %v2623 = vadd.f32 %v1941, %v2571
      %v2624 = vadd.f32 %v1942, %v2573
      %v2625 = vadd.f32 %v1943, %v2576
      %v2626 = vadd.f32 %v1944, %v2578
      %v2627 = vadd.f32 %v1945, %v2581
      %v2628 = vadd.f32 %v1946, %v2583
      %v2629 = vadd.f32 %v1947, %v2586
      %v2630 = vadd.f32 %v1948, %v2588
      %v2631 = vadd.f32 %v1949, %v2591
      %v2632 = vadd.f32 %v1950, %v2593
      %v2633 = vadd.f32 %v1951, %v2596
      %v2634 = vadd.f32 %v1952, %v2598
      %v2635 = vadd.f32 %v1953, %v2601
      %v2636 = vadd.f32 %v1954, %v2603
      %v2637 = vld [vmem:[%s1640] sm:$0xe]
      %v2638 = vld [vmem:[%s1640 + $0xc] sm:$0xe]
      %v2639 = vld [vmem:[%s1640 + $0x18] sm:$0xe]
      %v2640 = vld [vmem:[%s1640 + $0x24] sm:$0xe]
      %v2641 = vld [vmem:[%s1640 + $0x30] sm:$0xe]
      %v2642 = vld [vmem:[%s1640 + $0x3c] sm:$0xe]
      %v2643 = vld [vmem:[%s1640 + $0x48] sm:$0xe]
      %v2644 = vld [vmem:[%s1640 + $0x54] sm:$0xe]
      %v2645 = vld [vmem:[%s1640 + $0x60] sm:$0xe]
      %v2646 = vld [vmem:[%s1640 + $0x6c] sm:$0xe]
      %v2647 = vld [vmem:[%s1640 + $0x78] sm:$0xe]
      %v2648 = vld [vmem:[%s1640 + $0x84] sm:$0xe]
      %v2649 = vld [vmem:[%s1640 + $0x90] sm:$0xe]
      %v2650 = vld [vmem:[%s1640 + $0x9c] sm:$0xe]
      %v2651 = vld [vmem:[%s1640 + $0xa8] sm:$0xe]
      %v2652 = vld [vmem:[%s1640 + $0xb4] sm:$0xe]
      %v2701 = vrot.slane %v2637, 5
      %v2702 = vrot.slane %v2701, 4
      %v2703 = vrot.slane %v1956, 5
      %v2704 = vsel %vm1277, %v2702, %v2703
      %v2705 = vrot.slane %v2703, 4
      %v2706 = vrot.slane %v1957, 5
      %v2707 = vsel %vm1277, %v2705, %v2706
      %v2708 = vrot.slane %v2638, 5
      %v2709 = vrot.slane %v2708, 4
      %v2710 = vrot.slane %v1959, 5
      %v2711 = vsel %vm1277, %v2709, %v2710
      %v2712 = vrot.slane %v2710, 4
      %v2713 = vrot.slane %v1960, 5
      %v2714 = vsel %vm1277, %v2712, %v2713
      %v2715 = vrot.slane %v2639, 5
      %v2716 = vrot.slane %v2715, 4
      %v2717 = vrot.slane %v1962, 5
      %v2718 = vsel %vm1277, %v2716, %v2717
      %v2719 = vrot.slane %v2717, 4
      %v2720 = vrot.slane %v1963, 5
      %v2721 = vsel %vm1277, %v2719, %v2720
      %v2722 = vrot.slane %v2640, 5
      %v2723 = vrot.slane %v2722, 4
      %v2724 = vrot.slane %v1965, 5
      %v2725 = vsel %vm1277, %v2723, %v2724
      %v2726 = vrot.slane %v2724, 4
      %v2727 = vrot.slane %v1966, 5
      %v2728 = vsel %vm1277, %v2726, %v2727
      %v2729 = vrot.slane %v2641, 5
      %v2730 = vrot.slane %v2729, 4
      %v2731 = vrot.slane %v1968, 5
      %v2732 = vsel %vm1277, %v2730, %v2731
      %v2733 = vrot.slane %v2731, 4
      %v2734 = vrot.slane %v1969, 5
      %v2735 = vsel %vm1277, %v2733, %v2734
      %v2736 = vrot.slane %v2642, 5
      %v2737 = vrot.slane %v2736, 4
      %v2738 = vrot.slane %v1971, 5
      %v2739 = vsel %vm1277, %v2737, %v2738
      %v2740 = vrot.slane %v2738, 4
      %v2741 = vrot.slane %v1972, 5
      %v2742 = vsel %vm1277, %v2740, %v2741
      %v2743 = vrot.slane %v2643, 5
      %v2744 = vrot.slane %v2743, 4
      %v2745 = vrot.slane %v1974, 5
      %v2746 = vsel %vm1277, %v2744, %v2745
      %v2747 = vrot.slane %v2745, 4
      %v2748 = vrot.slane %v1975, 5
      %v2749 = vsel %vm1277, %v2747, %v2748
      %v2750 = vrot.slane %v2644, 5
      %v2751 = vrot.slane %v2750, 4
      %v2752 = vrot.slane %v1977, 5
      %v2753 = vsel %vm1277, %v2751, %v2752
      %v2754 = vrot.slane %v2752, 4
      %v2755 = vrot.slane %v1978, 5
      %v2756 = vsel %vm1277, %v2754, %v2755
      %v2757 = vrot.slane %v2645, 5
      %v2758 = vrot.slane %v2757, 4
      %v2759 = vrot.slane %v1980, 5
      %v2760 = vsel %vm1277, %v2758, %v2759
      %v2761 = vrot.slane %v2759, 4
      %v2762 = vrot.slane %v1981, 5
      %v2763 = vsel %vm1277, %v2761, %v2762
      %v2764 = vrot.slane %v2646, 5
      %v2765 = vrot.slane %v2764, 4
      %v2766 = vrot.slane %v1983, 5
      %v2767 = vsel %vm1277, %v2765, %v2766
      %v2768 = vrot.slane %v2766, 4
      %v2769 = vrot.slane %v1984, 5
      %v2770 = vsel %vm1277, %v2768, %v2769
      %v2771 = vrot.slane %v2647, 5
      %v2772 = vrot.slane %v2771, 4
      %v2773 = vrot.slane %v1986, 5
      %v2774 = vsel %vm1277, %v2772, %v2773
      %v2775 = vrot.slane %v2773, 4
      %v2776 = vrot.slane %v1987, 5
      %v2777 = vsel %vm1277, %v2775, %v2776
      %v2778 = vrot.slane %v2648, 5
      %v2779 = vrot.slane %v2778, 4
      %v2780 = vrot.slane %v1989, 5
      %v2781 = vsel %vm1277, %v2779, %v2780
      %v2782 = vrot.slane %v2780, 4
      %v2783 = vrot.slane %v1990, 5
      %v2784 = vsel %vm1277, %v2782, %v2783
      %v2785 = vrot.slane %v2649, 5
      %v2786 = vrot.slane %v2785, 4
      %v2787 = vrot.slane %v1992, 5
      %v2788 = vsel %vm1277, %v2786, %v2787
      %v2789 = vrot.slane %v2787, 4
      %v2790 = vrot.slane %v1993, 5
      %v2791 = vsel %vm1277, %v2789, %v2790
      %v2792 = vrot.slane %v2650, 5
      %v2793 = vrot.slane %v2792, 4
      %v2794 = vrot.slane %v1995, 5
      %v2795 = vsel %vm1277, %v2793, %v2794
      %v2796 = vrot.slane %v2794, 4
      %v2797 = vrot.slane %v1996, 5
      %v2798 = vsel %vm1277, %v2796, %v2797
      %v2799 = vrot.slane %v2651, 5
      %v2800 = vrot.slane %v2799, 4
      %v2801 = vrot.slane %v1998, 5
      %v2802 = vsel %vm1277, %v2800, %v2801
      %v2803 = vrot.slane %v2801, 4
      %v2804 = vrot.slane %v1999, 5
      %v2805 = vsel %vm1277, %v2803, %v2804
      %v2806 = vrot.slane %v2652, 5
      %v2807 = vrot.slane %v2806, 4
      %v2808 = vrot.slane %v2001, 5
      %v2809 = vsel %vm1277, %v2807, %v2808
      %v2810 = vrot.slane %v2808, 4
      %v2811 = vrot.slane %v2002, 5
      %v2812 = vsel %vm1277, %v2810, %v2811
      %s2813 = scalar_lea.vmem %s1, 320
      %v2814 = vld [vmem:[%s2813] sm:$0xf]
      %v2815 = vld [vmem:[%s2813 + $0x4] sm:$0xf]
      %v2816 = vld [vmem:[%s2813 + $0x8] sm:$0xf]
      %v2817 = vld [vmem:[%s2813 + $0xc] sm:$0xf]
      %v2818 = vld [vmem:[%s2813 + $0x10] sm:$0xf]
      %v2819 = vld [vmem:[%s2813 + $0x14] sm:$0xf]
      %v2820 = vld [vmem:[%s2813 + $0x18] sm:$0xf]
      %v2821 = vld [vmem:[%s2813 + $0x1c] sm:$0xf]
      %v2822 = vld [vmem:[%s2813 + $0x20] sm:$0xf]
      %v2823 = vld [vmem:[%s2813 + $0x24] sm:$0xf]
      %v2824 = vld [vmem:[%s2813 + $0x28] sm:$0xf]
      %v2825 = vld [vmem:[%s2813 + $0x2c] sm:$0xf]
      %v2826 = vld [vmem:[%s2813 + $0x30] sm:$0xf]
      %v2827 = vld [vmem:[%s2813 + $0x34] sm:$0xf]
      %v2828 = vld [vmem:[%s2813 + $0x38] sm:$0xf]
      %v2829 = vld [vmem:[%s2813 + $0x3c] sm:$0xf]
      %v2830 = vunpack.c.l.b16 %v2704
      %v2831 = vunpack.c.l.b16 %v2707
      %v2832 = vunpack.c.l.b16 %v2711
      %v2833 = vunpack.c.l.b16 %v2714
      %v2834 = vunpack.c.l.b16 %v2718
      %v2835 = vunpack.c.l.b16 %v2721
      %v2836 = vunpack.c.l.b16 %v2725
      %v2837 = vunpack.c.l.b16 %v2728
      %v2838 = vunpack.c.l.b16 %v2732
      %v2839 = vunpack.c.l.b16 %v2735
      %v2840 = vunpack.c.l.b16 %v2739
      %v2841 = vunpack.c.l.b16 %v2742
      %v2842 = vunpack.c.l.b16 %v2746
      %v2843 = vunpack.c.l.b16 %v2749
      %v2844 = vunpack.c.l.b16 %v2753
      %v2845 = vunpack.c.l.b16 %v2756
      %v2846 = vunpack.c.l.b16 %v2760
      %v2847 = vunpack.c.l.b16 %v2763
      %v2848 = vunpack.c.l.b16 %v2767
      %v2849 = vunpack.c.l.b16 %v2770
      %v2850 = vunpack.c.l.b16 %v2774
      %v2851 = vunpack.c.l.b16 %v2777
      %v2852 = vunpack.c.l.b16 %v2781
      %v2853 = vunpack.c.l.b16 %v2784
      %v2854 = vunpack.c.l.b16 %v2788
      %v2855 = vunpack.c.l.b16 %v2791
      %v2856 = vunpack.c.l.b16 %v2795
      %v2857 = vunpack.c.l.b16 %v2798
      %v2858 = vunpack.c.l.b16 %v2802
      %v2859 = vunpack.c.l.b16 %v2805
      %v2860 = vunpack.c.l.b16 %v2809
      %v2861 = vunpack.c.l.b16 %v2812
      %v2862 = vpack.c.b16 %v2831, %v2830
      %v2863 = vpack.c.b16 %v2833, %v2832
      %v2864 = vpack.c.b16 %v2835, %v2834
      %v2865 = vpack.c.b16 %v2837, %v2836
      %v2866 = vpack.c.b16 %v2839, %v2838
      %v2867 = vpack.c.b16 %v2841, %v2840
      %v2868 = vpack.c.b16 %v2843, %v2842
      %v2869 = vpack.c.b16 %v2845, %v2844
      %v2870 = vpack.c.b16 %v2847, %v2846
      %v2871 = vpack.c.b16 %v2849, %v2848
      %v2872 = vpack.c.b16 %v2851, %v2850
      %v2873 = vpack.c.b16 %v2853, %v2852
      %v2874 = vpack.c.b16 %v2855, %v2854
      %v2875 = vpack.c.b16 %v2857, %v2856
      %v2876 = vpack.c.b16 %v2859, %v2858
      %v2877 = vpack.c.b16 %v2861, %v2860
      %v2910 = vunpack.c.l.b16 %v2814
      %v2911 = vunpack.c.l.b16 %v2815
      %v2912 = vunpack.c.l.b16 %v2816
      %v2913 = vunpack.c.l.b16 %v2817
      %v2914 = vunpack.c.l.b16 %v2818
      %v2915 = vunpack.c.l.b16 %v2819
      %v2916 = vunpack.c.l.b16 %v2820
      %v2917 = vunpack.c.l.b16 %v2821
      %v2918 = vunpack.c.l.b16 %v2822
      %v2919 = vunpack.c.l.b16 %v2823
      %v2920 = vunpack.c.l.b16 %v2824
      %v2921 = vunpack.c.l.b16 %v2825
      %v2922 = vunpack.c.l.b16 %v2826
      %v2923 = vunpack.c.l.b16 %v2827
      %v2924 = vunpack.c.l.b16 %v2828
      %v2925 = vunpack.c.l.b16 %v2829
      %v2926 = vpack.c.b16 %v2911, %v2910
      %v2927 = vpack.c.b16 %v2913, %v2912
      %v2928 = vpack.c.b16 %v2915, %v2914
      %v2929 = vpack.c.b16 %v2917, %v2916
      %v2930 = vpack.c.b16 %v2919, %v2918
      %v2931 = vpack.c.b16 %v2921, %v2920
      %v2932 = vpack.c.b16 %v2923, %v2922
      %v2933 = vpack.c.b16 %v2925, %v2924
      %2942 = vmatpush.bf16.msra.mxu0 %v2933
      %2943 = vmatpush.bf16.msra.mxu0 %v2932
      %2944 = vmatpush.bf16.msra.mxu0 %v2931
      %2945 = vmatpush.bf16.msra.mxu0 %v2930
      %2946 = vmatpush.bf16.msra.mxu0 %v2929
      %2947 = vmatpush.bf16.msra.mxu0 %v2928
      %2948 = vmatpush.bf16.msra.mxu0 %v2927
      %2949 = vmatpush.bf16.msra.mxu0 %v2926
      %2950 = vmatmul.bf16.gmra.mxu0 %v2862
      %v2951 = vpop.f32.mrf.mxu0
      %v2952 = vadd.f32 0.0, %v2951
      %v2953 = vpop.f32.mrf.mxu0
      %v2954 = vadd.f32 0.0, %v2953
      %2955 = vmatmul.bf16.gmra.mxu0 %v2863
      %v2956 = vpop.f32.mrf.mxu0
      %v2957 = vadd.f32 0.0, %v2956
      %v2958 = vpop.f32.mrf.mxu0
      %v2959 = vadd.f32 0.0, %v2958
      %2960 = vmatmul.bf16.gmra.mxu0 %v2864
      %v2961 = vpop.f32.mrf.mxu0
      %v2962 = vadd.f32 0.0, %v2961
      %v2963 = vpop.f32.mrf.mxu0
      %v2964 = vadd.f32 0.0, %v2963
      %2965 = vmatmul.bf16.gmra.mxu0 %v2865
      %v2966 = vpop.f32.mrf.mxu0
      %v2967 = vadd.f32 0.0, %v2966
      %v2968 = vpop.f32.mrf.mxu0
      %v2969 = vadd.f32 0.0, %v2968
      %2970 = vmatmul.bf16.gmra.mxu0 %v2866
      %v2971 = vpop.f32.mrf.mxu0
      %v2972 = vadd.f32 0.0, %v2971
      %v2973 = vpop.f32.mrf.mxu0
      %v2974 = vadd.f32 0.0, %v2973
      %2975 = vmatmul.bf16.gmra.mxu0 %v2867
      %v2976 = vpop.f32.mrf.mxu0
      %v2977 = vadd.f32 0.0, %v2976
      %v2978 = vpop.f32.mrf.mxu0
      %v2979 = vadd.f32 0.0, %v2978
      %2980 = vmatmul.bf16.gmra.mxu0 %v2868
      %v2981 = vpop.f32.mrf.mxu0
      %v2982 = vadd.f32 0.0, %v2981
      %v2983 = vpop.f32.mrf.mxu0
      %v2984 = vadd.f32 0.0, %v2983
      %2985 = vmatmul.bf16.gmra.mxu0 %v2869
      %v2986 = vpop.f32.mrf.mxu0
      %v2987 = vadd.f32 0.0, %v2986
      %v2988 = vpop.f32.mrf.mxu0
      %v2989 = vadd.f32 0.0, %v2988
      %2990 = vmatmul.bf16.gmra.mxu0 %v2870
      %v2991 = vpop.f32.mrf.mxu0
      %v2992 = vadd.f32 0.0, %v2991
      %v2993 = vpop.f32.mrf.mxu0
      %v2994 = vadd.f32 0.0, %v2993
      %2995 = vmatmul.bf16.gmra.mxu0 %v2871
      %v2996 = vpop.f32.mrf.mxu0
      %v2997 = vadd.f32 0.0, %v2996
      %v2998 = vpop.f32.mrf.mxu0
      %v2999 = vadd.f32 0.0, %v2998
      %3000 = vmatmul.bf16.gmra.mxu0 %v2872
      %v3001 = vpop.f32.mrf.mxu0
      %v3002 = vadd.f32 0.0, %v3001
      %v3003 = vpop.f32.mrf.mxu0
      %v3004 = vadd.f32 0.0, %v3003
      %3005 = vmatmul.bf16.gmra.mxu0 %v2873
      %v3006 = vpop.f32.mrf.mxu0
      %v3007 = vadd.f32 0.0, %v3006
      %v3008 = vpop.f32.mrf.mxu0
      %v3009 = vadd.f32 0.0, %v3008
      %3010 = vmatmul.bf16.gmra.mxu0 %v2874
      %v3011 = vpop.f32.mrf.mxu0
      %v3012 = vadd.f32 0.0, %v3011
      %v3013 = vpop.f32.mrf.mxu0
      %v3014 = vadd.f32 0.0, %v3013
      %3015 = vmatmul.bf16.gmra.mxu0 %v2875
      %v3016 = vpop.f32.mrf.mxu0
      %v3017 = vadd.f32 0.0, %v3016
      %v3018 = vpop.f32.mrf.mxu0
      %v3019 = vadd.f32 0.0, %v3018
      %3020 = vmatmul.bf16.gmra.mxu0 %v2876
      %v3021 = vpop.f32.mrf.mxu0
      %v3022 = vadd.f32 0.0, %v3021
      %v3023 = vpop.f32.mrf.mxu0
      %v3024 = vadd.f32 0.0, %v3023
      %3025 = vmatmul.bf16.gmra.mxu0 %v2877
      %v3026 = vpop.f32.mrf.mxu0
      %v3027 = vadd.f32 0.0, %v3026
      %v3028 = vpop.f32.mrf.mxu0
      %v3029 = vadd.f32 0.0, %v3028
      %3030 = vdwg.mxu0
      %v3031 = vadd.f32 %v2605, %v2952
      %v3032 = vadd.f32 %v2606, %v2954
      %v3033 = vadd.f32 %v2607, %v2957
      %v3034 = vadd.f32 %v2608, %v2959
      %v3035 = vadd.f32 %v2609, %v2962
      %v3036 = vadd.f32 %v2610, %v2964
      %v3037 = vadd.f32 %v2611, %v2967
      %v3038 = vadd.f32 %v2612, %v2969
      %v3039 = vadd.f32 %v2613, %v2972
      %v3040 = vadd.f32 %v2614, %v2974
      %v3041 = vadd.f32 %v2615, %v2977
      %v3042 = vadd.f32 %v2616, %v2979
      %v3043 = vadd.f32 %v2617, %v2982
      %v3044 = vadd.f32 %v2618, %v2984
      %v3045 = vadd.f32 %v2619, %v2987
      %v3046 = vadd.f32 %v2620, %v2989
      %v3047 = vadd.f32 %v2621, %v2992
      %v3048 = vadd.f32 %v2622, %v2994
      %v3049 = vadd.f32 %v2623, %v2997
      %v3050 = vadd.f32 %v2624, %v2999
      %v3051 = vadd.f32 %v2625, %v3002
      %v3052 = vadd.f32 %v2626, %v3004
      %v3053 = vadd.f32 %v2627, %v3007
      %v3054 = vadd.f32 %v2628, %v3009
      %v3055 = vadd.f32 %v2629, %v3012
      %v3056 = vadd.f32 %v2630, %v3014
      %v3057 = vadd.f32 %v2631, %v3017
      %v3058 = vadd.f32 %v2632, %v3019
      %v3059 = vadd.f32 %v2633, %v3022
      %v3060 = vadd.f32 %v2634, %v3024
      %v3061 = vadd.f32 %v2635, %v3027
      %v3062 = vadd.f32 %v2636, %v3029
      %s3063 = scalar_lea.vmem %s199, 24
      %v3064 = vld [vmem:[%s3063] sm:$0xf]
      %v3065 = vld [vmem:[%s3063 + $0x4] sm:$0xf]
      %v3066 = vld [vmem:[%s3063 + $0xc] sm:$0xf]
      %v3067 = vld [vmem:[%s3063 + $0x10] sm:$0xf]
      %v3068 = vld [vmem:[%s3063 + $0x18] sm:$0xf]
      %v3069 = vld [vmem:[%s3063 + $0x1c] sm:$0xf]
      %v3070 = vld [vmem:[%s3063 + $0x24] sm:$0xf]
      %v3071 = vld [vmem:[%s3063 + $0x28] sm:$0xf]
      %v3072 = vld [vmem:[%s3063 + $0x30] sm:$0xf]
      %v3073 = vld [vmem:[%s3063 + $0x34] sm:$0xf]
      %v3074 = vld [vmem:[%s3063 + $0x3c] sm:$0xf]
      %v3075 = vld [vmem:[%s3063 + $0x40] sm:$0xf]
      %v3076 = vld [vmem:[%s3063 + $0x48] sm:$0xf]
      %v3077 = vld [vmem:[%s3063 + $0x4c] sm:$0xf]
      %v3078 = vld [vmem:[%s3063 + $0x54] sm:$0xf]
      %v3079 = vld [vmem:[%s3063 + $0x58] sm:$0xf]
      %v3080 = vld [vmem:[%s3063 + $0x60] sm:$0xf]
      %v3081 = vld [vmem:[%s3063 + $0x64] sm:$0xf]
      %v3082 = vld [vmem:[%s3063 + $0x6c] sm:$0xf]
      %v3083 = vld [vmem:[%s3063 + $0x70] sm:$0xf]
      %v3084 = vld [vmem:[%s3063 + $0x78] sm:$0xf]
      %v3085 = vld [vmem:[%s3063 + $0x7c] sm:$0xf]
      %v3086 = vld [vmem:[%s3063 + $0x84] sm:$0xf]
      %v3087 = vld [vmem:[%s3063 + $0x88] sm:$0xf]
      %v3088 = vld [vmem:[%s3063 + $0x90] sm:$0xf]
      %v3089 = vld [vmem:[%s3063 + $0x94] sm:$0xf]
      %v3090 = vld [vmem:[%s3063 + $0x9c] sm:$0xf]
      %v3091 = vld [vmem:[%s3063 + $0xa0] sm:$0xf]
      %v3092 = vld [vmem:[%s3063 + $0xa8] sm:$0xf]
      %v3093 = vld [vmem:[%s3063 + $0xac] sm:$0xf]
      %v3094 = vld [vmem:[%s3063 + $0xb4] sm:$0xf]
      %v3095 = vld [vmem:[%s3063 + $0xb8] sm:$0xf]
      %s3096 = scalar_lea.vmem %s1, 384
      %v3097 = vld [vmem:[%s3096] sm:$0xf]
      %v3098 = vld [vmem:[%s3096 + $0x4] sm:$0xf]
      %v3099 = vld [vmem:[%s3096 + $0x8] sm:$0xf]
      %v3100 = vld [vmem:[%s3096 + $0xc] sm:$0xf]
      %v3101 = vld [vmem:[%s3096 + $0x10] sm:$0xf]
      %v3102 = vld [vmem:[%s3096 + $0x14] sm:$0xf]
      %v3103 = vld [vmem:[%s3096 + $0x18] sm:$0xf]
      %v3104 = vld [vmem:[%s3096 + $0x1c] sm:$0xf]
      %v3105 = vld [vmem:[%s3096 + $0x20] sm:$0xf]
      %v3106 = vld [vmem:[%s3096 + $0x24] sm:$0xf]
      %v3107 = vld [vmem:[%s3096 + $0x28] sm:$0xf]
      %v3108 = vld [vmem:[%s3096 + $0x2c] sm:$0xf]
      %v3109 = vld [vmem:[%s3096 + $0x30] sm:$0xf]
      %v3110 = vld [vmem:[%s3096 + $0x34] sm:$0xf]
      %v3111 = vld [vmem:[%s3096 + $0x38] sm:$0xf]
      %v3112 = vld [vmem:[%s3096 + $0x3c] sm:$0xf]
      %v3145 = vunpack.c.l.b16 %v3064
      %v3146 = vunpack.c.l.b16 %v3065
      %v3147 = vunpack.c.l.b16 %v3066
      %v3148 = vunpack.c.l.b16 %v3067
      %v3149 = vunpack.c.l.b16 %v3068
      %v3150 = vunpack.c.l.b16 %v3069
      %v3151 = vunpack.c.l.b16 %v3070
      %v3152 = vunpack.c.l.b16 %v3071
      %v3153 = vunpack.c.l.b16 %v3072
      %v3154 = vunpack.c.l.b16 %v3073
      %v3155 = vunpack.c.l.b16 %v3074
      %v3156 = vunpack.c.l.b16 %v3075
      %v3157 = vunpack.c.l.b16 %v3076
      %v3158 = vunpack.c.l.b16 %v3077
      %v3159 = vunpack.c.l.b16 %v3078
      %v3160 = vunpack.c.l.b16 %v3079
      %v3161 = vunpack.c.l.b16 %v3080
      %v3162 = vunpack.c.l.b16 %v3081
      %v3163 = vunpack.c.l.b16 %v3082
      %v3164 = vunpack.c.l.b16 %v3083
      %v3165 = vunpack.c.l.b16 %v3084
      %v3166 = vunpack.c.l.b16 %v3085
      %v3167 = vunpack.c.l.b16 %v3086
      %v3168 = vunpack.c.l.b16 %v3087
      %v3169 = vunpack.c.l.b16 %v3088
      %v3170 = vunpack.c.l.b16 %v3089
      %v3171 = vunpack.c.l.b16 %v3090
      %v3172 = vunpack.c.l.b16 %v3091
      %v3173 = vunpack.c.l.b16 %v3092
      %v3174 = vunpack.c.l.b16 %v3093
      %v3175 = vunpack.c.l.b16 %v3094
      %v3176 = vunpack.c.l.b16 %v3095
      %v3177 = vpack.c.b16 %v3146, %v3145
      %v3178 = vpack.c.b16 %v3148, %v3147
      %v3179 = vpack.c.b16 %v3150, %v3149
      %v3180 = vpack.c.b16 %v3152, %v3151
      %v3181 = vpack.c.b16 %v3154, %v3153
      %v3182 = vpack.c.b16 %v3156, %v3155
      %v3183 = vpack.c.b16 %v3158, %v3157
      %v3184 = vpack.c.b16 %v3160, %v3159
      %v3185 = vpack.c.b16 %v3162, %v3161
      %v3186 = vpack.c.b16 %v3164, %v3163
      %v3187 = vpack.c.b16 %v3166, %v3165
      %v3188 = vpack.c.b16 %v3168, %v3167
      %v3189 = vpack.c.b16 %v3170, %v3169
      %v3190 = vpack.c.b16 %v3172, %v3171
      %v3191 = vpack.c.b16 %v3174, %v3173
      %v3192 = vpack.c.b16 %v3176, %v3175
      %v3225 = vunpack.c.l.b16 %v3097
      %v3226 = vunpack.c.l.b16 %v3098
      %v3227 = vunpack.c.l.b16 %v3099
      %v3228 = vunpack.c.l.b16 %v3100
      %v3229 = vunpack.c.l.b16 %v3101
      %v3230 = vunpack.c.l.b16 %v3102
      %v3231 = vunpack.c.l.b16 %v3103
      %v3232 = vunpack.c.l.b16 %v3104
      %v3233 = vunpack.c.l.b16 %v3105
      %v3234 = vunpack.c.l.b16 %v3106
      %v3235 = vunpack.c.l.b16 %v3107
      %v3236 = vunpack.c.l.b16 %v3108
      %v3237 = vunpack.c.l.b16 %v3109
      %v3238 = vunpack.c.l.b16 %v3110
      %v3239 = vunpack.c.l.b16 %v3111
      %v3240 = vunpack.c.l.b16 %v3112
      %v3241 = vpack.c.b16 %v3226, %v3225
      %v3242 = vpack.c.b16 %v3228, %v3227
      %v3243 = vpack.c.b16 %v3230, %v3229
      %v3244 = vpack.c.b16 %v3232, %v3231
      %v3245 = vpack.c.b16 %v3234, %v3233
      %v3246 = vpack.c.b16 %v3236, %v3235
      %v3247 = vpack.c.b16 %v3238, %v3237
      %v3248 = vpack.c.b16 %v3240, %v3239
      %3257 = vmatpush.bf16.msra.mxu0 %v3248
      %3258 = vmatpush.bf16.msra.mxu0 %v3247
      %3259 = vmatpush.bf16.msra.mxu0 %v3246
      %3260 = vmatpush.bf16.msra.mxu0 %v3245
      %3261 = vmatpush.bf16.msra.mxu0 %v3244
      %3262 = vmatpush.bf16.msra.mxu0 %v3243
      %3263 = vmatpush.bf16.msra.mxu0 %v3242
      %3264 = vmatpush.bf16.msra.mxu0 %v3241
      %3265 = vmatmul.bf16.gmra.mxu0 %v3177
      %v3266 = vpop.f32.mrf.mxu0
      %v3267 = vadd.f32 0.0, %v3266
      %v3268 = vpop.f32.mrf.mxu0
      %v3269 = vadd.f32 0.0, %v3268
      %3270 = vmatmul.bf16.gmra.mxu0 %v3178
      %v3271 = vpop.f32.mrf.mxu0
      %v3272 = vadd.f32 0.0, %v3271
      %v3273 = vpop.f32.mrf.mxu0
      %v3274 = vadd.f32 0.0, %v3273
      %3275 = vmatmul.bf16.gmra.mxu0 %v3179
      %v3276 = vpop.f32.mrf.mxu0
      %v3277 = vadd.f32 0.0, %v3276
      %v3278 = vpop.f32.mrf.mxu0
      %v3279 = vadd.f32 0.0, %v3278
      %3280 = vmatmul.bf16.gmra.mxu0 %v3180
      %v3281 = vpop.f32.mrf.mxu0
      %v3282 = vadd.f32 0.0, %v3281
      %v3283 = vpop.f32.mrf.mxu0
      %v3284 = vadd.f32 0.0, %v3283
      %3285 = vmatmul.bf16.gmra.mxu0 %v3181
      %v3286 = vpop.f32.mrf.mxu0
      %v3287 = vadd.f32 0.0, %v3286
      %v3288 = vpop.f32.mrf.mxu0
      %v3289 = vadd.f32 0.0, %v3288
      %3290 = vmatmul.bf16.gmra.mxu0 %v3182
      %v3291 = vpop.f32.mrf.mxu0
      %v3292 = vadd.f32 0.0, %v3291
      %v3293 = vpop.f32.mrf.mxu0
      %v3294 = vadd.f32 0.0, %v3293
      %3295 = vmatmul.bf16.gmra.mxu0 %v3183
      %v3296 = vpop.f32.mrf.mxu0
      %v3297 = vadd.f32 0.0, %v3296
      %v3298 = vpop.f32.mrf.mxu0
      %v3299 = vadd.f32 0.0, %v3298
      %3300 = vmatmul.bf16.gmra.mxu0 %v3184
      %v3301 = vpop.f32.mrf.mxu0
      %v3302 = vadd.f32 0.0, %v3301
      %v3303 = vpop.f32.mrf.mxu0
      %v3304 = vadd.f32 0.0, %v3303
      %3305 = vmatmul.bf16.gmra.mxu0 %v3185
      %v3306 = vpop.f32.mrf.mxu0
      %v3307 = vadd.f32 0.0, %v3306
      %v3308 = vpop.f32.mrf.mxu0
      %v3309 = vadd.f32 0.0, %v3308
      %3310 = vmatmul.bf16.gmra.mxu0 %v3186
      %v3311 = vpop.f32.mrf.mxu0
      %v3312 = vadd.f32 0.0, %v3311
      %v3313 = vpop.f32.mrf.mxu0
      %v3314 = vadd.f32 0.0, %v3313
      %3315 = vmatmul.bf16.gmra.mxu0 %v3187
      %v3316 = vpop.f32.mrf.mxu0
      %v3317 = vadd.f32 0.0, %v3316
      %v3318 = vpop.f32.mrf.mxu0
      %v3319 = vadd.f32 0.0, %v3318
      %3320 = vmatmul.bf16.gmra.mxu0 %v3188
      %v3321 = vpop.f32.mrf.mxu0
      %v3322 = vadd.f32 0.0, %v3321
      %v3323 = vpop.f32.mrf.mxu0
      %v3324 = vadd.f32 0.0, %v3323
      %3325 = vmatmul.bf16.gmra.mxu0 %v3189
      %v3326 = vpop.f32.mrf.mxu0
      %v3327 = vadd.f32 0.0, %v3326
      %v3328 = vpop.f32.mrf.mxu0
      %v3329 = vadd.f32 0.0, %v3328
      %3330 = vmatmul.bf16.gmra.mxu0 %v3190
      %v3331 = vpop.f32.mrf.mxu0
      %v3332 = vadd.f32 0.0, %v3331
      %v3333 = vpop.f32.mrf.mxu0
      %v3334 = vadd.f32 0.0, %v3333
      %3335 = vmatmul.bf16.gmra.mxu0 %v3191
      %v3336 = vpop.f32.mrf.mxu0
      %v3337 = vadd.f32 0.0, %v3336
      %v3338 = vpop.f32.mrf.mxu0
      %v3339 = vadd.f32 0.0, %v3338
      %3340 = vmatmul.bf16.gmra.mxu0 %v3192
      %v3341 = vpop.f32.mrf.mxu0
      %v3342 = vadd.f32 0.0, %v3341
      %v3343 = vpop.f32.mrf.mxu0
      %v3344 = vadd.f32 0.0, %v3343
      %3345 = vdwg.mxu0
      %v3346 = vadd.f32 %v3031, %v3267
      %v3347 = vadd.f32 %v3032, %v3269
      %v3348 = vadd.f32 %v3033, %v3272
      %v3349 = vadd.f32 %v3034, %v3274
      %v3350 = vadd.f32 %v3035, %v3277
      %v3351 = vadd.f32 %v3036, %v3279
      %v3352 = vadd.f32 %v3037, %v3282
      %v3353 = vadd.f32 %v3038, %v3284
      %v3354 = vadd.f32 %v3039, %v3287
      %v3355 = vadd.f32 %v3040, %v3289
      %v3356 = vadd.f32 %v3041, %v3292
      %v3357 = vadd.f32 %v3042, %v3294
      %v3358 = vadd.f32 %v3043, %v3297
      %v3359 = vadd.f32 %v3044, %v3299
      %v3360 = vadd.f32 %v3045, %v3302
      %v3361 = vadd.f32 %v3046, %v3304
      %v3362 = vadd.f32 %v3047, %v3307
      %v3363 = vadd.f32 %v3048, %v3309
      %v3364 = vadd.f32 %v3049, %v3312
      %v3365 = vadd.f32 %v3050, %v3314
      %v3366 = vadd.f32 %v3051, %v3317
      %v3367 = vadd.f32 %v3052, %v3319
      %v3368 = vadd.f32 %v3053, %v3322
      %v3369 = vadd.f32 %v3054, %v3324
      %v3370 = vadd.f32 %v3055, %v3327
      %v3371 = vadd.f32 %v3056, %v3329
      %v3372 = vadd.f32 %v3057, %v3332
      %v3373 = vadd.f32 %v3058, %v3334
      %v3374 = vadd.f32 %v3059, %v3337
      %v3375 = vadd.f32 %v3060, %v3339
      %v3376 = vadd.f32 %v3061, %v3342
      %v3377 = vadd.f32 %v3062, %v3344
      %v3378 = vld [vmem:[%s3063] sm:$0xf]
      %v3379 = vld [vmem:[%s3063 + $0x4] sm:$0xf]
      %v3380 = vld [vmem:[%s3063 + $0x8] sm:$0x1]
      %v3381 = vld [vmem:[%s3063 + $0xc] sm:$0xf]
      %v3382 = vld [vmem:[%s3063 + $0x10] sm:$0xf]
      %v3383 = vld [vmem:[%s3063 + $0x14] sm:$0x1]
      %v3384 = vld [vmem:[%s3063 + $0x18] sm:$0xf]
      %v3385 = vld [vmem:[%s3063 + $0x1c] sm:$0xf]
      %v3386 = vld [vmem:[%s3063 + $0x20] sm:$0x1]
      %v3387 = vld [vmem:[%s3063 + $0x24] sm:$0xf]
      %v3388 = vld [vmem:[%s3063 + $0x28] sm:$0xf]
      %v3389 = vld [vmem:[%s3063 + $0x2c] sm:$0x1]
      %v3390 = vld [vmem:[%s3063 + $0x30] sm:$0xf]
      %v3391 = vld [vmem:[%s3063 + $0x34] sm:$0xf]
      %v3392 = vld [vmem:[%s3063 + $0x38] sm:$0x1]
      %v3393 = vld [vmem:[%s3063 + $0x3c] sm:$0xf]
      %v3394 = vld [vmem:[%s3063 + $0x40] sm:$0xf]
      %v3395 = vld [vmem:[%s3063 + $0x44] sm:$0x1]
      %v3396 = vld [vmem:[%s3063 + $0x48] sm:$0xf]
      %v3397 = vld [vmem:[%s3063 + $0x4c] sm:$0xf]
      %v3398 = vld [vmem:[%s3063 + $0x50] sm:$0x1]
      %v3399 = vld [vmem:[%s3063 + $0x54] sm:$0xf]
      %v3400 = vld [vmem:[%s3063 + $0x58] sm:$0xf]
      %v3401 = vld [vmem:[%s3063 + $0x5c] sm:$0x1]
      %v3402 = vld [vmem:[%s3063 + $0x60] sm:$0xf]
      %v3403 = vld [vmem:[%s3063 + $0x64] sm:$0xf]
      %v3404 = vld [vmem:[%s3063 + $0x68] sm:$0x1]
      %v3405 = vld [vmem:[%s3063 + $0x6c] sm:$0xf]
      %v3406 = vld [vmem:[%s3063 + $0x70] sm:$0xf]
      %v3407 = vld [vmem:[%s3063 + $0x74] sm:$0x1]
      %v3408 = vld [vmem:[%s3063 + $0x78] sm:$0xf]
      %v3409 = vld [vmem:[%s3063 + $0x7c] sm:$0xf]
      %v3410 = vld [vmem:[%s3063 + $0x80] sm:$0x1]
      %v3411 = vld [vmem:[%s3063 + $0x84] sm:$0xf]
      %v3412 = vld [vmem:[%s3063 + $0x88] sm:$0xf]
      %v3413 = vld [vmem:[%s3063 + $0x8c] sm:$0x1]
      %v3414 = vld [vmem:[%s3063 + $0x90] sm:$0xf]
      %v3415 = vld [vmem:[%s3063 + $0x94] sm:$0xf]
      %v3416 = vld [vmem:[%s3063 + $0x98] sm:$0x1]
      %v3417 = vld [vmem:[%s3063 + $0x9c] sm:$0xf]
      %v3418 = vld [vmem:[%s3063 + $0xa0] sm:$0xf]
      %v3419 = vld [vmem:[%s3063 + $0xa4] sm:$0x1]
      %v3420 = vld [vmem:[%s3063 + $0xa8] sm:$0xf]
      %v3421 = vld [vmem:[%s3063 + $0xac] sm:$0xf]
      %v3422 = vld [vmem:[%s3063 + $0xb0] sm:$0x1]
      %v3423 = vld [vmem:[%s3063 + $0xb4] sm:$0xf]
      %v3424 = vld [vmem:[%s3063 + $0xb8] sm:$0xf]
      %v3425 = vld [vmem:[%s3063 + $0xbc] sm:$0x1]
      %v3427 = vshrl.u32 %v3378, 16
      %v3429 = vrot.slane %v3427, 4
      %v3430 = vshll.u32 %v3378, 16
      %v3432 = vrot.slane %v3430, 5
      %v3433 = vor.u32 %v3429, %v3432
      %v3434 = vrot.slane %v3433, 4
      %v3436 = vshll.u32 %v3379, 16
      %v3438 = vrot.slane %v3436, 5
      %v3439 = vsel %vm576, %v3434, %v3438
      %v3440 = vshrl.u32 %v3379, 16
      %v3442 = vrot.slane %v3440, 4
      %v3443 = vor.u32 %v3442, %v3438
      %v3444 = vrot.slane %v3443, 4
      %v3446 = vshll.u32 %v3380, 16
      %v3448 = vrot.slane %v3446, 5
      %v3449 = vsel %vm576, %v3444, %v3448
      %v3451 = vshrl.u32 %v3381, 16
      %v3453 = vrot.slane %v3451, 4
      %v3454 = vshll.u32 %v3381, 16
      %v3456 = vrot.slane %v3454, 5
      %v3457 = vor.u32 %v3453, %v3456
      %v3458 = vrot.slane %v3457, 4
      %v3460 = vshll.u32 %v3382, 16
      %v3462 = vrot.slane %v3460, 5
      %v3463 = vsel %vm576, %v3458, %v3462
      %v3464 = vshrl.u32 %v3382, 16
      %v3466 = vrot.slane %v3464, 4
      %v3467 = vor.u32 %v3466, %v3462
      %v3468 = vrot.slane %v3467, 4
      %v3470 = vshll.u32 %v3383, 16
      %v3472 = vrot.slane %v3470, 5
      %v3473 = vsel %vm576, %v3468, %v3472
      %v3475 = vshrl.u32 %v3384, 16
      %v3477 = vrot.slane %v3475, 4
      %v3478 = vshll.u32 %v3384, 16
      %v3480 = vrot.slane %v3478, 5
      %v3481 = vor.u32 %v3477, %v3480
      %v3482 = vrot.slane %v3481, 4
      %v3484 = vshll.u32 %v3385, 16
      %v3486 = vrot.slane %v3484, 5
      %v3487 = vsel %vm576, %v3482, %v3486
      %v3488 = vshrl.u32 %v3385, 16
      %v3490 = vrot.slane %v3488, 4
      %v3491 = vor.u32 %v3490, %v3486
      %v3492 = vrot.slane %v3491, 4
      %v3494 = vshll.u32 %v3386, 16
      %v3496 = vrot.slane %v3494, 5
      %v3497 = vsel %vm576, %v3492, %v3496
      %v3499 = vshrl.u32 %v3387, 16
      %v3501 = vrot.slane %v3499, 4
      %v3502 = vshll.u32 %v3387, 16
      %v3504 = vrot.slane %v3502, 5
      %v3505 = vor.u32 %v3501, %v3504
      %v3506 = vrot.slane %v3505, 4
      %v3508 = vshll.u32 %v3388, 16
      %v3510 = vrot.slane %v3508, 5
      %v3511 = vsel %vm576, %v3506, %v3510
      %v3512 = vshrl.u32 %v3388, 16
      %v3514 = vrot.slane %v3512, 4
      %v3515 = vor.u32 %v3514, %v3510
      %v3516 = vrot.slane %v3515, 4
      %v3518 = vshll.u32 %v3389, 16
      %v3520 = vrot.slane %v3518, 5
      %v3521 = vsel %vm576, %v3516, %v3520
      %v3523 = vshrl.u32 %v3390, 16
      %v3525 = vrot.slane %v3523, 4
      %v3526 = vshll.u32 %v3390, 16
      %v3528 = vrot.slane %v3526, 5
      %v3529 = vor.u32 %v3525, %v3528
      %v3530 = vrot.slane %v3529, 4
      %v3532 = vshll.u32 %v3391, 16
      %v3534 = vrot.slane %v3532, 5
      %v3535 = vsel %vm576, %v3530, %v3534
      %v3536 = vshrl.u32 %v3391, 16
      %v3538 = vrot.slane %v3536, 4
      %v3539 = vor.u32 %v3538, %v3534
      %v3540 = vrot.slane %v3539, 4
      %v3542 = vshll.u32 %v3392, 16
      %v3544 = vrot.slane %v3542, 5
      %v3545 = vsel %vm576, %v3540, %v3544
      %v3547 = vshrl.u32 %v3393, 16
      %v3549 = vrot.slane %v3547, 4
      %v3550 = vshll.u32 %v3393, 16
      %v3552 = vrot.slane %v3550, 5
      %v3553 = vor.u32 %v3549, %v3552
      %v3554 = vrot.slane %v3553, 4
      %v3556 = vshll.u32 %v3394, 16
      %v3558 = vrot.slane %v3556, 5
      %v3559 = vsel %vm576, %v3554, %v3558
      %v3560 = vshrl.u32 %v3394, 16
      %v3562 = vrot.slane %v3560, 4
      %v3563 = vor.u32 %v3562, %v3558
      %v3564 = vrot.slane %v3563, 4
      %v3566 = vshll.u32 %v3395, 16
      %v3568 = vrot.slane %v3566, 5
      %v3569 = vsel %vm576, %v3564, %v3568
      %v3571 = vshrl.u32 %v3396, 16
      %v3573 = vrot.slane %v3571, 4
      %v3574 = vshll.u32 %v3396, 16
      %v3576 = vrot.slane %v3574, 5
      %v3577 = vor.u32 %v3573, %v3576
      %v3578 = vrot.slane %v3577, 4
      %v3580 = vshll.u32 %v3397, 16
      %v3582 = vrot.slane %v3580, 5
      %v3583 = vsel %vm576, %v3578, %v3582
      %v3584 = vshrl.u32 %v3397, 16
      %v3586 = vrot.slane %v3584, 4
      %v3587 = vor.u32 %v3586, %v3582
      %v3588 = vrot.slane %v3587, 4
      %v3590 = vshll.u32 %v3398, 16
      %v3592 = vrot.slane %v3590, 5
      %v3593 = vsel %vm576, %v3588, %v3592
      %v3595 = vshrl.u32 %v3399, 16
      %v3597 = vrot.slane %v3595, 4
      %v3598 = vshll.u32 %v3399, 16
      %v3600 = vrot.slane %v3598, 5
      %v3601 = vor.u32 %v3597, %v3600
      %v3602 = vrot.slane %v3601, 4
      %v3604 = vshll.u32 %v3400, 16
      %v3606 = vrot.slane %v3604, 5
      %v3607 = vsel %vm576, %v3602, %v3606
      %v3608 = vshrl.u32 %v3400, 16
      %v3610 = vrot.slane %v3608, 4
      %v3611 = vor.u32 %v3610, %v3606
      %v3612 = vrot.slane %v3611, 4
      %v3614 = vshll.u32 %v3401, 16
      %v3616 = vrot.slane %v3614, 5
      %v3617 = vsel %vm576, %v3612, %v3616
      %v3619 = vshrl.u32 %v3402, 16
      %v3621 = vrot.slane %v3619, 4
      %v3622 = vshll.u32 %v3402, 16
      %v3624 = vrot.slane %v3622, 5
      %v3625 = vor.u32 %v3621, %v3624
      %v3626 = vrot.slane %v3625, 4
      %v3628 = vshll.u32 %v3403, 16
      %v3630 = vrot.slane %v3628, 5
      %v3631 = vsel %vm576, %v3626, %v3630
      %v3632 = vshrl.u32 %v3403, 16
      %v3634 = vrot.slane %v3632, 4
      %v3635 = vor.u32 %v3634, %v3630
      %v3636 = vrot.slane %v3635, 4
      %v3638 = vshll.u32 %v3404, 16
      %v3640 = vrot.slane %v3638, 5
      %v3641 = vsel %vm576, %v3636, %v3640
      %v3643 = vshrl.u32 %v3405, 16
      %v3645 = vrot.slane %v3643, 4
      %v3646 = vshll.u32 %v3405, 16
      %v3648 = vrot.slane %v3646, 5
      %v3649 = vor.u32 %v3645, %v3648
      %v3650 = vrot.slane %v3649, 4
      %v3652 = vshll.u32 %v3406, 16
      %v3654 = vrot.slane %v3652, 5
      %v3655 = vsel %vm576, %v3650, %v3654
      %v3656 = vshrl.u32 %v3406, 16
      %v3658 = vrot.slane %v3656, 4
      %v3659 = vor.u32 %v3658, %v3654
      %v3660 = vrot.slane %v3659, 4
      %v3662 = vshll.u32 %v3407, 16
      %v3664 = vrot.slane %v3662, 5
      %v3665 = vsel %vm576, %v3660, %v3664
      %v3667 = vshrl.u32 %v3408, 16
      %v3669 = vrot.slane %v3667, 4
      %v3670 = vshll.u32 %v3408, 16
      %v3672 = vrot.slane %v3670, 5
      %v3673 = vor.u32 %v3669, %v3672
      %v3674 = vrot.slane %v3673, 4
      %v3676 = vshll.u32 %v3409, 16
      %v3678 = vrot.slane %v3676, 5
      %v3679 = vsel %vm576, %v3674, %v3678
      %v3680 = vshrl.u32 %v3409, 16
      %v3682 = vrot.slane %v3680, 4
      %v3683 = vor.u32 %v3682, %v3678
      %v3684 = vrot.slane %v3683, 4
      %v3686 = vshll.u32 %v3410, 16
      %v3688 = vrot.slane %v3686, 5
      %v3689 = vsel %vm576, %v3684, %v3688
      %v3691 = vshrl.u32 %v3411, 16
      %v3693 = vrot.slane %v3691, 4
      %v3694 = vshll.u32 %v3411, 16
      %v3696 = vrot.slane %v3694, 5
      %v3697 = vor.u32 %v3693, %v3696
      %v3698 = vrot.slane %v3697, 4
      %v3700 = vshll.u32 %v3412, 16
      %v3702 = vrot.slane %v3700, 5
      %v3703 = vsel %vm576, %v3698, %v3702
      %v3704 = vshrl.u32 %v3412, 16
      %v3706 = vrot.slane %v3704, 4
      %v3707 = vor.u32 %v3706, %v3702
      %v3708 = vrot.slane %v3707, 4
      %v3710 = vshll.u32 %v3413, 16
      %v3712 = vrot.slane %v3710, 5
      %v3713 = vsel %vm576, %v3708, %v3712
      %v3715 = vshrl.u32 %v3414, 16
      %v3717 = vrot.slane %v3715, 4
      %v3718 = vshll.u32 %v3414, 16
      %v3720 = vrot.slane %v3718, 5
      %v3721 = vor.u32 %v3717, %v3720
      %v3722 = vrot.slane %v3721, 4
      %v3724 = vshll.u32 %v3415, 16
      %v3726 = vrot.slane %v3724, 5
      %v3727 = vsel %vm576, %v3722, %v3726
      %v3728 = vshrl.u32 %v3415, 16
      %v3730 = vrot.slane %v3728, 4
      %v3731 = vor.u32 %v3730, %v3726
      %v3732 = vrot.slane %v3731, 4
      %v3734 = vshll.u32 %v3416, 16
      %v3736 = vrot.slane %v3734, 5
      %v3737 = vsel %vm576, %v3732, %v3736
      %v3739 = vshrl.u32 %v3417, 16
      %v3741 = vrot.slane %v3739, 4
      %v3742 = vshll.u32 %v3417, 16
      %v3744 = vrot.slane %v3742, 5
      %v3745 = vor.u32 %v3741, %v3744
      %v3746 = vrot.slane %v3745, 4
      %v3748 = vshll.u32 %v3418, 16
      %v3750 = vrot.slane %v3748, 5
      %v3751 = vsel %vm576, %v3746, %v3750
      %v3752 = vshrl.u32 %v3418, 16
      %v3754 = vrot.slane %v3752, 4
      %v3755 = vor.u32 %v3754, %v3750
      %v3756 = vrot.slane %v3755, 4
      %v3758 = vshll.u32 %v3419, 16
      %v3760 = vrot.slane %v3758, 5
      %v3761 = vsel %vm576, %v3756, %v3760
      %v3763 = vshrl.u32 %v3420, 16
      %v3765 = vrot.slane %v3763, 4
      %v3766 = vshll.u32 %v3420, 16
      %v3768 = vrot.slane %v3766, 5
      %v3769 = vor.u32 %v3765, %v3768
      %v3770 = vrot.slane %v3769, 4
      %v3772 = vshll.u32 %v3421, 16
      %v3774 = vrot.slane %v3772, 5
      %v3775 = vsel %vm576, %v3770, %v3774
      %v3776 = vshrl.u32 %v3421, 16
      %v3778 = vrot.slane %v3776, 4
      %v3779 = vor.u32 %v3778, %v3774
      %v3780 = vrot.slane %v3779, 4
      %v3782 = vshll.u32 %v3422, 16
      %v3784 = vrot.slane %v3782, 5
      %v3785 = vsel %vm576, %v3780, %v3784
      %v3787 = vshrl.u32 %v3423, 16
      %v3789 = vrot.slane %v3787, 4
      %v3790 = vshll.u32 %v3423, 16
      %v3792 = vrot.slane %v3790, 5
      %v3793 = vor.u32 %v3789, %v3792
      %v3794 = vrot.slane %v3793, 4
      %v3796 = vshll.u32 %v3424, 16
      %v3798 = vrot.slane %v3796, 5
      %v3799 = vsel %vm576, %v3794, %v3798
      %v3800 = vshrl.u32 %v3424, 16
      %v3802 = vrot.slane %v3800, 4
      %v3803 = vor.u32 %v3802, %v3798
      %v3804 = vrot.slane %v3803, 4
      %v3806 = vshll.u32 %v3425, 16
      %v3808 = vrot.slane %v3806, 5
      %v3809 = vsel %vm576, %v3804, %v3808
      %s3810 = scalar_lea.vmem %s1, 448
      %v3811 = vld [vmem:[%s3810] sm:$0xf]
      %v3812 = vld [vmem:[%s3810 + $0x4] sm:$0xf]
      %v3813 = vld [vmem:[%s3810 + $0x8] sm:$0xf]
      %v3814 = vld [vmem:[%s3810 + $0xc] sm:$0xf]
      %v3815 = vld [vmem:[%s3810 + $0x10] sm:$0xf]
      %v3816 = vld [vmem:[%s3810 + $0x14] sm:$0xf]
      %v3817 = vld [vmem:[%s3810 + $0x18] sm:$0xf]
      %v3818 = vld [vmem:[%s3810 + $0x1c] sm:$0xf]
      %v3819 = vld [vmem:[%s3810 + $0x20] sm:$0xf]
      %v3820 = vld [vmem:[%s3810 + $0x24] sm:$0xf]
      %v3821 = vld [vmem:[%s3810 + $0x28] sm:$0xf]
      %v3822 = vld [vmem:[%s3810 + $0x2c] sm:$0xf]
      %v3823 = vld [vmem:[%s3810 + $0x30] sm:$0xf]
      %v3824 = vld [vmem:[%s3810 + $0x34] sm:$0xf]
      %v3825 = vld [vmem:[%s3810 + $0x38] sm:$0xf]
      %v3826 = vld [vmem:[%s3810 + $0x3c] sm:$0xf]
      %v3827 = vunpack.c.l.b16 %v3439
      %v3828 = vunpack.c.l.b16 %v3449
      %v3829 = vunpack.c.l.b16 %v3463
      %v3830 = vunpack.c.l.b16 %v3473
      %v3831 = vunpack.c.l.b16 %v3487
      %v3832 = vunpack.c.l.b16 %v3497
      %v3833 = vunpack.c.l.b16 %v3511
      %v3834 = vunpack.c.l.b16 %v3521
      %v3835 = vunpack.c.l.b16 %v3535
      %v3836 = vunpack.c.l.b16 %v3545
      %v3837 = vunpack.c.l.b16 %v3559
      %v3838 = vunpack.c.l.b16 %v3569
      %v3839 = vunpack.c.l.b16 %v3583
      %v3840 = vunpack.c.l.b16 %v3593
      %v3841 = vunpack.c.l.b16 %v3607
      %v3842 = vunpack.c.l.b16 %v3617
      %v3843 = vunpack.c.l.b16 %v3631
      %v3844 = vunpack.c.l.b16 %v3641
      %v3845 = vunpack.c.l.b16 %v3655
      %v3846 = vunpack.c.l.b16 %v3665
      %v3847 = vunpack.c.l.b16 %v3679
      %v3848 = vunpack.c.l.b16 %v3689
      %v3849 = vunpack.c.l.b16 %v3703
      %v3850 = vunpack.c.l.b16 %v3713
      %v3851 = vunpack.c.l.b16 %v3727
      %v3852 = vunpack.c.l.b16 %v3737
      %v3853 = vunpack.c.l.b16 %v3751
      %v3854 = vunpack.c.l.b16 %v3761
      %v3855 = vunpack.c.l.b16 %v3775
      %v3856 = vunpack.c.l.b16 %v3785
      %v3857 = vunpack.c.l.b16 %v3799
      %v3858 = vunpack.c.l.b16 %v3809
      %v3859 = vpack.c.b16 %v3828, %v3827
      %v3860 = vpack.c.b16 %v3830, %v3829
      %v3861 = vpack.c.b16 %v3832, %v3831
      %v3862 = vpack.c.b16 %v3834, %v3833
      %v3863 = vpack.c.b16 %v3836, %v3835
      %v3864 = vpack.c.b16 %v3838, %v3837
      %v3865 = vpack.c.b16 %v3840, %v3839
      %v3866 = vpack.c.b16 %v3842, %v3841
      %v3867 = vpack.c.b16 %v3844, %v3843
      %v3868 = vpack.c.b16 %v3846, %v3845
      %v3869 = vpack.c.b16 %v3848, %v3847
      %v3870 = vpack.c.b16 %v3850, %v3849
      %v3871 = vpack.c.b16 %v3852, %v3851
      %v3872 = vpack.c.b16 %v3854, %v3853
      %v3873 = vpack.c.b16 %v3856, %v3855
      %v3874 = vpack.c.b16 %v3858, %v3857
      %v3907 = vunpack.c.l.b16 %v3811
      %v3908 = vunpack.c.l.b16 %v3812
      %v3909 = vunpack.c.l.b16 %v3813
      %v3910 = vunpack.c.l.b16 %v3814
      %v3911 = vunpack.c.l.b16 %v3815
      %v3912 = vunpack.c.l.b16 %v3816
      %v3913 = vunpack.c.l.b16 %v3817
      %v3914 = vunpack.c.l.b16 %v3818
      %v3915 = vunpack.c.l.b16 %v3819
      %v3916 = vunpack.c.l.b16 %v3820
      %v3917 = vunpack.c.l.b16 %v3821
      %v3918 = vunpack.c.l.b16 %v3822
      %v3919 = vunpack.c.l.b16 %v3823
      %v3920 = vunpack.c.l.b16 %v3824
      %v3921 = vunpack.c.l.b16 %v3825
      %v3922 = vunpack.c.l.b16 %v3826
      %v3923 = vpack.c.b16 %v3908, %v3907
      %v3924 = vpack.c.b16 %v3910, %v3909
      %v3925 = vpack.c.b16 %v3912, %v3911
      %v3926 = vpack.c.b16 %v3914, %v3913
      %v3927 = vpack.c.b16 %v3916, %v3915
      %v3928 = vpack.c.b16 %v3918, %v3917
      %v3929 = vpack.c.b16 %v3920, %v3919
      %v3930 = vpack.c.b16 %v3922, %v3921
      %3939 = vmatpush.bf16.msra.mxu0 %v3930
      %3940 = vmatpush.bf16.msra.mxu0 %v3929
      %3941 = vmatpush.bf16.msra.mxu0 %v3928
      %3942 = vmatpush.bf16.msra.mxu0 %v3927
      %3943 = vmatpush.bf16.msra.mxu0 %v3926
      %3944 = vmatpush.bf16.msra.mxu0 %v3925
      %3945 = vmatpush.bf16.msra.mxu0 %v3924
      %3946 = vmatpush.bf16.msra.mxu0 %v3923
      %3947 = vmatmul.bf16.gmra.mxu0 %v3859
      %v3948 = vpop.f32.mrf.mxu0
      %v3949 = vadd.f32 0.0, %v3948
      %v3950 = vpop.f32.mrf.mxu0
      %v3951 = vadd.f32 0.0, %v3950
      %3952 = vmatmul.bf16.gmra.mxu0 %v3860
      %v3953 = vpop.f32.mrf.mxu0
      %v3954 = vadd.f32 0.0, %v3953
      %v3955 = vpop.f32.mrf.mxu0
      %v3956 = vadd.f32 0.0, %v3955
      %3957 = vmatmul.bf16.gmra.mxu0 %v3861
      %v3958 = vpop.f32.mrf.mxu0
      %v3959 = vadd.f32 0.0, %v3958
      %v3960 = vpop.f32.mrf.mxu0
      %v3961 = vadd.f32 0.0, %v3960
      %3962 = vmatmul.bf16.gmra.mxu0 %v3862
      %v3963 = vpop.f32.mrf.mxu0
      %v3964 = vadd.f32 0.0, %v3963
      %v3965 = vpop.f32.mrf.mxu0
      %v3966 = vadd.f32 0.0, %v3965
      %3967 = vmatmul.bf16.gmra.mxu0 %v3863
      %v3968 = vpop.f32.mrf.mxu0
      %v3969 = vadd.f32 0.0, %v3968
      %v3970 = vpop.f32.mrf.mxu0
      %v3971 = vadd.f32 0.0, %v3970
      %3972 = vmatmul.bf16.gmra.mxu0 %v3864
      %v3973 = vpop.f32.mrf.mxu0
      %v3974 = vadd.f32 0.0, %v3973
      %v3975 = vpop.f32.mrf.mxu0
      %v3976 = vadd.f32 0.0, %v3975
      %3977 = vmatmul.bf16.gmra.mxu0 %v3865
      %v3978 = vpop.f32.mrf.mxu0
      %v3979 = vadd.f32 0.0, %v3978
      %v3980 = vpop.f32.mrf.mxu0
      %v3981 = vadd.f32 0.0, %v3980
      %3982 = vmatmul.bf16.gmra.mxu0 %v3866
      %v3983 = vpop.f32.mrf.mxu0
      %v3984 = vadd.f32 0.0, %v3983
      %v3985 = vpop.f32.mrf.mxu0
      %v3986 = vadd.f32 0.0, %v3985
      %3987 = vmatmul.bf16.gmra.mxu0 %v3867
      %v3988 = vpop.f32.mrf.mxu0
      %v3989 = vadd.f32 0.0, %v3988
      %v3990 = vpop.f32.mrf.mxu0
      %v3991 = vadd.f32 0.0, %v3990
      %3992 = vmatmul.bf16.gmra.mxu0 %v3868
      %v3993 = vpop.f32.mrf.mxu0
      %v3994 = vadd.f32 0.0, %v3993
      %v3995 = vpop.f32.mrf.mxu0
      %v3996 = vadd.f32 0.0, %v3995
      %3997 = vmatmul.bf16.gmra.mxu0 %v3869
      %v3998 = vpop.f32.mrf.mxu0
      %v3999 = vadd.f32 0.0, %v3998
      %v4000 = vpop.f32.mrf.mxu0
      %v4001 = vadd.f32 0.0, %v4000
      %4002 = vmatmul.bf16.gmra.mxu0 %v3870
      %v4003 = vpop.f32.mrf.mxu0
      %v4004 = vadd.f32 0.0, %v4003
      %v4005 = vpop.f32.mrf.mxu0
      %v4006 = vadd.f32 0.0, %v4005
      %4007 = vmatmul.bf16.gmra.mxu0 %v3871
      %v4008 = vpop.f32.mrf.mxu0
      %v4009 = vadd.f32 0.0, %v4008
      %v4010 = vpop.f32.mrf.mxu0
      %v4011 = vadd.f32 0.0, %v4010
      %4012 = vmatmul.bf16.gmra.mxu0 %v3872
      %v4013 = vpop.f32.mrf.mxu0
      %v4014 = vadd.f32 0.0, %v4013
      %v4015 = vpop.f32.mrf.mxu0
      %v4016 = vadd.f32 0.0, %v4015
      %4017 = vmatmul.bf16.gmra.mxu0 %v3873
      %v4018 = vpop.f32.mrf.mxu0
      %v4019 = vadd.f32 0.0, %v4018
      %v4020 = vpop.f32.mrf.mxu0
      %v4021 = vadd.f32 0.0, %v4020
      %4022 = vmatmul.bf16.gmra.mxu0 %v3874
      %v4023 = vpop.f32.mrf.mxu0
      %v4024 = vadd.f32 0.0, %v4023
      %v4025 = vpop.f32.mrf.mxu0
      %v4026 = vadd.f32 0.0, %v4025
      %4027 = vdwg.mxu0
      %v4028 = vadd.f32 %v3346, %v3949
      %v4029 = vadd.f32 %v3347, %v3951
      %v4030 = vadd.f32 %v3348, %v3954
      %v4031 = vadd.f32 %v3349, %v3956
      %v4032 = vadd.f32 %v3350, %v3959
      %v4033 = vadd.f32 %v3351, %v3961
      %v4034 = vadd.f32 %v3352, %v3964
      %v4035 = vadd.f32 %v3353, %v3966
      %v4036 = vadd.f32 %v3354, %v3969
      %v4037 = vadd.f32 %v3355, %v3971
      %v4038 = vadd.f32 %v3356, %v3974
      %v4039 = vadd.f32 %v3357, %v3976
      %v4040 = vadd.f32 %v3358, %v3979
      %v4041 = vadd.f32 %v3359, %v3981
      %v4042 = vadd.f32 %v3360, %v3984
      %v4043 = vadd.f32 %v3361, %v3986
      %v4044 = vadd.f32 %v3362, %v3989
      %v4045 = vadd.f32 %v3363, %v3991
      %v4046 = vadd.f32 %v3364, %v3994
      %v4047 = vadd.f32 %v3365, %v3996
      %v4048 = vadd.f32 %v3366, %v3999
      %v4049 = vadd.f32 %v3367, %v4001
      %v4050 = vadd.f32 %v3368, %v4004
      %v4051 = vadd.f32 %v3369, %v4006
      %v4052 = vadd.f32 %v3370, %v4009
      %v4053 = vadd.f32 %v3371, %v4011
      %v4054 = vadd.f32 %v3372, %v4014
      %v4055 = vadd.f32 %v3373, %v4016
      %v4056 = vadd.f32 %v3374, %v4019
      %v4057 = vadd.f32 %v3375, %v4021
      %v4058 = vadd.f32 %v3376, %v4024
      %v4059 = vadd.f32 %v3377, %v4026
      %v4060 = vld [vmem:[%s3063] sm:$0xe]
      %v4061 = vld [vmem:[%s3063 + $0xc] sm:$0xe]
      %v4062 = vld [vmem:[%s3063 + $0x18] sm:$0xe]
      %v4063 = vld [vmem:[%s3063 + $0x24] sm:$0xe]
      %v4064 = vld [vmem:[%s3063 + $0x30] sm:$0xe]
      %v4065 = vld [vmem:[%s3063 + $0x3c] sm:$0xe]
      %v4066 = vld [vmem:[%s3063 + $0x48] sm:$0xe]
      %v4067 = vld [vmem:[%s3063 + $0x54] sm:$0xe]
      %v4068 = vld [vmem:[%s3063 + $0x60] sm:$0xe]
      %v4069 = vld [vmem:[%s3063 + $0x6c] sm:$0xe]
      %v4070 = vld [vmem:[%s3063 + $0x78] sm:$0xe]
      %v4071 = vld [vmem:[%s3063 + $0x84] sm:$0xe]
      %v4072 = vld [vmem:[%s3063 + $0x90] sm:$0xe]
      %v4073 = vld [vmem:[%s3063 + $0x9c] sm:$0xe]
      %v4074 = vld [vmem:[%s3063 + $0xa8] sm:$0xe]
      %v4075 = vld [vmem:[%s3063 + $0xb4] sm:$0xe]
      %v4124 = vrot.slane %v4060, 5
      %v4125 = vrot.slane %v4124, 4
      %v4126 = vrot.slane %v3379, 5
      %v4127 = vsel %vm1277, %v4125, %v4126
      %v4128 = vrot.slane %v4126, 4
      %v4129 = vrot.slane %v3380, 5
      %v4130 = vsel %vm1277, %v4128, %v4129
      %v4131 = vrot.slane %v4061, 5
      %v4132 = vrot.slane %v4131, 4
      %v4133 = vrot.slane %v3382, 5
      %v4134 = vsel %vm1277, %v4132, %v4133
      %v4135 = vrot.slane %v4133, 4
      %v4136 = vrot.slane %v3383, 5
      %v4137 = vsel %vm1277, %v4135, %v4136
      %v4138 = vrot.slane %v4062, 5
      %v4139 = vrot.slane %v4138, 4
      %v4140 = vrot.slane %v3385, 5
      %v4141 = vsel %vm1277, %v4139, %v4140
      %v4142 = vrot.slane %v4140, 4
      %v4143 = vrot.slane %v3386, 5
      %v4144 = vsel %vm1277, %v4142, %v4143
      %v4145 = vrot.slane %v4063, 5
      %v4146 = vrot.slane %v4145, 4
      %v4147 = vrot.slane %v3388, 5
      %v4148 = vsel %vm1277, %v4146, %v4147
      %v4149 = vrot.slane %v4147, 4
      %v4150 = vrot.slane %v3389, 5
      %v4151 = vsel %vm1277, %v4149, %v4150
      %v4152 = vrot.slane %v4064, 5
      %v4153 = vrot.slane %v4152, 4
      %v4154 = vrot.slane %v3391, 5
      %v4155 = vsel %vm1277, %v4153, %v4154
      %v4156 = vrot.slane %v4154, 4
      %v4157 = vrot.slane %v3392, 5
      %v4158 = vsel %vm1277, %v4156, %v4157
      %v4159 = vrot.slane %v4065, 5
      %v4160 = vrot.slane %v4159, 4
      %v4161 = vrot.slane %v3394, 5
      %v4162 = vsel %vm1277, %v4160, %v4161
      %v4163 = vrot.slane %v4161, 4
      %v4164 = vrot.slane %v3395, 5
      %v4165 = vsel %vm1277, %v4163, %v4164
      %v4166 = vrot.slane %v4066, 5
      %v4167 = vrot.slane %v4166, 4
      %v4168 = vrot.slane %v3397, 5
      %v4169 = vsel %vm1277, %v4167, %v4168
      %v4170 = vrot.slane %v4168, 4
      %v4171 = vrot.slane %v3398, 5
      %v4172 = vsel %vm1277, %v4170, %v4171
      %v4173 = vrot.slane %v4067, 5
      %v4174 = vrot.slane %v4173, 4
      %v4175 = vrot.slane %v3400, 5
      %v4176 = vsel %vm1277, %v4174, %v4175
      %v4177 = vrot.slane %v4175, 4
      %v4178 = vrot.slane %v3401, 5
      %v4179 = vsel %vm1277, %v4177, %v4178
      %v4180 = vrot.slane %v4068, 5
      %v4181 = vrot.slane %v4180, 4
      %v4182 = vrot.slane %v3403, 5
      %v4183 = vsel %vm1277, %v4181, %v4182
      %v4184 = vrot.slane %v4182, 4
      %v4185 = vrot.slane %v3404, 5
      %v4186 = vsel %vm1277, %v4184, %v4185
      %v4187 = vrot.slane %v4069, 5
      %v4188 = vrot.slane %v4187, 4
      %v4189 = vrot.slane %v3406, 5
      %v4190 = vsel %vm1277, %v4188, %v4189
      %v4191 = vrot.slane %v4189, 4
      %v4192 = vrot.slane %v3407, 5
      %v4193 = vsel %vm1277, %v4191, %v4192
      %v4194 = vrot.slane %v4070, 5
      %v4195 = vrot.slane %v4194, 4
      %v4196 = vrot.slane %v3409, 5
      %v4197 = vsel %vm1277, %v4195, %v4196
      %v4198 = vrot.slane %v4196, 4
      %v4199 = vrot.slane %v3410, 5
      %v4200 = vsel %vm1277, %v4198, %v4199
      %v4201 = vrot.slane %v4071, 5
      %v4202 = vrot.slane %v4201, 4
      %v4203 = vrot.slane %v3412, 5
      %v4204 = vsel %vm1277, %v4202, %v4203
      %v4205 = vrot.slane %v4203, 4
      %v4206 = vrot.slane %v3413, 5
      %v4207 = vsel %vm1277, %v4205, %v4206
      %v4208 = vrot.slane %v4072, 5
      %v4209 = vrot.slane %v4208, 4
      %v4210 = vrot.slane %v3415, 5
      %v4211 = vsel %vm1277, %v4209, %v4210
      %v4212 = vrot.slane %v4210, 4
      %v4213 = vrot.slane %v3416, 5
      %v4214 = vsel %vm1277, %v4212, %v4213
      %v4215 = vrot.slane %v4073, 5
      %v4216 = vrot.slane %v4215, 4
      %v4217 = vrot.slane %v3418, 5
      %v4218 = vsel %vm1277, %v4216, %v4217
      %v4219 = vrot.slane %v4217, 4
      %v4220 = vrot.slane %v3419, 5
      %v4221 = vsel %vm1277, %v4219, %v4220
      %v4222 = vrot.slane %v4074, 5
      %v4223 = vrot.slane %v4222, 4
      %v4224 = vrot.slane %v3421, 5
      %v4225 = vsel %vm1277, %v4223, %v4224
      %v4226 = vrot.slane %v4224, 4
      %v4227 = vrot.slane %v3422, 5
      %v4228 = vsel %vm1277, %v4226, %v4227
      %v4229 = vrot.slane %v4075, 5
      %v4230 = vrot.slane %v4229, 4
      %v4231 = vrot.slane %v3424, 5
      %v4232 = vsel %vm1277, %v4230, %v4231
      %v4233 = vrot.slane %v4231, 4
      %v4234 = vrot.slane %v3425, 5
      %v4235 = vsel %vm1277, %v4233, %v4234
      %s4236 = scalar_lea.vmem %s1, 512
      %v4237 = vld [vmem:[%s4236] sm:$0xf]
      %v4238 = vld [vmem:[%s4236 + $0x4] sm:$0xf]
      %v4239 = vld [vmem:[%s4236 + $0x8] sm:$0xf]
      %v4240 = vld [vmem:[%s4236 + $0xc] sm:$0xf]
      %v4241 = vld [vmem:[%s4236 + $0x10] sm:$0xf]
      %v4242 = vld [vmem:[%s4236 + $0x14] sm:$0xf]
      %v4243 = vld [vmem:[%s4236 + $0x18] sm:$0xf]
      %v4244 = vld [vmem:[%s4236 + $0x1c] sm:$0xf]
      %v4245 = vld [vmem:[%s4236 + $0x20] sm:$0xf]
      %v4246 = vld [vmem:[%s4236 + $0x24] sm:$0xf]
      %v4247 = vld [vmem:[%s4236 + $0x28] sm:$0xf]
      %v4248 = vld [vmem:[%s4236 + $0x2c] sm:$0xf]
      %v4249 = vld [vmem:[%s4236 + $0x30] sm:$0xf]
      %v4250 = vld [vmem:[%s4236 + $0x34] sm:$0xf]
      %v4251 = vld [vmem:[%s4236 + $0x38] sm:$0xf]
      %v4252 = vld [vmem:[%s4236 + $0x3c] sm:$0xf]
      %v4253 = vunpack.c.l.b16 %v4127
      %v4254 = vunpack.c.l.b16 %v4130
      %v4255 = vunpack.c.l.b16 %v4134
      %v4256 = vunpack.c.l.b16 %v4137
      %v4257 = vunpack.c.l.b16 %v4141
      %v4258 = vunpack.c.l.b16 %v4144
      %v4259 = vunpack.c.l.b16 %v4148
      %v4260 = vunpack.c.l.b16 %v4151
      %v4261 = vunpack.c.l.b16 %v4155
      %v4262 = vunpack.c.l.b16 %v4158
      %v4263 = vunpack.c.l.b16 %v4162
      %v4264 = vunpack.c.l.b16 %v4165
      %v4265 = vunpack.c.l.b16 %v4169
      %v4266 = vunpack.c.l.b16 %v4172
      %v4267 = vunpack.c.l.b16 %v4176
      %v4268 = vunpack.c.l.b16 %v4179
      %v4269 = vunpack.c.l.b16 %v4183
      %v4270 = vunpack.c.l.b16 %v4186
      %v4271 = vunpack.c.l.b16 %v4190
      %v4272 = vunpack.c.l.b16 %v4193
      %v4273 = vunpack.c.l.b16 %v4197
      %v4274 = vunpack.c.l.b16 %v4200
      %v4275 = vunpack.c.l.b16 %v4204
      %v4276 = vunpack.c.l.b16 %v4207
      %v4277 = vunpack.c.l.b16 %v4211
      %v4278 = vunpack.c.l.b16 %v4214
      %v4279 = vunpack.c.l.b16 %v4218
      %v4280 = vunpack.c.l.b16 %v4221
      %v4281 = vunpack.c.l.b16 %v4225
      %v4282 = vunpack.c.l.b16 %v4228
      %v4283 = vunpack.c.l.b16 %v4232
      %v4284 = vunpack.c.l.b16 %v4235
      %v4285 = vpack.c.b16 %v4254, %v4253
      %v4286 = vpack.c.b16 %v4256, %v4255
      %v4287 = vpack.c.b16 %v4258, %v4257
      %v4288 = vpack.c.b16 %v4260, %v4259
      %v4289 = vpack.c.b16 %v4262, %v4261
      %v4290 = vpack.c.b16 %v4264, %v4263
      %v4291 = vpack.c.b16 %v4266, %v4265
      %v4292 = vpack.c.b16 %v4268, %v4267
      %v4293 = vpack.c.b16 %v4270, %v4269
      %v4294 = vpack.c.b16 %v4272, %v4271
      %v4295 = vpack.c.b16 %v4274, %v4273
      %v4296 = vpack.c.b16 %v4276, %v4275
      %v4297 = vpack.c.b16 %v4278, %v4277
      %v4298 = vpack.c.b16 %v4280, %v4279
      %v4299 = vpack.c.b16 %v4282, %v4281
      %v4300 = vpack.c.b16 %v4284, %v4283
      %v4333 = vunpack.c.l.b16 %v4237
      %v4334 = vunpack.c.l.b16 %v4238
      %v4335 = vunpack.c.l.b16 %v4239
      %v4336 = vunpack.c.l.b16 %v4240
      %v4337 = vunpack.c.l.b16 %v4241
      %v4338 = vunpack.c.l.b16 %v4242
      %v4339 = vunpack.c.l.b16 %v4243
      %v4340 = vunpack.c.l.b16 %v4244
      %v4341 = vunpack.c.l.b16 %v4245
      %v4342 = vunpack.c.l.b16 %v4246
      %v4343 = vunpack.c.l.b16 %v4247
      %v4344 = vunpack.c.l.b16 %v4248
      %v4345 = vunpack.c.l.b16 %v4249
      %v4346 = vunpack.c.l.b16 %v4250
      %v4347 = vunpack.c.l.b16 %v4251
      %v4348 = vunpack.c.l.b16 %v4252
      %v4349 = vpack.c.b16 %v4334, %v4333
      %v4350 = vpack.c.b16 %v4336, %v4335
      %v4351 = vpack.c.b16 %v4338, %v4337
      %v4352 = vpack.c.b16 %v4340, %v4339
      %v4353 = vpack.c.b16 %v4342, %v4341
      %v4354 = vpack.c.b16 %v4344, %v4343
      %v4355 = vpack.c.b16 %v4346, %v4345
      %v4356 = vpack.c.b16 %v4348, %v4347
      %4365 = vmatpush.bf16.msra.mxu0 %v4356
      %4366 = vmatpush.bf16.msra.mxu0 %v4355
      %4367 = vmatpush.bf16.msra.mxu0 %v4354
      %4368 = vmatpush.bf16.msra.mxu0 %v4353
      %4369 = vmatpush.bf16.msra.mxu0 %v4352
      %4370 = vmatpush.bf16.msra.mxu0 %v4351
      %4371 = vmatpush.bf16.msra.mxu0 %v4350
      %4372 = vmatpush.bf16.msra.mxu0 %v4349
      %4373 = vmatmul.bf16.gmra.mxu0 %v4285
      %v4374 = vpop.f32.mrf.mxu0
      %v4375 = vadd.f32 0.0, %v4374
      %v4376 = vpop.f32.mrf.mxu0
      %v4377 = vadd.f32 0.0, %v4376
      %4378 = vmatmul.bf16.gmra.mxu0 %v4286
      %v4379 = vpop.f32.mrf.mxu0
      %v4380 = vadd.f32 0.0, %v4379
      %v4381 = vpop.f32.mrf.mxu0
      %v4382 = vadd.f32 0.0, %v4381
      %4383 = vmatmul.bf16.gmra.mxu0 %v4287
      %v4384 = vpop.f32.mrf.mxu0
      %v4385 = vadd.f32 0.0, %v4384
      %v4386 = vpop.f32.mrf.mxu0
      %v4387 = vadd.f32 0.0, %v4386
      %4388 = vmatmul.bf16.gmra.mxu0 %v4288
      %v4389 = vpop.f32.mrf.mxu0
      %v4390 = vadd.f32 0.0, %v4389
      %v4391 = vpop.f32.mrf.mxu0
      %v4392 = vadd.f32 0.0, %v4391
      %4393 = vmatmul.bf16.gmra.mxu0 %v4289
      %v4394 = vpop.f32.mrf.mxu0
      %v4395 = vadd.f32 0.0, %v4394
      %v4396 = vpop.f32.mrf.mxu0
      %v4397 = vadd.f32 0.0, %v4396
      %4398 = vmatmul.bf16.gmra.mxu0 %v4290
      %v4399 = vpop.f32.mrf.mxu0
      %v4400 = vadd.f32 0.0, %v4399
      %v4401 = vpop.f32.mrf.mxu0
      %v4402 = vadd.f32 0.0, %v4401
      %4403 = vmatmul.bf16.gmra.mxu0 %v4291
      %v4404 = vpop.f32.mrf.mxu0
      %v4405 = vadd.f32 0.0, %v4404
      %v4406 = vpop.f32.mrf.mxu0
      %v4407 = vadd.f32 0.0, %v4406
      %4408 = vmatmul.bf16.gmra.mxu0 %v4292
      %v4409 = vpop.f32.mrf.mxu0
      %v4410 = vadd.f32 0.0, %v4409
      %v4411 = vpop.f32.mrf.mxu0
      %v4412 = vadd.f32 0.0, %v4411
      %4413 = vmatmul.bf16.gmra.mxu0 %v4293
      %v4414 = vpop.f32.mrf.mxu0
      %v4415 = vadd.f32 0.0, %v4414
      %v4416 = vpop.f32.mrf.mxu0
      %v4417 = vadd.f32 0.0, %v4416
      %4418 = vmatmul.bf16.gmra.mxu0 %v4294
      %v4419 = vpop.f32.mrf.mxu0
      %v4420 = vadd.f32 0.0, %v4419
      %v4421 = vpop.f32.mrf.mxu0
      %v4422 = vadd.f32 0.0, %v4421
      %4423 = vmatmul.bf16.gmra.mxu0 %v4295
      %v4424 = vpop.f32.mrf.mxu0
      %v4425 = vadd.f32 0.0, %v4424
      %v4426 = vpop.f32.mrf.mxu0
      %v4427 = vadd.f32 0.0, %v4426
      %4428 = vmatmul.bf16.gmra.mxu0 %v4296
      %v4429 = vpop.f32.mrf.mxu0
      %v4430 = vadd.f32 0.0, %v4429
      %v4431 = vpop.f32.mrf.mxu0
      %v4432 = vadd.f32 0.0, %v4431
      %4433 = vmatmul.bf16.gmra.mxu0 %v4297
      %v4434 = vpop.f32.mrf.mxu0
      %v4435 = vadd.f32 0.0, %v4434
      %v4436 = vpop.f32.mrf.mxu0
      %v4437 = vadd.f32 0.0, %v4436
      %4438 = vmatmul.bf16.gmra.mxu0 %v4298
      %v4439 = vpop.f32.mrf.mxu0
      %v4440 = vadd.f32 0.0, %v4439
      %v4441 = vpop.f32.mrf.mxu0
      %v4442 = vadd.f32 0.0, %v4441
      %4443 = vmatmul.bf16.gmra.mxu0 %v4299
      %v4444 = vpop.f32.mrf.mxu0
      %v4445 = vadd.f32 0.0, %v4444
      %v4446 = vpop.f32.mrf.mxu0
      %v4447 = vadd.f32 0.0, %v4446
      %4448 = vmatmul.bf16.gmra.mxu0 %v4300
      %v4449 = vpop.f32.mrf.mxu0
      %v4450 = vadd.f32 0.0, %v4449
      %v4451 = vpop.f32.mrf.mxu0
      %v4452 = vadd.f32 0.0, %v4451
      %4453 = vdwg.mxu0
      %v4454 = vadd.f32 %v4028, %v4375
      %v4455 = vadd.f32 %v4029, %v4377
      %v4456 = vadd.f32 %v4030, %v4380
      %v4457 = vadd.f32 %v4031, %v4382
      %v4458 = vadd.f32 %v4032, %v4385
      %v4459 = vadd.f32 %v4033, %v4387
      %v4460 = vadd.f32 %v4034, %v4390
      %v4461 = vadd.f32 %v4035, %v4392
      %v4462 = vadd.f32 %v4036, %v4395
      %v4463 = vadd.f32 %v4037, %v4397
      %v4464 = vadd.f32 %v4038, %v4400
      %v4465 = vadd.f32 %v4039, %v4402
      %v4466 = vadd.f32 %v4040, %v4405
      %v4467 = vadd.f32 %v4041, %v4407
      %v4468 = vadd.f32 %v4042, %v4410
      %v4469 = vadd.f32 %v4043, %v4412
      %v4470 = vadd.f32 %v4044, %v4415
      %v4471 = vadd.f32 %v4045, %v4417
      %v4472 = vadd.f32 %v4046, %v4420
      %v4473 = vadd.f32 %v4047, %v4422
      %v4474 = vadd.f32 %v4048, %v4425
      %v4475 = vadd.f32 %v4049, %v4427
      %v4476 = vadd.f32 %v4050, %v4430
      %v4477 = vadd.f32 %v4051, %v4432
      %v4478 = vadd.f32 %v4052, %v4435
      %v4479 = vadd.f32 %v4053, %v4437
      %v4480 = vadd.f32 %v4054, %v4440
      %v4481 = vadd.f32 %v4055, %v4442
      %v4482 = vadd.f32 %v4056, %v4445
      %v4483 = vadd.f32 %v4057, %v4447
      %v4484 = vadd.f32 %v4058, %v4450
      %v4485 = vadd.f32 %v4059, %v4452
      %v4486 = vadd.f32 %v4454, %v4455
      %v4487 = vadd.f32 %v4486, %v4456
      %v4488 = vadd.f32 %v4487, %v4457
      %v4489 = vadd.f32 %v4488, %v4458
      %v4490 = vadd.f32 %v4489, %v4459
      %v4491 = vadd.f32 %v4490, %v4460
      %v4492 = vadd.f32 %v4491, %v4461
      %v4493 = vadd.f32 %v4492, %v4462
      %v4494 = vadd.f32 %v4493, %v4463
      %v4495 = vadd.f32 %v4494, %v4464
      %v4496 = vadd.f32 %v4495, %v4465
      %v4497 = vadd.f32 %v4496, %v4466
      %v4498 = vadd.f32 %v4497, %v4467
      %v4499 = vadd.f32 %v4498, %v4468
      %v4500 = vadd.f32 %v4499, %v4469
      %v4501 = vadd.f32 %v4500, %v4470
      %v4502 = vadd.f32 %v4501, %v4471
      %v4503 = vadd.f32 %v4502, %v4472
      %v4504 = vadd.f32 %v4503, %v4473
      %v4505 = vadd.f32 %v4504, %v4474
      %v4506 = vadd.f32 %v4505, %v4475
      %v4507 = vadd.f32 %v4506, %v4476
      %v4508 = vadd.f32 %v4507, %v4477
      %v4509 = vadd.f32 %v4508, %v4478
      %v4510 = vadd.f32 %v4509, %v4479
      %v4511 = vadd.f32 %v4510, %v4480
      %v4512 = vadd.f32 %v4511, %v4481
      %v4513 = vadd.f32 %v4512, %v4482
      %v4514 = vadd.f32 %v4513, %v4483
      %v4515 = vadd.f32 %v4514, %v4484
      %v4516 = vadd.f32 %v4515, %v4485
      %v4517 = vrot.slane %v4516, 4
      %v4518 = vadd.f32 %v4516, %v4517
      %v4519 = vrot.slane %v4518, 2
      %v4520 = vadd.f32 %v4518, %v4519
      %v4521 = vrot.slane %v4520, 1
      %v4522 = vadd.f32 %v4520, %v4521
      %v4523 = vmul.f32 %v4454, %v4454
      %v4524 = vmul.f32 %v4455, %v4455
      %v4525 = vmul.f32 %v4456, %v4456
      %v4526 = vmul.f32 %v4457, %v4457
      %v4527 = vmul.f32 %v4458, %v4458
      %v4528 = vmul.f32 %v4459, %v4459
      %v4529 = vmul.f32 %v4460, %v4460
      %v4530 = vmul.f32 %v4461, %v4461
      %v4531 = vmul.f32 %v4462, %v4462
      %v4532 = vmul.f32 %v4463, %v4463
      %v4533 = vmul.f32 %v4464, %v4464
      %v4534 = vmul.f32 %v4465, %v4465
      %v4535 = vmul.f32 %v4466, %v4466
      %v4536 = vmul.f32 %v4467, %v4467
      %v4537 = vmul.f32 %v4468, %v4468
      %v4538 = vmul.f32 %v4469, %v4469
      %v4539 = vmul.f32 %v4470, %v4470
      %v4540 = vmul.f32 %v4471, %v4471
      %v4541 = vmul.f32 %v4472, %v4472
      %v4542 = vmul.f32 %v4473, %v4473
      %v4543 = vmul.f32 %v4474, %v4474
      %v4544 = vmul.f32 %v4475, %v4475
      %v4545 = vmul.f32 %v4476, %v4476
      %v4546 = vmul.f32 %v4477, %v4477
      %v4547 = vmul.f32 %v4478, %v4478
      %v4548 = vmul.f32 %v4479, %v4479
      %v4549 = vmul.f32 %v4480, %v4480
      %v4550 = vmul.f32 %v4481, %v4481
      %v4551 = vmul.f32 %v4482, %v4482
      %v4552 = vmul.f32 %v4483, %v4483
      %v4553 = vmul.f32 %v4484, %v4484
      %v4554 = vmul.f32 %v4485, %v4485
      %v4555 = vadd.f32 %v4523, %v4524
      %v4556 = vadd.f32 %v4555, %v4525
      %v4557 = vadd.f32 %v4556, %v4526
      %v4558 = vadd.f32 %v4557, %v4527
      %v4559 = vadd.f32 %v4558, %v4528
      %v4560 = vadd.f32 %v4559, %v4529
      %v4561 = vadd.f32 %v4560, %v4530
      %v4562 = vadd.f32 %v4561, %v4531
      %v4563 = vadd.f32 %v4562, %v4532
      %v4564 = vadd.f32 %v4563, %v4533
      %v4565 = vadd.f32 %v4564, %v4534
      %v4566 = vadd.f32 %v4565, %v4535
      %v4567 = vadd.f32 %v4566, %v4536
      %v4568 = vadd.f32 %v4567, %v4537
      %v4569 = vadd.f32 %v4568, %v4538
      %v4570 = vadd.f32 %v4569, %v4539
      %v4571 = vadd.f32 %v4570, %v4540
      %v4572 = vadd.f32 %v4571, %v4541
      %v4573 = vadd.f32 %v4572, %v4542
      %v4574 = vadd.f32 %v4573, %v4543
      %v4575 = vadd.f32 %v4574, %v4544
      %v4576 = vadd.f32 %v4575, %v4545
      %v4577 = vadd.f32 %v4576, %v4546
      %v4578 = vadd.f32 %v4577, %v4547
      %v4579 = vadd.f32 %v4578, %v4548
      %v4580 = vadd.f32 %v4579, %v4549
      %v4581 = vadd.f32 %v4580, %v4550
      %v4582 = vadd.f32 %v4581, %v4551
      %v4583 = vadd.f32 %v4582, %v4552
      %v4584 = vadd.f32 %v4583, %v4553
      %v4585 = vadd.f32 %v4584, %v4554
      %v4586 = vrot.slane %v4585, 4
      %v4587 = vadd.f32 %v4585, %v4586
      %v4588 = vrot.slane %v4587, 2
      %v4589 = vadd.f32 %v4587, %v4588
      %v4590 = vrot.slane %v4589, 1
      %v4591 = vadd.f32 %v4589, %v4590
      %vm4592 = vcmask 1040384
      %v4593 = vsel %vm4592, %v4522, %v4591
      %4594 = vst [vmem:[%s208] sm:$0x3] %v4593
      %v4595 = vpack.c.bf16 %v4454, %v4454
      %v4596 = vpack.c.bf16 %v4455, %v4455
      %v4597 = vpack.c.bf16 %v4456, %v4456
      %v4598 = vpack.c.bf16 %v4457, %v4457
      %v4599 = vpack.c.bf16 %v4458, %v4458
      %v4600 = vpack.c.bf16 %v4459, %v4459
      %v4601 = vpack.c.bf16 %v4460, %v4460
      %v4602 = vpack.c.bf16 %v4461, %v4461
      %v4603 = vpack.c.bf16 %v4462, %v4462
      %v4604 = vpack.c.bf16 %v4463, %v4463
      %v4605 = vpack.c.bf16 %v4464, %v4464
      %v4606 = vpack.c.bf16 %v4465, %v4465
      %v4607 = vpack.c.bf16 %v4466, %v4466
      %v4608 = vpack.c.bf16 %v4467, %v4467
      %v4609 = vpack.c.bf16 %v4468, %v4468
      %v4610 = vpack.c.bf16 %v4469, %v4469
      %v4611 = vpack.c.bf16 %v4470, %v4470
      %v4612 = vpack.c.bf16 %v4471, %v4471
      %v4613 = vpack.c.bf16 %v4472, %v4472
      %v4614 = vpack.c.bf16 %v4473, %v4473
      %v4615 = vpack.c.bf16 %v4474, %v4474
      %v4616 = vpack.c.bf16 %v4475, %v4475
      %v4617 = vpack.c.bf16 %v4476, %v4476
      %v4618 = vpack.c.bf16 %v4477, %v4477
      %v4619 = vpack.c.bf16 %v4478, %v4478
      %v4620 = vpack.c.bf16 %v4479, %v4479
      %v4621 = vpack.c.bf16 %v4480, %v4480
      %v4622 = vpack.c.bf16 %v4481, %v4481
      %v4623 = vpack.c.bf16 %v4482, %v4482
      %v4624 = vpack.c.bf16 %v4483, %v4483
      %v4625 = vpack.c.bf16 %v4484, %v4484
      %v4626 = vpack.c.bf16 %v4485, %v4485
      %4627 = vst [vmem:[%s204] sm:$0xf] %v4595
      %4628 = vst [vmem:[%s204 + $0x4] sm:$0xf] %v4596
      %4629 = vst [vmem:[%s204 + $0x8] sm:$0xf] %v4597
      %4630 = vst [vmem:[%s204 + $0xc] sm:$0xf] %v4598
      %4631 = vst [vmem:[%s204 + $0x10] sm:$0xf] %v4599
      %4632 = vst [vmem:[%s204 + $0x14] sm:$0xf] %v4600
      %4633 = vst [vmem:[%s204 + $0x18] sm:$0xf] %v4601
      %4634 = vst [vmem:[%s204 + $0x1c] sm:$0xf] %v4602
      %4635 = vst [vmem:[%s204 + $0x20] sm:$0xf] %v4603
      %4636 = vst [vmem:[%s204 + $0x24] sm:$0xf] %v4604
      %4637 = vst [vmem:[%s204 + $0x28] sm:$0xf] %v4605
      %4638 = vst [vmem:[%s204 + $0x2c] sm:$0xf] %v4606
      %4639 = vst [vmem:[%s204 + $0x30] sm:$0xf] %v4607
      %4640 = vst [vmem:[%s204 + $0x34] sm:$0xf] %v4608
      %4641 = vst [vmem:[%s204 + $0x38] sm:$0xf] %v4609
      %4642 = vst [vmem:[%s204 + $0x3c] sm:$0xf] %v4610
      %4643 = vst [vmem:[%s204 + $0x40] sm:$0xf] %v4611
      %4644 = vst [vmem:[%s204 + $0x44] sm:$0xf] %v4612
      %4645 = vst [vmem:[%s204 + $0x48] sm:$0xf] %v4613
      %4646 = vst [vmem:[%s204 + $0x4c] sm:$0xf] %v4614
      %4647 = vst [vmem:[%s204 + $0x50] sm:$0xf] %v4615
      %4648 = vst [vmem:[%s204 + $0x54] sm:$0xf] %v4616
      %4649 = vst [vmem:[%s204 + $0x58] sm:$0xf] %v4617
      %4650 = vst [vmem:[%s204 + $0x5c] sm:$0xf] %v4618
      %4651 = vst [vmem:[%s204 + $0x60] sm:$0xf] %v4619
      %4652 = vst [vmem:[%s204 + $0x64] sm:$0xf] %v4620
      %4653 = vst [vmem:[%s204 + $0x68] sm:$0xf] %v4621
      %4654 = vst [vmem:[%s204 + $0x6c] sm:$0xf] %v4622
      %4655 = vst [vmem:[%s204 + $0x70] sm:$0xf] %v4623
      %4656 = vst [vmem:[%s204 + $0x74] sm:$0xf] %v4624
      %4657 = vst [vmem:[%s204 + $0x78] sm:$0xf] %v4625
      %4658 = vst [vmem:[%s204 + $0x7c] sm:$0xf] %v4626
      %p4659 = scmp.lt.s32.totalorder %s16, 1
      %s4660 = scalar_select %p4659, %s16, 1
      %s4661 = smul.addr %s4660, 32
      %s4662 = smul.addr %s4661, 4
      %s4663 = scalar_lea.vmem %s3, %s4662
      %p4664 = scmp.lt.s32.totalorder %s16, 1
      %s4665 = scalar_select %p4664, %s16, 1
      %s4666 = smul.addr %s4665, 2
      %s4667 = scalar_lea.vmem %s4, %s4666
      // Predicated region
      $region33: #{residual_block.3} parent=31 // pred_check
        %p4668 = pneg %p102
      $region34: #{residual_block.3} parent=31 // pred_check_branch
        %4670 = sbr.rel (%p4668) target = $region36
      $region35: #{residual_block.3} parent=31 // pred_region
        _
      $region36: #{residual_block.3} parent=31 // pred_fallthru
        _
      // Predicated region
      $region37: #{residual_block.3} parent=31 // pred_check
        %p4671 = pneg %p128
      $region38: #{residual_block.3} parent=31 // pred_check_branch
        %4673 = sbr.rel (%p4671) target = $region40
      $region39: #{residual_block.3} parent=31 // pred_region
        _
      $region40: #{residual_block.3} parent=31 // pred_fallthru
        _
    $region32: #{residual_block.3} parent=5 // pred_fallthru
      _
    %p4674 = scmp.le.s32.totalorder 2, %s11
    // Predicated region
    $region41: #{residual_block.3} parent=5 // pred_check
      %p4675 = pneg %p4674
    $region42: #{residual_block.3} parent=5 // pred_check_branch
      %4677 = sbr.rel (%p4675) target = $region44
    $region43: #{residual_block.3} parent=5 // pred_region
      %s4678 = ssub.s32 %s11, 2
      // Predicated region
      $region45: #{residual_block.3} parent=43 // pred_check
        %p4679 = pneg %p108
      $region46: #{residual_block.3} parent=43 // pred_check_branch
        %4681 = sbr.rel (%p4679) target = $region48
      $region47: #{residual_block.3} parent=43 // pred_region
        %p4682 = scmp.lt.s32.totalorder %s17, 1
        %s4683 = scalar_select %p4682, %s17, 1
        %s4684 = smul.addr %s4683, 32
        %s4685 = smul.addr %s4684, 4
        %s4686 = scalar_lea.vmem %s3, %s4685
      $region48: #{residual_block.3} parent=43 // pred_fallthru
        _
      // Predicated region
      $region49: #{residual_block.3} parent=43 // pred_check
        %p4687 = pneg %p134
      $region50: #{residual_block.3} parent=43 // pred_check_branch
        %4689 = sbr.rel (%p4687) target = $region52
      $region51: #{residual_block.3} parent=43 // pred_region
        %p4690 = scmp.lt.s32.totalorder %s17, 1
        %s4691 = scalar_select %p4690, %s17, 1
        %s4692 = smul.addr %s4691, 2
        %s4693 = scalar_lea.vmem %s4, %s4692
      $region52: #{residual_block.3} parent=43 // pred_fallthru
        _
    $region44: #{residual_block.3} parent=5 // pred_fallthru
      _
  $region6: #{residual_block.3} parent=0 // loop_footer
    %s15 = sadd.s32 1, %s11
  $region7: #{residual_block.3} parent=0 // loop_footer_branch
    %10 = sbr.rel target = $region3
  $region8: #{residual_block.3} parent=0 // loop_exit
    _

// kernel: residual_block.4
$region0: #{residual_block.4}
  #allocation0 [shape = 'u32[]', space=smem, size = 0x4, offset = 0x4, fixed_abs, tag = 'smem constant byte address 0x4 - core index']
  #allocation1 [shape = 'u32[72,128]{1,0:T(1,128)}', space=vmem, size = 0x9000, scoped, tag = 'internal scratch']
  #allocation2 [shape = 'bf16[18,18,128]{2,1,0:T(8,128)(2,1)}', space=vmem, size = 0x1b000, scoped, tag = 'scratch operand']
  %s0 = inlined_call_operand.vmem [shape: bf16[2,16,16,128], index: 0, kind: input, shape index: {}]
  %s1 = inlined_call_operand.vmem [shape: bf16[9,128,128], index: 1, kind: input, shape index: {}]
  %s2 = inlined_call_operand.vmem [shape: f32[1,128], index: 2, kind: input, shape index: {}]
  %s3 = inlined_call_operand.vmem [shape: f32[1,128], index: 3, kind: input, shape index: {}]
  %s4 = inlined_call_operand.vmem [shape: f32[1,128], index: 4, kind: input, shape index: {}]
  %s5 = inlined_call_operand.vmem [shape: bf16[2,256,128], index: 5, kind: output, shape index: {0}]
  %s6 = inlined_call_operand.vmem [shape: f32[2,2,128], index: 6, kind: output, shape index: {1}]
  %7 = xla_tuple %s5, %s6
  %s8 = sld [smem:[#allocation0]]
  $region61: #{residual_block.4} parent=0
    _
  %s10 = ssub.s32 1, %s8
  %s11 = scalar_select 0, %s10, %s8
  loop: start=0, step=1, limit=4
  $region2: #{residual_block.4} parent=0 // loop_pre_header
    _
  $region3: #{residual_block.4} parent=0 // loop_header
    %s13 = sphi 0, %s17
    %p14 = scmp.ge.s32.totalorder %s13, 4
    %s23 = sphi 0, %s25
    %s26 = sphi 0, %s23
    %s27 = sphi 0, %s26
    %s43 = sphi 0, %s27
    %s47 = sphi 0, %s47
    %s49 = sphi 0, %s47
    %s50 = sphi 0, %s49
    %s64 = sphi 0, %s50
    %s68 = sphi 0, %s68
    %s70 = sphi 0, %s68
    %s71 = sphi 0, %s70
    %s85 = sphi 0, %s71
    %s89 = sphi 0, %s89
    %s91 = sphi 0, %s89
    %s92 = sphi 0, %s91
    %s106 = sphi 0, %s92
    %s110 = sphi 0, %s110
    %s112 = sphi 0, %s110
    %s113 = sphi 0, %s112
    %s127 = sphi 0, %s113
    %s133 = sphi 0, %s135
    %s136 = sphi 0, %s133
    %s137 = sphi 0, %s136
    %s153 = sphi 0, %s137
    %s159 = sphi 0, %s161
    %s162 = sphi 0, %s159
    %s163 = sphi 0, %s162
    %s179 = sphi 0, %s163
  $region4: #{residual_block.4} parent=0 // loop_header_branch
    %16 = sbr.rel (%p14) target = $region8
  $region5: #{residual_block.4} parent=0 // loop_body
    %s18 = ssub.s32 %s13, 1
    %s19 = ssub.s32 %s13, 2
    %s20 = sadd.s32 %s13, 1
    %s21 = ssub.s32 %s13, %s20
    %p22 = scmp.eq.s32.totalorder %s21, 0
    %s24 = sadd.s32 %s23, 1
    %s25 = scalar_select %p22, %s23, %s24
    %p28 = pneg %p22
    %p29 = scmp.eq.s32.totalorder %s13, 1
    %p30 = por %p28, %p29
    %p31 = scmp.ne.s32.totalorder %s23, %s26
    %p32 = scmp.eq.s32.totalorder %s13, 0
    %p33 = por %p31, %p32
    %p34 = scmp.ne.s32.totalorder %s23, %s26
    %p35 = scmp.eq.s32.totalorder %s18, 1
    %p36 = por %p34, %p35
    %p37 = scmp.ne.s32.totalorder %s26, %s27
    %p38 = scmp.eq.s32.totalorder %s18, 0
    %p39 = por %p37, %p38
    %p40 = scmp.ne.s32.totalorder %s26, %s27
    %p41 = scmp.eq.s32.totalorder %s19, 1
    %p42 = por %p40, %p41
    %p44 = scmp.ne.s32.totalorder %s27, %s43
    %p45 = scmp.eq.s32.totalorder %s19, 0
    %p46 = por %p44, %p45
    %s48 = sadd.s32 %s47, 1
    %p51 = scmp.eq.s32.totalorder %s13, 1
    %p52 = scmp.ne.s32.totalorder %s47, %s49
    %p53 = scmp.eq.s32.totalorder %s13, 0
    %p54 = por %p52, %p53
    %p55 = scmp.ne.s32.totalorder %s47, %s49
    %p56 = scmp.eq.s32.totalorder %s18, 1
    %p57 = por %p55, %p56
    %p58 = scmp.ne.s32.totalorder %s49, %s50
    %p59 = scmp.eq.s32.totalorder %s18, 0
    %p60 = por %p58, %p59
    %p61 = scmp.ne.s32.totalorder %s49, %s50
    %p62 = scmp.eq.s32.totalorder %s19, 1
    %p63 = por %p61, %p62
    %p65 = scmp.ne.s32.totalorder %s50, %s64
    %p66 = scmp.eq.s32.totalorder %s19, 0
    %p67 = por %p65, %p66
    %s69 = sadd.s32 %s68, 1
    %p72 = scmp.eq.s32.totalorder %s13, 1
    %p73 = scmp.ne.s32.totalorder %s68, %s70
    %p74 = scmp.eq.s32.totalorder %s13, 0
    %p75 = por %p73, %p74
    %p76 = scmp.ne.s32.totalorder %s68, %s70
    %p77 = scmp.eq.s32.totalorder %s18, 1
    %p78 = por %p76, %p77
    %p79 = scmp.ne.s32.totalorder %s70, %s71
    %p80 = scmp.eq.s32.totalorder %s18, 0
    %p81 = por %p79, %p80
    %p82 = scmp.ne.s32.totalorder %s70, %s71
    %p83 = scmp.eq.s32.totalorder %s19, 1
    %p84 = por %p82, %p83
    %p86 = scmp.ne.s32.totalorder %s71, %s85
    %p87 = scmp.eq.s32.totalorder %s19, 0
    %p88 = por %p86, %p87
    %s90 = sadd.s32 %s89, 1
    %p93 = scmp.eq.s32.totalorder %s13, 1
    %p94 = scmp.ne.s32.totalorder %s89, %s91
    %p95 = scmp.eq.s32.totalorder %s13, 0
    %p96 = por %p94, %p95
    %p97 = scmp.ne.s32.totalorder %s89, %s91
    %p98 = scmp.eq.s32.totalorder %s18, 1
    %p99 = por %p97, %p98
    %p100 = scmp.ne.s32.totalorder %s91, %s92
    %p101 = scmp.eq.s32.totalorder %s18, 0
    %p102 = por %p100, %p101
    %p103 = scmp.ne.s32.totalorder %s91, %s92
    %p104 = scmp.eq.s32.totalorder %s19, 1
    %p105 = por %p103, %p104
    %p107 = scmp.ne.s32.totalorder %s92, %s106
    %p108 = scmp.eq.s32.totalorder %s19, 0
    %p109 = por %p107, %p108
    %s111 = sadd.s32 %s110, 1
    %p114 = scmp.eq.s32.totalorder %s13, 1
    %p115 = scmp.ne.s32.totalorder %s110, %s112
    %p116 = scmp.eq.s32.totalorder %s13, 0
    %p117 = por %p115, %p116
    %p118 = scmp.ne.s32.totalorder %s110, %s112
    %p119 = scmp.eq.s32.totalorder %s18, 1
    %p120 = por %p118, %p119
    %p121 = scmp.ne.s32.totalorder %s112, %s113
    %p122 = scmp.eq.s32.totalorder %s18, 0
    %p123 = por %p121, %p122
    %p124 = scmp.ne.s32.totalorder %s112, %s113
    %p125 = scmp.eq.s32.totalorder %s19, 1
    %p126 = por %p124, %p125
    %p128 = scmp.ne.s32.totalorder %s113, %s127
    %p129 = scmp.eq.s32.totalorder %s19, 0
    %p130 = por %p128, %p129
    %s131 = ssub.s32 %s13, %s20
    %p132 = scmp.eq.s32.totalorder %s131, 0
    %s134 = sadd.s32 %s133, 1
    %s135 = scalar_select %p132, %s133, %s134
    %p138 = pneg %p132
    %p139 = scmp.eq.s32.totalorder %s13, 1
    %p140 = por %p138, %p139
    %p141 = scmp.ne.s32.totalorder %s133, %s136
    %p142 = scmp.eq.s32.totalorder %s13, 0
    %p143 = por %p141, %p142
    %p144 = scmp.ne.s32.totalorder %s133, %s136
    %p145 = scmp.eq.s32.totalorder %s18, 1
    %p146 = por %p144, %p145
    %p147 = scmp.ne.s32.totalorder %s136, %s137
    %p148 = scmp.eq.s32.totalorder %s18, 0
    %p149 = por %p147, %p148
    %p150 = scmp.ne.s32.totalorder %s136, %s137
    %p151 = scmp.eq.s32.totalorder %s19, 1
    %p152 = por %p150, %p151
    %p154 = scmp.ne.s32.totalorder %s137, %s153
    %p155 = scmp.eq.s32.totalorder %s19, 0
    %p156 = por %p154, %p155
    %s157 = ssub.s32 %s13, %s20
    %p158 = scmp.eq.s32.totalorder %s157, 0
    %s160 = sadd.s32 %s159, 1
    %s161 = scalar_select %p158, %s159, %s160
    %p164 = pneg %p158
    %p165 = scmp.eq.s32.totalorder %s13, 1
    %p166 = por %p164, %p165
    %p167 = scmp.ne.s32.totalorder %s159, %s162
    %p168 = scmp.eq.s32.totalorder %s13, 0
    %p169 = por %p167, %p168
    %p170 = scmp.ne.s32.totalorder %s159, %s162
    %p171 = scmp.eq.s32.totalorder %s18, 1
    %p172 = por %p170, %p171
    %p173 = scmp.ne.s32.totalorder %s162, %s163
    %p174 = scmp.eq.s32.totalorder %s18, 0
    %p175 = por %p173, %p174
    %p176 = scmp.ne.s32.totalorder %s162, %s163
    %p177 = scmp.eq.s32.totalorder %s19, 1
    %p178 = por %p176, %p177
    %p180 = scmp.ne.s32.totalorder %s163, %s179
    %p181 = scmp.eq.s32.totalorder %s19, 0
    %p182 = por %p180, %p181
    %p183 = scmp.le.s32.totalorder 1, %s13
    %p184 = scmp.lt.s32.totalorder %s13, 3
    %p185 = pnand %p183, %p184
    %p186 = pneg %p185
    // Predicated region
    $region9: #{residual_block.4} parent=5 // pred_check
      _
    $region10: #{residual_block.4} parent=5 // pred_check_branch
      %188 = sbr.rel (%p185) target = $region12
    $region11: #{residual_block.4} parent=5 // pred_region
      %s189 = ssub.s32 %s13, 1
      // Predicated region
      $region13: #{residual_block.4} parent=11 // pred_check
        %p190 = pneg %p60
      $region14: #{residual_block.4} parent=11 // pred_check_branch
        %192 = sbr.rel (%p190) target = $region16
      $region15: #{residual_block.4} parent=11 // pred_region
        _
      $region16: #{residual_block.4} parent=11 // pred_fallthru
        _
      // Predicated region
      $region17: #{residual_block.4} parent=11 // pred_check
        %p193 = pneg %p81
      $region18: #{residual_block.4} parent=11 // pred_check_branch
        %195 = sbr.rel (%p193) target = $region20
      $region19: #{residual_block.4} parent=11 // pred_region
        _
      $region20: #{residual_block.4} parent=11 // pred_fallthru
        _
      // Predicated region
      $region21: #{residual_block.4} parent=11 // pred_check
        %p196 = pneg %p102
      $region22: #{residual_block.4} parent=11 // pred_check_branch
        %198 = sbr.rel (%p196) target = $region24
      $region23: #{residual_block.4} parent=11 // pred_region
        _
      $region24: #{residual_block.4} parent=11 // pred_fallthru
        _
      // Predicated region
      $region25: #{residual_block.4} parent=11 // pred_check
        %p199 = pneg %p123
      $region26: #{residual_block.4} parent=11 // pred_check_branch
        %201 = sbr.rel (%p199) target = $region28
      $region27: #{residual_block.4} parent=11 // pred_region
        _
      $region28: #{residual_block.4} parent=11 // pred_fallthru
        _
    $region12: #{residual_block.4} parent=5 // pred_fallthru
      _
    %p202 = scmp.lt.s32.totalorder %s13, 2
    // Predicated region
    $region29: #{residual_block.4} parent=5 // pred_check
      %p203 = pneg %p202
    $region30: #{residual_block.4} parent=5 // pred_check_branch
      %205 = sbr.rel (%p203) target = $region32
    $region31: #{residual_block.4} parent=5 // pred_region
      // Predicated region
      $region33: #{residual_block.4} parent=31 // pred_check
        %p206 = pneg %p33
      $region34: #{residual_block.4} parent=31 // pred_check_branch
        %208 = sbr.rel (%p206) target = $region36
      $region35: #{residual_block.4} parent=31 // pred_region
        %p209 = scmp.lt.s32.totalorder %s13, 1
        %s210 = scalar_select %p209, %s13, 1
        %s211 = smul.addr %s210, 32
        %s212 = smul.addr %s211, 4
        %s213 = scalar_lea.vmem %s0, %s212
      $region36: #{residual_block.4} parent=31 // pred_fallthru
        _
    $region32: #{residual_block.4} parent=5 // pred_fallthru
      _
    %p214 = scmp.le.s32.totalorder 1, %s13
    %p215 = scmp.lt.s32.totalorder %s13, 3
    %p216 = pnand %p214, %p215
    %p217 = pneg %p216
    // Predicated region
    $region37: #{residual_block.4} parent=5 // pred_check
      _
    $region38: #{residual_block.4} parent=5 // pred_check_branch
      %219 = sbr.rel (%p216) target = $region40
    $region39: #{residual_block.4} parent=5 // pred_region
      %s220 = ssub.s32 %s13, 1
      %p221 = scmp.lt.s32.totalorder %s18, 1
      %s222 = scalar_select %p221, %s18, 1
      %s223 = smul.addr %s222, 32
      %s224 = smul.addr %s223, 4
      %s225 = scalar_lea.vmem %s0, %s224
      %p226 = pneg %p39
      %p227 = pneg %p36
      %p228 = pneg %p60
      %p229 = pneg %p57
      %p230 = pneg %p81
      %p231 = pneg %p78
      %p232 = pneg %p102
      %p233 = pneg %p99
      %p234 = pneg %p123
      %p235 = pneg %p120
      %p236 = pneg %p149
      %p237 = pneg %p146
      %p238 = scmp.lt.s32.totalorder %s18, 1
      %s239 = scalar_select %p238, %s18, 1
      %s240 = smul.addr %s239, 32
      %s241 = smul.addr %s240, 4
      %s242 = scalar_lea.vmem %s5, %s241
      %p243 = pneg %p175
      %p244 = pneg %p172
      %p245 = scmp.lt.s32.totalorder %s18, 1
      %s246 = scalar_select %p245, %s18, 1
      %s247 = smul.addr %s246, 2
      %s248 = scalar_lea.vmem %s6, %s247
      %p249 = scmp.lt.s32.totalorder %s18, 1
      %s250 = scalar_select %p249, %s18, 1
      %s251 = smul.addr %s250, 32
      %s252 = smul.addr %s251, 4
      %s253 = scalar_lea.vmem %s0, %s252
      %p254 = scmp.lt.s32.totalorder %s18, 1
      %s255 = scalar_select %p254, %s18, 1
      %s256 = smul.addr %s255, 32
      %s257 = smul.addr %s256, 4
      %s258 = scalar_lea.vmem %s5, %s257
      %p259 = scmp.lt.s32.totalorder %s18, 1
      %s260 = scalar_select %p259, %s18, 1
      %s261 = smul.addr %s260, 2
      %s262 = scalar_lea.vmem %s6, %s261
      %264 = vst [vmem:[#allocation2] sm:$0xf] 0
      %265 = vst [vmem:[#allocation2 + $0x4] sm:$0xf] 0
      %266 = vst [vmem:[#allocation2 + $0x8] sm:$0x1] 0
      %s267 = scalar_lea.vmem [#allocation2], 204
      %268 = vst [vmem:[%s267] sm:$0xf] 0
      %269 = vst [vmem:[%s267 + $0x4] sm:$0xf] 0
      %270 = vst [vmem:[%s267 + $0x8] sm:$0x1] 0
      %vm271 = vcmask 1040384
      %vm272 = vsmask.f32 256
      %vm273 = vmand %vm271, %vm272
      %v274 = vld [vmem:[#allocation2] sm:$0x1]
      %v275 = vsel %vm273, 0, %v274
      %276 = vst [vmem:[#allocation2] sm:$0x1] %v275
      %v277 = vld [vmem:[#allocation2 + $0xc] sm:$0x1]
      %v278 = vsel %vm273, 0, %v277
      %279 = vst [vmem:[#allocation2 + $0xc] sm:$0x1] %v278
      %v280 = vld [vmem:[#allocation2 + $0x18] sm:$0x1]
      %v281 = vsel %vm273, 0, %v280
      %282 = vst [vmem:[#allocation2 + $0x18] sm:$0x1] %v281
      %v283 = vld [vmem:[#allocation2 + $0x24] sm:$0x1]
      %v284 = vsel %vm273, 0, %v283
      %285 = vst [vmem:[#allocation2 + $0x24] sm:$0x1] %v284
      %v286 = vld [vmem:[#allocation2 + $0x30] sm:$0x1]
      %v287 = vsel %vm273, 0, %v286
      %288 = vst [vmem:[#allocation2 + $0x30] sm:$0x1] %v287
      %v289 = vld [vmem:[#allocation2 + $0x3c] sm:$0x1]
      %v290 = vsel %vm273, 0, %v289
      %291 = vst [vmem:[#allocation2 + $0x3c] sm:$0x1] %v290
      %v292 = vld [vmem:[#allocation2 + $0x48] sm:$0x1]
      %v293 = vsel %vm273, 0, %v292
      %294 = vst [vmem:[#allocation2 + $0x48] sm:$0x1] %v293
      %v295 = vld [vmem:[#allocation2 + $0x54] sm:$0x1]
      %v296 = vsel %vm273, 0, %v295
      %297 = vst [vmem:[#allocation2 + $0x54] sm:$0x1] %v296
      %v298 = vld [vmem:[#allocation2 + $0x60] sm:$0x1]
      %v299 = vsel %vm273, 0, %v298
      %300 = vst [vmem:[#allocation2 + $0x60] sm:$0x1] %v299
      %v301 = vld [vmem:[#allocation2 + $0x6c] sm:$0x1]
      %v302 = vsel %vm273, 0, %v301
      %303 = vst [vmem:[#allocation2 + $0x6c] sm:$0x1] %v302
      %v304 = vld [vmem:[#allocation2 + $0x78] sm:$0x1]
      %v305 = vsel %vm273, 0, %v304
      %306 = vst [vmem:[#allocation2 + $0x78] sm:$0x1] %v305
      %v307 = vld [vmem:[#allocation2 + $0x84] sm:$0x1]
      %v308 = vsel %vm273, 0, %v307
      %309 = vst [vmem:[#allocation2 + $0x84] sm:$0x1] %v308
      %v310 = vld [vmem:[#allocation2 + $0x90] sm:$0x1]
      %v311 = vsel %vm273, 0, %v310
      %312 = vst [vmem:[#allocation2 + $0x90] sm:$0x1] %v311
      %v313 = vld [vmem:[#allocation2 + $0x9c] sm:$0x1]
      %v314 = vsel %vm273, 0, %v313
      %315 = vst [vmem:[#allocation2 + $0x9c] sm:$0x1] %v314
      %v316 = vld [vmem:[#allocation2 + $0xa8] sm:$0x1]
      %v317 = vsel %vm273, 0, %v316
      %318 = vst [vmem:[#allocation2 + $0xa8] sm:$0x1] %v317
      %v319 = vld [vmem:[#allocation2 + $0xb4] sm:$0x1]
      %v320 = vsel %vm273, 0, %v319
      %321 = vst [vmem:[#allocation2 + $0xb4] sm:$0x1] %v320
      %v322 = vld [vmem:[#allocation2 + $0xc0] sm:$0x1]
      %v323 = vsel %vm273, 0, %v322
      %324 = vst [vmem:[#allocation2 + $0xc0] sm:$0x1] %v323
      %v325 = vld [vmem:[#allocation2 + $0xcc] sm:$0x1]
      %v326 = vsel %vm273, 0, %v325
      %327 = vst [vmem:[#allocation2 + $0xcc] sm:$0x1] %v326
      %vm328 = vsmask.f32 7938
      %vm329 = vmand %vm271, %vm328
      %v330 = vld [vmem:[#allocation2 + $0x8] sm:$0x1]
      %v331 = vsel %vm329, 0, %v330
      %332 = vst [vmem:[#allocation2 + $0x8] sm:$0x1] %v331
      %v333 = vld [vmem:[#allocation2 + $0x14] sm:$0x1]
      %v334 = vsel %vm329, 0, %v333
      %335 = vst [vmem:[#allocation2 + $0x14] sm:$0x1] %v334
      %v336 = vld [vmem:[#allocation2 + $0x20] sm:$0x1]
      %v337 = vsel %vm329, 0, %v336
      %338 = vst [vmem:[#allocation2 + $0x20] sm:$0x1] %v337
      %v339 = vld [vmem:[#allocation2 + $0x2c] sm:$0x1]
      %v340 = vsel %vm329, 0, %v339
      %341 = vst [vmem:[#allocation2 + $0x2c] sm:$0x1] %v340
      %v342 = vld [vmem:[#allocation2 + $0x38] sm:$0x1]
      %v343 = vsel %vm329, 0, %v342
      %344 = vst [vmem:[#allocation2 + $0x38] sm:$0x1] %v343
      %v345 = vld [vmem:[#allocation2 + $0x44] sm:$0x1]
      %v346 = vsel %vm329, 0, %v345
      %347 = vst [vmem:[#allocation2 + $0x44] sm:$0x1] %v346
      %v348 = vld [vmem:[#allocation2 + $0x50] sm:$0x1]
      %v349 = vsel %vm329, 0, %v348
      %350 = vst [vmem:[#allocation2 + $0x50] sm:$0x1] %v349
      %v351 = vld [vmem:[#allocation2 + $0x5c] sm:$0x1]
      %v352 = vsel %vm329, 0, %v351
      %353 = vst [vmem:[#allocation2 + $0x5c] sm:$0x1] %v352
      %v354 = vld [vmem:[#allocation2 + $0x68] sm:$0x1]
      %v355 = vsel %vm329, 0, %v354
      %356 = vst [vmem:[#allocation2 + $0x68] sm:$0x1] %v355
      %v357 = vld [vmem:[#allocation2 + $0x74] sm:$0x1]
      %v358 = vsel %vm329, 0, %v357
      %359 = vst [vmem:[#allocation2 + $0x74] sm:$0x1] %v358
      %v360 = vld [vmem:[#allocation2 + $0x80] sm:$0x1]
      %v361 = vsel %vm329, 0, %v360
      %362 = vst [vmem:[#allocation2 + $0x80] sm:$0x1] %v361
      %v363 = vld [vmem:[#allocation2 + $0x8c] sm:$0x1]
      %v364 = vsel %vm329, 0, %v363
      %365 = vst [vmem:[#allocation2 + $0x8c] sm:$0x1] %v364
      %v366 = vld [vmem:[#allocation2 + $0x98] sm:$0x1]
      %v367 = vsel %vm329, 0, %v366
      %368 = vst [vmem:[#allocation2 + $0x98] sm:$0x1] %v367
      %v369 = vld [vmem:[#allocation2 + $0xa4] sm:$0x1]
      %v370 = vsel %vm329, 0, %v369
      %371 = vst [vmem:[#allocation2 + $0xa4] sm:$0x1] %v370
      %v372 = vld [vmem:[#allocation2 + $0xb0] sm:$0x1]
      %v373 = vsel %vm329, 0, %v372
      %374 = vst [vmem:[#allocation2 + $0xb0] sm:$0x1] %v373
      %v375 = vld [vmem:[#allocation2 + $0xbc] sm:$0x1]
      %v376 = vsel %vm329, 0, %v375
      %377 = vst [vmem:[#allocation2 + $0xbc] sm:$0x1] %v376
      %v378 = vld [vmem:[#allocation2 + $0xc8] sm:$0x1]
      %v379 = vsel %vm329, 0, %v378
      %380 = vst [vmem:[#allocation2 + $0xc8] sm:$0x1] %v379
      %v381 = vld [vmem:[#allocation2 + $0xd4] sm:$0x1]
      %v382 = vsel %vm329, 0, %v381
      %383 = vst [vmem:[#allocation2 + $0xd4] sm:$0x1] %v382
      %v384 = vld [vmem:[%s3] sm:$0x1]
      %v385 = vld [vmem:[%s4] sm:$0x1]
      %v386 = vld [vmem:[%s253] sm:$0xf]
      %v387 = vld [vmem:[%s253 + $0x4] sm:$0xf]
      %v388 = vld [vmem:[%s253 + $0x8] sm:$0xf]
      %v389 = vld [vmem:[%s253 + $0xc] sm:$0xf]
      %v390 = vld [vmem:[%s253 + $0x10] sm:$0xf]
      %v391 = vld [vmem:[%s253 + $0x14] sm:$0xf]
      %v392 = vld [vmem:[%s253 + $0x18] sm:$0xf]
      %v393 = vld [vmem:[%s253 + $0x1c] sm:$0xf]
      %v394 = vld [vmem:[%s253 + $0x20] sm:$0xf]
      %v395 = vld [vmem:[%s253 + $0x24] sm:$0xf]
      %v396 = vld [vmem:[%s253 + $0x28] sm:$0xf]
      %v397 = vld [vmem:[%s253 + $0x2c] sm:$0xf]
      %v398 = vld [vmem:[%s253 + $0x30] sm:$0xf]
      %v399 = vld [vmem:[%s253 + $0x34] sm:$0xf]
      %v400 = vld [vmem:[%s253 + $0x38] sm:$0xf]
      %v401 = vld [vmem:[%s253 + $0x3c] sm:$0xf]
      %v402 = vld [vmem:[%s253 + $0x40] sm:$0xf]
      %v403 = vld [vmem:[%s253 + $0x44] sm:$0xf]
      %v404 = vld [vmem:[%s253 + $0x48] sm:$0xf]
      %v405 = vld [vmem:[%s253 + $0x4c] sm:$0xf]
      %v406 = vld [vmem:[%s253 + $0x50] sm:$0xf]
      %v407 = vld [vmem:[%s253 + $0x54] sm:$0xf]
      %v408 = vld [vmem:[%s253 + $0x58] sm:$0xf]
      %v409 = vld [vmem:[%s253 + $0x5c] sm:$0xf]
      %v410 = vld [vmem:[%s253 + $0x60] sm:$0xf]
      %v411 = vld [vmem:[%s253 + $0x64] sm:$0xf]
      %v412 = vld [vmem:[%s253 + $0x68] sm:$0xf]
      %v413 = vld [vmem:[%s253 + $0x6c] sm:$0xf]
      %v414 = vld [vmem:[%s253 + $0x70] sm:$0xf]
      %v415 = vld [vmem:[%s253 + $0x74] sm:$0xf]
      %v416 = vld [vmem:[%s253 + $0x78] sm:$0xf]
      %v417 = vld [vmem:[%s253 + $0x7c] sm:$0xf]
      %v418 = vunpack.c.l.bf16 %v386
      %v419 = vunpack.c.l.bf16 %v387
      %v420 = vunpack.c.l.bf16 %v388
      %v421 = vunpack.c.l.bf16 %v389
      %v422 = vunpack.c.l.bf16 %v390
      %v423 = vunpack.c.l.bf16 %v391
      %v424 = vunpack.c.l.bf16 %v392
      %v425 = vunpack.c.l.bf16 %v393
      %v426 = vunpack.c.l.bf16 %v394
      %v427 = vunpack.c.l.bf16 %v395
      %v428 = vunpack.c.l.bf16 %v396
      %v429 = vunpack.c.l.bf16 %v397
      %v430 = vunpack.c.l.bf16 %v398
      %v431 = vunpack.c.l.bf16 %v399
      %v432 = vunpack.c.l.bf16 %v400
      %v433 = vunpack.c.l.bf16 %v401
      %v434 = vunpack.c.l.bf16 %v402
      %v435 = vunpack.c.l.bf16 %v403
      %v436 = vunpack.c.l.bf16 %v404
      %v437 = vunpack.c.l.bf16 %v405
      %v438 = vunpack.c.l.bf16 %v406
      %v439 = vunpack.c.l.bf16 %v407
      %v440 = vunpack.c.l.bf16 %v408
      %v441 = vunpack.c.l.bf16 %v409
      %v442 = vunpack.c.l.bf16 %v410
      %v443 = vunpack.c.l.bf16 %v411
      %v444 = vunpack.c.l.bf16 %v412
      %v445 = vunpack.c.l.bf16 %v413
      %v446 = vunpack.c.l.bf16 %v414
      %v447 = vunpack.c.l.bf16 %v415
      %v448 = vunpack.c.l.bf16 %v416
      %v449 = vunpack.c.l.bf16 %v417
      %v451 = vperm.slane %v384, 0
      %v453 = vmul.f32 %v418, %v451
      %v454 = vmul.f32 %v419, %v451
      %v455 = vmul.f32 %v420, %v451
      %v456 = vmul.f32 %v421, %v451
      %v457 = vmul.f32 %v422, %v451
      %v458 = vmul.f32 %v423, %v451
      %v459 = vmul.f32 %v424, %v451
      %v460 = vmul.f32 %v425, %v451
      %v461 = vmul.f32 %v426, %v451
      %v462 = vmul.f32 %v427, %v451
      %v463 = vmul.f32 %v428, %v451
      %v464 = vmul.f32 %v429, %v451
      %v465 = vmul.f32 %v430, %v451
      %v466 = vmul.f32 %v431, %v451
      %v467 = vmul.f32 %v432, %v451
      %v468 = vmul.f32 %v433, %v451
      %v469 = vmul.f32 %v434, %v451
      %v470 = vmul.f32 %v435, %v451
      %v471 = vmul.f32 %v436, %v451
      %v472 = vmul.f32 %v437, %v451
      %v473 = vmul.f32 %v438, %v451
      %v474 = vmul.f32 %v439, %v451
      %v475 = vmul.f32 %v440, %v451
      %v476 = vmul.f32 %v441, %v451
      %v477 = vmul.f32 %v442, %v451
      %v478 = vmul.f32 %v443, %v451
      %v479 = vmul.f32 %v444, %v451
      %v480 = vmul.f32 %v445, %v451
      %v481 = vmul.f32 %v446, %v451
      %v482 = vmul.f32 %v447, %v451
      %v483 = vmul.f32 %v448, %v451
      %v484 = vmul.f32 %v449, %v451
      %v486 = vperm.slane %v385, 0
      %v488 = vadd.f32 %v453, %v486
      %v489 = vadd.f32 %v454, %v486
      %v490 = vadd.f32 %v455, %v486
      %v491 = vadd.f32 %v456, %v486
      %v492 = vadd.f32 %v457, %v486
      %v493 = vadd.f32 %v458, %v486
      %v494 = vadd.f32 %v459, %v486
      %v495 = vadd.f32 %v460, %v486
      %v496 = vadd.f32 %v461, %v486
      %v497 = vadd.f32 %v462, %v486
      %v498 = vadd.f32 %v463, %v486
      %v499 = vadd.f32 %v464, %v486
      %v500 = vadd.f32 %v465, %v486
      %v501 = vadd.f32 %v466, %v486
      %v502 = vadd.f32 %v467, %v486
      %v503 = vadd.f32 %v468, %v486
      %v504 = vadd.f32 %v469, %v486
      %v505 = vadd.f32 %v470, %v486
      %v506 = vadd.f32 %v471, %v486
      %v507 = vadd.f32 %v472, %v486
      %v508 = vadd.f32 %v473, %v486
      %v509 = vadd.f32 %v474, %v486
      %v510 = vadd.f32 %v475, %v486
      %v511 = vadd.f32 %v476, %v486
      %v512 = vadd.f32 %v477, %v486
      %v513 = vadd.f32 %v478, %v486
      %v514 = vadd.f32 %v479, %v486
      %v515 = vadd.f32 %v480, %v486
      %v516 = vadd.f32 %v481, %v486
      %v517 = vadd.f32 %v482, %v486
      %v518 = vadd.f32 %v483, %v486
      %v519 = vadd.f32 %v484, %v486
      %v520 = vmax.f32 %v488, 0.0
      %v521 = vmax.f32 %v489, 0.0
      %v522 = vmax.f32 %v490, 0.0
      %v523 = vmax.f32 %v491, 0.0
      %v524 = vmax.f32 %v492, 0.0
      %v525 = vmax.f32 %v493, 0.0
      %v526 = vmax.f32 %v494, 0.0
      %v527 = vmax.f32 %v495, 0.0
      %v528 = vmax.f32 %v496, 0.0
      %v529 = vmax.f32 %v497, 0.0
      %v530 = vmax.f32 %v498, 0.0
      %v531 = vmax.f32 %v499, 0.0
      %v532 = vmax.f32 %v500, 0.0
      %v533 = vmax.f32 %v501, 0.0
      %v534 = vmax.f32 %v502, 0.0
      %v535 = vmax.f32 %v503, 0.0
      %v536 = vmax.f32 %v504, 0.0
      %v537 = vmax.f32 %v505, 0.0
      %v538 = vmax.f32 %v506, 0.0
      %v539 = vmax.f32 %v507, 0.0
      %v540 = vmax.f32 %v508, 0.0
      %v541 = vmax.f32 %v509, 0.0
      %v542 = vmax.f32 %v510, 0.0
      %v543 = vmax.f32 %v511, 0.0
      %v544 = vmax.f32 %v512, 0.0
      %v545 = vmax.f32 %v513, 0.0
      %v546 = vmax.f32 %v514, 0.0
      %v547 = vmax.f32 %v515, 0.0
      %v548 = vmax.f32 %v516, 0.0
      %v549 = vmax.f32 %v517, 0.0
      %v550 = vmax.f32 %v518, 0.0
      %v551 = vmax.f32 %v519, 0.0
      %v552 = vpack.c.bf16 %v520, %v520
      %v553 = vpack.c.bf16 %v521, %v521
      %v554 = vpack.c.bf16 %v522, %v522
      %v555 = vpack.c.bf16 %v523, %v523
      %v556 = vpack.c.bf16 %v524, %v524
      %v557 = vpack.c.bf16 %v525, %v525
      %v558 = vpack.c.bf16 %v526, %v526
      %v559 = vpack.c.bf16 %v527, %v527
      %v560 = vpack.c.bf16 %v528, %v528
      %v561 = vpack.c.bf16 %v529, %v529
      %v562 = vpack.c.bf16 %v530, %v530
      %v563 = vpack.c.bf16 %v531, %v531
      %v564 = vpack.c.bf16 %v532, %v532
      %v565 = vpack.c.bf16 %v533, %v533
      %v566 = vpack.c.bf16 %v534, %v534
      %v567 = vpack.c.bf16 %v535, %v535
      %v568 = vpack.c.bf16 %v536, %v536
      %v569 = vpack.c.bf16 %v537, %v537
      %v570 = vpack.c.bf16 %v538, %v538
      %v571 = vpack.c.bf16 %v539, %v539
      %v572 = vpack.c.bf16 %v540, %v540
      %v573 = vpack.c.bf16 %v541, %v541
      %v574 = vpack.c.bf16 %v542, %v542
      %v575 = vpack.c.bf16 %v543, %v543
      %v576 = vpack.c.bf16 %v544, %v544
      %v577 = vpack.c.bf16 %v545, %v545
      %v578 = vpack.c.bf16 %v546, %v546
      %v579 = vpack.c.bf16 %v547, %v547
      %v580 = vpack.c.bf16 %v548, %v548
      %v581 = vpack.c.bf16 %v549, %v549
      %v582 = vpack.c.bf16 %v550, %v550
      %v583 = vpack.c.bf16 %v551, %v551
      %vm584 = vsmask.f32 4368
      %vm585 = vmor %vm272, %vm584
      %v587 = vshrl.u32 %v552, 16
      %v589 = vrot.slane %v587, 7
      %v590 = vshll.u32 %v552, 16
      %v592 = vor.u32 %v589, %v590
      %v593 = vrot.slane %v589, 4
      %v595 = vshrl.u32 %v553, 16
      %v597 = vrot.slane %v595, 7
      %v598 = vshll.u32 %v553, 16
      %v600 = vor.u32 %v597, %v598
      %v601 = vsel %vm585, %v593, %v600
      %v602 = vrot.slane %v597, 4
      %v604 = vshrl.u32 %v554, 16
      %v606 = vrot.slane %v604, 7
      %v607 = vshll.u32 %v554, 16
      %v609 = vor.u32 %v606, %v607
      %v610 = vrot.slane %v606, 4
      %v612 = vshrl.u32 %v555, 16
      %v614 = vrot.slane %v612, 7
      %v615 = vshll.u32 %v555, 16
      %v617 = vor.u32 %v614, %v615
      %v618 = vsel %vm585, %v610, %v617
      %v619 = vrot.slane %v614, 4
      %v621 = vshrl.u32 %v556, 16
      %v623 = vrot.slane %v621, 7
      %v624 = vshll.u32 %v556, 16
      %v626 = vor.u32 %v623, %v624
      %v627 = vrot.slane %v623, 4
      %v629 = vshrl.u32 %v557, 16
      %v631 = vrot.slane %v629, 7
      %v632 = vshll.u32 %v557, 16
      %v634 = vor.u32 %v631, %v632
      %v635 = vsel %vm585, %v627, %v634
      %v636 = vrot.slane %v631, 4
      %v638 = vshrl.u32 %v558, 16
      %v640 = vrot.slane %v638, 7
      %v641 = vshll.u32 %v558, 16
      %v643 = vor.u32 %v640, %v641
      %v644 = vrot.slane %v640, 4
      %v646 = vshrl.u32 %v559, 16
      %v648 = vrot.slane %v646, 7
      %v649 = vshll.u32 %v559, 16
      %v651 = vor.u32 %v648, %v649
      %v652 = vsel %vm585, %v644, %v651
      %v653 = vrot.slane %v648, 4
      %v655 = vshrl.u32 %v560, 16
      %v657 = vrot.slane %v655, 7
      %v658 = vshll.u32 %v560, 16
      %v660 = vor.u32 %v657, %v658
      %v661 = vrot.slane %v657, 4
      %v663 = vshrl.u32 %v561, 16
      %v665 = vrot.slane %v663, 7
      %v666 = vshll.u32 %v561, 16
      %v668 = vor.u32 %v665, %v666
      %v669 = vsel %vm585, %v661, %v668
      %v670 = vrot.slane %v665, 4
      %v672 = vshrl.u32 %v562, 16
      %v674 = vrot.slane %v672, 7
      %v675 = vshll.u32 %v562, 16
      %v677 = vor.u32 %v674, %v675
      %v678 = vrot.slane %v674, 4
      %v680 = vshrl.u32 %v563, 16
      %v682 = vrot.slane %v680, 7
      %v683 = vshll.u32 %v563, 16
      %v685 = vor.u32 %v682, %v683
      %v686 = vsel %vm585, %v678, %v685
      %v687 = vrot.slane %v682, 4
      %v689 = vshrl.u32 %v564, 16
      %v691 = vrot.slane %v689, 7
      %v692 = vshll.u32 %v564, 16
      %v694 = vor.u32 %v691, %v692
      %v695 = vrot.slane %v691, 4
      %v697 = vshrl.u32 %v565, 16
      %v699 = vrot.slane %v697, 7
      %v700 = vshll.u32 %v565, 16
      %v702 = vor.u32 %v699, %v700
      %v703 = vsel %vm585, %v695, %v702
      %v704 = vrot.slane %v699, 4
      %v706 = vshrl.u32 %v566, 16
      %v708 = vrot.slane %v706, 7
      %v709 = vshll.u32 %v566, 16
      %v711 = vor.u32 %v708, %v709
      %v712 = vrot.slane %v708, 4
      %v714 = vshrl.u32 %v567, 16
      %v716 = vrot.slane %v714, 7
      %v717 = vshll.u32 %v567, 16
      %v719 = vor.u32 %v716, %v717
      %v720 = vsel %vm585, %v712, %v719
      %v721 = vrot.slane %v716, 4
      %v723 = vshrl.u32 %v568, 16
      %v725 = vrot.slane %v723, 7
      %v726 = vshll.u32 %v568, 16
      %v728 = vor.u32 %v725, %v726
      %v729 = vrot.slane %v725, 4
      %v731 = vshrl.u32 %v569, 16
      %v733 = vrot.slane %v731, 7
      %v734 = vshll.u32 %v569, 16
      %v736 = vor.u32 %v733, %v734
      %v737 = vsel %vm585, %v729, %v736
      %v738 = vrot.slane %v733, 4
      %v740 = vshrl.u32 %v570, 16
      %v742 = vrot.slane %v740, 7
      %v743 = vshll.u32 %v570, 16
      %v745 = vor.u32 %v742, %v743
      %v746 = vrot.slane %v742, 4
      %v748 = vshrl.u32 %v571, 16
      %v750 = vrot.slane %v748, 7
      %v751 = vshll.u32 %v571, 16
      %v753 = vor.u32 %v750, %v751
      %v754 = vsel %vm585, %v746, %v753
      %v755 = vrot.slane %v750, 4
      %v757 = vshrl.u32 %v572, 16
      %v759 = vrot.slane %v757, 7
      %v760 = vshll.u32 %v572, 16
      %v762 = vor.u32 %v759, %v760
      %v763 = vrot.slane %v759, 4
      %v765 = vshrl.u32 %v573, 16
      %v767 = vrot.slane %v765, 7
      %v768 = vshll.u32 %v573, 16
      %v770 = vor.u32 %v767, %v768
      %v771 = vsel %vm585, %v763, %v770
      %v772 = vrot.slane %v767, 4
      %v774 = vshrl.u32 %v574, 16
      %v776 = vrot.slane %v774, 7
      %v777 = vshll.u32 %v574, 16
      %v779 = vor.u32 %v776, %v777
      %v780 = vrot.slane %v776, 4
      %v782 = vshrl.u32 %v575, 16
      %v784 = vrot.slane %v782, 7
      %v785 = vshll.u32 %v575, 16
      %v787 = vor.u32 %v784, %v785
      %v788 = vsel %vm585, %v780, %v787
      %v789 = vrot.slane %v784, 4
      %v791 = vshrl.u32 %v576, 16
      %v793 = vrot.slane %v791, 7
      %v794 = vshll.u32 %v576, 16
      %v796 = vor.u32 %v793, %v794
      %v797 = vrot.slane %v793, 4
      %v799 = vshrl.u32 %v577, 16
      %v801 = vrot.slane %v799, 7
      %v802 = vshll.u32 %v577, 16
      %v804 = vor.u32 %v801, %v802
      %v805 = vsel %vm585, %v797, %v804
      %v806 = vrot.slane %v801, 4
      %v808 = vshrl.u32 %v578, 16
      %v810 = vrot.slane %v808, 7
      %v811 = vshll.u32 %v578, 16
      %v813 = vor.u32 %v810, %v811
      %v814 = vrot.slane %v810, 4
      %v816 = vshrl.u32 %v579, 16
      %v818 = vrot.slane %v816, 7
      %v819 = vshll.u32 %v579, 16
      %v821 = vor.u32 %v818, %v819
      %v822 = vsel %vm585, %v814, %v821
      %v823 = vrot.slane %v818, 4
      %v825 = vshrl.u32 %v580, 16
      %v827 = vrot.slane %v825, 7
      %v828 = vshll.u32 %v580, 16
      %v830 = vor.u32 %v827, %v828
      %v831 = vrot.slane %v827, 4
      %v833 = vshrl.u32 %v581, 16
      %v835 = vrot.slane %v833, 7
      %v836 = vshll.u32 %v581, 16
      %v838 = vor.u32 %v835, %v836
      %v839 = vsel %vm585, %v831, %v838
      %v840 = vrot.slane %v835, 4
      %v842 = vshrl.u32 %v582, 16
      %v844 = vrot.slane %v842, 7
      %v845 = vshll.u32 %v582, 16
      %v847 = vor.u32 %v844, %v845
      %v848 = vrot.slane %v844, 4
      %v850 = vshrl.u32 %v583, 16
      %v852 = vrot.slane %v850, 7
      %v853 = vshll.u32 %v583, 16
      %v855 = vor.u32 %v852, %v853
      %v856 = vsel %vm585, %v848, %v855
      %v857 = vrot.slane %v852, 4
      %s906 = scalar_lea.vmem [#allocation2], 12
      %vm907 = vcmask 1043456
      %vm908 = vmand %vm907, %vm328
      %v909 = vld [vmem:[%s906] sm:$0xf]
      %v910 = vsel %vm908, %v592, %v909
      %911 = vst [vmem:[%s906] sm:$0xf] %v910
      %912 = vst [vmem:[%s906 + $0x4] sm:$0xf] %v601
      %v913 = vld [vmem:[%s906 + $0x8] sm:$0x1]
      %v914 = vsel %vm273, %v602, %v913
      %915 = vst [vmem:[%s906 + $0x8] sm:$0x1] %v914
      %v916 = vld [vmem:[%s906 + $0xc] sm:$0xf]
      %v917 = vsel %vm908, %v609, %v916
      %918 = vst [vmem:[%s906 + $0xc] sm:$0xf] %v917
      %919 = vst [vmem:[%s906 + $0x10] sm:$0xf] %v618
      %v920 = vld [vmem:[%s906 + $0x14] sm:$0x1]
      %v921 = vsel %vm273, %v619, %v920
      %922 = vst [vmem:[%s906 + $0x14] sm:$0x1] %v921
      %v923 = vld [vmem:[%s906 + $0x18] sm:$0xf]
      %v924 = vsel %vm908, %v626, %v923
      %925 = vst [vmem:[%s906 + $0x18] sm:$0xf] %v924
      %926 = vst [vmem:[%s906 + $0x1c] sm:$0xf] %v635
      %v927 = vld [vmem:[%s906 + $0x20] sm:$0x1]
      %v928 = vsel %vm273, %v636, %v927
      %929 = vst [vmem:[%s906 + $0x20] sm:$0x1] %v928
      %v930 = vld [vmem:[%s906 + $0x24] sm:$0xf]
      %v931 = vsel %vm908, %v643, %v930
      %932 = vst [vmem:[%s906 + $0x24] sm:$0xf] %v931
      %933 = vst [vmem:[%s906 + $0x28] sm:$0xf] %v652
      %v934 = vld [vmem:[%s906 + $0x2c] sm:$0x1]
      %v935 = vsel %vm273, %v653, %v934
      %936 = vst [vmem:[%s906 + $0x2c] sm:$0x1] %v935
      %v937 = vld [vmem:[%s906 + $0x30] sm:$0xf]
      %v938 = vsel %vm908, %v660, %v937
      %939 = vst [vmem:[%s906 + $0x30] sm:$0xf] %v938
      %940 = vst [vmem:[%s906 + $0x34] sm:$0xf] %v669
      %v941 = vld [vmem:[%s906 + $0x38] sm:$0x1]
      %v942 = vsel %vm273, %v670, %v941
      %943 = vst [vmem:[%s906 + $0x38] sm:$0x1] %v942
      %v944 = vld [vmem:[%s906 + $0x3c] sm:$0xf]
      %v945 = vsel %vm908, %v677, %v944
      %946 = vst [vmem:[%s906 + $0x3c] sm:$0xf] %v945
      %947 = vst [vmem:[%s906 + $0x40] sm:$0xf] %v686
      %v948 = vld [vmem:[%s906 + $0x44] sm:$0x1]
      %v949 = vsel %vm273, %v687, %v948
      %950 = vst [vmem:[%s906 + $0x44] sm:$0x1] %v949
      %v951 = vld [vmem:[%s906 + $0x48] sm:$0xf]
      %v952 = vsel %vm908, %v694, %v951
      %953 = vst [vmem:[%s906 + $0x48] sm:$0xf] %v952
      %954 = vst [vmem:[%s906 + $0x4c] sm:$0xf] %v703
      %v955 = vld [vmem:[%s906 + $0x50] sm:$0x1]
      %v956 = vsel %vm273, %v704, %v955
      %957 = vst [vmem:[%s906 + $0x50] sm:$0x1] %v956
      %v958 = vld [vmem:[%s906 + $0x54] sm:$0xf]
      %v959 = vsel %vm908, %v711, %v958
      %960 = vst [vmem:[%s906 + $0x54] sm:$0xf] %v959
      %961 = vst [vmem:[%s906 + $0x58] sm:$0xf] %v720
      %v962 = vld [vmem:[%s906 + $0x5c] sm:$0x1]
      %v963 = vsel %vm273, %v721, %v962
      %964 = vst [vmem:[%s906 + $0x5c] sm:$0x1] %v963
      %v965 = vld [vmem:[%s906 + $0x60] sm:$0xf]
      %v966 = vsel %vm908, %v728, %v965
      %967 = vst [vmem:[%s906 + $0x60] sm:$0xf] %v966
      %968 = vst [vmem:[%s906 + $0x64] sm:$0xf] %v737
      %v969 = vld [vmem:[%s906 + $0x68] sm:$0x1]
      %v970 = vsel %vm273, %v738, %v969
      %971 = vst [vmem:[%s906 + $0x68] sm:$0x1] %v970
      %v972 = vld [vmem:[%s906 + $0x6c] sm:$0xf]
      %v973 = vsel %vm908, %v745, %v972
      %974 = vst [vmem:[%s906 + $0x6c] sm:$0xf] %v973
      %975 = vst [vmem:[%s906 + $0x70] sm:$0xf] %v754
      %v976 = vld [vmem:[%s906 + $0x74] sm:$0x1]
      %v977 = vsel %vm273, %v755, %v976
      %978 = vst [vmem:[%s906 + $0x74] sm:$0x1] %v977
      %v979 = vld [vmem:[%s906 + $0x78] sm:$0xf]
      %v980 = vsel %vm908, %v762, %v979
      %981 = vst [vmem:[%s906 + $0x78] sm:$0xf] %v980
      %982 = vst [vmem:[%s906 + $0x7c] sm:$0xf] %v771
      %v983 = vld [vmem:[%s906 + $0x80] sm:$0x1]
      %v984 = vsel %vm273, %v772, %v983
      %985 = vst [vmem:[%s906 + $0x80] sm:$0x1] %v984
      %v986 = vld [vmem:[%s906 + $0x84] sm:$0xf]
      %v987 = vsel %vm908, %v779, %v986
      %988 = vst [vmem:[%s906 + $0x84] sm:$0xf] %v987
      %989 = vst [vmem:[%s906 + $0x88] sm:$0xf] %v788
      %v990 = vld [vmem:[%s906 + $0x8c] sm:$0x1]
      %v991 = vsel %vm273, %v789, %v990
      %992 = vst [vmem:[%s906 + $0x8c] sm:$0x1] %v991
      %v993 = vld [vmem:[%s906 + $0x90] sm:$0xf]
      %v994 = vsel %vm908, %v796, %v993
      %995 = vst [vmem:[%s906 + $0x90] sm:$0xf] %v994
      %996 = vst [vmem:[%s906 + $0x94] sm:$0xf] %v805
      %v997 = vld [vmem:[%s906 + $0x98] sm:$0x1]
      %v998 = vsel %vm273, %v806, %v997
      %999 = vst [vmem:[%s906 + $0x98] sm:$0x1] %v998
      %v1000 = vld [vmem:[%s906 + $0x9c] sm:$0xf]
      %v1001 = vsel %vm908, %v813, %v1000
      %1002 = vst [vmem:[%s906 + $0x9c] sm:$0xf] %v1001
      %1003 = vst [vmem:[%s906 + $0xa0] sm:$0xf] %v822
      %v1004 = vld [vmem:[%s906 + $0xa4] sm:$0x1]
      %v1005 = vsel %vm273, %v823, %v1004
      %1006 = vst [vmem:[%s906 + $0xa4] sm:$0x1] %v1005
      %v1007 = vld [vmem:[%s906 + $0xa8] sm:$0xf]
      %v1008 = vsel %vm908, %v830, %v1007
      %1009 = vst [vmem:[%s906 + $0xa8] sm:$0xf] %v1008
      %1010 = vst [vmem:[%s906 + $0xac] sm:$0xf] %v839
      %v1011 = vld [vmem:[%s906 + $0xb0] sm:$0x1]
      %v1012 = vsel %vm273, %v840, %v1011
      %1013 = vst [vmem:[%s906 + $0xb0] sm:$0x1] %v1012
      %v1014 = vld [vmem:[%s906 + $0xb4] sm:$0xf]
      %v1015 = vsel %vm908, %v847, %v1014
      %1016 = vst [vmem:[%s906 + $0xb4] sm:$0xf] %v1015
      %1017 = vst [vmem:[%s906 + $0xb8] sm:$0xf] %v856
      %v1018 = vld [vmem:[%s906 + $0xbc] sm:$0x1]
      %v1019 = vsel %vm273, %v857, %v1018
      %1020 = vst [vmem:[%s906 + $0xbc] sm:$0x1] %v1019
      %v1021 = vld [vmem:[%s2] sm:$0x1]
      %v1023 = vperm.slane %v1021, 0
      %v1025 = vld [vmem:[#allocation2] sm:$0xf]
      %v1026 = vld [vmem:[#allocation2 + $0x4] sm:$0xf]
      %v1027 = vld [vmem:[#allocation2 + $0xc] sm:$0xf]
      %v1028 = vld [vmem:[#allocation2 + $0x10] sm:$0xf]
      %v1029 = vld [vmem:[#allocation2 + $0x18] sm:$0xf]
      %v1030 = vld [vmem:[#allocation2 + $0x1c] sm:$0xf]
      %v1031 = vld [vmem:[#allocation2 + $0x24] sm:$0xf]
      %v1032 = vld [vmem:[#allocation2 + $0x28] sm:$0xf]
      %v1033 = vld [vmem:[#allocation2 + $0x30] sm:$0xf]
      %v1034 = vld [vmem:[#allocation2 + $0x34] sm:$0xf]
      %v1035 = vld [vmem:[#allocation2 + $0x3c] sm:$0xf]
      %v1036 = vld [vmem:[#allocation2 + $0x40] sm:$0xf]
      %v1037 = vld [vmem:[#allocation2 + $0x48] sm:$0xf]
      %v1038 = vld [vmem:[#allocation2 + $0x4c] sm:$0xf]
      %v1039 = vld [vmem:[#allocation2 + $0x54] sm:$0xf]
      %v1040 = vld [vmem:[#allocation2 + $0x58] sm:$0xf]
      %v1041 = vld [vmem:[#allocation2 + $0x60] sm:$0xf]
      %v1042 = vld [vmem:[#allocation2 + $0x64] sm:$0xf]
      %v1043 = vld [vmem:[#allocation2 + $0x6c] sm:$0xf]
      %v1044 = vld [vmem:[#allocation2 + $0x70] sm:$0xf]
      %v1045 = vld [vmem:[#allocation2 + $0x78] sm:$0xf]
      %v1046 = vld [vmem:[#allocation2 + $0x7c] sm:$0xf]
      %v1047 = vld [vmem:[#allocation2 + $0x84] sm:$0xf]
      %v1048 = vld [vmem:[#allocation2 + $0x88] sm:$0xf]
      %v1049 = vld [vmem:[#allocation2 + $0x90] sm:$0xf]
      %v1050 = vld [vmem:[#allocation2 + $0x94] sm:$0xf]
      %v1051 = vld [vmem:[#allocation2 + $0x9c] sm:$0xf]
      %v1052 = vld [vmem:[#allocation2 + $0xa0] sm:$0xf]
      %v1053 = vld [vmem:[#allocation2 + $0xa8] sm:$0xf]
      %v1054 = vld [vmem:[#allocation2 + $0xac] sm:$0xf]
      %v1055 = vld [vmem:[#allocation2 + $0xb4] sm:$0xf]
      %v1056 = vld [vmem:[#allocation2 + $0xb8] sm:$0xf]
      %v1057 = vld [vmem:[%s1] sm:$0xf]
      %v1058 = vld [vmem:[%s1 + $0x4] sm:$0xf]
      %v1059 = vld [vmem:[%s1 + $0x8] sm:$0xf]
      %v1060 = vld [vmem:[%s1 + $0xc] sm:$0xf]
      %v1061 = vld [vmem:[%s1 + $0x10] sm:$0xf]
      %v1062 = vld [vmem:[%s1 + $0x14] sm:$0xf]
      %v1063 = vld [vmem:[%s1 + $0x18] sm:$0xf]
      %v1064 = vld [vmem:[%s1 + $0x1c] sm:$0xf]
      %v1065 = vld [vmem:[%s1 + $0x20] sm:$0xf]
      %v1066 = vld [vmem:[%s1 + $0x24] sm:$0xf]
      %v1067 = vld [vmem:[%s1 + $0x28] sm:$0xf]
      %v1068 = vld [vmem:[%s1 + $0x2c] sm:$0xf]
      %v1069 = vld [vmem:[%s1 + $0x30] sm:$0xf]
      %v1070 = vld [vmem:[%s1 + $0x34] sm:$0xf]
      %v1071 = vld [vmem:[%s1 + $0x38] sm:$0xf]
      %v1072 = vld [vmem:[%s1 + $0x3c] sm:$0xf]
      %v1105 = vunpack.c.l.b16 %v1025
      %v1106 = vunpack.c.l.b16 %v1026
      %v1107 = vunpack.c.l.b16 %v1027
      %v1108 = vunpack.c.l.b16 %v1028
      %v1109 = vunpack.c.l.b16 %v1029
      %v1110 = vunpack.c.l.b16 %v1030
      %v1111 = vunpack.c.l.b16 %v1031
      %v1112 = vunpack.c.l.b16 %v1032
      %v1113 = vunpack.c.l.b16 %v1033
      %v1114 = vunpack.c.l.b16 %v1034
      %v1115 = vunpack.c.l.b16 %v1035
      %v1116 = vunpack.c.l.b16 %v1036
      %v1117 = vunpack.c.l.b16 %v1037
      %v1118 = vunpack.c.l.b16 %v1038
      %v1119 = vunpack.c.l.b16 %v1039
      %v1120 = vunpack.c.l.b16 %v1040
      %v1121 = vunpack.c.l.b16 %v1041
      %v1122 = vunpack.c.l.b16 %v1042
      %v1123 = vunpack.c.l.b16 %v1043
      %v1124 = vunpack.c.l.b16 %v1044
      %v1125 = vunpack.c.l.b16 %v1045
      %v1126 = vunpack.c.l.b16 %v1046
      %v1127 = vunpack.c.l.b16 %v1047
      %v1128 = vunpack.c.l.b16 %v1048
      %v1129 = vunpack.c.l.b16 %v1049
      %v1130 = vunpack.c.l.b16 %v1050
      %v1131 = vunpack.c.l.b16 %v1051
      %v1132 = vunpack.c.l.b16 %v1052
      %v1133 = vunpack.c.l.b16 %v1053
      %v1134 = vunpack.c.l.b16 %v1054
      %v1135 = vunpack.c.l.b16 %v1055
      %v1136 = vunpack.c.l.b16 %v1056
      %v1137 = vpack.c.b16 %v1106, %v1105
      %v1138 = vpack.c.b16 %v1108, %v1107
      %v1139 = vpack.c.b16 %v1110, %v1109
      %v1140 = vpack.c.b16 %v1112, %v1111
      %v1141 = vpack.c.b16 %v1114, %v1113
      %v1142 = vpack.c.b16 %v1116, %v1115
      %v1143 = vpack.c.b16 %v1118, %v1117
      %v1144 = vpack.c.b16 %v1120, %v1119
      %v1145 = vpack.c.b16 %v1122, %v1121
      %v1146 = vpack.c.b16 %v1124, %v1123
      %v1147 = vpack.c.b16 %v1126, %v1125
      %v1148 = vpack.c.b16 %v1128, %v1127
      %v1149 = vpack.c.b16 %v1130, %v1129
      %v1150 = vpack.c.b16 %v1132, %v1131
      %v1151 = vpack.c.b16 %v1134, %v1133
      %v1152 = vpack.c.b16 %v1136, %v1135
      %v1185 = vunpack.c.l.b16 %v1057
      %v1186 = vunpack.c.l.b16 %v1058
      %v1187 = vunpack.c.l.b16 %v1059
      %v1188 = vunpack.c.l.b16 %v1060
      %v1189 = vunpack.c.l.b16 %v1061
      %v1190 = vunpack.c.l.b16 %v1062
      %v1191 = vunpack.c.l.b16 %v1063
      %v1192 = vunpack.c.l.b16 %v1064
      %v1193 = vunpack.c.l.b16 %v1065
      %v1194 = vunpack.c.l.b16 %v1066
      %v1195 = vunpack.c.l.b16 %v1067
      %v1196 = vunpack.c.l.b16 %v1068
      %v1197 = vunpack.c.l.b16 %v1069
      %v1198 = vunpack.c.l.b16 %v1070
      %v1199 = vunpack.c.l.b16 %v1071
      %v1200 = vunpack.c.l.b16 %v1072
      %v1201 = vpack.c.b16 %v1186, %v1185
      %v1202 = vpack.c.b16 %v1188, %v1187
      %v1203 = vpack.c.b16 %v1190, %v1189
      %v1204 = vpack.c.b16 %v1192, %v1191
      %v1205 = vpack.c.b16 %v1194, %v1193
      %v1206 = vpack.c.b16 %v1196, %v1195
      %v1207 = vpack.c.b16 %v1198, %v1197
      %v1208 = vpack.c.b16 %v1200, %v1199
      %1217 = vmatpush.bf16.msra.mxu0 %v1208
      %1218 = vmatpush.bf16.msra.mxu0 %v1207
      %1219 = vmatpush.bf16.msra.mxu0 %v1206
      %1220 = vmatpush.bf16.msra.mxu0 %v1205
      %1221 = vmatpush.bf16.msra.mxu0 %v1204
      %1222 = vmatpush.bf16.msra.mxu0 %v1203
      %1223 = vmatpush.bf16.msra.mxu0 %v1202
      %1224 = vmatpush.bf16.msra.mxu0 %v1201
      %1225 = vmatmul.bf16.gmra.mxu0 %v1137
      %v1226 = vpop.f32.mrf.mxu0
      %v1227 = vadd.f32 0.0, %v1226
      %v1228 = vpop.f32.mrf.mxu0
      %v1229 = vadd.f32 0.0, %v1228
      %1230 = vmatmul.bf16.gmra.mxu0 %v1138
      %v1231 = vpop.f32.mrf.mxu0
      %v1232 = vadd.f32 0.0, %v1231
      %v1233 = vpop.f32.mrf.mxu0
      %v1234 = vadd.f32 0.0, %v1233
      %1235 = vmatmul.bf16.gmra.mxu0 %v1139
      %v1236 = vpop.f32.mrf.mxu0
      %v1237 = vadd.f32 0.0, %v1236
      %v1238 = vpop.f32.mrf.mxu0
      %v1239 = vadd.f32 0.0, %v1238
      %1240 = vmatmul.bf16.gmra.mxu0 %v1140
      %v1241 = vpop.f32.mrf.mxu0
      %v1242 = vadd.f32 0.0, %v1241
      %v1243 = vpop.f32.mrf.mxu0
      %v1244 = vadd.f32 0.0, %v1243
      %1245 = vmatmul.bf16.gmra.mxu0 %v1141
      %v1246 = vpop.f32.mrf.mxu0
      %v1247 = vadd.f32 0.0, %v1246
      %v1248 = vpop.f32.mrf.mxu0
      %v1249 = vadd.f32 0.0, %v1248
      %1250 = vmatmul.bf16.gmra.mxu0 %v1142
      %v1251 = vpop.f32.mrf.mxu0
      %v1252 = vadd.f32 0.0, %v1251
      %v1253 = vpop.f32.mrf.mxu0
      %v1254 = vadd.f32 0.0, %v1253
      %1255 = vmatmul.bf16.gmra.mxu0 %v1143
      %v1256 = vpop.f32.mrf.mxu0
      %v1257 = vadd.f32 0.0, %v1256
      %v1258 = vpop.f32.mrf.mxu0
      %v1259 = vadd.f32 0.0, %v1258
      %1260 = vmatmul.bf16.gmra.mxu0 %v1144
      %v1261 = vpop.f32.mrf.mxu0
      %v1262 = vadd.f32 0.0, %v1261
      %v1263 = vpop.f32.mrf.mxu0
      %v1264 = vadd.f32 0.0, %v1263
      %1265 = vmatmul.bf16.gmra.mxu0 %v1145
      %v1266 = vpop.f32.mrf.mxu0
      %v1267 = vadd.f32 0.0, %v1266
      %v1268 = vpop.f32.mrf.mxu0
      %v1269 = vadd.f32 0.0, %v1268
      %1270 = vmatmul.bf16.gmra.mxu0 %v1146
      %v1271 = vpop.f32.mrf.mxu0
      %v1272 = vadd.f32 0.0, %v1271
      %v1273 = vpop.f32.mrf.mxu0
      %v1274 = vadd.f32 0.0, %v1273
      %1275 = vmatmul.bf16.gmra.mxu0 %v1147
      %v1276 = vpop.f32.mrf.mxu0
      %v1277 = vadd.f32 0.0, %v1276
      %v1278 = vpop.f32.mrf.mxu0
      %v1279 = vadd.f32 0.0, %v1278
      %1280 = vmatmul.bf16.gmra.mxu0 %v1148
      %v1281 = vpop.f32.mrf.mxu0
      %v1282 = vadd.f32 0.0, %v1281
      %v1283 = vpop.f32.mrf.mxu0
      %v1284 = vadd.f32 0.0, %v1283
      %1285 = vmatmul.bf16.gmra.mxu0 %v1149
      %v1286 = vpop.f32.mrf.mxu0
      %v1287 = vadd.f32 0.0, %v1286
      %v1288 = vpop.f32.mrf.mxu0
      %v1289 = vadd.f32 0.0, %v1288
      %1290 = vmatmul.bf16.gmra.mxu0 %v1150
      %v1291 = vpop.f32.mrf.mxu0
      %v1292 = vadd.f32 0.0, %v1291
      %v1293 = vpop.f32.mrf.mxu0
      %v1294 = vadd.f32 0.0, %v1293
      %1295 = vmatmul.bf16.gmra.mxu0 %v1151
      %v1296 = vpop.f32.mrf.mxu0
      %v1297 = vadd.f32 0.0, %v1296
      %v1298 = vpop.f32.mrf.mxu0
      %v1299 = vadd.f32 0.0, %v1298
      %1300 = vmatmul.bf16.gmra.mxu0 %v1152
      %v1301 = vpop.f32.mrf.mxu0
      %v1302 = vadd.f32 0.0, %v1301
      %v1303 = vpop.f32.mrf.mxu0
      %v1304 = vadd.f32 0.0, %v1303
      %1305 = vdwg.mxu0
      %v1306 = vadd.f32 %v1023, %v1227
      %v1307 = vadd.f32 %v1023, %v1229
      %v1308 = vadd.f32 %v1023, %v1232
      %v1309 = vadd.f32 %v1023, %v1234
      %v1310 = vadd.f32 %v1023, %v1237
      %v1311 = vadd.f32 %v1023, %v1239
      %v1312 = vadd.f32 %v1023, %v1242
      %v1313 = vadd.f32 %v1023, %v1244
      %v1314 = vadd.f32 %v1023, %v1247
      %v1315 = vadd.f32 %v1023, %v1249
      %v1316 = vadd.f32 %v1023, %v1252
      %v1317 = vadd.f32 %v1023, %v1254
      %v1318 = vadd.f32 %v1023, %v1257
      %v1319 = vadd.f32 %v1023, %v1259
      %v1320 = vadd.f32 %v1023, %v1262
      %v1321 = vadd.f32 %v1023, %v1264
      %v1322 = vadd.f32 %v1023, %v1267
      %v1323 = vadd.f32 %v1023, %v1269
      %v1324 = vadd.f32 %v1023, %v1272
      %v1325 = vadd.f32 %v1023, %v1274
      %v1326 = vadd.f32 %v1023, %v1277
      %v1327 = vadd.f32 %v1023, %v1279
      %v1328 = vadd.f32 %v1023, %v1282
      %v1329 = vadd.f32 %v1023, %v1284
      %v1330 = vadd.f32 %v1023, %v1287
      %v1331 = vadd.f32 %v1023, %v1289
      %v1332 = vadd.f32 %v1023, %v1292
      %v1333 = vadd.f32 %v1023, %v1294
      %v1334 = vadd.f32 %v1023, %v1297
      %v1335 = vadd.f32 %v1023, %v1299
      %v1336 = vadd.f32 %v1023, %v1302
      %v1337 = vadd.f32 %v1023, %v1304
      %v1338 = vld [vmem:[#allocation2] sm:$0xf]
      %v1339 = vld [vmem:[#allocation2 + $0x4] sm:$0xf]
      %v1340 = vld [vmem:[#allocation2 + $0x8] sm:$0x1]
      %v1341 = vld [vmem:[#allocation2 + $0xc] sm:$0xf]
      %v1342 = vld [vmem:[#allocation2 + $0x10] sm:$0xf]
      %v1343 = vld [vmem:[#allocation2 + $0x14] sm:$0x1]
      %v1344 = vld [vmem:[#allocation2 + $0x18] sm:$0xf]
      %v1345 = vld [vmem:[#allocation2 + $0x1c] sm:$0xf]
      %v1346 = vld [vmem:[#allocation2 + $0x20] sm:$0x1]
      %v1347 = vld [vmem:[#allocation2 + $0x24] sm:$0xf]
      %v1348 = vld [vmem:[#allocation2 + $0x28] sm:$0xf]
      %v1349 = vld [vmem:[#allocation2 + $0x2c] sm:$0x1]
      %v1350 = vld [vmem:[#allocation2 + $0x30] sm:$0xf]
      %v1351 = vld [vmem:[#allocation2 + $0x34] sm:$0xf]
      %v1352 = vld [vmem:[#allocation2 + $0x38] sm:$0x1]
      %v1353 = vld [vmem:[#allocation2 + $0x3c] sm:$0xf]
      %v1354 = vld [vmem:[#allocation2 + $0x40] sm:$0xf]
      %v1355 = vld [vmem:[#allocation2 + $0x44] sm:$0x1]
      %v1356 = vld [vmem:[#allocation2 + $0x48] sm:$0xf]
      %v1357 = vld [vmem:[#allocation2 + $0x4c] sm:$0xf]
      %v1358 = vld [vmem:[#allocation2 + $0x50] sm:$0x1]
      %v1359 = vld [vmem:[#allocation2 + $0x54] sm:$0xf]
      %v1360 = vld [vmem:[#allocation2 + $0x58] sm:$0xf]
      %v1361 = vld [vmem:[#allocation2 + $0x5c] sm:$0x1]
      %v1362 = vld [vmem:[#allocation2 + $0x60] sm:$0xf]
      %v1363 = vld [vmem:[#allocation2 + $0x64] sm:$0xf]
      %v1364 = vld [vmem:[#allocation2 + $0x68] sm:$0x1]
      %v1365 = vld [vmem:[#allocation2 + $0x6c] sm:$0xf]
      %v1366 = vld [vmem:[#allocation2 + $0x70] sm:$0xf]
      %v1367 = vld [vmem:[#allocation2 + $0x74] sm:$0x1]
      %v1368 = vld [vmem:[#allocation2 + $0x78] sm:$0xf]
      %v1369 = vld [vmem:[#allocation2 + $0x7c] sm:$0xf]
      %v1370 = vld [vmem:[#allocation2 + $0x80] sm:$0x1]
      %v1371 = vld [vmem:[#allocation2 + $0x84] sm:$0xf]
      %v1372 = vld [vmem:[#allocation2 + $0x88] sm:$0xf]
      %v1373 = vld [vmem:[#allocation2 + $0x8c] sm:$0x1]
      %v1374 = vld [vmem:[#allocation2 + $0x90] sm:$0xf]
      %v1375 = vld [vmem:[#allocation2 + $0x94] sm:$0xf]
      %v1376 = vld [vmem:[#allocation2 + $0x98] sm:$0x1]
      %v1377 = vld [vmem:[#allocation2 + $0x9c] sm:$0xf]
      %v1378 = vld [vmem:[#allocation2 + $0xa0] sm:$0xf]
      %v1379 = vld [vmem:[#allocation2 + $0xa4] sm:$0x1]
      %v1380 = vld [vmem:[#allocation2 + $0xa8] sm:$0xf]
      %v1381 = vld [vmem:[#allocation2 + $0xac] sm:$0xf]
      %v1382 = vld [vmem:[#allocation2 + $0xb0] sm:$0x1]
      %v1383 = vld [vmem:[#allocation2 + $0xb4] sm:$0xf]
      %v1384 = vld [vmem:[#allocation2 + $0xb8] sm:$0xf]
      %v1385 = vld [vmem:[#allocation2 + $0xbc] sm:$0x1]
      %vm1386 = vsmask.f32 3328
      %vm1387 = vsmask.f32 7440
      %vm1388 = vmor %vm1386, %vm1387
      %v1390 = vshrl.u32 %v1338, 16
      %v1392 = vrot.slane %v1390, 4
      %v1393 = vshll.u32 %v1338, 16
      %v1395 = vrot.slane %v1393, 5
      %v1396 = vor.u32 %v1392, %v1395
      %v1397 = vrot.slane %v1396, 4
      %v1399 = vshll.u32 %v1339, 16
      %v1401 = vrot.slane %v1399, 5
      %v1402 = vsel %vm1388, %v1397, %v1401
      %v1403 = vshrl.u32 %v1339, 16
      %v1405 = vrot.slane %v1403, 4
      %v1406 = vor.u32 %v1405, %v1401
      %v1407 = vrot.slane %v1406, 4
      %v1409 = vshll.u32 %v1340, 16
      %v1411 = vrot.slane %v1409, 5
      %v1412 = vsel %vm1388, %v1407, %v1411
      %v1414 = vshrl.u32 %v1341, 16
      %v1416 = vrot.slane %v1414, 4
      %v1417 = vshll.u32 %v1341, 16
      %v1419 = vrot.slane %v1417, 5
      %v1420 = vor.u32 %v1416, %v1419
      %v1421 = vrot.slane %v1420, 4
      %v1423 = vshll.u32 %v1342, 16
      %v1425 = vrot.slane %v1423, 5
      %v1426 = vsel %vm1388, %v1421, %v1425
      %v1427 = vshrl.u32 %v1342, 16
      %v1429 = vrot.slane %v1427, 4
      %v1430 = vor.u32 %v1429, %v1425
      %v1431 = vrot.slane %v1430, 4
      %v1433 = vshll.u32 %v1343, 16
      %v1435 = vrot.slane %v1433, 5
      %v1436 = vsel %vm1388, %v1431, %v1435
      %v1438 = vshrl.u32 %v1344, 16
      %v1440 = vrot.slane %v1438, 4
      %v1441 = vshll.u32 %v1344, 16
      %v1443 = vrot.slane %v1441, 5
      %v1444 = vor.u32 %v1440, %v1443
      %v1445 = vrot.slane %v1444, 4
      %v1447 = vshll.u32 %v1345, 16
      %v1449 = vrot.slane %v1447, 5
      %v1450 = vsel %vm1388, %v1445, %v1449
      %v1451 = vshrl.u32 %v1345, 16
      %v1453 = vrot.slane %v1451, 4
      %v1454 = vor.u32 %v1453, %v1449
      %v1455 = vrot.slane %v1454, 4
      %v1457 = vshll.u32 %v1346, 16
      %v1459 = vrot.slane %v1457, 5
      %v1460 = vsel %vm1388, %v1455, %v1459
      %v1462 = vshrl.u32 %v1347, 16
      %v1464 = vrot.slane %v1462, 4
      %v1465 = vshll.u32 %v1347, 16
      %v1467 = vrot.slane %v1465, 5
      %v1468 = vor.u32 %v1464, %v1467
      %v1469 = vrot.slane %v1468, 4
      %v1471 = vshll.u32 %v1348, 16
      %v1473 = vrot.slane %v1471, 5
      %v1474 = vsel %vm1388, %v1469, %v1473
      %v1475 = vshrl.u32 %v1348, 16
      %v1477 = vrot.slane %v1475, 4
      %v1478 = vor.u32 %v1477, %v1473
      %v1479 = vrot.slane %v1478, 4
      %v1481 = vshll.u32 %v1349, 16
      %v1483 = vrot.slane %v1481, 5
      %v1484 = vsel %vm1388, %v1479, %v1483
      %v1486 = vshrl.u32 %v1350, 16
      %v1488 = vrot.slane %v1486, 4
      %v1489 = vshll.u32 %v1350, 16
      %v1491 = vrot.slane %v1489, 5
      %v1492 = vor.u32 %v1488, %v1491
      %v1493 = vrot.slane %v1492, 4
      %v1495 = vshll.u32 %v1351, 16
      %v1497 = vrot.slane %v1495, 5
      %v1498 = vsel %vm1388, %v1493, %v1497
      %v1499 = vshrl.u32 %v1351, 16
      %v1501 = vrot.slane %v1499, 4
      %v1502 = vor.u32 %v1501, %v1497
      %v1503 = vrot.slane %v1502, 4
      %v1505 = vshll.u32 %v1352, 16
      %v1507 = vrot.slane %v1505, 5
      %v1508 = vsel %vm1388, %v1503, %v1507
      %v1510 = vshrl.u32 %v1353, 16
      %v1512 = vrot.slane %v1510, 4
      %v1513 = vshll.u32 %v1353, 16
      %v1515 = vrot.slane %v1513, 5
      %v1516 = vor.u32 %v1512, %v1515
      %v1517 = vrot.slane %v1516, 4
      %v1519 = vshll.u32 %v1354, 16
      %v1521 = vrot.slane %v1519, 5
      %v1522 = vsel %vm1388, %v1517, %v1521
      %v1523 = vshrl.u32 %v1354, 16
      %v1525 = vrot.slane %v1523, 4
      %v1526 = vor.u32 %v1525, %v1521
      %v1527 = vrot.slane %v1526, 4
      %v1529 = vshll.u32 %v1355, 16
      %v1531 = vrot.slane %v1529, 5
      %v1532 = vsel %vm1388, %v1527, %v1531
      %v1534 = vshrl.u32 %v1356, 16
      %v1536 = vrot.slane %v1534, 4
      %v1537 = vshll.u32 %v1356, 16
      %v1539 = vrot.slane %v1537, 5
      %v1540 = vor.u32 %v1536, %v1539
      %v1541 = vrot.slane %v1540, 4
      %v1543 = vshll.u32 %v1357, 16
      %v1545 = vrot.slane %v1543, 5
      %v1546 = vsel %vm1388, %v1541, %v1545
      %v1547 = vshrl.u32 %v1357, 16
      %v1549 = vrot.slane %v1547, 4
      %v1550 = vor.u32 %v1549, %v1545
      %v1551 = vrot.slane %v1550, 4
      %v1553 = vshll.u32 %v1358, 16
      %v1555 = vrot.slane %v1553, 5
      %v1556 = vsel %vm1388, %v1551, %v1555
      %v1558 = vshrl.u32 %v1359, 16
      %v1560 = vrot.slane %v1558, 4
      %v1561 = vshll.u32 %v1359, 16
      %v1563 = vrot.slane %v1561, 5
      %v1564 = vor.u32 %v1560, %v1563
      %v1565 = vrot.slane %v1564, 4
      %v1567 = vshll.u32 %v1360, 16
      %v1569 = vrot.slane %v1567, 5
      %v1570 = vsel %vm1388, %v1565, %v1569
      %v1571 = vshrl.u32 %v1360, 16
      %v1573 = vrot.slane %v1571, 4
      %v1574 = vor.u32 %v1573, %v1569
      %v1575 = vrot.slane %v1574, 4
      %v1577 = vshll.u32 %v1361, 16
      %v1579 = vrot.slane %v1577, 5
      %v1580 = vsel %vm1388, %v1575, %v1579
      %v1582 = vshrl.u32 %v1362, 16
      %v1584 = vrot.slane %v1582, 4
      %v1585 = vshll.u32 %v1362, 16
      %v1587 = vrot.slane %v1585, 5
      %v1588 = vor.u32 %v1584, %v1587
      %v1589 = vrot.slane %v1588, 4
      %v1591 = vshll.u32 %v1363, 16
      %v1593 = vrot.slane %v1591, 5
      %v1594 = vsel %vm1388, %v1589, %v1593
      %v1595 = vshrl.u32 %v1363, 16
      %v1597 = vrot.slane %v1595, 4
      %v1598 = vor.u32 %v1597, %v1593
      %v1599 = vrot.slane %v1598, 4
      %v1601 = vshll.u32 %v1364, 16
      %v1603 = vrot.slane %v1601, 5
      %v1604 = vsel %vm1388, %v1599, %v1603
      %v1606 = vshrl.u32 %v1365, 16
      %v1608 = vrot.slane %v1606, 4
      %v1609 = vshll.u32 %v1365, 16
      %v1611 = vrot.slane %v1609, 5
      %v1612 = vor.u32 %v1608, %v1611
      %v1613 = vrot.slane %v1612, 4
      %v1615 = vshll.u32 %v1366, 16
      %v1617 = vrot.slane %v1615, 5
      %v1618 = vsel %vm1388, %v1613, %v1617
      %v1619 = vshrl.u32 %v1366, 16
      %v1621 = vrot.slane %v1619, 4
      %v1622 = vor.u32 %v1621, %v1617
      %v1623 = vrot.slane %v1622, 4
      %v1625 = vshll.u32 %v1367, 16
      %v1627 = vrot.slane %v1625, 5
      %v1628 = vsel %vm1388, %v1623, %v1627
      %v1630 = vshrl.u32 %v1368, 16
      %v1632 = vrot.slane %v1630, 4
      %v1633 = vshll.u32 %v1368, 16
      %v1635 = vrot.slane %v1633, 5
      %v1636 = vor.u32 %v1632, %v1635
      %v1637 = vrot.slane %v1636, 4
      %v1639 = vshll.u32 %v1369, 16
      %v1641 = vrot.slane %v1639, 5
      %v1642 = vsel %vm1388, %v1637, %v1641
      %v1643 = vshrl.u32 %v1369, 16
      %v1645 = vrot.slane %v1643, 4
      %v1646 = vor.u32 %v1645, %v1641
      %v1647 = vrot.slane %v1646, 4
      %v1649 = vshll.u32 %v1370, 16
      %v1651 = vrot.slane %v1649, 5
      %v1652 = vsel %vm1388, %v1647, %v1651
      %v1654 = vshrl.u32 %v1371, 16
      %v1656 = vrot.slane %v1654, 4
      %v1657 = vshll.u32 %v1371, 16
      %v1659 = vrot.slane %v1657, 5
      %v1660 = vor.u32 %v1656, %v1659
      %v1661 = vrot.slane %v1660, 4
      %v1663 = vshll.u32 %v1372, 16
      %v1665 = vrot.slane %v1663, 5
      %v1666 = vsel %vm1388, %v1661, %v1665
      %v1667 = vshrl.u32 %v1372, 16
      %v1669 = vrot.slane %v1667, 4
      %v1670 = vor.u32 %v1669, %v1665
      %v1671 = vrot.slane %v1670, 4
      %v1673 = vshll.u32 %v1373, 16
      %v1675 = vrot.slane %v1673, 5
      %v1676 = vsel %vm1388, %v1671, %v1675
      %v1678 = vshrl.u32 %v1374, 16
      %v1680 = vrot.slane %v1678, 4
      %v1681 = vshll.u32 %v1374, 16
      %v1683 = vrot.slane %v1681, 5
      %v1684 = vor.u32 %v1680, %v1683
      %v1685 = vrot.slane %v1684, 4
      %v1687 = vshll.u32 %v1375, 16
      %v1689 = vrot.slane %v1687, 5
      %v1690 = vsel %vm1388, %v1685, %v1689
      %v1691 = vshrl.u32 %v1375, 16
      %v1693 = vrot.slane %v1691, 4
      %v1694 = vor.u32 %v1693, %v1689
      %v1695 = vrot.slane %v1694, 4
      %v1697 = vshll.u32 %v1376, 16
      %v1699 = vrot.slane %v1697, 5
      %v1700 = vsel %vm1388, %v1695, %v1699
      %v1702 = vshrl.u32 %v1377, 16
      %v1704 = vrot.slane %v1702, 4
      %v1705 = vshll.u32 %v1377, 16
      %v1707 = vrot.slane %v1705, 5
      %v1708 = vor.u32 %v1704, %v1707
      %v1709 = vrot.slane %v1708, 4
      %v1711 = vshll.u32 %v1378, 16
      %v1713 = vrot.slane %v1711, 5
      %v1714 = vsel %vm1388, %v1709, %v1713
      %v1715 = vshrl.u32 %v1378, 16
      %v1717 = vrot.slane %v1715, 4
      %v1718 = vor.u32 %v1717, %v1713
      %v1719 = vrot.slane %v1718, 4
      %v1721 = vshll.u32 %v1379, 16
      %v1723 = vrot.slane %v1721, 5
      %v1724 = vsel %vm1388, %v1719, %v1723
      %v1726 = vshrl.u32 %v1380, 16
      %v1728 = vrot.slane %v1726, 4
      %v1729 = vshll.u32 %v1380, 16
      %v1731 = vrot.slane %v1729, 5
      %v1732 = vor.u32 %v1728, %v1731
      %v1733 = vrot.slane %v1732, 4
      %v1735 = vshll.u32 %v1381, 16
      %v1737 = vrot.slane %v1735, 5
      %v1738 = vsel %vm1388, %v1733, %v1737
      %v1739 = vshrl.u32 %v1381, 16
      %v1741 = vrot.slane %v1739, 4
      %v1742 = vor.u32 %v1741, %v1737
      %v1743 = vrot.slane %v1742, 4
      %v1745 = vshll.u32 %v1382, 16
      %v1747 = vrot.slane %v1745, 5
      %v1748 = vsel %vm1388, %v1743, %v1747
      %v1750 = vshrl.u32 %v1383, 16
      %v1752 = vrot.slane %v1750, 4
      %v1753 = vshll.u32 %v1383, 16
      %v1755 = vrot.slane %v1753, 5
      %v1756 = vor.u32 %v1752, %v1755
      %v1757 = vrot.slane %v1756, 4
      %v1759 = vshll.u32 %v1384, 16
      %v1761 = vrot.slane %v1759, 5
      %v1762 = vsel %vm1388, %v1757, %v1761
      %v1763 = vshrl.u32 %v1384, 16
      %v1765 = vrot.slane %v1763, 4
      %v1766 = vor.u32 %v1765, %v1761
      %v1767 = vrot.slane %v1766, 4
      %v1769 = vshll.u32 %v1385, 16
      %v1771 = vrot.slane %v1769, 5
      %v1772 = vsel %vm1388, %v1767, %v1771
      %s1773 = scalar_lea.vmem %s1, 64
      %v1774 = vld [vmem:[%s1773] sm:$0xf]
      %v1775 = vld [vmem:[%s1773 + $0x4] sm:$0xf]
      %v1776 = vld [vmem:[%s1773 + $0x8] sm:$0xf]
      %v1777 = vld [vmem:[%s1773 + $0xc] sm:$0xf]
      %v1778 = vld [vmem:[%s1773 + $0x10] sm:$0xf]
      %v1779 = vld [vmem:[%s1773 + $0x14] sm:$0xf]
      %v1780 = vld [vmem:[%s1773 + $0x18] sm:$0xf]
      %v1781 = vld [vmem:[%s1773 + $0x1c] sm:$0xf]
      %v1782 = vld [vmem:[%s1773 + $0x20] sm:$0xf]
      %v1783 = vld [vmem:[%s1773 + $0x24] sm:$0xf]
      %v1784 = vld [vmem:[%s1773 + $0x28] sm:$0xf]
      %v1785 = vld [vmem:[%s1773 + $0x2c] sm:$0xf]
      %v1786 = vld [vmem:[%s1773 + $0x30] sm:$0xf]
      %v1787 = vld [vmem:[%s1773 + $0x34] sm:$0xf]
      %v1788 = vld [vmem:[%s1773 + $0x38] sm:$0xf]
      %v1789 = vld [vmem:[%s1773 + $0x3c] sm:$0xf]
      %v1790 = vunpack.c.l.b16 %v1402
      %v1791 = vunpack.c.l.b16 %v1412
      %v1792 = vunpack.c.l.b16 %v1426
      %v1793 = vunpack.c.l.b16 %v1436
      %v1794 = vunpack.c.l.b16 %v1450
      %v1795 = vunpack.c.l.b16 %v1460
      %v1796 = vunpack.c.l.b16 %v1474
      %v1797 = vunpack.c.l.b16 %v1484
      %v1798 = vunpack.c.l.b16 %v1498
      %v1799 = vunpack.c.l.b16 %v1508
      %v1800 = vunpack.c.l.b16 %v1522
      %v1801 = vunpack.c.l.b16 %v1532
      %v1802 = vunpack.c.l.b16 %v1546
      %v1803 = vunpack.c.l.b16 %v1556
      %v1804 = vunpack.c.l.b16 %v1570
      %v1805 = vunpack.c.l.b16 %v1580
      %v1806 = vunpack.c.l.b16 %v1594
      %v1807 = vunpack.c.l.b16 %v1604
      %v1808 = vunpack.c.l.b16 %v1618
      %v1809 = vunpack.c.l.b16 %v1628
      %v1810 = vunpack.c.l.b16 %v1642
      %v1811 = vunpack.c.l.b16 %v1652
      %v1812 = vunpack.c.l.b16 %v1666
      %v1813 = vunpack.c.l.b16 %v1676
      %v1814 = vunpack.c.l.b16 %v1690
      %v1815 = vunpack.c.l.b16 %v1700
      %v1816 = vunpack.c.l.b16 %v1714
      %v1817 = vunpack.c.l.b16 %v1724
      %v1818 = vunpack.c.l.b16 %v1738
      %v1819 = vunpack.c.l.b16 %v1748
      %v1820 = vunpack.c.l.b16 %v1762
      %v1821 = vunpack.c.l.b16 %v1772
      %v1822 = vpack.c.b16 %v1791, %v1790
      %v1823 = vpack.c.b16 %v1793, %v1792
      %v1824 = vpack.c.b16 %v1795, %v1794
      %v1825 = vpack.c.b16 %v1797, %v1796
      %v1826 = vpack.c.b16 %v1799, %v1798
      %v1827 = vpack.c.b16 %v1801, %v1800
      %v1828 = vpack.c.b16 %v1803, %v1802
      %v1829 = vpack.c.b16 %v1805, %v1804
      %v1830 = vpack.c.b16 %v1807, %v1806
      %v1831 = vpack.c.b16 %v1809, %v1808
      %v1832 = vpack.c.b16 %v1811, %v1810
      %v1833 = vpack.c.b16 %v1813, %v1812
      %v1834 = vpack.c.b16 %v1815, %v1814
      %v1835 = vpack.c.b16 %v1817, %v1816
      %v1836 = vpack.c.b16 %v1819, %v1818
      %v1837 = vpack.c.b16 %v1821, %v1820
      %v1870 = vunpack.c.l.b16 %v1774
      %v1871 = vunpack.c.l.b16 %v1775
      %v1872 = vunpack.c.l.b16 %v1776
      %v1873 = vunpack.c.l.b16 %v1777
      %v1874 = vunpack.c.l.b16 %v1778
      %v1875 = vunpack.c.l.b16 %v1779
      %v1876 = vunpack.c.l.b16 %v1780
      %v1877 = vunpack.c.l.b16 %v1781
      %v1878 = vunpack.c.l.b16 %v1782
      %v1879 = vunpack.c.l.b16 %v1783
      %v1880 = vunpack.c.l.b16 %v1784
      %v1881 = vunpack.c.l.b16 %v1785
      %v1882 = vunpack.c.l.b16 %v1786
      %v1883 = vunpack.c.l.b16 %v1787
      %v1884 = vunpack.c.l.b16 %v1788
      %v1885 = vunpack.c.l.b16 %v1789
      %v1886 = vpack.c.b16 %v1871, %v1870
      %v1887 = vpack.c.b16 %v1873, %v1872
      %v1888 = vpack.c.b16 %v1875, %v1874
      %v1889 = vpack.c.b16 %v1877, %v1876
      %v1890 = vpack.c.b16 %v1879, %v1878
      %v1891 = vpack.c.b16 %v1881, %v1880
      %v1892 = vpack.c.b16 %v1883, %v1882
      %v1893 = vpack.c.b16 %v1885, %v1884
      %1902 = vmatpush.bf16.msra.mxu0 %v1893
      %1903 = vmatpush.bf16.msra.mxu0 %v1892
      %1904 = vmatpush.bf16.msra.mxu0 %v1891
      %1905 = vmatpush.bf16.msra.mxu0 %v1890
      %1906 = vmatpush.bf16.msra.mxu0 %v1889
      %1907 = vmatpush.bf16.msra.mxu0 %v1888
      %1908 = vmatpush.bf16.msra.mxu0 %v1887
      %1909 = vmatpush.bf16.msra.mxu0 %v1886
      %1910 = vmatmul.bf16.gmra.mxu0 %v1822
      %v1911 = vpop.f32.mrf.mxu0
      %v1912 = vadd.f32 0.0, %v1911
      %v1913 = vpop.f32.mrf.mxu0
      %v1914 = vadd.f32 0.0, %v1913
      %1915 = vmatmul.bf16.gmra.mxu0 %v1823
      %v1916 = vpop.f32.mrf.mxu0
      %v1917 = vadd.f32 0.0, %v1916
      %v1918 = vpop.f32.mrf.mxu0
      %v1919 = vadd.f32 0.0, %v1918
      %1920 = vmatmul.bf16.gmra.mxu0 %v1824
      %v1921 = vpop.f32.mrf.mxu0
      %v1922 = vadd.f32 0.0, %v1921
      %v1923 = vpop.f32.mrf.mxu0
      %v1924 = vadd.f32 0.0, %v1923
      %1925 = vmatmul.bf16.gmra.mxu0 %v1825
      %v1926 = vpop.f32.mrf.mxu0
      %v1927 = vadd.f32 0.0, %v1926
      %v1928 = vpop.f32.mrf.mxu0
      %v1929 = vadd.f32 0.0, %v1928
      %1930 = vmatmul.bf16.gmra.mxu0 %v1826
      %v1931 = vpop.f32.mrf.mxu0
      %v1932 = vadd.f32 0.0, %v1931
      %v1933 = vpop.f32.mrf.mxu0
      %v1934 = vadd.f32 0.0, %v1933
      %1935 = vmatmul.bf16.gmra.mxu0 %v1827
      %v1936 = vpop.f32.mrf.mxu0
      %v1937 = vadd.f32 0.0, %v1936
      %v1938 = vpop.f32.mrf.mxu0
      %v1939 = vadd.f32 0.0, %v1938
      %1940 = vmatmul.bf16.gmra.mxu0 %v1828
      %v1941 = vpop.f32.mrf.mxu0
      %v1942 = vadd.f32 0.0, %v1941
      %v1943 = vpop.f32.mrf.mxu0
      %v1944 = vadd.f32 0.0, %v1943
      %1945 = vmatmul.bf16.gmra.mxu0 %v1829
      %v1946 = vpop.f32.mrf.mxu0
      %v1947 = vadd.f32 0.0, %v1946
      %v1948 = vpop.f32.mrf.mxu0
      %v1949 = vadd.f32 0.0, %v1948
      %1950 = vmatmul.bf16.gmra.mxu0 %v1830
      %v1951 = vpop.f32.mrf.mxu0
      %v1952 = vadd.f32 0.0, %v1951
      %v1953 = vpop.f32.mrf.mxu0
      %v1954 = vadd.f32 0.0, %v1953
      %1955 = vmatmul.bf16.gmra.mxu0 %v1831
      %v1956 = vpop.f32.mrf.mxu0
      %v1957 = vadd.f32 0.0, %v1956
      %v1958 = vpop.f32.mrf.mxu0
      %v1959 = vadd.f32 0.0, %v1958
      %1960 = vmatmul.bf16.gmra.mxu0 %v1832
      %v1961 = vpop.f32.mrf.mxu0
      %v1962 = vadd.f32 0.0, %v1961
      %v1963 = vpop.f32.mrf.mxu0
      %v1964 = vadd.f32 0.0, %v1963
      %1965 = vmatmul.bf16.gmra.mxu0 %v1833
      %v1966 = vpop.f32.mrf.mxu0
      %v1967 = vadd.f32 0.0, %v1966
      %v1968 = vpop.f32.mrf.mxu0
      %v1969 = vadd.f32 0.0, %v1968
      %1970 = vmatmul.bf16.gmra.mxu0 %v1834
      %v1971 = vpop.f32.mrf.mxu0
      %v1972 = vadd.f32 0.0, %v1971
      %v1973 = vpop.f32.mrf.mxu0
      %v1974 = vadd.f32 0.0, %v1973
      %1975 = vmatmul.bf16.gmra.mxu0 %v1835
      %v1976 = vpop.f32.mrf.mxu0
      %v1977 = vadd.f32 0.0, %v1976
      %v1978 = vpop.f32.mrf.mxu0
      %v1979 = vadd.f32 0.0, %v1978
      %1980 = vmatmul.bf16.gmra.mxu0 %v1836
      %v1981 = vpop.f32.mrf.mxu0
      %v1982 = vadd.f32 0.0, %v1981
      %v1983 = vpop.f32.mrf.mxu0
      %v1984 = vadd.f32 0.0, %v1983
      %1985 = vmatmul.bf16.gmra.mxu0 %v1837
      %v1986 = vpop.f32.mrf.mxu0
      %v1987 = vadd.f32 0.0, %v1986
      %v1988 = vpop.f32.mrf.mxu0
      %v1989 = vadd.f32 0.0, %v1988
      %1990 = vdwg.mxu0
      %v1991 = vadd.f32 %v1306, %v1912
      %v1992 = vadd.f32 %v1307, %v1914
      %v1993 = vadd.f32 %v1308, %v1917
      %v1994 = vadd.f32 %v1309, %v1919
      %v1995 = vadd.f32 %v1310, %v1922
      %v1996 = vadd.f32 %v1311, %v1924
      %v1997 = vadd.f32 %v1312, %v1927
      %v1998 = vadd.f32 %v1313, %v1929
      %v1999 = vadd.f32 %v1314, %v1932
      %v2000 = vadd.f32 %v1315, %v1934
      %v2001 = vadd.f32 %v1316, %v1937
      %v2002 = vadd.f32 %v1317, %v1939
      %v2003 = vadd.f32 %v1318, %v1942
      %v2004 = vadd.f32 %v1319, %v1944
      %v2005 = vadd.f32 %v1320, %v1947
      %v2006 = vadd.f32 %v1321, %v1949
      %v2007 = vadd.f32 %v1322, %v1952
      %v2008 = vadd.f32 %v1323, %v1954
      %v2009 = vadd.f32 %v1324, %v1957
      %v2010 = vadd.f32 %v1325, %v1959
      %v2011 = vadd.f32 %v1326, %v1962
      %v2012 = vadd.f32 %v1327, %v1964
      %v2013 = vadd.f32 %v1328, %v1967
      %v2014 = vadd.f32 %v1329, %v1969
      %v2015 = vadd.f32 %v1330, %v1972
      %v2016 = vadd.f32 %v1331, %v1974
      %v2017 = vadd.f32 %v1332, %v1977
      %v2018 = vadd.f32 %v1333, %v1979
      %v2019 = vadd.f32 %v1334, %v1982
      %v2020 = vadd.f32 %v1335, %v1984
      %v2021 = vadd.f32 %v1336, %v1987
      %v2022 = vadd.f32 %v1337, %v1989
      %v2023 = vld [vmem:[#allocation2] sm:$0xe]
      %v2024 = vld [vmem:[#allocation2 + $0xc] sm:$0xe]
      %v2025 = vld [vmem:[#allocation2 + $0x18] sm:$0xe]
      %v2026 = vld [vmem:[#allocation2 + $0x24] sm:$0xe]
      %v2027 = vld [vmem:[#allocation2 + $0x30] sm:$0xe]
      %v2028 = vld [vmem:[#allocation2 + $0x3c] sm:$0xe]
      %v2029 = vld [vmem:[#allocation2 + $0x48] sm:$0xe]
      %v2030 = vld [vmem:[#allocation2 + $0x54] sm:$0xe]
      %v2031 = vld [vmem:[#allocation2 + $0x60] sm:$0xe]
      %v2032 = vld [vmem:[#allocation2 + $0x6c] sm:$0xe]
      %v2033 = vld [vmem:[#allocation2 + $0x78] sm:$0xe]
      %v2034 = vld [vmem:[#allocation2 + $0x84] sm:$0xe]
      %v2035 = vld [vmem:[#allocation2 + $0x90] sm:$0xe]
      %v2036 = vld [vmem:[#allocation2 + $0x9c] sm:$0xe]
      %v2037 = vld [vmem:[#allocation2 + $0xa8] sm:$0xe]
      %v2038 = vld [vmem:[#allocation2 + $0xb4] sm:$0xe]
      %vm2087 = vcmask 1042432
      %vm2088 = vcmask 1046532
      %vm2089 = vmor %vm2087, %vm2088
      %v2090 = vrot.slane %v2023, 5
      %v2091 = vrot.slane %v2090, 4
      %v2092 = vrot.slane %v1339, 5
      %v2093 = vsel %vm2089, %v2091, %v2092
      %v2094 = vrot.slane %v2092, 4
      %v2095 = vrot.slane %v1340, 5
      %v2096 = vsel %vm2089, %v2094, %v2095
      %v2097 = vrot.slane %v2024, 5
      %v2098 = vrot.slane %v2097, 4
      %v2099 = vrot.slane %v1342, 5
      %v2100 = vsel %vm2089, %v2098, %v2099
      %v2101 = vrot.slane %v2099, 4
      %v2102 = vrot.slane %v1343, 5
      %v2103 = vsel %vm2089, %v2101, %v2102
      %v2104 = vrot.slane %v2025, 5
      %v2105 = vrot.slane %v2104, 4
      %v2106 = vrot.slane %v1345, 5
      %v2107 = vsel %vm2089, %v2105, %v2106
      %v2108 = vrot.slane %v2106, 4
      %v2109 = vrot.slane %v1346, 5
      %v2110 = vsel %vm2089, %v2108, %v2109
      %v2111 = vrot.slane %v2026, 5
      %v2112 = vrot.slane %v2111, 4
      %v2113 = vrot.slane %v1348, 5
      %v2114 = vsel %vm2089, %v2112, %v2113
      %v2115 = vrot.slane %v2113, 4
      %v2116 = vrot.slane %v1349, 5
      %v2117 = vsel %vm2089, %v2115, %v2116
      %v2118 = vrot.slane %v2027, 5
      %v2119 = vrot.slane %v2118, 4
      %v2120 = vrot.slane %v1351, 5
      %v2121 = vsel %vm2089, %v2119, %v2120
      %v2122 = vrot.slane %v2120, 4
      %v2123 = vrot.slane %v1352, 5
      %v2124 = vsel %vm2089, %v2122, %v2123
      %v2125 = vrot.slane %v2028, 5
      %v2126 = vrot.slane %v2125, 4
      %v2127 = vrot.slane %v1354, 5
      %v2128 = vsel %vm2089, %v2126, %v2127
      %v2129 = vrot.slane %v2127, 4
      %v2130 = vrot.slane %v1355, 5
      %v2131 = vsel %vm2089, %v2129, %v2130
      %v2132 = vrot.slane %v2029, 5
      %v2133 = vrot.slane %v2132, 4
      %v2134 = vrot.slane %v1357, 5
      %v2135 = vsel %vm2089, %v2133, %v2134
      %v2136 = vrot.slane %v2134, 4
      %v2137 = vrot.slane %v1358, 5
      %v2138 = vsel %vm2089, %v2136, %v2137
      %v2139 = vrot.slane %v2030, 5
      %v2140 = vrot.slane %v2139, 4
      %v2141 = vrot.slane %v1360, 5
      %v2142 = vsel %vm2089, %v2140, %v2141
      %v2143 = vrot.slane %v2141, 4
      %v2144 = vrot.slane %v1361, 5
      %v2145 = vsel %vm2089, %v2143, %v2144
      %v2146 = vrot.slane %v2031, 5
      %v2147 = vrot.slane %v2146, 4
      %v2148 = vrot.slane %v1363, 5
      %v2149 = vsel %vm2089, %v2147, %v2148
      %v2150 = vrot.slane %v2148, 4
      %v2151 = vrot.slane %v1364, 5
      %v2152 = vsel %vm2089, %v2150, %v2151
      %v2153 = vrot.slane %v2032, 5
      %v2154 = vrot.slane %v2153, 4
      %v2155 = vrot.slane %v1366, 5
      %v2156 = vsel %vm2089, %v2154, %v2155
      %v2157 = vrot.slane %v2155, 4
      %v2158 = vrot.slane %v1367, 5
      %v2159 = vsel %vm2089, %v2157, %v2158
      %v2160 = vrot.slane %v2033, 5
      %v2161 = vrot.slane %v2160, 4
      %v2162 = vrot.slane %v1369, 5
      %v2163 = vsel %vm2089, %v2161, %v2162
      %v2164 = vrot.slane %v2162, 4
      %v2165 = vrot.slane %v1370, 5
      %v2166 = vsel %vm2089, %v2164, %v2165
      %v2167 = vrot.slane %v2034, 5
      %v2168 = vrot.slane %v2167, 4
      %v2169 = vrot.slane %v1372, 5
      %v2170 = vsel %vm2089, %v2168, %v2169
      %v2171 = vrot.slane %v2169, 4
      %v2172 = vrot.slane %v1373, 5
      %v2173 = vsel %vm2089, %v2171, %v2172
      %v2174 = vrot.slane %v2035, 5
      %v2175 = vrot.slane %v2174, 4
      %v2176 = vrot.slane %v1375, 5
      %v2177 = vsel %vm2089, %v2175, %v2176
      %v2178 = vrot.slane %v2176, 4
      %v2179 = vrot.slane %v1376, 5
      %v2180 = vsel %vm2089, %v2178, %v2179
      %v2181 = vrot.slane %v2036, 5
      %v2182 = vrot.slane %v2181, 4
      %v2183 = vrot.slane %v1378, 5
      %v2184 = vsel %vm2089, %v2182, %v2183
      %v2185 = vrot.slane %v2183, 4
      %v2186 = vrot.slane %v1379, 5
      %v2187 = vsel %vm2089, %v2185, %v2186
      %v2188 = vrot.slane %v2037, 5
      %v2189 = vrot.slane %v2188, 4
      %v2190 = vrot.slane %v1381, 5
      %v2191 = vsel %vm2089, %v2189, %v2190
      %v2192 = vrot.slane %v2190, 4
      %v2193 = vrot.slane %v1382, 5
      %v2194 = vsel %vm2089, %v2192, %v2193
      %v2195 = vrot.slane %v2038, 5
      %v2196 = vrot.slane %v2195, 4
      %v2197 = vrot.slane %v1384, 5
      %v2198 = vsel %vm2089, %v2196, %v2197
      %v2199 = vrot.slane %v2197, 4
      %v2200 = vrot.slane %v1385, 5
      %v2201 = vsel %vm2089, %v2199, %v2200
      %s2202 = scalar_lea.vmem %s1, 128
      %v2203 = vld [vmem:[%s2202] sm:$0xf]
      %v2204 = vld [vmem:[%s2202 + $0x4] sm:$0xf]
      %v2205 = vld [vmem:[%s2202 + $0x8] sm:$0xf]
      %v2206 = vld [vmem:[%s2202 + $0xc] sm:$0xf]
      %v2207 = vld [vmem:[%s2202 + $0x10] sm:$0xf]
      %v2208 = vld [vmem:[%s2202 + $0x14] sm:$0xf]
      %v2209 = vld [vmem:[%s2202 + $0x18] sm:$0xf]
      %v2210 = vld [vmem:[%s2202 + $0x1c] sm:$0xf]
      %v2211 = vld [vmem:[%s2202 + $0x20] sm:$0xf]
      %v2212 = vld [vmem:[%s2202 + $0x24] sm:$0xf]
      %v2213 = vld [vmem:[%s2202 + $0x28] sm:$0xf]
      %v2214 = vld [vmem:[%s2202 + $0x2c] sm:$0xf]
      %v2215 = vld [vmem:[%s2202 + $0x30] sm:$0xf]
      %v2216 = vld [vmem:[%s2202 + $0x34] sm:$0xf]
      %v2217 = vld [vmem:[%s2202 + $0x38] sm:$0xf]
      %v2218 = vld [vmem:[%s2202 + $0x3c] sm:$0xf]
      %v2219 = vunpack.c.l.b16 %v2093
      %v2220 = vunpack.c.l.b16 %v2096
      %v2221 = vunpack.c.l.b16 %v2100
      %v2222 = vunpack.c.l.b16 %v2103
      %v2223 = vunpack.c.l.b16 %v2107
      %v2224 = vunpack.c.l.b16 %v2110
      %v2225 = vunpack.c.l.b16 %v2114
      %v2226 = vunpack.c.l.b16 %v2117
      %v2227 = vunpack.c.l.b16 %v2121
      %v2228 = vunpack.c.l.b16 %v2124
      %v2229 = vunpack.c.l.b16 %v2128
      %v2230 = vunpack.c.l.b16 %v2131
      %v2231 = vunpack.c.l.b16 %v2135
      %v2232 = vunpack.c.l.b16 %v2138
      %v2233 = vunpack.c.l.b16 %v2142
      %v2234 = vunpack.c.l.b16 %v2145
      %v2235 = vunpack.c.l.b16 %v2149
      %v2236 = vunpack.c.l.b16 %v2152
      %v2237 = vunpack.c.l.b16 %v2156
      %v2238 = vunpack.c.l.b16 %v2159
      %v2239 = vunpack.c.l.b16 %v2163
      %v2240 = vunpack.c.l.b16 %v2166
      %v2241 = vunpack.c.l.b16 %v2170
      %v2242 = vunpack.c.l.b16 %v2173
      %v2243 = vunpack.c.l.b16 %v2177
      %v2244 = vunpack.c.l.b16 %v2180
      %v2245 = vunpack.c.l.b16 %v2184
      %v2246 = vunpack.c.l.b16 %v2187
      %v2247 = vunpack.c.l.b16 %v2191
      %v2248 = vunpack.c.l.b16 %v2194
      %v2249 = vunpack.c.l.b16 %v2198
      %v2250 = vunpack.c.l.b16 %v2201
      %v2251 = vpack.c.b16 %v2220, %v2219
      %v2252 = vpack.c.b16 %v2222, %v2221
      %v2253 = vpack.c.b16 %v2224, %v2223
      %v2254 = vpack.c.b16 %v2226, %v2225
      %v2255 = vpack.c.b16 %v2228, %v2227
      %v2256 = vpack.c.b16 %v2230, %v2229
      %v2257 = vpack.c.b16 %v2232, %v2231
      %v2258 = vpack.c.b16 %v2234, %v2233
      %v2259 = vpack.c.b16 %v2236, %v2235
      %v2260 = vpack.c.b16 %v2238, %v2237
      %v2261 = vpack.c.b16 %v2240, %v2239
      %v2262 = vpack.c.b16 %v2242, %v2241
      %v2263 = vpack.c.b16 %v2244, %v2243
      %v2264 = vpack.c.b16 %v2246, %v2245
      %v2265 = vpack.c.b16 %v2248, %v2247
      %v2266 = vpack.c.b16 %v2250, %v2249
      %v2299 = vunpack.c.l.b16 %v2203
      %v2300 = vunpack.c.l.b16 %v2204
      %v2301 = vunpack.c.l.b16 %v2205
      %v2302 = vunpack.c.l.b16 %v2206
      %v2303 = vunpack.c.l.b16 %v2207
      %v2304 = vunpack.c.l.b16 %v2208
      %v2305 = vunpack.c.l.b16 %v2209
      %v2306 = vunpack.c.l.b16 %v2210
      %v2307 = vunpack.c.l.b16 %v2211
      %v2308 = vunpack.c.l.b16 %v2212
      %v2309 = vunpack.c.l.b16 %v2213
      %v2310 = vunpack.c.l.b16 %v2214
      %v2311 = vunpack.c.l.b16 %v2215
      %v2312 = vunpack.c.l.b16 %v2216
      %v2313 = vunpack.c.l.b16 %v2217
      %v2314 = vunpack.c.l.b16 %v2218
      %v2315 = vpack.c.b16 %v2300, %v2299
      %v2316 = vpack.c.b16 %v2302, %v2301
      %v2317 = vpack.c.b16 %v2304, %v2303
      %v2318 = vpack.c.b16 %v2306, %v2305
      %v2319 = vpack.c.b16 %v2308, %v2307
      %v2320 = vpack.c.b16 %v2310, %v2309
      %v2321 = vpack.c.b16 %v2312, %v2311
      %v2322 = vpack.c.b16 %v2314, %v2313
      %2331 = vmatpush.bf16.msra.mxu0 %v2322
      %2332 = vmatpush.bf16.msra.mxu0 %v2321
      %2333 = vmatpush.bf16.msra.mxu0 %v2320
      %2334 = vmatpush.bf16.msra.mxu0 %v2319
      %2335 = vmatpush.bf16.msra.mxu0 %v2318
      %2336 = vmatpush.bf16.msra.mxu0 %v2317
      %2337 = vmatpush.bf16.msra.mxu0 %v2316
      %2338 = vmatpush.bf16.msra.mxu0 %v2315
      %2339 = vmatmul.bf16.gmra.mxu0 %v2251
      %v2340 = vpop.f32.mrf.mxu0
      %v2341 = vadd.f32 0.0, %v2340
      %v2342 = vpop.f32.mrf.mxu0
      %v2343 = vadd.f32 0.0, %v2342
      %2344 = vmatmul.bf16.gmra.mxu0 %v2252
      %v2345 = vpop.f32.mrf.mxu0
      %v2346 = vadd.f32 0.0, %v2345
      %v2347 = vpop.f32.mrf.mxu0
      %v2348 = vadd.f32 0.0, %v2347
      %2349 = vmatmul.bf16.gmra.mxu0 %v2253
      %v2350 = vpop.f32.mrf.mxu0
      %v2351 = vadd.f32 0.0, %v2350
      %v2352 = vpop.f32.mrf.mxu0
      %v2353 = vadd.f32 0.0, %v2352
      %2354 = vmatmul.bf16.gmra.mxu0 %v2254
      %v2355 = vpop.f32.mrf.mxu0
      %v2356 = vadd.f32 0.0, %v2355
      %v2357 = vpop.f32.mrf.mxu0
      %v2358 = vadd.f32 0.0, %v2357
      %2359 = vmatmul.bf16.gmra.mxu0 %v2255
      %v2360 = vpop.f32.mrf.mxu0
      %v2361 = vadd.f32 0.0, %v2360
      %v2362 = vpop.f32.mrf.mxu0
      %v2363 = vadd.f32 0.0, %v2362
      %2364 = vmatmul.bf16.gmra.mxu0 %v2256
      %v2365 = vpop.f32.mrf.mxu0
      %v2366 = vadd.f32 0.0, %v2365
      %v2367 = vpop.f32.mrf.mxu0
      %v2368 = vadd.f32 0.0, %v2367
      %2369 = vmatmul.bf16.gmra.mxu0 %v2257
      %v2370 = vpop.f32.mrf.mxu0
      %v2371 = vadd.f32 0.0, %v2370
      %v2372 = vpop.f32.mrf.mxu0
      %v2373 = vadd.f32 0.0, %v2372
      %2374 = vmatmul.bf16.gmra.mxu0 %v2258
      %v2375 = vpop.f32.mrf.mxu0
      %v2376 = vadd.f32 0.0, %v2375
      %v2377 = vpop.f32.mrf.mxu0
      %v2378 = vadd.f32 0.0, %v2377
      %2379 = vmatmul.bf16.gmra.mxu0 %v2259
      %v2380 = vpop.f32.mrf.mxu0
      %v2381 = vadd.f32 0.0, %v2380
      %v2382 = vpop.f32.mrf.mxu0
      %v2383 = vadd.f32 0.0, %v2382
      %2384 = vmatmul.bf16.gmra.mxu0 %v2260
      %v2385 = vpop.f32.mrf.mxu0
      %v2386 = vadd.f32 0.0, %v2385
      %v2387 = vpop.f32.mrf.mxu0
      %v2388 = vadd.f32 0.0, %v2387
      %2389 = vmatmul.bf16.gmra.mxu0 %v2261
      %v2390 = vpop.f32.mrf.mxu0
      %v2391 = vadd.f32 0.0, %v2390
      %v2392 = vpop.f32.mrf.mxu0
      %v2393 = vadd.f32 0.0, %v2392
      %2394 = vmatmul.bf16.gmra.mxu0 %v2262
      %v2395 = vpop.f32.mrf.mxu0
      %v2396 = vadd.f32 0.0, %v2395
      %v2397 = vpop.f32.mrf.mxu0
      %v2398 = vadd.f32 0.0, %v2397
      %2399 = vmatmul.bf16.gmra.mxu0 %v2263
      %v2400 = vpop.f32.mrf.mxu0
      %v2401 = vadd.f32 0.0, %v2400
      %v2402 = vpop.f32.mrf.mxu0
      %v2403 = vadd.f32 0.0, %v2402
      %2404 = vmatmul.bf16.gmra.mxu0 %v2264
      %v2405 = vpop.f32.mrf.mxu0
      %v2406 = vadd.f32 0.0, %v2405
      %v2407 = vpop.f32.mrf.mxu0
      %v2408 = vadd.f32 0.0, %v2407
      %2409 = vmatmul.bf16.gmra.mxu0 %v2265
      %v2410 = vpop.f32.mrf.mxu0
      %v2411 = vadd.f32 0.0, %v2410
      %v2412 = vpop.f32.mrf.mxu0
      %v2413 = vadd.f32 0.0, %v2412
      %2414 = vmatmul.bf16.gmra.mxu0 %v2266
      %v2415 = vpop.f32.mrf.mxu0
      %v2416 = vadd.f32 0.0, %v2415
      %v2417 = vpop.f32.mrf.mxu0
      %v2418 = vadd.f32 0.0, %v2417
      %2419 = vdwg.mxu0
      %v2420 = vadd.f32 %v1991, %v2341
      %v2421 = vadd.f32 %v1992, %v2343
      %v2422 = vadd.f32 %v1993, %v2346
      %v2423 = vadd.f32 %v1994, %v2348
      %v2424 = vadd.f32 %v1995, %v2351
      %v2425 = vadd.f32 %v1996, %v2353
      %v2426 = vadd.f32 %v1997, %v2356
      %v2427 = vadd.f32 %v1998, %v2358
      %v2428 = vadd.f32 %v1999, %v2361
      %v2429 = vadd.f32 %v2000, %v2363
      %v2430 = vadd.f32 %v2001, %v2366
      %v2431 = vadd.f32 %v2002, %v2368
      %v2432 = vadd.f32 %v2003, %v2371
      %v2433 = vadd.f32 %v2004, %v2373
      %v2434 = vadd.f32 %v2005, %v2376
      %v2435 = vadd.f32 %v2006, %v2378
      %v2436 = vadd.f32 %v2007, %v2381
      %v2437 = vadd.f32 %v2008, %v2383
      %v2438 = vadd.f32 %v2009, %v2386
      %v2439 = vadd.f32 %v2010, %v2388
      %v2440 = vadd.f32 %v2011, %v2391
      %v2441 = vadd.f32 %v2012, %v2393
      %v2442 = vadd.f32 %v2013, %v2396
      %v2443 = vadd.f32 %v2014, %v2398
      %v2444 = vadd.f32 %v2015, %v2401
      %v2445 = vadd.f32 %v2016, %v2403
      %v2446 = vadd.f32 %v2017, %v2406
      %v2447 = vadd.f32 %v2018, %v2408
      %v2448 = vadd.f32 %v2019, %v2411
      %v2449 = vadd.f32 %v2020, %v2413
      %v2450 = vadd.f32 %v2021, %v2416
      %v2451 = vadd.f32 %v2022, %v2418
      %v2452 = vld [vmem:[%s906] sm:$0xf]
      %v2453 = vld [vmem:[%s906 + $0x4] sm:$0xf]
      %v2454 = vld [vmem:[%s906 + $0xc] sm:$0xf]
      %v2455 = vld [vmem:[%s906 + $0x10] sm:$0xf]
      %v2456 = vld [vmem:[%s906 + $0x18] sm:$0xf]
      %v2457 = vld [vmem:[%s906 + $0x1c] sm:$0xf]
      %v2458 = vld [vmem:[%s906 + $0x24] sm:$0xf]
      %v2459 = vld [vmem:[%s906 + $0x28] sm:$0xf]
      %v2460 = vld [vmem:[%s906 + $0x30] sm:$0xf]
      %v2461 = vld [vmem:[%s906 + $0x34] sm:$0xf]
      %v2462 = vld [vmem:[%s906 + $0x3c] sm:$0xf]
      %v2463 = vld [vmem:[%s906 + $0x40] sm:$0xf]
      %v2464 = vld [vmem:[%s906 + $0x48] sm:$0xf]
      %v2465 = vld [vmem:[%s906 + $0x4c] sm:$0xf]
      %v2466 = vld [vmem:[%s906 + $0x54] sm:$0xf]
      %v2467 = vld [vmem:[%s906 + $0x58] sm:$0xf]
      %v2468 = vld [vmem:[%s906 + $0x60] sm:$0xf]
      %v2469 = vld [vmem:[%s906 + $0x64] sm:$0xf]
      %v2470 = vld [vmem:[%s906 + $0x6c] sm:$0xf]
      %v2471 = vld [vmem:[%s906 + $0x70] sm:$0xf]
      %v2472 = vld [vmem:[%s906 + $0x78] sm:$0xf]
      %v2473 = vld [vmem:[%s906 + $0x7c] sm:$0xf]
      %v2474 = vld [vmem:[%s906 + $0x84] sm:$0xf]
      %v2475 = vld [vmem:[%s906 + $0x88] sm:$0xf]
      %v2476 = vld [vmem:[%s906 + $0x90] sm:$0xf]
      %v2477 = vld [vmem:[%s906 + $0x94] sm:$0xf]
      %v2478 = vld [vmem:[%s906 + $0x9c] sm:$0xf]
      %v2479 = vld [vmem:[%s906 + $0xa0] sm:$0xf]
      %v2480 = vld [vmem:[%s906 + $0xa8] sm:$0xf]
      %v2481 = vld [vmem:[%s906 + $0xac] sm:$0xf]
      %v2482 = vld [vmem:[%s906 + $0xb4] sm:$0xf]
      %v2483 = vld [vmem:[%s906 + $0xb8] sm:$0xf]
      %s2484 = scalar_lea.vmem %s1, 192
      %v2485 = vld [vmem:[%s2484] sm:$0xf]
      %v2486 = vld [vmem:[%s2484 + $0x4] sm:$0xf]
      %v2487 = vld [vmem:[%s2484 + $0x8] sm:$0xf]
      %v2488 = vld [vmem:[%s2484 + $0xc] sm:$0xf]
      %v2489 = vld [vmem:[%s2484 + $0x10] sm:$0xf]
      %v2490 = vld [vmem:[%s2484 + $0x14] sm:$0xf]
      %v2491 = vld [vmem:[%s2484 + $0x18] sm:$0xf]
      %v2492 = vld [vmem:[%s2484 + $0x1c] sm:$0xf]
      %v2493 = vld [vmem:[%s2484 + $0x20] sm:$0xf]
      %v2494 = vld [vmem:[%s2484 + $0x24] sm:$0xf]
      %v2495 = vld [vmem:[%s2484 + $0x28] sm:$0xf]
      %v2496 = vld [vmem:[%s2484 + $0x2c] sm:$0xf]
      %v2497 = vld [vmem:[%s2484 + $0x30] sm:$0xf]
      %v2498 = vld [vmem:[%s2484 + $0x34] sm:$0xf]
      %v2499 = vld [vmem:[%s2484 + $0x38] sm:$0xf]
      %v2500 = vld [vmem:[%s2484 + $0x3c] sm:$0xf]
      %v2533 = vunpack.c.l.b16 %v2452
      %v2534 = vunpack.c.l.b16 %v2453
      %v2535 = vunpack.c.l.b16 %v2454
      %v2536 = vunpack.c.l.b16 %v2455
      %v2537 = vunpack.c.l.b16 %v2456
      %v2538 = vunpack.c.l.b16 %v2457
      %v2539 = vunpack.c.l.b16 %v2458
      %v2540 = vunpack.c.l.b16 %v2459
      %v2541 = vunpack.c.l.b16 %v2460
      %v2542 = vunpack.c.l.b16 %v2461
      %v2543 = vunpack.c.l.b16 %v2462
      %v2544 = vunpack.c.l.b16 %v2463
      %v2545 = vunpack.c.l.b16 %v2464
      %v2546 = vunpack.c.l.b16 %v2465
      %v2547 = vunpack.c.l.b16 %v2466
      %v2548 = vunpack.c.l.b16 %v2467
      %v2549 = vunpack.c.l.b16 %v2468
      %v2550 = vunpack.c.l.b16 %v2469
      %v2551 = vunpack.c.l.b16 %v2470
      %v2552 = vunpack.c.l.b16 %v2471
      %v2553 = vunpack.c.l.b16 %v2472
      %v2554 = vunpack.c.l.b16 %v2473
      %v2555 = vunpack.c.l.b16 %v2474
      %v2556 = vunpack.c.l.b16 %v2475
      %v2557 = vunpack.c.l.b16 %v2476
      %v2558 = vunpack.c.l.b16 %v2477
      %v2559 = vunpack.c.l.b16 %v2478
      %v2560 = vunpack.c.l.b16 %v2479
      %v2561 = vunpack.c.l.b16 %v2480
      %v2562 = vunpack.c.l.b16 %v2481
      %v2563 = vunpack.c.l.b16 %v2482
      %v2564 = vunpack.c.l.b16 %v2483
      %v2565 = vpack.c.b16 %v2534, %v2533
      %v2566 = vpack.c.b16 %v2536, %v2535
      %v2567 = vpack.c.b16 %v2538, %v2537
      %v2568 = vpack.c.b16 %v2540, %v2539
      %v2569 = vpack.c.b16 %v2542, %v2541
      %v2570 = vpack.c.b16 %v2544, %v2543
      %v2571 = vpack.c.b16 %v2546, %v2545
      %v2572 = vpack.c.b16 %v2548, %v2547
      %v2573 = vpack.c.b16 %v2550, %v2549
      %v2574 = vpack.c.b16 %v2552, %v2551
      %v2575 = vpack.c.b16 %v2554, %v2553
      %v2576 = vpack.c.b16 %v2556, %v2555
      %v2577 = vpack.c.b16 %v2558, %v2557
      %v2578 = vpack.c.b16 %v2560, %v2559
      %v2579 = vpack.c.b16 %v2562, %v2561
      %v2580 = vpack.c.b16 %v2564, %v2563
      %v2613 = vunpack.c.l.b16 %v2485
      %v2614 = vunpack.c.l.b16 %v2486
      %v2615 = vunpack.c.l.b16 %v2487
      %v2616 = vunpack.c.l.b16 %v2488
      %v2617 = vunpack.c.l.b16 %v2489
      %v2618 = vunpack.c.l.b16 %v2490
      %v2619 = vunpack.c.l.b16 %v2491
      %v2620 = vunpack.c.l.b16 %v2492
      %v2621 = vunpack.c.l.b16 %v2493
      %v2622 = vunpack.c.l.b16 %v2494
      %v2623 = vunpack.c.l.b16 %v2495
      %v2624 = vunpack.c.l.b16 %v2496
      %v2625 = vunpack.c.l.b16 %v2497
      %v2626 = vunpack.c.l.b16 %v2498
      %v2627 = vunpack.c.l.b16 %v2499
      %v2628 = vunpack.c.l.b16 %v2500
      %v2629 = vpack.c.b16 %v2614, %v2613
      %v2630 = vpack.c.b16 %v2616, %v2615
      %v2631 = vpack.c.b16 %v2618, %v2617
      %v2632 = vpack.c.b16 %v2620, %v2619
      %v2633 = vpack.c.b16 %v2622, %v2621
      %v2634 = vpack.c.b16 %v2624, %v2623
      %v2635 = vpack.c.b16 %v2626, %v2625
      %v2636 = vpack.c.b16 %v2628, %v2627
      %2645 = vmatpush.bf16.msra.mxu0 %v2636
      %2646 = vmatpush.bf16.msra.mxu0 %v2635
      %2647 = vmatpush.bf16.msra.mxu0 %v2634
      %2648 = vmatpush.bf16.msra.mxu0 %v2633
      %2649 = vmatpush.bf16.msra.mxu0 %v2632
      %2650 = vmatpush.bf16.msra.mxu0 %v2631
      %2651 = vmatpush.bf16.msra.mxu0 %v2630
      %2652 = vmatpush.bf16.msra.mxu0 %v2629
      %2653 = vmatmul.bf16.gmra.mxu0 %v2565
      %v2654 = vpop.f32.mrf.mxu0
      %v2655 = vadd.f32 0.0, %v2654
      %v2656 = vpop.f32.mrf.mxu0
      %v2657 = vadd.f32 0.0, %v2656
      %2658 = vmatmul.bf16.gmra.mxu0 %v2566
      %v2659 = vpop.f32.mrf.mxu0
      %v2660 = vadd.f32 0.0, %v2659
      %v2661 = vpop.f32.mrf.mxu0
      %v2662 = vadd.f32 0.0, %v2661
      %2663 = vmatmul.bf16.gmra.mxu0 %v2567
      %v2664 = vpop.f32.mrf.mxu0
      %v2665 = vadd.f32 0.0, %v2664
      %v2666 = vpop.f32.mrf.mxu0
      %v2667 = vadd.f32 0.0, %v2666
      %2668 = vmatmul.bf16.gmra.mxu0 %v2568
      %v2669 = vpop.f32.mrf.mxu0
      %v2670 = vadd.f32 0.0, %v2669
      %v2671 = vpop.f32.mrf.mxu0
      %v2672 = vadd.f32 0.0, %v2671
      %2673 = vmatmul.bf16.gmra.mxu0 %v2569
      %v2674 = vpop.f32.mrf.mxu0
      %v2675 = vadd.f32 0.0, %v2674
      %v2676 = vpop.f32.mrf.mxu0
      %v2677 = vadd.f32 0.0, %v2676
      %2678 = vmatmul.bf16.gmra.mxu0 %v2570
      %v2679 = vpop.f32.mrf.mxu0
      %v2680 = vadd.f32 0.0, %v2679
      %v2681 = vpop.f32.mrf.mxu0
      %v2682 = vadd.f32 0.0, %v2681
      %2683 = vmatmul.bf16.gmra.mxu0 %v2571
      %v2684 = vpop.f32.mrf.mxu0
      %v2685 = vadd.f32 0.0, %v2684
      %v2686 = vpop.f32.mrf.mxu0
      %v2687 = vadd.f32 0.0, %v2686
      %2688 = vmatmul.bf16.gmra.mxu0 %v2572
      %v2689 = vpop.f32.mrf.mxu0
      %v2690 = vadd.f32 0.0, %v2689
      %v2691 = vpop.f32.mrf.mxu0
      %v2692 = vadd.f32 0.0, %v2691
      %2693 = vmatmul.bf16.gmra.mxu0 %v2573
      %v2694 = vpop.f32.mrf.mxu0
      %v2695 = vadd.f32 0.0, %v2694
      %v2696 = vpop.f32.mrf.mxu0
      %v2697 = vadd.f32 0.0, %v2696
      %2698 = vmatmul.bf16.gmra.mxu0 %v2574
      %v2699 = vpop.f32.mrf.mxu0
      %v2700 = vadd.f32 0.0, %v2699
      %v2701 = vpop.f32.mrf.mxu0
      %v2702 = vadd.f32 0.0, %v2701
      %2703 = vmatmul.bf16.gmra.mxu0 %v2575
      %v2704 = vpop.f32.mrf.mxu0
      %v2705 = vadd.f32 0.0, %v2704
      %v2706 = vpop.f32.mrf.mxu0
      %v2707 = vadd.f32 0.0, %v2706
      %2708 = vmatmul.bf16.gmra.mxu0 %v2576
      %v2709 = vpop.f32.mrf.mxu0
      %v2710 = vadd.f32 0.0, %v2709
      %v2711 = vpop.f32.mrf.mxu0
      %v2712 = vadd.f32 0.0, %v2711
      %2713 = vmatmul.bf16.gmra.mxu0 %v2577
      %v2714 = vpop.f32.mrf.mxu0
      %v2715 = vadd.f32 0.0, %v2714
      %v2716 = vpop.f32.mrf.mxu0
      %v2717 = vadd.f32 0.0, %v2716
      %2718 = vmatmul.bf16.gmra.mxu0 %v2578
      %v2719 = vpop.f32.mrf.mxu0
      %v2720 = vadd.f32 0.0, %v2719
      %v2721 = vpop.f32.mrf.mxu0
      %v2722 = vadd.f32 0.0, %v2721
      %2723 = vmatmul.bf16.gmra.mxu0 %v2579
      %v2724 = vpop.f32.mrf.mxu0
      %v2725 = vadd.f32 0.0, %v2724
      %v2726 = vpop.f32.mrf.mxu0
      %v2727 = vadd.f32 0.0, %v2726
      %2728 = vmatmul.bf16.gmra.mxu0 %v2580
      %v2729 = vpop.f32.mrf.mxu0
      %v2730 = vadd.f32 0.0, %v2729
      %v2731 = vpop.f32.mrf.mxu0
      %v2732 = vadd.f32 0.0, %v2731
      %2733 = vdwg.mxu0
      %v2734 = vadd.f32 %v2420, %v2655
      %v2735 = vadd.f32 %v2421, %v2657
      %v2736 = vadd.f32 %v2422, %v2660
      %v2737 = vadd.f32 %v2423, %v2662
      %v2738 = vadd.f32 %v2424, %v2665
      %v2739 = vadd.f32 %v2425, %v2667
      %v2740 = vadd.f32 %v2426, %v2670
      %v2741 = vadd.f32 %v2427, %v2672
      %v2742 = vadd.f32 %v2428, %v2675
      %v2743 = vadd.f32 %v2429, %v2677
      %v2744 = vadd.f32 %v2430, %v2680
      %v2745 = vadd.f32 %v2431, %v2682
      %v2746 = vadd.f32 %v2432, %v2685
      %v2747 = vadd.f32 %v2433, %v2687
      %v2748 = vadd.f32 %v2434, %v2690
      %v2749 = vadd.f32 %v2435, %v2692
      %v2750 = vadd.f32 %v2436, %v2695
      %v2751 = vadd.f32 %v2437, %v2697
      %v2752 = vadd.f32 %v2438, %v2700
      %v2753 = vadd.f32 %v2439, %v2702
      %v2754 = vadd.f32 %v2440, %v2705
      %v2755 = vadd.f32 %v2441, %v2707
      %v2756 = vadd.f32 %v2442, %v2710
      %v2757 = vadd.f32 %v2443, %v2712
      %v2758 = vadd.f32 %v2444, %v2715
      %v2759 = vadd.f32 %v2445, %v2717
      %v2760 = vadd.f32 %v2446, %v2720
      %v2761 = vadd.f32 %v2447, %v2722
      %v2762 = vadd.f32 %v2448, %v2725
      %v2763 = vadd.f32 %v2449, %v2727
      %v2764 = vadd.f32 %v2450, %v2730
      %v2765 = vadd.f32 %v2451, %v2732
      %v2766 = vld [vmem:[%s906] sm:$0xf]
      %v2767 = vld [vmem:[%s906 + $0x4] sm:$0xf]
      %v2768 = vld [vmem:[%s906 + $0x8] sm:$0x1]
      %v2769 = vld [vmem:[%s906 + $0xc] sm:$0xf]
      %v2770 = vld [vmem:[%s906 + $0x10] sm:$0xf]
      %v2771 = vld [vmem:[%s906 + $0x14] sm:$0x1]
      %v2772 = vld [vmem:[%s906 + $0x18] sm:$0xf]
      %v2773 = vld [vmem:[%s906 + $0x1c] sm:$0xf]
      %v2774 = vld [vmem:[%s906 + $0x20] sm:$0x1]
      %v2775 = vld [vmem:[%s906 + $0x24] sm:$0xf]
      %v2776 = vld [vmem:[%s906 + $0x28] sm:$0xf]
      %v2777 = vld [vmem:[%s906 + $0x2c] sm:$0x1]
      %v2778 = vld [vmem:[%s906 + $0x30] sm:$0xf]
      %v2779 = vld [vmem:[%s906 + $0x34] sm:$0xf]
      %v2780 = vld [vmem:[%s906 + $0x38] sm:$0x1]
      %v2781 = vld [vmem:[%s906 + $0x3c] sm:$0xf]
      %v2782 = vld [vmem:[%s906 + $0x40] sm:$0xf]
      %v2783 = vld [vmem:[%s906 + $0x44] sm:$0x1]
      %v2784 = vld [vmem:[%s906 + $0x48] sm:$0xf]
      %v2785 = vld [vmem:[%s906 + $0x4c] sm:$0xf]
      %v2786 = vld [vmem:[%s906 + $0x50] sm:$0x1]
      %v2787 = vld [vmem:[%s906 + $0x54] sm:$0xf]
      %v2788 = vld [vmem:[%s906 + $0x58] sm:$0xf]
      %v2789 = vld [vmem:[%s906 + $0x5c] sm:$0x1]
      %v2790 = vld [vmem:[%s906 + $0x60] sm:$0xf]
      %v2791 = vld [vmem:[%s906 + $0x64] sm:$0xf]
      %v2792 = vld [vmem:[%s906 + $0x68] sm:$0x1]
      %v2793 = vld [vmem:[%s906 + $0x6c] sm:$0xf]
      %v2794 = vld [vmem:[%s906 + $0x70] sm:$0xf]
      %v2795 = vld [vmem:[%s906 + $0x74] sm:$0x1]
      %v2796 = vld [vmem:[%s906 + $0x78] sm:$0xf]
      %v2797 = vld [vmem:[%s906 + $0x7c] sm:$0xf]
      %v2798 = vld [vmem:[%s906 + $0x80] sm:$0x1]
      %v2799 = vld [vmem:[%s906 + $0x84] sm:$0xf]
      %v2800 = vld [vmem:[%s906 + $0x88] sm:$0xf]
      %v2801 = vld [vmem:[%s906 + $0x8c] sm:$0x1]
      %v2802 = vld [vmem:[%s906 + $0x90] sm:$0xf]
      %v2803 = vld [vmem:[%s906 + $0x94] sm:$0xf]
      %v2804 = vld [vmem:[%s906 + $0x98] sm:$0x1]
      %v2805 = vld [vmem:[%s906 + $0x9c] sm:$0xf]
      %v2806 = vld [vmem:[%s906 + $0xa0] sm:$0xf]
      %v2807 = vld [vmem:[%s906 + $0xa4] sm:$0x1]
      %v2808 = vld [vmem:[%s906 + $0xa8] sm:$0xf]
      %v2809 = vld [vmem:[%s906 + $0xac] sm:$0xf]
      %v2810 = vld [vmem:[%s906 + $0xb0] sm:$0x1]
      %v2811 = vld [vmem:[%s906 + $0xb4] sm:$0xf]
      %v2812 = vld [vmem:[%s906 + $0xb8] sm:$0xf]
      %v2813 = vld [vmem:[%s906 + $0xbc] sm:$0x1]
      %v2815 = vshrl.u32 %v2766, 16
      %v2817 = vrot.slane %v2815, 4
      %v2818 = vshll.u32 %v2766, 16
      %v2820 = vrot.slane %v2818, 5
      %v2821 = vor.u32 %v2817, %v2820
      %v2822 = vrot.slane %v2821, 4
      %v2824 = vshll.u32 %v2767, 16
      %v2826 = vrot.slane %v2824, 5
      %v2827 = vsel %vm1388, %v2822, %v2826
      %v2828 = vshrl.u32 %v2767, 16
      %v2830 = vrot.slane %v2828, 4
      %v2831 = vor.u32 %v2830, %v2826
      %v2832 = vrot.slane %v2831, 4
      %v2834 = vshll.u32 %v2768, 16
      %v2836 = vrot.slane %v2834, 5
      %v2837 = vsel %vm1388, %v2832, %v2836
      %v2839 = vshrl.u32 %v2769, 16
      %v2841 = vrot.slane %v2839, 4
      %v2842 = vshll.u32 %v2769, 16
      %v2844 = vrot.slane %v2842, 5
      %v2845 = vor.u32 %v2841, %v2844
      %v2846 = vrot.slane %v2845, 4
      %v2848 = vshll.u32 %v2770, 16
      %v2850 = vrot.slane %v2848, 5
      %v2851 = vsel %vm1388, %v2846, %v2850
      %v2852 = vshrl.u32 %v2770, 16
      %v2854 = vrot.slane %v2852, 4
      %v2855 = vor.u32 %v2854, %v2850
      %v2856 = vrot.slane %v2855, 4
      %v2858 = vshll.u32 %v2771, 16
      %v2860 = vrot.slane %v2858, 5
      %v2861 = vsel %vm1388, %v2856, %v2860
      %v2863 = vshrl.u32 %v2772, 16
      %v2865 = vrot.slane %v2863, 4
      %v2866 = vshll.u32 %v2772, 16
      %v2868 = vrot.slane %v2866, 5
      %v2869 = vor.u32 %v2865, %v2868
      %v2870 = vrot.slane %v2869, 4
      %v2872 = vshll.u32 %v2773, 16
      %v2874 = vrot.slane %v2872, 5
      %v2875 = vsel %vm1388, %v2870, %v2874
      %v2876 = vshrl.u32 %v2773, 16
      %v2878 = vrot.slane %v2876, 4
      %v2879 = vor.u32 %v2878, %v2874
      %v2880 = vrot.slane %v2879, 4
      %v2882 = vshll.u32 %v2774, 16
      %v2884 = vrot.slane %v2882, 5
      %v2885 = vsel %vm1388, %v2880, %v2884
      %v2887 = vshrl.u32 %v2775, 16
      %v2889 = vrot.slane %v2887, 4
      %v2890 = vshll.u32 %v2775, 16
      %v2892 = vrot.slane %v2890, 5
      %v2893 = vor.u32 %v2889, %v2892
      %v2894 = vrot.slane %v2893, 4
      %v2896 = vshll.u32 %v2776, 16
      %v2898 = vrot.slane %v2896, 5
      %v2899 = vsel %vm1388, %v2894, %v2898
      %v2900 = vshrl.u32 %v2776, 16
      %v2902 = vrot.slane %v2900, 4
      %v2903 = vor.u32 %v2902, %v2898
      %v2904 = vrot.slane %v2903, 4
      %v2906 = vshll.u32 %v2777, 16
      %v2908 = vrot.slane %v2906, 5
      %v2909 = vsel %vm1388, %v2904, %v2908
      %v2911 = vshrl.u32 %v2778, 16
      %v2913 = vrot.slane %v2911, 4
      %v2914 = vshll.u32 %v2778, 16
      %v2916 = vrot.slane %v2914, 5
      %v2917 = vor.u32 %v2913, %v2916
      %v2918 = vrot.slane %v2917, 4
      %v2920 = vshll.u32 %v2779, 16
      %v2922 = vrot.slane %v2920, 5
      %v2923 = vsel %vm1388, %v2918, %v2922
      %v2924 = vshrl.u32 %v2779, 16
      %v2926 = vrot.slane %v2924, 4
      %v2927 = vor.u32 %v2926, %v2922
      %v2928 = vrot.slane %v2927, 4
      %v2930 = vshll.u32 %v2780, 16
      %v2932 = vrot.slane %v2930, 5
      %v2933 = vsel %vm1388, %v2928, %v2932
      %v2935 = vshrl.u32 %v2781, 16
      %v2937 = vrot.slane %v2935, 4
      %v2938 = vshll.u32 %v2781, 16
      %v2940 = vrot.slane %v2938, 5
      %v2941 = vor.u32 %v2937, %v2940
      %v2942 = vrot.slane %v2941, 4
      %v2944 = vshll.u32 %v2782, 16
      %v2946 = vrot.slane %v2944, 5
      %v2947 = vsel %vm1388, %v2942, %v2946
      %v2948 = vshrl.u32 %v2782, 16
      %v2950 = vrot.slane %v2948, 4
      %v2951 = vor.u32 %v2950, %v2946
      %v2952 = vrot.slane %v2951, 4
      %v2954 = vshll.u32 %v2783, 16
      %v2956 = vrot.slane %v2954, 5
      %v2957 = vsel %vm1388, %v2952, %v2956
      %v2959 = vshrl.u32 %v2784, 16
      %v2961 = vrot.slane %v2959, 4
      %v2962 = vshll.u32 %v2784, 16
      %v2964 = vrot.slane %v2962, 5
      %v2965 = vor.u32 %v2961, %v2964
      %v2966 = vrot.slane %v2965, 4
      %v2968 = vshll.u32 %v2785, 16
      %v2970 = vrot.slane %v2968, 5
      %v2971 = vsel %vm1388, %v2966, %v2970
      %v2972 = vshrl.u32 %v2785, 16
      %v2974 = vrot.slane %v2972, 4
      %v2975 = vor.u32 %v2974, %v2970
      %v2976 = vrot.slane %v2975, 4
      %v2978 = vshll.u32 %v2786, 16
      %v2980 = vrot.slane %v2978, 5
      %v2981 = vsel %vm1388, %v2976, %v2980
      %v2983 = vshrl.u32 %v2787, 16
      %v2985 = vrot.slane %v2983, 4
      %v2986 = vshll.u32 %v2787, 16
      %v2988 = vrot.slane %v2986, 5
      %v2989 = vor.u32 %v2985, %v2988
      %v2990 = vrot.slane %v2989, 4
      %v2992 = vshll.u32 %v2788, 16
      %v2994 = vrot.slane %v2992, 5
      %v2995 = vsel %vm1388, %v2990, %v2994
      %v2996 = vshrl.u32 %v2788, 16
      %v2998 = vrot.slane %v2996, 4
      %v2999 = vor.u32 %v2998, %v2994
      %v3000 = vrot.slane %v2999, 4
      %v3002 = vshll.u32 %v2789, 16
      %v3004 = vrot.slane %v3002, 5
      %v3005 = vsel %vm1388, %v3000, %v3004
      %v3007 = vshrl.u32 %v2790, 16
      %v3009 = vrot.slane %v3007, 4
      %v3010 = vshll.u32 %v2790, 16
      %v3012 = vrot.slane %v3010, 5
      %v3013 = vor.u32 %v3009, %v3012
      %v3014 = vrot.slane %v3013, 4
      %v3016 = vshll.u32 %v2791, 16
      %v3018 = vrot.slane %v3016, 5
      %v3019 = vsel %vm1388, %v3014, %v3018
      %v3020 = vshrl.u32 %v2791, 16
      %v3022 = vrot.slane %v3020, 4
      %v3023 = vor.u32 %v3022, %v3018
      %v3024 = vrot.slane %v3023, 4
      %v3026 = vshll.u32 %v2792, 16
      %v3028 = vrot.slane %v3026, 5
      %v3029 = vsel %vm1388, %v3024, %v3028
      %v3031 = vshrl.u32 %v2793, 16
      %v3033 = vrot.slane %v3031, 4
      %v3034 = vshll.u32 %v2793, 16
      %v3036 = vrot.slane %v3034, 5
      %v3037 = vor.u32 %v3033, %v3036
      %v3038 = vrot.slane %v3037, 4
      %v3040 = vshll.u32 %v2794, 16
      %v3042 = vrot.slane %v3040, 5
      %v3043 = vsel %vm1388, %v3038, %v3042
      %v3044 = vshrl.u32 %v2794, 16
      %v3046 = vrot.slane %v3044, 4
      %v3047 = vor.u32 %v3046, %v3042
      %v3048 = vrot.slane %v3047, 4
      %v3050 = vshll.u32 %v2795, 16
      %v3052 = vrot.slane %v3050, 5
      %v3053 = vsel %vm1388, %v3048, %v3052
      %v3055 = vshrl.u32 %v2796, 16
      %v3057 = vrot.slane %v3055, 4
      %v3058 = vshll.u32 %v2796, 16
      %v3060 = vrot.slane %v3058, 5
      %v3061 = vor.u32 %v3057, %v3060
      %v3062 = vrot.slane %v3061, 4
      %v3064 = vshll.u32 %v2797, 16
      %v3066 = vrot.slane %v3064, 5
      %v3067 = vsel %vm1388, %v3062, %v3066
      %v3068 = vshrl.u32 %v2797, 16
      %v3070 = vrot.slane %v3068, 4
      %v3071 = vor.u32 %v3070, %v3066
      %v3072 = vrot.slane %v3071, 4
      %v3074 = vshll.u32 %v2798, 16
      %v3076 = vrot.slane %v3074, 5
      %v3077 = vsel %vm1388, %v3072, %v3076
      %v3079 = vshrl.u32 %v2799, 16
      %v3081 = vrot.slane %v3079, 4
      %v3082 = vshll.u32 %v2799, 16
      %v3084 = vrot.slane %v3082, 5
      %v3085 = vor.u32 %v3081, %v3084
      %v3086 = vrot.slane %v3085, 4
      %v3088 = vshll.u32 %v2800, 16
      %v3090 = vrot.slane %v3088, 5
      %v3091 = vsel %vm1388, %v3086, %v3090
      %v3092 = vshrl.u32 %v2800, 16
      %v3094 = vrot.slane %v3092, 4
      %v3095 = vor.u32 %v3094, %v3090
      %v3096 = vrot.slane %v3095, 4
      %v3098 = vshll.u32 %v2801, 16
      %v3100 = vrot.slane %v3098, 5
      %v3101 = vsel %vm1388, %v3096, %v3100
      %v3103 = vshrl.u32 %v2802, 16
      %v3105 = vrot.slane %v3103, 4
      %v3106 = vshll.u32 %v2802, 16
      %v3108 = vrot.slane %v3106, 5
      %v3109 = vor.u32 %v3105, %v3108
      %v3110 = vrot.slane %v3109, 4
      %v3112 = vshll.u32 %v2803, 16
      %v3114 = vrot.slane %v3112, 5
      %v3115 = vsel %vm1388, %v3110, %v3114
      %v3116 = vshrl.u32 %v2803, 16
      %v3118 = vrot.slane %v3116, 4
      %v3119 = vor.u32 %v3118, %v3114
      %v3120 = vrot.slane %v3119, 4
      %v3122 = vshll.u32 %v2804, 16
      %v3124 = vrot.slane %v3122, 5
      %v3125 = vsel %vm1388, %v3120, %v3124
      %v3127 = vshrl.u32 %v2805, 16
      %v3129 = vrot.slane %v3127, 4
      %v3130 = vshll.u32 %v2805, 16
      %v3132 = vrot.slane %v3130, 5
      %v3133 = vor.u32 %v3129, %v3132
      %v3134 = vrot.slane %v3133, 4
      %v3136 = vshll.u32 %v2806, 16
      %v3138 = vrot.slane %v3136, 5
      %v3139 = vsel %vm1388, %v3134, %v3138
      %v3140 = vshrl.u32 %v2806, 16
      %v3142 = vrot.slane %v3140, 4
      %v3143 = vor.u32 %v3142, %v3138
      %v3144 = vrot.slane %v3143, 4
      %v3146 = vshll.u32 %v2807, 16
      %v3148 = vrot.slane %v3146, 5
      %v3149 = vsel %vm1388, %v3144, %v3148
      %v3151 = vshrl.u32 %v2808, 16
      %v3153 = vrot.slane %v3151, 4
      %v3154 = vshll.u32 %v2808, 16
      %v3156 = vrot.slane %v3154, 5
      %v3157 = vor.u32 %v3153, %v3156
      %v3158 = vrot.slane %v3157, 4
      %v3160 = vshll.u32 %v2809, 16
      %v3162 = vrot.slane %v3160, 5
      %v3163 = vsel %vm1388, %v3158, %v3162
      %v3164 = vshrl.u32 %v2809, 16
      %v3166 = vrot.slane %v3164, 4
      %v3167 = vor.u32 %v3166, %v3162
      %v3168 = vrot.slane %v3167, 4
      %v3170 = vshll.u32 %v2810, 16
      %v3172 = vrot.slane %v3170, 5
      %v3173 = vsel %vm1388, %v3168, %v3172
      %v3175 = vshrl.u32 %v2811, 16
      %v3177 = vrot.slane %v3175, 4
      %v3178 = vshll.u32 %v2811, 16
      %v3180 = vrot.slane %v3178, 5
      %v3181 = vor.u32 %v3177, %v3180
      %v3182 = vrot.slane %v3181, 4
      %v3184 = vshll.u32 %v2812, 16
      %v3186 = vrot.slane %v3184, 5
      %v3187 = vsel %vm1388, %v3182, %v3186
      %v3188 = vshrl.u32 %v2812, 16
      %v3190 = vrot.slane %v3188, 4
      %v3191 = vor.u32 %v3190, %v3186
      %v3192 = vrot.slane %v3191, 4
      %v3194 = vshll.u32 %v2813, 16
      %v3196 = vrot.slane %v3194, 5
      %v3197 = vsel %vm1388, %v3192, %v3196
      %s3198 = scalar_lea.vmem %s1, 256
      %v3199 = vld [vmem:[%s3198] sm:$0xf]
      %v3200 = vld [vmem:[%s3198 + $0x4] sm:$0xf]
      %v3201 = vld [vmem:[%s3198 + $0x8] sm:$0xf]
      %v3202 = vld [vmem:[%s3198 + $0xc] sm:$0xf]
      %v3203 = vld [vmem:[%s3198 + $0x10] sm:$0xf]
      %v3204 = vld [vmem:[%s3198 + $0x14] sm:$0xf]
      %v3205 = vld [vmem:[%s3198 + $0x18] sm:$0xf]
      %v3206 = vld [vmem:[%s3198 + $0x1c] sm:$0xf]
      %v3207 = vld [vmem:[%s3198 + $0x20] sm:$0xf]
      %v3208 = vld [vmem:[%s3198 + $0x24] sm:$0xf]
      %v3209 = vld [vmem:[%s3198 + $0x28] sm:$0xf]
      %v3210 = vld [vmem:[%s3198 + $0x2c] sm:$0xf]
      %v3211 = vld [vmem:[%s3198 + $0x30] sm:$0xf]
      %v3212 = vld [vmem:[%s3198 + $0x34] sm:$0xf]
      %v3213 = vld [vmem:[%s3198 + $0x38] sm:$0xf]
      %v3214 = vld [vmem:[%s3198 + $0x3c] sm:$0xf]
      %v3215 = vunpack.c.l.b16 %v2827
      %v3216 = vunpack.c.l.b16 %v2837
      %v3217 = vunpack.c.l.b16 %v2851
      %v3218 = vunpack.c.l.b16 %v2861
      %v3219 = vunpack.c.l.b16 %v2875
      %v3220 = vunpack.c.l.b16 %v2885
      %v3221 = vunpack.c.l.b16 %v2899
      %v3222 = vunpack.c.l.b16 %v2909
      %v3223 = vunpack.c.l.b16 %v2923
      %v3224 = vunpack.c.l.b16 %v2933
      %v3225 = vunpack.c.l.b16 %v2947
      %v3226 = vunpack.c.l.b16 %v2957
      %v3227 = vunpack.c.l.b16 %v2971
      %v3228 = vunpack.c.l.b16 %v2981
      %v3229 = vunpack.c.l.b16 %v2995
      %v3230 = vunpack.c.l.b16 %v3005
      %v3231 = vunpack.c.l.b16 %v3019
      %v3232 = vunpack.c.l.b16 %v3029
      %v3233 = vunpack.c.l.b16 %v3043
      %v3234 = vunpack.c.l.b16 %v3053
      %v3235 = vunpack.c.l.b16 %v3067
      %v3236 = vunpack.c.l.b16 %v3077
      %v3237 = vunpack.c.l.b16 %v3091
      %v3238 = vunpack.c.l.b16 %v3101
      %v3239 = vunpack.c.l.b16 %v3115
      %v3240 = vunpack.c.l.b16 %v3125
      %v3241 = vunpack.c.l.b16 %v3139
      %v3242 = vunpack.c.l.b16 %v3149
      %v3243 = vunpack.c.l.b16 %v3163
      %v3244 = vunpack.c.l.b16 %v3173
      %v3245 = vunpack.c.l.b16 %v3187
      %v3246 = vunpack.c.l.b16 %v3197
      %v3247 = vpack.c.b16 %v3216, %v3215
      %v3248 = vpack.c.b16 %v3218, %v3217
      %v3249 = vpack.c.b16 %v3220, %v3219
      %v3250 = vpack.c.b16 %v3222, %v3221
      %v3251 = vpack.c.b16 %v3224, %v3223
      %v3252 = vpack.c.b16 %v3226, %v3225
      %v3253 = vpack.c.b16 %v3228, %v3227
      %v3254 = vpack.c.b16 %v3230, %v3229
      %v3255 = vpack.c.b16 %v3232, %v3231
      %v3256 = vpack.c.b16 %v3234, %v3233
      %v3257 = vpack.c.b16 %v3236, %v3235
      %v3258 = vpack.c.b16 %v3238, %v3237
      %v3259 = vpack.c.b16 %v3240, %v3239
      %v3260 = vpack.c.b16 %v3242, %v3241
      %v3261 = vpack.c.b16 %v3244, %v3243
      %v3262 = vpack.c.b16 %v3246, %v3245
      %v3295 = vunpack.c.l.b16 %v3199
      %v3296 = vunpack.c.l.b16 %v3200
      %v3297 = vunpack.c.l.b16 %v3201
      %v3298 = vunpack.c.l.b16 %v3202
      %v3299 = vunpack.c.l.b16 %v3203
      %v3300 = vunpack.c.l.b16 %v3204
      %v3301 = vunpack.c.l.b16 %v3205
      %v3302 = vunpack.c.l.b16 %v3206
      %v3303 = vunpack.c.l.b16 %v3207
      %v3304 = vunpack.c.l.b16 %v3208
      %v3305 = vunpack.c.l.b16 %v3209
      %v3306 = vunpack.c.l.b16 %v3210
      %v3307 = vunpack.c.l.b16 %v3211
      %v3308 = vunpack.c.l.b16 %v3212
      %v3309 = vunpack.c.l.b16 %v3213
      %v3310 = vunpack.c.l.b16 %v3214
      %v3311 = vpack.c.b16 %v3296, %v3295
      %v3312 = vpack.c.b16 %v3298, %v3297
      %v3313 = vpack.c.b16 %v3300, %v3299
      %v3314 = vpack.c.b16 %v3302, %v3301
      %v3315 = vpack.c.b16 %v3304, %v3303
      %v3316 = vpack.c.b16 %v3306, %v3305
      %v3317 = vpack.c.b16 %v3308, %v3307
      %v3318 = vpack.c.b16 %v3310, %v3309
      %3327 = vmatpush.bf16.msra.mxu0 %v3318
      %3328 = vmatpush.bf16.msra.mxu0 %v3317
      %3329 = vmatpush.bf16.msra.mxu0 %v3316
      %3330 = vmatpush.bf16.msra.mxu0 %v3315
      %3331 = vmatpush.bf16.msra.mxu0 %v3314
      %3332 = vmatpush.bf16.msra.mxu0 %v3313
      %3333 = vmatpush.bf16.msra.mxu0 %v3312
      %3334 = vmatpush.bf16.msra.mxu0 %v3311
      %3335 = vmatmul.bf16.gmra.mxu0 %v3247
      %v3336 = vpop.f32.mrf.mxu0
      %v3337 = vadd.f32 0.0, %v3336
      %v3338 = vpop.f32.mrf.mxu0
      %v3339 = vadd.f32 0.0, %v3338
      %3340 = vmatmul.bf16.gmra.mxu0 %v3248
      %v3341 = vpop.f32.mrf.mxu0
      %v3342 = vadd.f32 0.0, %v3341
      %v3343 = vpop.f32.mrf.mxu0
      %v3344 = vadd.f32 0.0, %v3343
      %3345 = vmatmul.bf16.gmra.mxu0 %v3249
      %v3346 = vpop.f32.mrf.mxu0
      %v3347 = vadd.f32 0.0, %v3346
      %v3348 = vpop.f32.mrf.mxu0
      %v3349 = vadd.f32 0.0, %v3348
      %3350 = vmatmul.bf16.gmra.mxu0 %v3250
      %v3351 = vpop.f32.mrf.mxu0
      %v3352 = vadd.f32 0.0, %v3351
      %v3353 = vpop.f32.mrf.mxu0
      %v3354 = vadd.f32 0.0, %v3353
      %3355 = vmatmul.bf16.gmra.mxu0 %v3251
      %v3356 = vpop.f32.mrf.mxu0
      %v3357 = vadd.f32 0.0, %v3356
      %v3358 = vpop.f32.mrf.mxu0
      %v3359 = vadd.f32 0.0, %v3358
      %3360 = vmatmul.bf16.gmra.mxu0 %v3252
      %v3361 = vpop.f32.mrf.mxu0
      %v3362 = vadd.f32 0.0, %v3361
      %v3363 = vpop.f32.mrf.mxu0
      %v3364 = vadd.f32 0.0, %v3363
      %3365 = vmatmul.bf16.gmra.mxu0 %v3253
      %v3366 = vpop.f32.mrf.mxu0
      %v3367 = vadd.f32 0.0, %v3366
      %v3368 = vpop.f32.mrf.mxu0
      %v3369 = vadd.f32 0.0, %v3368
      %3370 = vmatmul.bf16.gmra.mxu0 %v3254
      %v3371 = vpop.f32.mrf.mxu0
      %v3372 = vadd.f32 0.0, %v3371
      %v3373 = vpop.f32.mrf.mxu0
      %v3374 = vadd.f32 0.0, %v3373
      %3375 = vmatmul.bf16.gmra.mxu0 %v3255
      %v3376 = vpop.f32.mrf.mxu0
      %v3377 = vadd.f32 0.0, %v3376
      %v3378 = vpop.f32.mrf.mxu0
      %v3379 = vadd.f32 0.0, %v3378
      %3380 = vmatmul.bf16.gmra.mxu0 %v3256
      %v3381 = vpop.f32.mrf.mxu0
      %v3382 = vadd.f32 0.0, %v3381
      %v3383 = vpop.f32.mrf.mxu0
      %v3384 = vadd.f32 0.0, %v3383
      %3385 = vmatmul.bf16.gmra.mxu0 %v3257
      %v3386 = vpop.f32.mrf.mxu0
      %v3387 = vadd.f32 0.0, %v3386
      %v3388 = vpop.f32.mrf.mxu0
      %v3389 = vadd.f32 0.0, %v3388
      %3390 = vmatmul.bf16.gmra.mxu0 %v3258
      %v3391 = vpop.f32.mrf.mxu0
      %v3392 = vadd.f32 0.0, %v3391
      %v3393 = vpop.f32.mrf.mxu0
      %v3394 = vadd.f32 0.0, %v3393
      %3395 = vmatmul.bf16.gmra.mxu0 %v3259
      %v3396 = vpop.f32.mrf.mxu0
      %v3397 = vadd.f32 0.0, %v3396
      %v3398 = vpop.f32.mrf.mxu0
      %v3399 = vadd.f32 0.0, %v3398
      %3400 = vmatmul.bf16.gmra.mxu0 %v3260
      %v3401 = vpop.f32.mrf.mxu0
      %v3402 = vadd.f32 0.0, %v3401
      %v3403 = vpop.f32.mrf.mxu0
      %v3404 = vadd.f32 0.0, %v3403
      %3405 = vmatmul.bf16.gmra.mxu0 %v3261
      %v3406 = vpop.f32.mrf.mxu0
      %v3407 = vadd.f32 0.0, %v3406
      %v3408 = vpop.f32.mrf.mxu0
      %v3409 = vadd.f32 0.0, %v3408
      %3410 = vmatmul.bf16.gmra.mxu0 %v3262
      %v3411 = vpop.f32.mrf.mxu0
      %v3412 = vadd.f32 0.0, %v3411
      %v3413 = vpop.f32.mrf.mxu0
      %v3414 = vadd.f32 0.0, %v3413
      %3415 = vdwg.mxu0
      %v3416 = vadd.f32 %v2734, %v3337
      %v3417 = vadd.f32 %v2735, %v3339
      %v3418 = vadd.f32 %v2736, %v3342
      %v3419 = vadd.f32 %v2737, %v3344
      %v3420 = vadd.f32 %v2738, %v3347
      %v3421 = vadd.f32 %v2739, %v3349
      %v3422 = vadd.f32 %v2740, %v3352
      %v3423 = vadd.f32 %v2741, %v3354
      %v3424 = vadd.f32 %v2742, %v3357
      %v3425 = vadd.f32 %v2743, %v3359
      %v3426 = vadd.f32 %v2744, %v3362
      %v3427 = vadd.f32 %v2745, %v3364
      %v3428 = vadd.f32 %v2746, %v3367
      %v3429 = vadd.f32 %v2747, %v3369
      %v3430 = vadd.f32 %v2748, %v3372
      %v3431 = vadd.f32 %v2749, %v3374
      %v3432 = vadd.f32 %v2750, %v3377
      %v3433 = vadd.f32 %v2751, %v3379
      %v3434 = vadd.f32 %v2752, %v3382
      %v3435 = vadd.f32 %v2753, %v3384
      %v3436 = vadd.f32 %v2754, %v3387
      %v3437 = vadd.f32 %v2755, %v3389
      %v3438 = vadd.f32 %v2756, %v3392
      %v3439 = vadd.f32 %v2757, %v3394
      %v3440 = vadd.f32 %v2758, %v3397
      %v3441 = vadd.f32 %v2759, %v3399
      %v3442 = vadd.f32 %v2760, %v3402
      %v3443 = vadd.f32 %v2761, %v3404
      %v3444 = vadd.f32 %v2762, %v3407
      %v3445 = vadd.f32 %v2763, %v3409
      %v3446 = vadd.f32 %v2764, %v3412
      %v3447 = vadd.f32 %v2765, %v3414
      %v3448 = vld [vmem:[%s906] sm:$0xe]
      %v3449 = vld [vmem:[%s906 + $0xc] sm:$0xe]
      %v3450 = vld [vmem:[%s906 + $0x18] sm:$0xe]
      %v3451 = vld [vmem:[%s906 + $0x24] sm:$0xe]
      %v3452 = vld [vmem:[%s906 + $0x30] sm:$0xe]
      %v3453 = vld [vmem:[%s906 + $0x3c] sm:$0xe]
      %v3454 = vld [vmem:[%s906 + $0x48] sm:$0xe]
      %v3455 = vld [vmem:[%s906 + $0x54] sm:$0xe]
      %v3456 = vld [vmem:[%s906 + $0x60] sm:$0xe]
      %v3457 = vld [vmem:[%s906 + $0x6c] sm:$0xe]
      %v3458 = vld [vmem:[%s906 + $0x78] sm:$0xe]
      %v3459 = vld [vmem:[%s906 + $0x84] sm:$0xe]
      %v3460 = vld [vmem:[%s906 + $0x90] sm:$0xe]
      %v3461 = vld [vmem:[%s906 + $0x9c] sm:$0xe]
      %v3462 = vld [vmem:[%s906 + $0xa8] sm:$0xe]
      %v3463 = vld [vmem:[%s906 + $0xb4] sm:$0xe]
      %v3512 = vrot.slane %v3448, 5
      %v3513 = vrot.slane %v3512, 4
      %v3514 = vrot.slane %v2767, 5
      %v3515 = vsel %vm2089, %v3513, %v3514
      %v3516 = vrot.slane %v3514, 4
      %v3517 = vrot.slane %v2768, 5
      %v3518 = vsel %vm2089, %v3516, %v3517
      %v3519 = vrot.slane %v3449, 5
      %v3520 = vrot.slane %v3519, 4
      %v3521 = vrot.slane %v2770, 5
      %v3522 = vsel %vm2089, %v3520, %v3521
      %v3523 = vrot.slane %v3521, 4
      %v3524 = vrot.slane %v2771, 5
      %v3525 = vsel %vm2089, %v3523, %v3524
      %v3526 = vrot.slane %v3450, 5
      %v3527 = vrot.slane %v3526, 4
      %v3528 = vrot.slane %v2773, 5
      %v3529 = vsel %vm2089, %v3527, %v3528
      %v3530 = vrot.slane %v3528, 4
      %v3531 = vrot.slane %v2774, 5
      %v3532 = vsel %vm2089, %v3530, %v3531
      %v3533 = vrot.slane %v3451, 5
      %v3534 = vrot.slane %v3533, 4
      %v3535 = vrot.slane %v2776, 5
      %v3536 = vsel %vm2089, %v3534, %v3535
      %v3537 = vrot.slane %v3535, 4
      %v3538 = vrot.slane %v2777, 5
      %v3539 = vsel %vm2089, %v3537, %v3538
      %v3540 = vrot.slane %v3452, 5
      %v3541 = vrot.slane %v3540, 4
      %v3542 = vrot.slane %v2779, 5
      %v3543 = vsel %vm2089, %v3541, %v3542
      %v3544 = vrot.slane %v3542, 4
      %v3545 = vrot.slane %v2780, 5
      %v3546 = vsel %vm2089, %v3544, %v3545
      %v3547 = vrot.slane %v3453, 5
      %v3548 = vrot.slane %v3547, 4
      %v3549 = vrot.slane %v2782, 5
      %v3550 = vsel %vm2089, %v3548, %v3549
      %v3551 = vrot.slane %v3549, 4
      %v3552 = vrot.slane %v2783, 5
      %v3553 = vsel %vm2089, %v3551, %v3552
      %v3554 = vrot.slane %v3454, 5
      %v3555 = vrot.slane %v3554, 4
      %v3556 = vrot.slane %v2785, 5
      %v3557 = vsel %vm2089, %v3555, %v3556
      %v3558 = vrot.slane %v3556, 4
      %v3559 = vrot.slane %v2786, 5
      %v3560 = vsel %vm2089, %v3558, %v3559
      %v3561 = vrot.slane %v3455, 5
      %v3562 = vrot.slane %v3561, 4
      %v3563 = vrot.slane %v2788, 5
      %v3564 = vsel %vm2089, %v3562, %v3563
      %v3565 = vrot.slane %v3563, 4
      %v3566 = vrot.slane %v2789, 5
      %v3567 = vsel %vm2089, %v3565, %v3566
      %v3568 = vrot.slane %v3456, 5
      %v3569 = vrot.slane %v3568, 4
      %v3570 = vrot.slane %v2791, 5
      %v3571 = vsel %vm2089, %v3569, %v3570
      %v3572 = vrot.slane %v3570, 4
      %v3573 = vrot.slane %v2792, 5
      %v3574 = vsel %vm2089, %v3572, %v3573
      %v3575 = vrot.slane %v3457, 5
      %v3576 = vrot.slane %v3575, 4
      %v3577 = vrot.slane %v2794, 5
      %v3578 = vsel %vm2089, %v3576, %v3577
      %v3579 = vrot.slane %v3577, 4
      %v3580 = vrot.slane %v2795, 5
      %v3581 = vsel %vm2089, %v3579, %v3580
      %v3582 = vrot.slane %v3458, 5
      %v3583 = vrot.slane %v3582, 4
      %v3584 = vrot.slane %v2797, 5
      %v3585 = vsel %vm2089, %v3583, %v3584
      %v3586 = vrot.slane %v3584, 4
      %v3587 = vrot.slane %v2798, 5
      %v3588 = vsel %vm2089, %v3586, %v3587
      %v3589 = vrot.slane %v3459, 5
      %v3590 = vrot.slane %v3589, 4
      %v3591 = vrot.slane %v2800, 5
      %v3592 = vsel %vm2089, %v3590, %v3591
      %v3593 = vrot.slane %v3591, 4
      %v3594 = vrot.slane %v2801, 5
      %v3595 = vsel %vm2089, %v3593, %v3594
      %v3596 = vrot.slane %v3460, 5
      %v3597 = vrot.slane %v3596, 4
      %v3598 = vrot.slane %v2803, 5
      %v3599 = vsel %vm2089, %v3597, %v3598
      %v3600 = vrot.slane %v3598, 4
      %v3601 = vrot.slane %v2804, 5
      %v3602 = vsel %vm2089, %v3600, %v3601
      %v3603 = vrot.slane %v3461, 5
      %v3604 = vrot.slane %v3603, 4
      %v3605 = vrot.slane %v2806, 5
      %v3606 = vsel %vm2089, %v3604, %v3605
      %v3607 = vrot.slane %v3605, 4
      %v3608 = vrot.slane %v2807, 5
      %v3609 = vsel %vm2089, %v3607, %v3608
      %v3610 = vrot.slane %v3462, 5
      %v3611 = vrot.slane %v3610, 4
      %v3612 = vrot.slane %v2809, 5
      %v3613 = vsel %vm2089, %v3611, %v3612
      %v3614 = vrot.slane %v3612, 4
      %v3615 = vrot.slane %v2810, 5
      %v3616 = vsel %vm2089, %v3614, %v3615
      %v3617 = vrot.slane %v3463, 5
      %v3618 = vrot.slane %v3617, 4
      %v3619 = vrot.slane %v2812, 5
      %v3620 = vsel %vm2089, %v3618, %v3619
      %v3621 = vrot.slane %v3619, 4
      %v3622 = vrot.slane %v2813, 5
      %v3623 = vsel %vm2089, %v3621, %v3622
      %s3624 = scalar_lea.vmem %s1, 320
      %v3625 = vld [vmem:[%s3624] sm:$0xf]
      %v3626 = vld [vmem:[%s3624 + $0x4] sm:$0xf]
      %v3627 = vld [vmem:[%s3624 + $0x8] sm:$0xf]
      %v3628 = vld [vmem:[%s3624 + $0xc] sm:$0xf]
      %v3629 = vld [vmem:[%s3624 + $0x10] sm:$0xf]
      %v3630 = vld [vmem:[%s3624 + $0x14] sm:$0xf]
      %v3631 = vld [vmem:[%s3624 + $0x18] sm:$0xf]
      %v3632 = vld [vmem:[%s3624 + $0x1c] sm:$0xf]
      %v3633 = vld [vmem:[%s3624 + $0x20] sm:$0xf]
      %v3634 = vld [vmem:[%s3624 + $0x24] sm:$0xf]
      %v3635 = vld [vmem:[%s3624 + $0x28] sm:$0xf]
      %v3636 = vld [vmem:[%s3624 + $0x2c] sm:$0xf]
      %v3637 = vld [vmem:[%s3624 + $0x30] sm:$0xf]
      %v3638 = vld [vmem:[%s3624 + $0x34] sm:$0xf]
      %v3639 = vld [vmem:[%s3624 + $0x38] sm:$0xf]
      %v3640 = vld [vmem:[%s3624 + $0x3c] sm:$0xf]
      %v3641 = vunpack.c.l.b16 %v3515
      %v3642 = vunpack.c.l.b16 %v3518
      %v3643 = vunpack.c.l.b16 %v3522
      %v3644 = vunpack.c.l.b16 %v3525
      %v3645 = vunpack.c.l.b16 %v3529
      %v3646 = vunpack.c.l.b16 %v3532
      %v3647 = vunpack.c.l.b16 %v3536
      %v3648 = vunpack.c.l.b16 %v3539
      %v3649 = vunpack.c.l.b16 %v3543
      %v3650 = vunpack.c.l.b16 %v3546
      %v3651 = vunpack.c.l.b16 %v3550
      %v3652 = vunpack.c.l.b16 %v3553
      %v3653 = vunpack.c.l.b16 %v3557
      %v3654 = vunpack.c.l.b16 %v3560
      %v3655 = vunpack.c.l.b16 %v3564
      %v3656 = vunpack.c.l.b16 %v3567
      %v3657 = vunpack.c.l.b16 %v3571
      %v3658 = vunpack.c.l.b16 %v3574
      %v3659 = vunpack.c.l.b16 %v3578
      %v3660 = vunpack.c.l.b16 %v3581
      %v3661 = vunpack.c.l.b16 %v3585
      %v3662 = vunpack.c.l.b16 %v3588
      %v3663 = vunpack.c.l.b16 %v3592
      %v3664 = vunpack.c.l.b16 %v3595
      %v3665 = vunpack.c.l.b16 %v3599
      %v3666 = vunpack.c.l.b16 %v3602
      %v3667 = vunpack.c.l.b16 %v3606
      %v3668 = vunpack.c.l.b16 %v3609
      %v3669 = vunpack.c.l.b16 %v3613
      %v3670 = vunpack.c.l.b16 %v3616
      %v3671 = vunpack.c.l.b16 %v3620
      %v3672 = vunpack.c.l.b16 %v3623
      %v3673 = vpack.c.b16 %v3642, %v3641
      %v3674 = vpack.c.b16 %v3644, %v3643
      %v3675 = vpack.c.b16 %v3646, %v3645
      %v3676 = vpack.c.b16 %v3648, %v3647
      %v3677 = vpack.c.b16 %v3650, %v3649
      %v3678 = vpack.c.b16 %v3652, %v3651
      %v3679 = vpack.c.b16 %v3654, %v3653
      %v3680 = vpack.c.b16 %v3656, %v3655
      %v3681 = vpack.c.b16 %v3658, %v3657
      %v3682 = vpack.c.b16 %v3660, %v3659
      %v3683 = vpack.c.b16 %v3662, %v3661
      %v3684 = vpack.c.b16 %v3664, %v3663
      %v3685 = vpack.c.b16 %v3666, %v3665
      %v3686 = vpack.c.b16 %v3668, %v3667
      %v3687 = vpack.c.b16 %v3670, %v3669
      %v3688 = vpack.c.b16 %v3672, %v3671
      %v3721 = vunpack.c.l.b16 %v3625
      %v3722 = vunpack.c.l.b16 %v3626
      %v3723 = vunpack.c.l.b16 %v3627
      %v3724 = vunpack.c.l.b16 %v3628
      %v3725 = vunpack.c.l.b16 %v3629
      %v3726 = vunpack.c.l.b16 %v3630
      %v3727 = vunpack.c.l.b16 %v3631
      %v3728 = vunpack.c.l.b16 %v3632
      %v3729 = vunpack.c.l.b16 %v3633
      %v3730 = vunpack.c.l.b16 %v3634
      %v3731 = vunpack.c.l.b16 %v3635
      %v3732 = vunpack.c.l.b16 %v3636
      %v3733 = vunpack.c.l.b16 %v3637
      %v3734 = vunpack.c.l.b16 %v3638
      %v3735 = vunpack.c.l.b16 %v3639
      %v3736 = vunpack.c.l.b16 %v3640
      %v3737 = vpack.c.b16 %v3722, %v3721
      %v3738 = vpack.c.b16 %v3724, %v3723
      %v3739 = vpack.c.b16 %v3726, %v3725
      %v3740 = vpack.c.b16 %v3728, %v3727
      %v3741 = vpack.c.b16 %v3730, %v3729
      %v3742 = vpack.c.b16 %v3732, %v3731
      %v3743 = vpack.c.b16 %v3734, %v3733
      %v3744 = vpack.c.b16 %v3736, %v3735
      %3753 = vmatpush.bf16.msra.mxu0 %v3744
      %3754 = vmatpush.bf16.msra.mxu0 %v3743
      %3755 = vmatpush.bf16.msra.mxu0 %v3742
      %3756 = vmatpush.bf16.msra.mxu0 %v3741
      %3757 = vmatpush.bf16.msra.mxu0 %v3740
      %3758 = vmatpush.bf16.msra.mxu0 %v3739
      %3759 = vmatpush.bf16.msra.mxu0 %v3738
      %3760 = vmatpush.bf16.msra.mxu0 %v3737
      %3761 = vmatmul.bf16.gmra.mxu0 %v3673
      %v3762 = vpop.f32.mrf.mxu0
      %v3763 = vadd.f32 0.0, %v3762
      %v3764 = vpop.f32.mrf.mxu0
      %v3765 = vadd.f32 0.0, %v3764
      %3766 = vmatmul.bf16.gmra.mxu0 %v3674
      %v3767 = vpop.f32.mrf.mxu0
      %v3768 = vadd.f32 0.0, %v3767
      %v3769 = vpop.f32.mrf.mxu0
      %v3770 = vadd.f32 0.0, %v3769
      %3771 = vmatmul.bf16.gmra.mxu0 %v3675
      %v3772 = vpop.f32.mrf.mxu0
      %v3773 = vadd.f32 0.0, %v3772
      %v3774 = vpop.f32.mrf.mxu0
      %v3775 = vadd.f32 0.0, %v3774
      %3776 = vmatmul.bf16.gmra.mxu0 %v3676
      %v3777 = vpop.f32.mrf.mxu0
      %v3778 = vadd.f32 0.0, %v3777
      %v3779 = vpop.f32.mrf.mxu0
      %v3780 = vadd.f32 0.0, %v3779
      %3781 = vmatmul.bf16.gmra.mxu0 %v3677
      %v3782 = vpop.f32.mrf.mxu0
      %v3783 = vadd.f32 0.0, %v3782
      %v3784 = vpop.f32.mrf.mxu0
      %v3785 = vadd.f32 0.0, %v3784
      %3786 = vmatmul.bf16.gmra.mxu0 %v3678
      %v3787 = vpop.f32.mrf.mxu0
      %v3788 = vadd.f32 0.0, %v3787
      %v3789 = vpop.f32.mrf.mxu0
      %v3790 = vadd.f32 0.0, %v3789
      %3791 = vmatmul.bf16.gmra.mxu0 %v3679
      %v3792 = vpop.f32.mrf.mxu0
      %v3793 = vadd.f32 0.0, %v3792
      %v3794 = vpop.f32.mrf.mxu0
      %v3795 = vadd.f32 0.0, %v3794
      %3796 = vmatmul.bf16.gmra.mxu0 %v3680
      %v3797 = vpop.f32.mrf.mxu0
      %v3798 = vadd.f32 0.0, %v3797
      %v3799 = vpop.f32.mrf.mxu0
      %v3800 = vadd.f32 0.0, %v3799
      %3801 = vmatmul.bf16.gmra.mxu0 %v3681
      %v3802 = vpop.f32.mrf.mxu0
      %v3803 = vadd.f32 0.0, %v3802
      %v3804 = vpop.f32.mrf.mxu0
      %v3805 = vadd.f32 0.0, %v3804
      %3806 = vmatmul.bf16.gmra.mxu0 %v3682
      %v3807 = vpop.f32.mrf.mxu0
      %v3808 = vadd.f32 0.0, %v3807
      %v3809 = vpop.f32.mrf.mxu0
      %v3810 = vadd.f32 0.0, %v3809
      %3811 = vmatmul.bf16.gmra.mxu0 %v3683
      %v3812 = vpop.f32.mrf.mxu0
      %v3813 = vadd.f32 0.0, %v3812
      %v3814 = vpop.f32.mrf.mxu0
      %v3815 = vadd.f32 0.0, %v3814
      %3816 = vmatmul.bf16.gmra.mxu0 %v3684
      %v3817 = vpop.f32.mrf.mxu0
      %v3818 = vadd.f32 0.0, %v3817
      %v3819 = vpop.f32.mrf.mxu0
      %v3820 = vadd.f32 0.0, %v3819
      %3821 = vmatmul.bf16.gmra.mxu0 %v3685
      %v3822 = vpop.f32.mrf.mxu0
      %v3823 = vadd.f32 0.0, %v3822
      %v3824 = vpop.f32.mrf.mxu0
      %v3825 = vadd.f32 0.0, %v3824
      %3826 = vmatmul.bf16.gmra.mxu0 %v3686
      %v3827 = vpop.f32.mrf.mxu0
      %v3828 = vadd.f32 0.0, %v3827
      %v3829 = vpop.f32.mrf.mxu0
      %v3830 = vadd.f32 0.0, %v3829
      %3831 = vmatmul.bf16.gmra.mxu0 %v3687
      %v3832 = vpop.f32.mrf.mxu0
      %v3833 = vadd.f32 0.0, %v3832
      %v3834 = vpop.f32.mrf.mxu0
      %v3835 = vadd.f32 0.0, %v3834
      %3836 = vmatmul.bf16.gmra.mxu0 %v3688
      %v3837 = vpop.f32.mrf.mxu0
      %v3838 = vadd.f32 0.0, %v3837
      %v3839 = vpop.f32.mrf.mxu0
      %v3840 = vadd.f32 0.0, %v3839
      %3841 = vdwg.mxu0
      %v3842 = vadd.f32 %v3416, %v3763
      %v3843 = vadd.f32 %v3417, %v3765
      %v3844 = vadd.f32 %v3418, %v3768
      %v3845 = vadd.f32 %v3419, %v3770
      %v3846 = vadd.f32 %v3420, %v3773
      %v3847 = vadd.f32 %v3421, %v3775
      %v3848 = vadd.f32 %v3422, %v3778
      %v3849 = vadd.f32 %v3423, %v3780
      %v3850 = vadd.f32 %v3424, %v3783
      %v3851 = vadd.f32 %v3425, %v3785
      %v3852 = vadd.f32 %v3426, %v3788
      %v3853 = vadd.f32 %v3427, %v3790
      %v3854 = vadd.f32 %v3428, %v3793
      %v3855 = vadd.f32 %v3429, %v3795
      %v3856 = vadd.f32 %v3430, %v3798
      %v3857 = vadd.f32 %v3431, %v3800
      %v3858 = vadd.f32 %v3432, %v3803
      %v3859 = vadd.f32 %v3433, %v3805
      %v3860 = vadd.f32 %v3434, %v3808
      %v3861 = vadd.f32 %v3435, %v3810
      %v3862 = vadd.f32 %v3436, %v3813
      %v3863 = vadd.f32 %v3437, %v3815
      %v3864 = vadd.f32 %v3438, %v3818
      %v3865 = vadd.f32 %v3439, %v3820
      %v3866 = vadd.f32 %v3440, %v3823
      %v3867 = vadd.f32 %v3441, %v3825
      %v3868 = vadd.f32 %v3442, %v3828
      %v3869 = vadd.f32 %v3443, %v3830
      %v3870 = vadd.f32 %v3444, %v3833
      %v3871 = vadd.f32 %v3445, %v3835
      %v3872 = vadd.f32 %v3446, %v3838
      %v3873 = vadd.f32 %v3447, %v3840
      %s3874 = scalar_lea.vmem [#allocation2], 24
      %v3875 = vld [vmem:[%s3874] sm:$0xf]
      %v3876 = vld [vmem:[%s3874 + $0x4] sm:$0xf]
      %v3877 = vld [vmem:[%s3874 + $0xc] sm:$0xf]
      %v3878 = vld [vmem:[%s3874 + $0x10] sm:$0xf]
      %v3879 = vld [vmem:[%s3874 + $0x18] sm:$0xf]
      %v3880 = vld [vmem:[%s3874 + $0x1c] sm:$0xf]
      %v3881 = vld [vmem:[%s3874 + $0x24] sm:$0xf]
      %v3882 = vld [vmem:[%s3874 + $0x28] sm:$0xf]
      %v3883 = vld [vmem:[%s3874 + $0x30] sm:$0xf]
      %v3884 = vld [vmem:[%s3874 + $0x34] sm:$0xf]
      %v3885 = vld [vmem:[%s3874 + $0x3c] sm:$0xf]
      %v3886 = vld [vmem:[%s3874 + $0x40] sm:$0xf]
      %v3887 = vld [vmem:[%s3874 + $0x48] sm:$0xf]
      %v3888 = vld [vmem:[%s3874 + $0x4c] sm:$0xf]
      %v3889 = vld [vmem:[%s3874 + $0x54] sm:$0xf]
      %v3890 = vld [vmem:[%s3874 + $0x58] sm:$0xf]
      %v3891 = vld [vmem:[%s3874 + $0x60] sm:$0xf]
      %v3892 = vld [vmem:[%s3874 + $0x64] sm:$0xf]
      %v3893 = vld [vmem:[%s3874 + $0x6c] sm:$0xf]
      %v3894 = vld [vmem:[%s3874 + $0x70] sm:$0xf]
      %v3895 = vld [vmem:[%s3874 + $0x78] sm:$0xf]
      %v3896 = vld [vmem:[%s3874 + $0x7c] sm:$0xf]
      %v3897 = vld [vmem:[%s3874 + $0x84] sm:$0xf]
      %v3898 = vld [vmem:[%s3874 + $0x88] sm:$0xf]
      %v3899 = vld [vmem:[%s3874 + $0x90] sm:$0xf]
      %v3900 = vld [vmem:[%s3874 + $0x94] sm:$0xf]
      %v3901 = vld [vmem:[%s3874 + $0x9c] sm:$0xf]
      %v3902 = vld [vmem:[%s3874 + $0xa0] sm:$0xf]
      %v3903 = vld [vmem:[%s3874 + $0xa8] sm:$0xf]
      %v3904 = vld [vmem:[%s3874 + $0xac] sm:$0xf]
      %v3905 = vld [vmem:[%s3874 + $0xb4] sm:$0xf]
      %v3906 = vld [vmem:[%s3874 + $0xb8] sm:$0xf]
      %s3907 = scalar_lea.vmem %s1, 384
      %v3908 = vld [vmem:[%s3907] sm:$0xf]
      %v3909 = vld [vmem:[%s3907 + $0x4] sm:$0xf]
      %v3910 = vld [vmem:[%s3907 + $0x8] sm:$0xf]
      %v3911 = vld [vmem:[%s3907 + $0xc] sm:$0xf]
      %v3912 = vld [vmem:[%s3907 + $0x10] sm:$0xf]
      %v3913 = vld [vmem:[%s3907 + $0x14] sm:$0xf]
      %v3914 = vld [vmem:[%s3907 + $0x18] sm:$0xf]
      %v3915 = vld [vmem:[%s3907 + $0x1c] sm:$0xf]
      %v3916 = vld [vmem:[%s3907 + $0x20] sm:$0xf]
      %v3917 = vld [vmem:[%s3907 + $0x24] sm:$0xf]
      %v3918 = vld [vmem:[%s3907 + $0x28] sm:$0xf]
      %v3919 = vld [vmem:[%s3907 + $0x2c] sm:$0xf]
      %v3920 = vld [vmem:[%s3907 + $0x30] sm:$0xf]
      %v3921 = vld [vmem:[%s3907 + $0x34] sm:$0xf]
      %v3922 = vld [vmem:[%s3907 + $0x38] sm:$0xf]
      %v3923 = vld [vmem:[%s3907 + $0x3c] sm:$0xf]
      %v3956 = vunpack.c.l.b16 %v3875
      %v3957 = vunpack.c.l.b16 %v3876
      %v3958 = vunpack.c.l.b16 %v3877
      %v3959 = vunpack.c.l.b16 %v3878
      %v3960 = vunpack.c.l.b16 %v3879
      %v3961 = vunpack.c.l.b16 %v3880
      %v3962 = vunpack.c.l.b16 %v3881
      %v3963 = vunpack.c.l.b16 %v3882
      %v3964 = vunpack.c.l.b16 %v3883
      %v3965 = vunpack.c.l.b16 %v3884
      %v3966 = vunpack.c.l.b16 %v3885
      %v3967 = vunpack.c.l.b16 %v3886
      %v3968 = vunpack.c.l.b16 %v3887
      %v3969 = vunpack.c.l.b16 %v3888
      %v3970 = vunpack.c.l.b16 %v3889
      %v3971 = vunpack.c.l.b16 %v3890
      %v3972 = vunpack.c.l.b16 %v3891
      %v3973 = vunpack.c.l.b16 %v3892
      %v3974 = vunpack.c.l.b16 %v3893
      %v3975 = vunpack.c.l.b16 %v3894
      %v3976 = vunpack.c.l.b16 %v3895
      %v3977 = vunpack.c.l.b16 %v3896
      %v3978 = vunpack.c.l.b16 %v3897
      %v3979 = vunpack.c.l.b16 %v3898
      %v3980 = vunpack.c.l.b16 %v3899
      %v3981 = vunpack.c.l.b16 %v3900
      %v3982 = vunpack.c.l.b16 %v3901
      %v3983 = vunpack.c.l.b16 %v3902
      %v3984 = vunpack.c.l.b16 %v3903
      %v3985 = vunpack.c.l.b16 %v3904
      %v3986 = vunpack.c.l.b16 %v3905
      %v3987 = vunpack.c.l.b16 %v3906
      %v3988 = vpack.c.b16 %v3957, %v3956
      %v3989 = vpack.c.b16 %v3959, %v3958
      %v3990 = vpack.c.b16 %v3961, %v3960
      %v3991 = vpack.c.b16 %v3963, %v3962
      %v3992 = vpack.c.b16 %v3965, %v3964
      %v3993 = vpack.c.b16 %v3967, %v3966
      %v3994 = vpack.c.b16 %v3969, %v3968
      %v3995 = vpack.c.b16 %v3971, %v3970
      %v3996 = vpack.c.b16 %v3973, %v3972
      %v3997 = vpack.c.b16 %v3975, %v3974
      %v3998 = vpack.c.b16 %v3977, %v3976
      %v3999 = vpack.c.b16 %v3979, %v3978
      %v4000 = vpack.c.b16 %v3981, %v3980
      %v4001 = vpack.c.b16 %v3983, %v3982
      %v4002 = vpack.c.b16 %v3985, %v3984
      %v4003 = vpack.c.b16 %v3987, %v3986
      %v4036 = vunpack.c.l.b16 %v3908
      %v4037 = vunpack.c.l.b16 %v3909
      %v4038 = vunpack.c.l.b16 %v3910
      %v4039 = vunpack.c.l.b16 %v3911
      %v4040 = vunpack.c.l.b16 %v3912
      %v4041 = vunpack.c.l.b16 %v3913
      %v4042 = vunpack.c.l.b16 %v3914
      %v4043 = vunpack.c.l.b16 %v3915
      %v4044 = vunpack.c.l.b16 %v3916
      %v4045 = vunpack.c.l.b16 %v3917
      %v4046 = vunpack.c.l.b16 %v3918
      %v4047 = vunpack.c.l.b16 %v3919
      %v4048 = vunpack.c.l.b16 %v3920
      %v4049 = vunpack.c.l.b16 %v3921
      %v4050 = vunpack.c.l.b16 %v3922
      %v4051 = vunpack.c.l.b16 %v3923
      %v4052 = vpack.c.b16 %v4037, %v4036
      %v4053 = vpack.c.b16 %v4039, %v4038
      %v4054 = vpack.c.b16 %v4041, %v4040
      %v4055 = vpack.c.b16 %v4043, %v4042
      %v4056 = vpack.c.b16 %v4045, %v4044
      %v4057 = vpack.c.b16 %v4047, %v4046
      %v4058 = vpack.c.b16 %v4049, %v4048
      %v4059 = vpack.c.b16 %v4051, %v4050
      %4068 = vmatpush.bf16.msra.mxu0 %v4059
      %4069 = vmatpush.bf16.msra.mxu0 %v4058
      %4070 = vmatpush.bf16.msra.mxu0 %v4057
      %4071 = vmatpush.bf16.msra.mxu0 %v4056
      %4072 = vmatpush.bf16.msra.mxu0 %v4055
      %4073 = vmatpush.bf16.msra.mxu0 %v4054
      %4074 = vmatpush.bf16.msra.mxu0 %v4053
      %4075 = vmatpush.bf16.msra.mxu0 %v4052
      %4076 = vmatmul.bf16.gmra.mxu0 %v3988
      %v4077 = vpop.f32.mrf.mxu0
      %v4078 = vadd.f32 0.0, %v4077
      %v4079 = vpop.f32.mrf.mxu0
      %v4080 = vadd.f32 0.0, %v4079
      %4081 = vmatmul.bf16.gmra.mxu0 %v3989
      %v4082 = vpop.f32.mrf.mxu0
      %v4083 = vadd.f32 0.0, %v4082
      %v4084 = vpop.f32.mrf.mxu0
      %v4085 = vadd.f32 0.0, %v4084
      %4086 = vmatmul.bf16.gmra.mxu0 %v3990
      %v4087 = vpop.f32.mrf.mxu0
      %v4088 = vadd.f32 0.0, %v4087
      %v4089 = vpop.f32.mrf.mxu0
      %v4090 = vadd.f32 0.0, %v4089
      %4091 = vmatmul.bf16.gmra.mxu0 %v3991
      %v4092 = vpop.f32.mrf.mxu0
      %v4093 = vadd.f32 0.0, %v4092
      %v4094 = vpop.f32.mrf.mxu0
      %v4095 = vadd.f32 0.0, %v4094
      %4096 = vmatmul.bf16.gmra.mxu0 %v3992
      %v4097 = vpop.f32.mrf.mxu0
      %v4098 = vadd.f32 0.0, %v4097
      %v4099 = vpop.f32.mrf.mxu0
      %v4100 = vadd.f32 0.0, %v4099
      %4101 = vmatmul.bf16.gmra.mxu0 %v3993
      %v4102 = vpop.f32.mrf.mxu0
      %v4103 = vadd.f32 0.0, %v4102
      %v4104 = vpop.f32.mrf.mxu0
      %v4105 = vadd.f32 0.0, %v4104
      %4106 = vmatmul.bf16.gmra.mxu0 %v3994
      %v4107 = vpop.f32.mrf.mxu0
      %v4108 = vadd.f32 0.0, %v4107
      %v4109 = vpop.f32.mrf.mxu0
      %v4110 = vadd.f32 0.0, %v4109
      %4111 = vmatmul.bf16.gmra.mxu0 %v3995
      %v4112 = vpop.f32.mrf.mxu0
      %v4113 = vadd.f32 0.0, %v4112
      %v4114 = vpop.f32.mrf.mxu0
      %v4115 = vadd.f32 0.0, %v4114
      %4116 = vmatmul.bf16.gmra.mxu0 %v3996
      %v4117 = vpop.f32.mrf.mxu0
      %v4118 = vadd.f32 0.0, %v4117
      %v4119 = vpop.f32.mrf.mxu0
      %v4120 = vadd.f32 0.0, %v4119
      %4121 = vmatmul.bf16.gmra.mxu0 %v3997
      %v4122 = vpop.f32.mrf.mxu0
      %v4123 = vadd.f32 0.0, %v4122
      %v4124 = vpop.f32.mrf.mxu0
      %v4125 = vadd.f32 0.0, %v4124
      %4126 = vmatmul.bf16.gmra.mxu0 %v3998
      %v4127 = vpop.f32.mrf.mxu0
      %v4128 = vadd.f32 0.0, %v4127
      %v4129 = vpop.f32.mrf.mxu0
      %v4130 = vadd.f32 0.0, %v4129
      %4131 = vmatmul.bf16.gmra.mxu0 %v3999
      %v4132 = vpop.f32.mrf.mxu0
      %v4133 = vadd.f32 0.0, %v4132
      %v4134 = vpop.f32.mrf.mxu0
      %v4135 = vadd.f32 0.0, %v4134
      %4136 = vmatmul.bf16.gmra.mxu0 %v4000
      %v4137 = vpop.f32.mrf.mxu0
      %v4138 = vadd.f32 0.0, %v4137
      %v4139 = vpop.f32.mrf.mxu0
      %v4140 = vadd.f32 0.0, %v4139
      %4141 = vmatmul.bf16.gmra.mxu0 %v4001
      %v4142 = vpop.f32.mrf.mxu0
      %v4143 = vadd.f32 0.0, %v4142
      %v4144 = vpop.f32.mrf.mxu0
      %v4145 = vadd.f32 0.0, %v4144
      %4146 = vmatmul.bf16.gmra.mxu0 %v4002
      %v4147 = vpop.f32.mrf.mxu0
      %v4148 = vadd.f32 0.0, %v4147
      %v4149 = vpop.f32.mrf.mxu0
      %v4150 = vadd.f32 0.0, %v4149
      %4151 = vmatmul.bf16.gmra.mxu0 %v4003
      %v4152 = vpop.f32.mrf.mxu0
      %v4153 = vadd.f32 0.0, %v4152
      %v4154 = vpop.f32.mrf.mxu0
      %v4155 = vadd.f32 0.0, %v4154
      %4156 = vdwg.mxu0
      %v4157 = vadd.f32 %v3842, %v4078
      %v4158 = vadd.f32 %v3843, %v4080
      %v4159 = vadd.f32 %v3844, %v4083
      %v4160 = vadd.f32 %v3845, %v4085
      %v4161 = vadd.f32 %v3846, %v4088
      %v4162 = vadd.f32 %v3847, %v4090
      %v4163 = vadd.f32 %v3848, %v4093
      %v4164 = vadd.f32 %v3849, %v4095
      %v4165 = vadd.f32 %v3850, %v4098
      %v4166 = vadd.f32 %v3851, %v4100
      %v4167 = vadd.f32 %v3852, %v4103
      %v4168 = vadd.f32 %v3853, %v4105
      %v4169 = vadd.f32 %v3854, %v4108
      %v4170 = vadd.f32 %v3855, %v4110
      %v4171 = vadd.f32 %v3856, %v4113
      %v4172 = vadd.f32 %v3857, %v4115
      %v4173 = vadd.f32 %v3858, %v4118
      %v4174 = vadd.f32 %v3859, %v4120
      %v4175 = vadd.f32 %v3860, %v4123
      %v4176 = vadd.f32 %v3861, %v4125
      %v4177 = vadd.f32 %v3862, %v4128
      %v4178 = vadd.f32 %v3863, %v4130
      %v4179 = vadd.f32 %v3864, %v4133
      %v4180 = vadd.f32 %v3865, %v4135
      %v4181 = vadd.f32 %v3866, %v4138
      %v4182 = vadd.f32 %v3867, %v4140
      %v4183 = vadd.f32 %v3868, %v4143
      %v4184 = vadd.f32 %v3869, %v4145
      %v4185 = vadd.f32 %v3870, %v4148
      %v4186 = vadd.f32 %v3871, %v4150
      %v4187 = vadd.f32 %v3872, %v4153
      %v4188 = vadd.f32 %v3873, %v4155
      %v4189 = vld [vmem:[%s3874] sm:$0xf]
      %v4190 = vld [vmem:[%s3874 + $0x4] sm:$0xf]
      %v4191 = vld [vmem:[%s3874 + $0x8] sm:$0x1]
      %v4192 = vld [vmem:[%s3874 + $0xc] sm:$0xf]
      %v4193 = vld [vmem:[%s3874 + $0x10] sm:$0xf]
      %v4194 = vld [vmem:[%s3874 + $0x14] sm:$0x1]
      %v4195 = vld [vmem:[%s3874 + $0x18] sm:$0xf]
      %v4196 = vld [vmem:[%s3874 + $0x1c] sm:$0xf]
      %v4197 = vld [vmem:[%s3874 + $0x20] sm:$0x1]
      %v4198 = vld [vmem:[%s3874 + $0x24] sm:$0xf]
      %v4199 = vld [vmem:[%s3874 + $0x28] sm:$0xf]
      %v4200 = vld [vmem:[%s3874 + $0x2c] sm:$0x1]
      %v4201 = vld [vmem:[%s3874 + $0x30] sm:$0xf]
      %v4202 = vld [vmem:[%s3874 + $0x34] sm:$0xf]
      %v4203 = vld [vmem:[%s3874 + $0x38] sm:$0x1]
      %v4204 = vld [vmem:[%s3874 + $0x3c] sm:$0xf]
      %v4205 = vld [vmem:[%s3874 + $0x40] sm:$0xf]
      %v4206 = vld [vmem:[%s3874 + $0x44] sm:$0x1]
      %v4207 = vld [vmem:[%s3874 + $0x48] sm:$0xf]
      %v4208 = vld [vmem:[%s3874 + $0x4c] sm:$0xf]
      %v4209 = vld [vmem:[%s3874 + $0x50] sm:$0x1]
      %v4210 = vld [vmem:[%s3874 + $0x54] sm:$0xf]
      %v4211 = vld [vmem:[%s3874 + $0x58] sm:$0xf]
      %v4212 = vld [vmem:[%s3874 + $0x5c] sm:$0x1]
      %v4213 = vld [vmem:[%s3874 + $0x60] sm:$0xf]
      %v4214 = vld [vmem:[%s3874 + $0x64] sm:$0xf]
      %v4215 = vld [vmem:[%s3874 + $0x68] sm:$0x1]
      %v4216 = vld [vmem:[%s3874 + $0x6c] sm:$0xf]
      %v4217 = vld [vmem:[%s3874 + $0x70] sm:$0xf]
      %v4218 = vld [vmem:[%s3874 + $0x74] sm:$0x1]
      %v4219 = vld [vmem:[%s3874 + $0x78] sm:$0xf]
      %v4220 = vld [vmem:[%s3874 + $0x7c] sm:$0xf]
      %v4221 = vld [vmem:[%s3874 + $0x80] sm:$0x1]
      %v4222 = vld [vmem:[%s3874 + $0x84] sm:$0xf]
      %v4223 = vld [vmem:[%s3874 + $0x88] sm:$0xf]
      %v4224 = vld [vmem:[%s3874 + $0x8c] sm:$0x1]
      %v4225 = vld [vmem:[%s3874 + $0x90] sm:$0xf]
      %v4226 = vld [vmem:[%s3874 + $0x94] sm:$0xf]
      %v4227 = vld [vmem:[%s3874 + $0x98] sm:$0x1]
      %v4228 = vld [vmem:[%s3874 + $0x9c] sm:$0xf]
      %v4229 = vld [vmem:[%s3874 + $0xa0] sm:$0xf]
      %v4230 = vld [vmem:[%s3874 + $0xa4] sm:$0x1]
      %v4231 = vld [vmem:[%s3874 + $0xa8] sm:$0xf]
      %v4232 = vld [vmem:[%s3874 + $0xac] sm:$0xf]
      %v4233 = vld [vmem:[%s3874 + $0xb0] sm:$0x1]
      %v4234 = vld [vmem:[%s3874 + $0xb4] sm:$0xf]
      %v4235 = vld [vmem:[%s3874 + $0xb8] sm:$0xf]
      %v4236 = vld [vmem:[%s3874 + $0xbc] sm:$0x1]
      %v4238 = vshrl.u32 %v4189, 16
      %v4240 = vrot.slane %v4238, 4
      %v4241 = vshll.u32 %v4189, 16
      %v4243 = vrot.slane %v4241, 5
      %v4244 = vor.u32 %v4240, %v4243
      %v4245 = vrot.slane %v4244, 4
      %v4247 = vshll.u32 %v4190, 16
      %v4249 = vrot.slane %v4247, 5
      %v4250 = vsel %vm1388, %v4245, %v4249
      %v4251 = vshrl.u32 %v4190, 16
      %v4253 = vrot.slane %v4251, 4
      %v4254 = vor.u32 %v4253, %v4249
      %v4255 = vrot.slane %v4254, 4
      %v4257 = vshll.u32 %v4191, 16
      %v4259 = vrot.slane %v4257, 5
      %v4260 = vsel %vm1388, %v4255, %v4259
      %v4262 = vshrl.u32 %v4192, 16
      %v4264 = vrot.slane %v4262, 4
      %v4265 = vshll.u32 %v4192, 16
      %v4267 = vrot.slane %v4265, 5
      %v4268 = vor.u32 %v4264, %v4267
      %v4269 = vrot.slane %v4268, 4
      %v4271 = vshll.u32 %v4193, 16
      %v4273 = vrot.slane %v4271, 5
      %v4274 = vsel %vm1388, %v4269, %v4273
      %v4275 = vshrl.u32 %v4193, 16
      %v4277 = vrot.slane %v4275, 4
      %v4278 = vor.u32 %v4277, %v4273
      %v4279 = vrot.slane %v4278, 4
      %v4281 = vshll.u32 %v4194, 16
      %v4283 = vrot.slane %v4281, 5
      %v4284 = vsel %vm1388, %v4279, %v4283
      %v4286 = vshrl.u32 %v4195, 16
      %v4288 = vrot.slane %v4286, 4
      %v4289 = vshll.u32 %v4195, 16
      %v4291 = vrot.slane %v4289, 5
      %v4292 = vor.u32 %v4288, %v4291
      %v4293 = vrot.slane %v4292, 4
      %v4295 = vshll.u32 %v4196, 16
      %v4297 = vrot.slane %v4295, 5
      %v4298 = vsel %vm1388, %v4293, %v4297
      %v4299 = vshrl.u32 %v4196, 16
      %v4301 = vrot.slane %v4299, 4
      %v4302 = vor.u32 %v4301, %v4297
      %v4303 = vrot.slane %v4302, 4
      %v4305 = vshll.u32 %v4197, 16
      %v4307 = vrot.slane %v4305, 5
      %v4308 = vsel %vm1388, %v4303, %v4307
      %v4310 = vshrl.u32 %v4198, 16
      %v4312 = vrot.slane %v4310, 4
      %v4313 = vshll.u32 %v4198, 16
      %v4315 = vrot.slane %v4313, 5
      %v4316 = vor.u32 %v4312, %v4315
      %v4317 = vrot.slane %v4316, 4
      %v4319 = vshll.u32 %v4199, 16
      %v4321 = vrot.slane %v4319, 5
      %v4322 = vsel %vm1388, %v4317, %v4321
      %v4323 = vshrl.u32 %v4199, 16
      %v4325 = vrot.slane %v4323, 4
      %v4326 = vor.u32 %v4325, %v4321
      %v4327 = vrot.slane %v4326, 4
      %v4329 = vshll.u32 %v4200, 16
      %v4331 = vrot.slane %v4329, 5
      %v4332 = vsel %vm1388, %v4327, %v4331
      %v4334 = vshrl.u32 %v4201, 16
      %v4336 = vrot.slane %v4334, 4
      %v4337 = vshll.u32 %v4201, 16
      %v4339 = vrot.slane %v4337, 5
      %v4340 = vor.u32 %v4336, %v4339
      %v4341 = vrot.slane %v4340, 4
      %v4343 = vshll.u32 %v4202, 16
      %v4345 = vrot.slane %v4343, 5
      %v4346 = vsel %vm1388, %v4341, %v4345
      %v4347 = vshrl.u32 %v4202, 16
      %v4349 = vrot.slane %v4347, 4
      %v4350 = vor.u32 %v4349, %v4345
      %v4351 = vrot.slane %v4350, 4
      %v4353 = vshll.u32 %v4203, 16
      %v4355 = vrot.slane %v4353, 5
      %v4356 = vsel %vm1388, %v4351, %v4355
      %v4358 = vshrl.u32 %v4204, 16
      %v4360 = vrot.slane %v4358, 4
      %v4361 = vshll.u32 %v4204, 16
      %v4363 = vrot.slane %v4361, 5
      %v4364 = vor.u32 %v4360, %v4363
      %v4365 = vrot.slane %v4364, 4
      %v4367 = vshll.u32 %v4205, 16
      %v4369 = vrot.slane %v4367, 5
      %v4370 = vsel %vm1388, %v4365, %v4369
      %v4371 = vshrl.u32 %v4205, 16
      %v4373 = vrot.slane %v4371, 4
      %v4374 = vor.u32 %v4373, %v4369
      %v4375 = vrot.slane %v4374, 4
      %v4377 = vshll.u32 %v4206, 16
      %v4379 = vrot.slane %v4377, 5
      %v4380 = vsel %vm1388, %v4375, %v4379
      %v4382 = vshrl.u32 %v4207, 16
      %v4384 = vrot.slane %v4382, 4
      %v4385 = vshll.u32 %v4207, 16
      %v4387 = vrot.slane %v4385, 5
      %v4388 = vor.u32 %v4384, %v4387
      %v4389 = vrot.slane %v4388, 4
      %v4391 = vshll.u32 %v4208, 16
      %v4393 = vrot.slane %v4391, 5
      %v4394 = vsel %vm1388, %v4389, %v4393
      %v4395 = vshrl.u32 %v4208, 16
      %v4397 = vrot.slane %v4395, 4
      %v4398 = vor.u32 %v4397, %v4393
      %v4399 = vrot.slane %v4398, 4
      %v4401 = vshll.u32 %v4209, 16
      %v4403 = vrot.slane %v4401, 5
      %v4404 = vsel %vm1388, %v4399, %v4403
      %v4406 = vshrl.u32 %v4210, 16
      %v4408 = vrot.slane %v4406, 4
      %v4409 = vshll.u32 %v4210, 16
      %v4411 = vrot.slane %v4409, 5
      %v4412 = vor.u32 %v4408, %v4411
      %v4413 = vrot.slane %v4412, 4
      %v4415 = vshll.u32 %v4211, 16
      %v4417 = vrot.slane %v4415, 5
      %v4418 = vsel %vm1388, %v4413, %v4417
      %v4419 = vshrl.u32 %v4211, 16
      %v4421 = vrot.slane %v4419, 4
      %v4422 = vor.u32 %v4421, %v4417
      %v4423 = vrot.slane %v4422, 4
      %v4425 = vshll.u32 %v4212, 16
      %v4427 = vrot.slane %v4425, 5
      %v4428 = vsel %vm1388, %v4423, %v4427
      %v4430 = vshrl.u32 %v4213, 16
      %v4432 = vrot.slane %v4430, 4
      %v4433 = vshll.u32 %v4213, 16
      %v4435 = vrot.slane %v4433, 5
      %v4436 = vor.u32 %v4432, %v4435
      %v4437 = vrot.slane %v4436, 4
      %v4439 = vshll.u32 %v4214, 16
      %v4441 = vrot.slane %v4439, 5
      %v4442 = vsel %vm1388, %v4437, %v4441
      %v4443 = vshrl.u32 %v4214, 16
      %v4445 = vrot.slane %v4443, 4
      %v4446 = vor.u32 %v4445, %v4441
      %v4447 = vrot.slane %v4446, 4
      %v4449 = vshll.u32 %v4215, 16
      %v4451 = vrot.slane %v4449, 5
      %v4452 = vsel %vm1388, %v4447, %v4451
      %v4454 = vshrl.u32 %v4216, 16
      %v4456 = vrot.slane %v4454, 4
      %v4457 = vshll.u32 %v4216, 16
      %v4459 = vrot.slane %v4457, 5
      %v4460 = vor.u32 %v4456, %v4459
      %v4461 = vrot.slane %v4460, 4
      %v4463 = vshll.u32 %v4217, 16
      %v4465 = vrot.slane %v4463, 5
      %v4466 = vsel %vm1388, %v4461, %v4465
      %v4467 = vshrl.u32 %v4217, 16
      %v4469 = vrot.slane %v4467, 4
      %v4470 = vor.u32 %v4469, %v4465
      %v4471 = vrot.slane %v4470, 4
      %v4473 = vshll.u32 %v4218, 16
      %v4475 = vrot.slane %v4473, 5
      %v4476 = vsel %vm1388, %v4471, %v4475
      %v4478 = vshrl.u32 %v4219, 16
      %v4480 = vrot.slane %v4478, 4
      %v4481 = vshll.u32 %v4219, 16
      %v4483 = vrot.slane %v4481, 5
      %v4484 = vor.u32 %v4480, %v4483
      %v4485 = vrot.slane %v4484, 4
      %v4487 = vshll.u32 %v4220, 16
      %v4489 = vrot.slane %v4487, 5
      %v4490 = vsel %vm1388, %v4485, %v4489
      %v4491 = vshrl.u32 %v4220, 16
      %v4493 = vrot.slane %v4491, 4
      %v4494 = vor.u32 %v4493, %v4489
      %v4495 = vrot.slane %v4494, 4
      %v4497 = vshll.u32 %v4221, 16
      %v4499 = vrot.slane %v4497, 5
      %v4500 = vsel %vm1388, %v4495, %v4499
      %v4502 = vshrl.u32 %v4222, 16
      %v4504 = vrot.slane %v4502, 4
      %v4505 = vshll.u32 %v4222, 16
      %v4507 = vrot.slane %v4505, 5
      %v4508 = vor.u32 %v4504, %v4507
      %v4509 = vrot.slane %v4508, 4
      %v4511 = vshll.u32 %v4223, 16
      %v4513 = vrot.slane %v4511, 5
      %v4514 = vsel %vm1388, %v4509, %v4513
      %v4515 = vshrl.u32 %v4223, 16
      %v4517 = vrot.slane %v4515, 4
      %v4518 = vor.u32 %v4517, %v4513
      %v4519 = vrot.slane %v4518, 4
      %v4521 = vshll.u32 %v4224, 16
      %v4523 = vrot.slane %v4521, 5
      %v4524 = vsel %vm1388, %v4519, %v4523
      %v4526 = vshrl.u32 %v4225, 16
      %v4528 = vrot.slane %v4526, 4
      %v4529 = vshll.u32 %v4225, 16
      %v4531 = vrot.slane %v4529, 5
      %v4532 = vor.u32 %v4528, %v4531
      %v4533 = vrot.slane %v4532, 4
      %v4535 = vshll.u32 %v4226, 16
      %v4537 = vrot.slane %v4535, 5
      %v4538 = vsel %vm1388, %v4533, %v4537
      %v4539 = vshrl.u32 %v4226, 16
      %v4541 = vrot.slane %v4539, 4
      %v4542 = vor.u32 %v4541, %v4537
      %v4543 = vrot.slane %v4542, 4
      %v4545 = vshll.u32 %v4227, 16
      %v4547 = vrot.slane %v4545, 5
      %v4548 = vsel %vm1388, %v4543, %v4547
      %v4550 = vshrl.u32 %v4228, 16
      %v4552 = vrot.slane %v4550, 4
      %v4553 = vshll.u32 %v4228, 16
      %v4555 = vrot.slane %v4553, 5
      %v4556 = vor.u32 %v4552, %v4555
      %v4557 = vrot.slane %v4556, 4
      %v4559 = vshll.u32 %v4229, 16
      %v4561 = vrot.slane %v4559, 5
      %v4562 = vsel %vm1388, %v4557, %v4561
      %v4563 = vshrl.u32 %v4229, 16
      %v4565 = vrot.slane %v4563, 4
      %v4566 = vor.u32 %v4565, %v4561
      %v4567 = vrot.slane %v4566, 4
      %v4569 = vshll.u32 %v4230, 16
      %v4571 = vrot.slane %v4569, 5
      %v4572 = vsel %vm1388, %v4567, %v4571
      %v4574 = vshrl.u32 %v4231, 16
      %v4576 = vrot.slane %v4574, 4
      %v4577 = vshll.u32 %v4231, 16
      %v4579 = vrot.slane %v4577, 5
      %v4580 = vor.u32 %v4576, %v4579
      %v4581 = vrot.slane %v4580, 4
      %v4583 = vshll.u32 %v4232, 16
      %v4585 = vrot.slane %v4583, 5
      %v4586 = vsel %vm1388, %v4581, %v4585
      %v4587 = vshrl.u32 %v4232, 16
      %v4589 = vrot.slane %v4587, 4
      %v4590 = vor.u32 %v4589, %v4585
      %v4591 = vrot.slane %v4590, 4
      %v4593 = vshll.u32 %v4233, 16
      %v4595 = vrot.slane %v4593, 5
      %v4596 = vsel %vm1388, %v4591, %v4595
      %v4598 = vshrl.u32 %v4234, 16
      %v4600 = vrot.slane %v4598, 4
      %v4601 = vshll.u32 %v4234, 16
      %v4603 = vrot.slane %v4601, 5
      %v4604 = vor.u32 %v4600, %v4603
      %v4605 = vrot.slane %v4604, 4
      %v4607 = vshll.u32 %v4235, 16
      %v4609 = vrot.slane %v4607, 5
      %v4610 = vsel %vm1388, %v4605, %v4609
      %v4611 = vshrl.u32 %v4235, 16
      %v4613 = vrot.slane %v4611, 4
      %v4614 = vor.u32 %v4613, %v4609
      %v4615 = vrot.slane %v4614, 4
      %v4617 = vshll.u32 %v4236, 16
      %v4619 = vrot.slane %v4617, 5
      %v4620 = vsel %vm1388, %v4615, %v4619
      %s4621 = scalar_lea.vmem %s1, 448
      %v4622 = vld [vmem:[%s4621] sm:$0xf]
      %v4623 = vld [vmem:[%s4621 + $0x4] sm:$0xf]
      %v4624 = vld [vmem:[%s4621 + $0x8] sm:$0xf]
      %v4625 = vld [vmem:[%s4621 + $0xc] sm:$0xf]
      %v4626 = vld [vmem:[%s4621 + $0x10] sm:$0xf]
      %v4627 = vld [vmem:[%s4621 + $0x14] sm:$0xf]
      %v4628 = vld [vmem:[%s4621 + $0x18] sm:$0xf]
      %v4629 = vld [vmem:[%s4621 + $0x1c] sm:$0xf]
      %v4630 = vld [vmem:[%s4621 + $0x20] sm:$0xf]
      %v4631 = vld [vmem:[%s4621 + $0x24] sm:$0xf]
      %v4632 = vld [vmem:[%s4621 + $0x28] sm:$0xf]
      %v4633 = vld [vmem:[%s4621 + $0x2c] sm:$0xf]
      %v4634 = vld [vmem:[%s4621 + $0x30] sm:$0xf]
      %v4635 = vld [vmem:[%s4621 + $0x34] sm:$0xf]
      %v4636 = vld [vmem:[%s4621 + $0x38] sm:$0xf]
      %v4637 = vld [vmem:[%s4621 + $0x3c] sm:$0xf]
      %v4638 = vunpack.c.l.b16 %v4250
      %v4639 = vunpack.c.l.b16 %v4260
      %v4640 = vunpack.c.l.b16 %v4274
      %v4641 = vunpack.c.l.b16 %v4284
      %v4642 = vunpack.c.l.b16 %v4298
      %v4643 = vunpack.c.l.b16 %v4308
      %v4644 = vunpack.c.l.b16 %v4322
      %v4645 = vunpack.c.l.b16 %v4332
      %v4646 = vunpack.c.l.b16 %v4346
      %v4647 = vunpack.c.l.b16 %v4356
      %v4648 = vunpack.c.l.b16 %v4370
      %v4649 = vunpack.c.l.b16 %v4380
      %v4650 = vunpack.c.l.b16 %v4394
      %v4651 = vunpack.c.l.b16 %v4404
      %v4652 = vunpack.c.l.b16 %v4418
      %v4653 = vunpack.c.l.b16 %v4428
      %v4654 = vunpack.c.l.b16 %v4442
      %v4655 = vunpack.c.l.b16 %v4452
      %v4656 = vunpack.c.l.b16 %v4466
      %v4657 = vunpack.c.l.b16 %v4476
      %v4658 = vunpack.c.l.b16 %v4490
      %v4659 = vunpack.c.l.b16 %v4500
      %v4660 = vunpack.c.l.b16 %v4514
      %v4661 = vunpack.c.l.b16 %v4524
      %v4662 = vunpack.c.l.b16 %v4538
      %v4663 = vunpack.c.l.b16 %v4548
      %v4664 = vunpack.c.l.b16 %v4562
      %v4665 = vunpack.c.l.b16 %v4572
      %v4666 = vunpack.c.l.b16 %v4586
      %v4667 = vunpack.c.l.b16 %v4596
      %v4668 = vunpack.c.l.b16 %v4610
      %v4669 = vunpack.c.l.b16 %v4620
      %v4670 = vpack.c.b16 %v4639, %v4638
      %v4671 = vpack.c.b16 %v4641, %v4640
      %v4672 = vpack.c.b16 %v4643, %v4642
      %v4673 = vpack.c.b16 %v4645, %v4644
      %v4674 = vpack.c.b16 %v4647, %v4646
      %v4675 = vpack.c.b16 %v4649, %v4648
      %v4676 = vpack.c.b16 %v4651, %v4650
      %v4677 = vpack.c.b16 %v4653, %v4652
      %v4678 = vpack.c.b16 %v4655, %v4654
      %v4679 = vpack.c.b16 %v4657, %v4656
      %v4680 = vpack.c.b16 %v4659, %v4658
      %v4681 = vpack.c.b16 %v4661, %v4660
      %v4682 = vpack.c.b16 %v4663, %v4662
      %v4683 = vpack.c.b16 %v4665, %v4664
      %v4684 = vpack.c.b16 %v4667, %v4666
      %v4685 = vpack.c.b16 %v4669, %v4668
      %v4718 = vunpack.c.l.b16 %v4622
      %v4719 = vunpack.c.l.b16 %v4623
      %v4720 = vunpack.c.l.b16 %v4624
      %v4721 = vunpack.c.l.b16 %v4625
      %v4722 = vunpack.c.l.b16 %v4626
      %v4723 = vunpack.c.l.b16 %v4627
      %v4724 = vunpack.c.l.b16 %v4628
      %v4725 = vunpack.c.l.b16 %v4629
      %v4726 = vunpack.c.l.b16 %v4630
      %v4727 = vunpack.c.l.b16 %v4631
      %v4728 = vunpack.c.l.b16 %v4632
      %v4729 = vunpack.c.l.b16 %v4633
      %v4730 = vunpack.c.l.b16 %v4634
      %v4731 = vunpack.c.l.b16 %v4635
      %v4732 = vunpack.c.l.b16 %v4636
      %v4733 = vunpack.c.l.b16 %v4637
      %v4734 = vpack.c.b16 %v4719, %v4718
      %v4735 = vpack.c.b16 %v4721, %v4720
      %v4736 = vpack.c.b16 %v4723, %v4722
      %v4737 = vpack.c.b16 %v4725, %v4724
      %v4738 = vpack.c.b16 %v4727, %v4726
      %v4739 = vpack.c.b16 %v4729, %v4728
      %v4740 = vpack.c.b16 %v4731, %v4730
      %v4741 = vpack.c.b16 %v4733, %v4732
      %4750 = vmatpush.bf16.msra.mxu0 %v4741
      %4751 = vmatpush.bf16.msra.mxu0 %v4740
      %4752 = vmatpush.bf16.msra.mxu0 %v4739
      %4753 = vmatpush.bf16.msra.mxu0 %v4738
      %4754 = vmatpush.bf16.msra.mxu0 %v4737
      %4755 = vmatpush.bf16.msra.mxu0 %v4736
      %4756 = vmatpush.bf16.msra.mxu0 %v4735
      %4757 = vmatpush.bf16.msra.mxu0 %v4734
      %4758 = vmatmul.bf16.gmra.mxu0 %v4670
      %v4759 = vpop.f32.mrf.mxu0
      %v4760 = vadd.f32 0.0, %v4759
      %v4761 = vpop.f32.mrf.mxu0
      %v4762 = vadd.f32 0.0, %v4761
      %4763 = vmatmul.bf16.gmra.mxu0 %v4671
      %v4764 = vpop.f32.mrf.mxu0
      %v4765 = vadd.f32 0.0, %v4764
      %v4766 = vpop.f32.mrf.mxu0
      %v4767 = vadd.f32 0.0, %v4766
      %4768 = vmatmul.bf16.gmra.mxu0 %v4672
      %v4769 = vpop.f32.mrf.mxu0
      %v4770 = vadd.f32 0.0, %v4769
      %v4771 = vpop.f32.mrf.mxu0
      %v4772 = vadd.f32 0.0, %v4771
      %4773 = vmatmul.bf16.gmra.mxu0 %v4673
      %v4774 = vpop.f32.mrf.mxu0
      %v4775 = vadd.f32 0.0, %v4774
      %v4776 = vpop.f32.mrf.mxu0
      %v4777 = vadd.f32 0.0, %v4776
      %4778 = vmatmul.bf16.gmra.mxu0 %v4674
      %v4779 = vpop.f32.mrf.mxu0
      %v4780 = vadd.f32 0.0, %v4779
      %v4781 = vpop.f32.mrf.mxu0
      %v4782 = vadd.f32 0.0, %v4781
      %4783 = vmatmul.bf16.gmra.mxu0 %v4675
      %v4784 = vpop.f32.mrf.mxu0
      %v4785 = vadd.f32 0.0, %v4784
      %v4786 = vpop.f32.mrf.mxu0
      %v4787 = vadd.f32 0.0, %v4786
      %4788 = vmatmul.bf16.gmra.mxu0 %v4676
      %v4789 = vpop.f32.mrf.mxu0
      %v4790 = vadd.f32 0.0, %v4789
      %v4791 = vpop.f32.mrf.mxu0
      %v4792 = vadd.f32 0.0, %v4791
      %4793 = vmatmul.bf16.gmra.mxu0 %v4677
      %v4794 = vpop.f32.mrf.mxu0
      %v4795 = vadd.f32 0.0, %v4794
      %v4796 = vpop.f32.mrf.mxu0
      %v4797 = vadd.f32 0.0, %v4796
      %4798 = vmatmul.bf16.gmra.mxu0 %v4678
      %v4799 = vpop.f32.mrf.mxu0
      %v4800 = vadd.f32 0.0, %v4799
      %v4801 = vpop.f32.mrf.mxu0
      %v4802 = vadd.f32 0.0, %v4801
      %4803 = vmatmul.bf16.gmra.mxu0 %v4679
      %v4804 = vpop.f32.mrf.mxu0
      %v4805 = vadd.f32 0.0, %v4804
      %v4806 = vpop.f32.mrf.mxu0
      %v4807 = vadd.f32 0.0, %v4806
      %4808 = vmatmul.bf16.gmra.mxu0 %v4680
      %v4809 = vpop.f32.mrf.mxu0
      %v4810 = vadd.f32 0.0, %v4809
      %v4811 = vpop.f32.mrf.mxu0
      %v4812 = vadd.f32 0.0, %v4811
      %4813 = vmatmul.bf16.gmra.mxu0 %v4681
      %v4814 = vpop.f32.mrf.mxu0
      %v4815 = vadd.f32 0.0, %v4814
      %v4816 = vpop.f32.mrf.mxu0
      %v4817 = vadd.f32 0.0, %v4816
      %4818 = vmatmul.bf16.gmra.mxu0 %v4682
      %v4819 = vpop.f32.mrf.mxu0
      %v4820 = vadd.f32 0.0, %v4819
      %v4821 = vpop.f32.mrf.mxu0
      %v4822 = vadd.f32 0.0, %v4821
      %4823 = vmatmul.bf16.gmra.mxu0 %v4683
      %v4824 = vpop.f32.mrf.mxu0
      %v4825 = vadd.f32 0.0, %v4824
      %v4826 = vpop.f32.mrf.mxu0
      %v4827 = vadd.f32 0.0, %v4826
      %4828 = vmatmul.bf16.gmra.mxu0 %v4684
      %v4829 = vpop.f32.mrf.mxu0
      %v4830 = vadd.f32 0.0, %v4829
      %v4831 = vpop.f32.mrf.mxu0
      %v4832 = vadd.f32 0.0, %v4831
      %4833 = vmatmul.bf16.gmra.mxu0 %v4685
      %v4834 = vpop.f32.mrf.mxu0
      %v4835 = vadd.f32 0.0, %v4834
      %v4836 = vpop.f32.mrf.mxu0
      %v4837 = vadd.f32 0.0, %v4836
      %4838 = vdwg.mxu0
      %v4839 = vadd.f32 %v4157, %v4760
      %v4840 = vadd.f32 %v4158, %v4762
      %v4841 = vadd.f32 %v4159, %v4765
      %v4842 = vadd.f32 %v4160, %v4767
      %v4843 = vadd.f32 %v4161, %v4770
      %v4844 = vadd.f32 %v4162, %v4772
      %v4845 = vadd.f32 %v4163, %v4775
      %v4846 = vadd.f32 %v4164, %v4777
      %v4847 = vadd.f32 %v4165, %v4780
      %v4848 = vadd.f32 %v4166, %v4782
      %v4849 = vadd.f32 %v4167, %v4785
      %v4850 = vadd.f32 %v4168, %v4787
      %v4851 = vadd.f32 %v4169, %v4790
      %v4852 = vadd.f32 %v4170, %v4792
      %v4853 = vadd.f32 %v4171, %v4795
      %v4854 = vadd.f32 %v4172, %v4797
      %v4855 = vadd.f32 %v4173, %v4800
      %v4856 = vadd.f32 %v4174, %v4802
      %v4857 = vadd.f32 %v4175, %v4805
      %v4858 = vadd.f32 %v4176, %v4807
      %v4859 = vadd.f32 %v4177, %v4810
      %v4860 = vadd.f32 %v4178, %v4812
      %v4861 = vadd.f32 %v4179, %v4815
      %v4862 = vadd.f32 %v4180, %v4817
      %v4863 = vadd.f32 %v4181, %v4820
      %v4864 = vadd.f32 %v4182, %v4822
      %v4865 = vadd.f32 %v4183, %v4825
      %v4866 = vadd.f32 %v4184, %v4827
      %v4867 = vadd.f32 %v4185, %v4830
      %v4868 = vadd.f32 %v4186, %v4832
      %v4869 = vadd.f32 %v4187, %v4835
      %v4870 = vadd.f32 %v4188, %v4837
      %v4871 = vld [vmem:[%s3874] sm:$0xe]
      %v4872 = vld [vmem:[%s3874 + $0xc] sm:$0xe]
      %v4873 = vld [vmem:[%s3874 + $0x18] sm:$0xe]
      %v4874 = vld [vmem:[%s3874 + $0x24] sm:$0xe]
      %v4875 = vld [vmem:[%s3874 + $0x30] sm:$0xe]
      %v4876 = vld [vmem:[%s3874 + $0x3c] sm:$0xe]
      %v4877 = vld [vmem:[%s3874 + $0x48] sm:$0xe]
      %v4878 = vld [vmem:[%s3874 + $0x54] sm:$0xe]
      %v4879 = vld [vmem:[%s3874 + $0x60] sm:$0xe]
      %v4880 = vld [vmem:[%s3874 + $0x6c] sm:$0xe]
      %v4881 = vld [vmem:[%s3874 + $0x78] sm:$0xe]
      %v4882 = vld [vmem:[%s3874 + $0x84] sm:$0xe]
      %v4883 = vld [vmem:[%s3874 + $0x90] sm:$0xe]
      %v4884 = vld [vmem:[%s3874 + $0x9c] sm:$0xe]
      %v4885 = vld [vmem:[%s3874 + $0xa8] sm:$0xe]
      %v4886 = vld [vmem:[%s3874 + $0xb4] sm:$0xe]
      %v4935 = vrot.slane %v4871, 5
      %v4936 = vrot.slane %v4935, 4
      %v4937 = vrot.slane %v4190, 5
      %v4938 = vsel %vm2089, %v4936, %v4937
      %v4939 = vrot.slane %v4937, 4
      %v4940 = vrot.slane %v4191, 5
      %v4941 = vsel %vm2089, %v4939, %v4940
      %v4942 = vrot.slane %v4872, 5
      %v4943 = vrot.slane %v4942, 4
      %v4944 = vrot.slane %v4193, 5
      %v4945 = vsel %vm2089, %v4943, %v4944
      %v4946 = vrot.slane %v4944, 4
      %v4947 = vrot.slane %v4194, 5
      %v4948 = vsel %vm2089, %v4946, %v4947
      %v4949 = vrot.slane %v4873, 5
      %v4950 = vrot.slane %v4949, 4
      %v4951 = vrot.slane %v4196, 5
      %v4952 = vsel %vm2089, %v4950, %v4951
      %v4953 = vrot.slane %v4951, 4
      %v4954 = vrot.slane %v4197, 5
      %v4955 = vsel %vm2089, %v4953, %v4954
      %v4956 = vrot.slane %v4874, 5
      %v4957 = vrot.slane %v4956, 4
      %v4958 = vrot.slane %v4199, 5
      %v4959 = vsel %vm2089, %v4957, %v4958
      %v4960 = vrot.slane %v4958, 4
      %v4961 = vrot.slane %v4200, 5
      %v4962 = vsel %vm2089, %v4960, %v4961
      %v4963 = vrot.slane %v4875, 5
      %v4964 = vrot.slane %v4963, 4
      %v4965 = vrot.slane %v4202, 5
      %v4966 = vsel %vm2089, %v4964, %v4965
      %v4967 = vrot.slane %v4965, 4
      %v4968 = vrot.slane %v4203, 5
      %v4969 = vsel %vm2089, %v4967, %v4968
      %v4970 = vrot.slane %v4876, 5
      %v4971 = vrot.slane %v4970, 4
      %v4972 = vrot.slane %v4205, 5
      %v4973 = vsel %vm2089, %v4971, %v4972
      %v4974 = vrot.slane %v4972, 4
      %v4975 = vrot.slane %v4206, 5
      %v4976 = vsel %vm2089, %v4974, %v4975
      %v4977 = vrot.slane %v4877, 5
      %v4978 = vrot.slane %v4977, 4
      %v4979 = vrot.slane %v4208, 5
      %v4980 = vsel %vm2089, %v4978, %v4979
      %v4981 = vrot.slane %v4979, 4
      %v4982 = vrot.slane %v4209, 5
      %v4983 = vsel %vm2089, %v4981, %v4982
      %v4984 = vrot.slane %v4878, 5
      %v4985 = vrot.slane %v4984, 4
      %v4986 = vrot.slane %v4211, 5
      %v4987 = vsel %vm2089, %v4985, %v4986
      %v4988 = vrot.slane %v4986, 4
      %v4989 = vrot.slane %v4212, 5
      %v4990 = vsel %vm2089, %v4988, %v4989
      %v4991 = vrot.slane %v4879, 5
      %v4992 = vrot.slane %v4991, 4
      %v4993 = vrot.slane %v4214, 5
      %v4994 = vsel %vm2089, %v4992, %v4993
      %v4995 = vrot.slane %v4993, 4
      %v4996 = vrot.slane %v4215, 5
      %v4997 = vsel %vm2089, %v4995, %v4996
      %v4998 = vrot.slane %v4880, 5
      %v4999 = vrot.slane %v4998, 4
      %v5000 = vrot.slane %v4217, 5
      %v5001 = vsel %vm2089, %v4999, %v5000
      %v5002 = vrot.slane %v5000, 4
      %v5003 = vrot.slane %v4218, 5
      %v5004 = vsel %vm2089, %v5002, %v5003
      %v5005 = vrot.slane %v4881, 5
      %v5006 = vrot.slane %v5005, 4
      %v5007 = vrot.slane %v4220, 5
      %v5008 = vsel %vm2089, %v5006, %v5007
      %v5009 = vrot.slane %v5007, 4
      %v5010 = vrot.slane %v4221, 5
      %v5011 = vsel %vm2089, %v5009, %v5010
      %v5012 = vrot.slane %v4882, 5
      %v5013 = vrot.slane %v5012, 4
      %v5014 = vrot.slane %v4223, 5
      %v5015 = vsel %vm2089, %v5013, %v5014
      %v5016 = vrot.slane %v5014, 4
      %v5017 = vrot.slane %v4224, 5
      %v5018 = vsel %vm2089, %v5016, %v5017
      %v5019 = vrot.slane %v4883, 5
      %v5020 = vrot.slane %v5019, 4
      %v5021 = vrot.slane %v4226, 5
      %v5022 = vsel %vm2089, %v5020, %v5021
      %v5023 = vrot.slane %v5021, 4
      %v5024 = vrot.slane %v4227, 5
      %v5025 = vsel %vm2089, %v5023, %v5024
      %v5026 = vrot.slane %v4884, 5
      %v5027 = vrot.slane %v5026, 4
      %v5028 = vrot.slane %v4229, 5
      %v5029 = vsel %vm2089, %v5027, %v5028
      %v5030 = vrot.slane %v5028, 4
      %v5031 = vrot.slane %v4230, 5
      %v5032 = vsel %vm2089, %v5030, %v5031
      %v5033 = vrot.slane %v4885, 5
      %v5034 = vrot.slane %v5033, 4
      %v5035 = vrot.slane %v4232, 5
      %v5036 = vsel %vm2089, %v5034, %v5035
      %v5037 = vrot.slane %v5035, 4
      %v5038 = vrot.slane %v4233, 5
      %v5039 = vsel %vm2089, %v5037, %v5038
      %v5040 = vrot.slane %v4886, 5
      %v5041 = vrot.slane %v5040, 4
      %v5042 = vrot.slane %v4235, 5
      %v5043 = vsel %vm2089, %v5041, %v5042
      %v5044 = vrot.slane %v5042, 4
      %v5045 = vrot.slane %v4236, 5
      %v5046 = vsel %vm2089, %v5044, %v5045
      %s5047 = scalar_lea.vmem %s1, 512
      %v5048 = vld [vmem:[%s5047] sm:$0xf]
      %v5049 = vld [vmem:[%s5047 + $0x4] sm:$0xf]
      %v5050 = vld [vmem:[%s5047 + $0x8] sm:$0xf]
      %v5051 = vld [vmem:[%s5047 + $0xc] sm:$0xf]
      %v5052 = vld [vmem:[%s5047 + $0x10] sm:$0xf]
      %v5053 = vld [vmem:[%s5047 + $0x14] sm:$0xf]
      %v5054 = vld [vmem:[%s5047 + $0x18] sm:$0xf]
      %v5055 = vld [vmem:[%s5047 + $0x1c] sm:$0xf]
      %v5056 = vld [vmem:[%s5047 + $0x20] sm:$0xf]
      %v5057 = vld [vmem:[%s5047 + $0x24] sm:$0xf]
      %v5058 = vld [vmem:[%s5047 + $0x28] sm:$0xf]
      %v5059 = vld [vmem:[%s5047 + $0x2c] sm:$0xf]
      %v5060 = vld [vmem:[%s5047 + $0x30] sm:$0xf]
      %v5061 = vld [vmem:[%s5047 + $0x34] sm:$0xf]
      %v5062 = vld [vmem:[%s5047 + $0x38] sm:$0xf]
      %v5063 = vld [vmem:[%s5047 + $0x3c] sm:$0xf]
      %v5064 = vunpack.c.l.b16 %v4938
      %v5065 = vunpack.c.l.b16 %v4941
      %v5066 = vunpack.c.l.b16 %v4945
      %v5067 = vunpack.c.l.b16 %v4948
      %v5068 = vunpack.c.l.b16 %v4952
      %v5069 = vunpack.c.l.b16 %v4955
      %v5070 = vunpack.c.l.b16 %v4959
      %v5071 = vunpack.c.l.b16 %v4962
      %v5072 = vunpack.c.l.b16 %v4966
      %v5073 = vunpack.c.l.b16 %v4969
      %v5074 = vunpack.c.l.b16 %v4973
      %v5075 = vunpack.c.l.b16 %v4976
      %v5076 = vunpack.c.l.b16 %v4980
      %v5077 = vunpack.c.l.b16 %v4983
      %v5078 = vunpack.c.l.b16 %v4987
      %v5079 = vunpack.c.l.b16 %v4990
      %v5080 = vunpack.c.l.b16 %v4994
      %v5081 = vunpack.c.l.b16 %v4997
      %v5082 = vunpack.c.l.b16 %v5001
      %v5083 = vunpack.c.l.b16 %v5004
      %v5084 = vunpack.c.l.b16 %v5008
      %v5085 = vunpack.c.l.b16 %v5011
      %v5086 = vunpack.c.l.b16 %v5015
      %v5087 = vunpack.c.l.b16 %v5018
      %v5088 = vunpack.c.l.b16 %v5022
      %v5089 = vunpack.c.l.b16 %v5025
      %v5090 = vunpack.c.l.b16 %v5029
      %v5091 = vunpack.c.l.b16 %v5032
      %v5092 = vunpack.c.l.b16 %v5036
      %v5093 = vunpack.c.l.b16 %v5039
      %v5094 = vunpack.c.l.b16 %v5043
      %v5095 = vunpack.c.l.b16 %v5046
      %v5096 = vpack.c.b16 %v5065, %v5064
      %v5097 = vpack.c.b16 %v5067, %v5066
      %v5098 = vpack.c.b16 %v5069, %v5068
      %v5099 = vpack.c.b16 %v5071, %v5070
      %v5100 = vpack.c.b16 %v5073, %v5072
      %v5101 = vpack.c.b16 %v5075, %v5074
      %v5102 = vpack.c.b16 %v5077, %v5076
      %v5103 = vpack.c.b16 %v5079, %v5078
      %v5104 = vpack.c.b16 %v5081, %v5080
      %v5105 = vpack.c.b16 %v5083, %v5082
      %v5106 = vpack.c.b16 %v5085, %v5084
      %v5107 = vpack.c.b16 %v5087, %v5086
      %v5108 = vpack.c.b16 %v5089, %v5088
      %v5109 = vpack.c.b16 %v5091, %v5090
      %v5110 = vpack.c.b16 %v5093, %v5092
      %v5111 = vpack.c.b16 %v5095, %v5094
      %v5144 = vunpack.c.l.b16 %v5048
      %v5145 = vunpack.c.l.b16 %v5049
      %v5146 = vunpack.c.l.b16 %v5050
      %v5147 = vunpack.c.l.b16 %v5051
      %v5148 = vunpack.c.l.b16 %v5052
      %v5149 = vunpack.c.l.b16 %v5053
      %v5150 = vunpack.c.l.b16 %v5054
      %v5151 = vunpack.c.l.b16 %v5055
      %v5152 = vunpack.c.l.b16 %v5056
      %v5153 = vunpack.c.l.b16 %v5057
      %v5154 = vunpack.c.l.b16 %v5058
      %v5155 = vunpack.c.l.b16 %v5059
      %v5156 = vunpack.c.l.b16 %v5060
      %v5157 = vunpack.c.l.b16 %v5061
      %v5158 = vunpack.c.l.b16 %v5062
      %v5159 = vunpack.c.l.b16 %v5063
      %v5160 = vpack.c.b16 %v5145, %v5144
      %v5161 = vpack.c.b16 %v5147, %v5146
      %v5162 = vpack.c.b16 %v5149, %v5148
      %v5163 = vpack.c.b16 %v5151, %v5150
      %v5164 = vpack.c.b16 %v5153, %v5152
      %v5165 = vpack.c.b16 %v5155, %v5154
      %v5166 = vpack.c.b16 %v5157, %v5156
      %v5167 = vpack.c.b16 %v5159, %v5158
      %5176 = vmatpush.bf16.msra.mxu0 %v5167
      %5177 = vmatpush.bf16.msra.mxu0 %v5166
      %5178 = vmatpush.bf16.msra.mxu0 %v5165
      %5179 = vmatpush.bf16.msra.mxu0 %v5164
      %5180 = vmatpush.bf16.msra.mxu0 %v5163
      %5181 = vmatpush.bf16.msra.mxu0 %v5162
      %5182 = vmatpush.bf16.msra.mxu0 %v5161
      %5183 = vmatpush.bf16.msra.mxu0 %v5160
      %5184 = vmatmul.bf16.gmra.mxu0 %v5096
      %v5185 = vpop.f32.mrf.mxu0
      %v5186 = vadd.f32 0.0, %v5185
      %v5187 = vpop.f32.mrf.mxu0
      %v5188 = vadd.f32 0.0, %v5187
      %5189 = vmatmul.bf16.gmra.mxu0 %v5097
      %v5190 = vpop.f32.mrf.mxu0
      %v5191 = vadd.f32 0.0, %v5190
      %v5192 = vpop.f32.mrf.mxu0
      %v5193 = vadd.f32 0.0, %v5192
      %5194 = vmatmul.bf16.gmra.mxu0 %v5098
      %v5195 = vpop.f32.mrf.mxu0
      %v5196 = vadd.f32 0.0, %v5195
      %v5197 = vpop.f32.mrf.mxu0
      %v5198 = vadd.f32 0.0, %v5197
      %5199 = vmatmul.bf16.gmra.mxu0 %v5099
      %v5200 = vpop.f32.mrf.mxu0
      %v5201 = vadd.f32 0.0, %v5200
      %v5202 = vpop.f32.mrf.mxu0
      %v5203 = vadd.f32 0.0, %v5202
      %5204 = vmatmul.bf16.gmra.mxu0 %v5100
      %v5205 = vpop.f32.mrf.mxu0
      %v5206 = vadd.f32 0.0, %v5205
      %v5207 = vpop.f32.mrf.mxu0
      %v5208 = vadd.f32 0.0, %v5207
      %5209 = vmatmul.bf16.gmra.mxu0 %v5101
      %v5210 = vpop.f32.mrf.mxu0
      %v5211 = vadd.f32 0.0, %v5210
      %v5212 = vpop.f32.mrf.mxu0
      %v5213 = vadd.f32 0.0, %v5212
      %5214 = vmatmul.bf16.gmra.mxu0 %v5102
      %v5215 = vpop.f32.mrf.mxu0
      %v5216 = vadd.f32 0.0, %v5215
      %v5217 = vpop.f32.mrf.mxu0
      %v5218 = vadd.f32 0.0, %v5217
      %5219 = vmatmul.bf16.gmra.mxu0 %v5103
      %v5220 = vpop.f32.mrf.mxu0
      %v5221 = vadd.f32 0.0, %v5220
      %v5222 = vpop.f32.mrf.mxu0
      %v5223 = vadd.f32 0.0, %v5222
      %5224 = vmatmul.bf16.gmra.mxu0 %v5104
      %v5225 = vpop.f32.mrf.mxu0
      %v5226 = vadd.f32 0.0, %v5225
      %v5227 = vpop.f32.mrf.mxu0
      %v5228 = vadd.f32 0.0, %v5227
      %5229 = vmatmul.bf16.gmra.mxu0 %v5105
      %v5230 = vpop.f32.mrf.mxu0
      %v5231 = vadd.f32 0.0, %v5230
      %v5232 = vpop.f32.mrf.mxu0
      %v5233 = vadd.f32 0.0, %v5232
      %5234 = vmatmul.bf16.gmra.mxu0 %v5106
      %v5235 = vpop.f32.mrf.mxu0
      %v5236 = vadd.f32 0.0, %v5235
      %v5237 = vpop.f32.mrf.mxu0
      %v5238 = vadd.f32 0.0, %v5237
      %5239 = vmatmul.bf16.gmra.mxu0 %v5107
      %v5240 = vpop.f32.mrf.mxu0
      %v5241 = vadd.f32 0.0, %v5240
      %v5242 = vpop.f32.mrf.mxu0
      %v5243 = vadd.f32 0.0, %v5242
      %5244 = vmatmul.bf16.gmra.mxu0 %v5108
      %v5245 = vpop.f32.mrf.mxu0
      %v5246 = vadd.f32 0.0, %v5245
      %v5247 = vpop.f32.mrf.mxu0
      %v5248 = vadd.f32 0.0, %v5247
      %5249 = vmatmul.bf16.gmra.mxu0 %v5109
      %v5250 = vpop.f32.mrf.mxu0
      %v5251 = vadd.f32 0.0, %v5250
      %v5252 = vpop.f32.mrf.mxu0
      %v5253 = vadd.f32 0.0, %v5252
      %5254 = vmatmul.bf16.gmra.mxu0 %v5110
      %v5255 = vpop.f32.mrf.mxu0
      %v5256 = vadd.f32 0.0, %v5255
      %v5257 = vpop.f32.mrf.mxu0
      %v5258 = vadd.f32 0.0, %v5257
      %5259 = vmatmul.bf16.gmra.mxu0 %v5111
      %v5260 = vpop.f32.mrf.mxu0
      %v5261 = vadd.f32 0.0, %v5260
      %v5262 = vpop.f32.mrf.mxu0
      %v5263 = vadd.f32 0.0, %v5262
      %5264 = vdwg.mxu0
      %v5265 = vadd.f32 %v4839, %v5186
      %v5266 = vadd.f32 %v4840, %v5188
      %v5267 = vadd.f32 %v4841, %v5191
      %v5268 = vadd.f32 %v4842, %v5193
      %v5269 = vadd.f32 %v4843, %v5196
      %v5270 = vadd.f32 %v4844, %v5198
      %v5271 = vadd.f32 %v4845, %v5201
      %v5272 = vadd.f32 %v4846, %v5203
      %v5273 = vadd.f32 %v4847, %v5206
      %v5274 = vadd.f32 %v4848, %v5208
      %v5275 = vadd.f32 %v4849, %v5211
      %v5276 = vadd.f32 %v4850, %v5213
      %v5277 = vadd.f32 %v4851, %v5216
      %v5278 = vadd.f32 %v4852, %v5218
      %v5279 = vadd.f32 %v4853, %v5221
      %v5280 = vadd.f32 %v4854, %v5223
      %v5281 = vadd.f32 %v4855, %v5226
      %v5282 = vadd.f32 %v4856, %v5228
      %v5283 = vadd.f32 %v4857, %v5231
      %v5284 = vadd.f32 %v4858, %v5233
      %v5285 = vadd.f32 %v4859, %v5236
      %v5286 = vadd.f32 %v4860, %v5238
      %v5287 = vadd.f32 %v4861, %v5241
      %v5288 = vadd.f32 %v4862, %v5243
      %v5289 = vadd.f32 %v4863, %v5246
      %v5290 = vadd.f32 %v4864, %v5248
      %v5291 = vadd.f32 %v4865, %v5251
      %v5292 = vadd.f32 %v4866, %v5253
      %v5293 = vadd.f32 %v4867, %v5256
      %v5294 = vadd.f32 %v4868, %v5258
      %v5295 = vadd.f32 %v4869, %v5261
      %v5296 = vadd.f32 %v4870, %v5263
      %v5297 = vadd.f32 %v5265, %v5266
      %v5298 = vadd.f32 %v5297, %v5267
      %v5299 = vadd.f32 %v5298, %v5268
      %v5300 = vadd.f32 %v5299, %v5269
      %v5301 = vadd.f32 %v5300, %v5270
      %v5302 = vadd.f32 %v5301, %v5271
      %v5303 = vadd.f32 %v5302, %v5272
      %v5304 = vadd.f32 %v5303, %v5273
      %v5305 = vadd.f32 %v5304, %v5274
      %v5306 = vadd.f32 %v5305, %v5275
      %v5307 = vadd.f32 %v5306, %v5276
      %v5308 = vadd.f32 %v5307, %v5277
      %v5309 = vadd.f32 %v5308, %v5278
      %v5310 = vadd.f32 %v5309, %v5279
      %v5311 = vadd.f32 %v5310, %v5280
      %v5312 = vadd.f32 %v5311, %v5281
      %v5313 = vadd.f32 %v5312, %v5282
      %v5314 = vadd.f32 %v5313, %v5283
      %v5315 = vadd.f32 %v5314, %v5284
      %v5316 = vadd.f32 %v5315, %v5285
      %v5317 = vadd.f32 %v5316, %v5286
      %v5318 = vadd.f32 %v5317, %v5287
      %v5319 = vadd.f32 %v5318, %v5288
      %v5320 = vadd.f32 %v5319, %v5289
      %v5321 = vadd.f32 %v5320, %v5290
      %v5322 = vadd.f32 %v5321, %v5291
      %v5323 = vadd.f32 %v5322, %v5292
      %v5324 = vadd.f32 %v5323, %v5293
      %v5325 = vadd.f32 %v5324, %v5294
      %v5326 = vadd.f32 %v5325, %v5295
      %v5327 = vadd.f32 %v5326, %v5296
      %v5328 = vrot.slane %v5327, 4
      %v5329 = vadd.f32 %v5327, %v5328
      %v5330 = vrot.slane %v5329, 2
      %v5331 = vadd.f32 %v5329, %v5330
      %v5332 = vrot.slane %v5331, 1
      %v5333 = vadd.f32 %v5331, %v5332
      %v5334 = vmul.f32 %v5265, %v5265
      %v5335 = vmul.f32 %v5266, %v5266
      %v5336 = vmul.f32 %v5267, %v5267
      %v5337 = vmul.f32 %v5268, %v5268
      %v5338 = vmul.f32 %v5269, %v5269
      %v5339 = vmul.f32 %v5270, %v5270
      %v5340 = vmul.f32 %v5271, %v5271
      %v5341 = vmul.f32 %v5272, %v5272
      %v5342 = vmul.f32 %v5273, %v5273
      %v5343 = vmul.f32 %v5274, %v5274
      %v5344 = vmul.f32 %v5275, %v5275
      %v5345 = vmul.f32 %v5276, %v5276
      %v5346 = vmul.f32 %v5277, %v5277
      %v5347 = vmul.f32 %v5278, %v5278
      %v5348 = vmul.f32 %v5279, %v5279
      %v5349 = vmul.f32 %v5280, %v5280
      %v5350 = vmul.f32 %v5281, %v5281
      %v5351 = vmul.f32 %v5282, %v5282
      %v5352 = vmul.f32 %v5283, %v5283
      %v5353 = vmul.f32 %v5284, %v5284
      %v5354 = vmul.f32 %v5285, %v5285
      %v5355 = vmul.f32 %v5286, %v5286
      %v5356 = vmul.f32 %v5287, %v5287
      %v5357 = vmul.f32 %v5288, %v5288
      %v5358 = vmul.f32 %v5289, %v5289
      %v5359 = vmul.f32 %v5290, %v5290
      %v5360 = vmul.f32 %v5291, %v5291
      %v5361 = vmul.f32 %v5292, %v5292
      %v5362 = vmul.f32 %v5293, %v5293
      %v5363 = vmul.f32 %v5294, %v5294
      %v5364 = vmul.f32 %v5295, %v5295
      %v5365 = vmul.f32 %v5296, %v5296
      %v5366 = vadd.f32 %v5334, %v5335
      %v5367 = vadd.f32 %v5366, %v5336
      %v5368 = vadd.f32 %v5367, %v5337
      %v5369 = vadd.f32 %v5368, %v5338
      %v5370 = vadd.f32 %v5369, %v5339
      %v5371 = vadd.f32 %v5370, %v5340
      %v5372 = vadd.f32 %v5371, %v5341
      %v5373 = vadd.f32 %v5372, %v5342
      %v5374 = vadd.f32 %v5373, %v5343
      %v5375 = vadd.f32 %v5374, %v5344
      %v5376 = vadd.f32 %v5375, %v5345
      %v5377 = vadd.f32 %v5376, %v5346
      %v5378 = vadd.f32 %v5377, %v5347
      %v5379 = vadd.f32 %v5378, %v5348
      %v5380 = vadd.f32 %v5379, %v5349
      %v5381 = vadd.f32 %v5380, %v5350
      %v5382 = vadd.f32 %v5381, %v5351
      %v5383 = vadd.f32 %v5382, %v5352
      %v5384 = vadd.f32 %v5383, %v5353
      %v5385 = vadd.f32 %v5384, %v5354
      %v5386 = vadd.f32 %v5385, %v5355
      %v5387 = vadd.f32 %v5386, %v5356
      %v5388 = vadd.f32 %v5387, %v5357
      %v5389 = vadd.f32 %v5388, %v5358
      %v5390 = vadd.f32 %v5389, %v5359
      %v5391 = vadd.f32 %v5390, %v5360
      %v5392 = vadd.f32 %v5391, %v5361
      %v5393 = vadd.f32 %v5392, %v5362
      %v5394 = vadd.f32 %v5393, %v5363
      %v5395 = vadd.f32 %v5394, %v5364
      %v5396 = vadd.f32 %v5395, %v5365
      %v5397 = vrot.slane %v5396, 4
      %v5398 = vadd.f32 %v5396, %v5397
      %v5399 = vrot.slane %v5398, 2
      %v5400 = vadd.f32 %v5398, %v5399
      %v5401 = vrot.slane %v5400, 1
      %v5402 = vadd.f32 %v5400, %v5401
      %vm5403 = vcmask 1040384
      %v5404 = vsel %vm5403, %v5333, %v5402
      %5405 = vst [vmem:[%s262] sm:$0x3] %v5404
      %v5406 = vpack.c.bf16 %v5265, %v5265
      %v5407 = vpack.c.bf16 %v5266, %v5266
      %v5408 = vpack.c.bf16 %v5267, %v5267
      %v5409 = vpack.c.bf16 %v5268, %v5268
      %v5410 = vpack.c.bf16 %v5269, %v5269
      %v5411 = vpack.c.bf16 %v5270, %v5270
      %v5412 = vpack.c.bf16 %v5271, %v5271
      %v5413 = vpack.c.bf16 %v5272, %v5272
      %v5414 = vpack.c.bf16 %v5273, %v5273
      %v5415 = vpack.c.bf16 %v5274, %v5274
      %v5416 = vpack.c.bf16 %v5275, %v5275
      %v5417 = vpack.c.bf16 %v5276, %v5276
      %v5418 = vpack.c.bf16 %v5277, %v5277
      %v5419 = vpack.c.bf16 %v5278, %v5278
      %v5420 = vpack.c.bf16 %v5279, %v5279
      %v5421 = vpack.c.bf16 %v5280, %v5280
      %v5422 = vpack.c.bf16 %v5281, %v5281
      %v5423 = vpack.c.bf16 %v5282, %v5282
      %v5424 = vpack.c.bf16 %v5283, %v5283
      %v5425 = vpack.c.bf16 %v5284, %v5284
      %v5426 = vpack.c.bf16 %v5285, %v5285
      %v5427 = vpack.c.bf16 %v5286, %v5286
      %v5428 = vpack.c.bf16 %v5287, %v5287
      %v5429 = vpack.c.bf16 %v5288, %v5288
      %v5430 = vpack.c.bf16 %v5289, %v5289
      %v5431 = vpack.c.bf16 %v5290, %v5290
      %v5432 = vpack.c.bf16 %v5291, %v5291
      %v5433 = vpack.c.bf16 %v5292, %v5292
      %v5434 = vpack.c.bf16 %v5293, %v5293
      %v5435 = vpack.c.bf16 %v5294, %v5294
      %v5436 = vpack.c.bf16 %v5295, %v5295
      %v5437 = vpack.c.bf16 %v5296, %v5296
      %5438 = vst [vmem:[%s258] sm:$0xf] %v5406
      %5439 = vst [vmem:[%s258 + $0x4] sm:$0xf] %v5407
      %5440 = vst [vmem:[%s258 + $0x8] sm:$0xf] %v5408
      %5441 = vst [vmem:[%s258 + $0xc] sm:$0xf] %v5409
      %5442 = vst [vmem:[%s258 + $0x10] sm:$0xf] %v5410
      %5443 = vst [vmem:[%s258 + $0x14] sm:$0xf] %v5411
      %5444 = vst [vmem:[%s258 + $0x18] sm:$0xf] %v5412
      %5445 = vst [vmem:[%s258 + $0x1c] sm:$0xf] %v5413
      %5446 = vst [vmem:[%s258 + $0x20] sm:$0xf] %v5414
      %5447 = vst [vmem:[%s258 + $0x24] sm:$0xf] %v5415
      %5448 = vst [vmem:[%s258 + $0x28] sm:$0xf] %v5416
      %5449 = vst [vmem:[%s258 + $0x2c] sm:$0xf] %v5417
      %5450 = vst [vmem:[%s258 + $0x30] sm:$0xf] %v5418
      %5451 = vst [vmem:[%s258 + $0x34] sm:$0xf] %v5419
      %5452 = vst [vmem:[%s258 + $0x38] sm:$0xf] %v5420
      %5453 = vst [vmem:[%s258 + $0x3c] sm:$0xf] %v5421
      %5454 = vst [vmem:[%s258 + $0x40] sm:$0xf] %v5422
      %5455 = vst [vmem:[%s258 + $0x44] sm:$0xf] %v5423
      %5456 = vst [vmem:[%s258 + $0x48] sm:$0xf] %v5424
      %5457 = vst [vmem:[%s258 + $0x4c] sm:$0xf] %v5425
      %5458 = vst [vmem:[%s258 + $0x50] sm:$0xf] %v5426
      %5459 = vst [vmem:[%s258 + $0x54] sm:$0xf] %v5427
      %5460 = vst [vmem:[%s258 + $0x58] sm:$0xf] %v5428
      %5461 = vst [vmem:[%s258 + $0x5c] sm:$0xf] %v5429
      %5462 = vst [vmem:[%s258 + $0x60] sm:$0xf] %v5430
      %5463 = vst [vmem:[%s258 + $0x64] sm:$0xf] %v5431
      %5464 = vst [vmem:[%s258 + $0x68] sm:$0xf] %v5432
      %5465 = vst [vmem:[%s258 + $0x6c] sm:$0xf] %v5433
      %5466 = vst [vmem:[%s258 + $0x70] sm:$0xf] %v5434
      %5467 = vst [vmem:[%s258 + $0x74] sm:$0xf] %v5435
      %5468 = vst [vmem:[%s258 + $0x78] sm:$0xf] %v5436
      %5469 = vst [vmem:[%s258 + $0x7c] sm:$0xf] %v5437
      %p5470 = scmp.lt.s32.totalorder %s18, 1
      %s5471 = scalar_select %p5470, %s18, 1
      %s5472 = smul.addr %s5471, 32
      %s5473 = smul.addr %s5472, 4
      %s5474 = scalar_lea.vmem %s5, %s5473
      %p5475 = scmp.lt.s32.totalorder %s18, 1
      %s5476 = scalar_select %p5475, %s18, 1
      %s5477 = smul.addr %s5476, 2
      %s5478 = scalar_lea.vmem %s6, %s5477
      // Predicated region
      $region41: #{residual_block.4} parent=39 // pred_check
        %p5479 = pneg %p146
      $region42: #{residual_block.4} parent=39 // pred_check_branch
        %5481 = sbr.rel (%p5479) target = $region44
      $region43: #{residual_block.4} parent=39 // pred_region
        _
      $region44: #{residual_block.4} parent=39 // pred_fallthru
        _
      // Predicated region
      $region45: #{residual_block.4} parent=39 // pred_check
        %p5482 = pneg %p172
      $region46: #{residual_block.4} parent=39 // pred_check_branch
        %5484 = sbr.rel (%p5482) target = $region48
      $region47: #{residual_block.4} parent=39 // pred_region
        _
      $region48: #{residual_block.4} parent=39 // pred_fallthru
        _
    $region40: #{residual_block.4} parent=5 // pred_fallthru
      _
    %p5485 = scmp.le.s32.totalorder 2, %s13
    // Predicated region
    $region49: #{residual_block.4} parent=5 // pred_check
      %p5486 = pneg %p5485
    $region50: #{residual_block.4} parent=5 // pred_check_branch
      %5488 = sbr.rel (%p5486) target = $region52
    $region51: #{residual_block.4} parent=5 // pred_region
      %s5489 = ssub.s32 %s13, 2
      // Predicated region
      $region53: #{residual_block.4} parent=51 // pred_check
        %p5490 = pneg %p152
      $region54: #{residual_block.4} parent=51 // pred_check_branch
        %5492 = sbr.rel (%p5490) target = $region56
      $region55: #{residual_block.4} parent=51 // pred_region
        %p5493 = scmp.lt.s32.totalorder %s19, 1
        %s5494 = scalar_select %p5493, %s19, 1
        %s5495 = smul.addr %s5494, 32
        %s5496 = smul.addr %s5495, 4
        %s5497 = scalar_lea.vmem %s5, %s5496
      $region56: #{residual_block.4} parent=51 // pred_fallthru
        _
      // Predicated region
      $region57: #{residual_block.4} parent=51 // pred_check
        %p5498 = pneg %p178
      $region58: #{residual_block.4} parent=51 // pred_check_branch
        %5500 = sbr.rel (%p5498) target = $region60
      $region59: #{residual_block.4} parent=51 // pred_region
        %p5501 = scmp.lt.s32.totalorder %s19, 1
        %s5502 = scalar_select %p5501, %s19, 1
        %s5503 = smul.addr %s5502, 2
        %s5504 = scalar_lea.vmem %s6, %s5503
      $region60: #{residual_block.4} parent=51 // pred_fallthru
        _
    $region52: #{residual_block.4} parent=5 // pred_fallthru
      _
  $region6: #{residual_block.4} parent=0 // loop_footer
    %s17 = sadd.s32 1, %s13
  $region7: #{residual_block.4} parent=0 // loop_footer_branch
    %12 = sbr.rel target = $region3
  $region8: #{residual_block.4} parent=0 // loop_exit
    _

</llo_original>
